<compile_context>
chip_gen: v7x
topology: tpu7x:2x2x1
jax: 0.10.0
libtpu: 0.0.40
codegen_flags: <defaults>
</compile_context>

<pallas_src>
import jax
import jax.numpy as jnp
from jax import lax
from jax.experimental import pallas as pl
from jax.experimental.pallas import tpu as pltpu

EPS = 1e-5


# --------------------------------------------------------------------------
# Generation-aware VMEM budgeting (v7x: 64 MiB physical, v5e/v6e: 128 MiB).
# --------------------------------------------------------------------------
def _vmem_limit_bytes():
    cap = 64 * 1024 * 1024                      # conservative default (v7x)
    try:
        info_cap = int(pltpu.get_tpu_info().vmem_capacity_bytes)
        if info_cap > 0:
            cap = info_cap
    except Exception:
        pass
    return int(cap * 0.75)                      # ~48 MiB v7x, ~96 MiB v5e/v6e


def _compiler_params(vmem_limit, semantics):
    return pltpu.CompilerParams(
        dimension_semantics=semantics,
        vmem_limit_bytes=vmem_limit,
    )


def _full_spec(a):
    """Whole-array VMEM block, invariant to the (1-D) grid index."""
    nd = a.ndim
    return pl.BlockSpec(a.shape, lambda n: (0,) * nd)


# --------------------------------------------------------------------------
# Shared math helpers (run inside kernels).
# --------------------------------------------------------------------------
def _fold_bn(o2d, gamma, beta, count):
    """Training-mode BN (biased batch var) folded into one per-channel FMA.

    o2d: (M, C) f32 conv output over the FULL batch; gamma/beta: (1, C) f32.
    One-pass variance (E[x^2]-mean^2) in f32; fine at the tolerance used.
    """
    s = jnp.sum(o2d, axis=0, keepdims=True)
    sq = jnp.sum(o2d * o2d, axis=0, keepdims=True)
    mean = s / count
    var = sq / count - mean * mean
    scale = gamma * lax.rsqrt(var + EPS)
    shift = beta - mean * scale
    return scale, shift


def _stats_rows(o2d):
    """Per-tile partial BN statistics: (2, C) = [sum, sum_of_squares]."""
    s = jnp.sum(o2d, axis=0, keepdims=True)
    sq = jnp.sum(o2d * o2d, axis=0, keepdims=True)
    return jnp.concatenate([s, sq], axis=0)


def _scale_shift(stats, gamma, beta, count):
    """Fold partial (sum, sumsq) tiles into per-channel BN scale/shift."""
    s = jnp.sum(stats[:, 0, :], axis=0)
    sq = jnp.sum(stats[:, 1, :], axis=0)
    mean = s / count
    var = sq / count - mean * mean
    scale = gamma * lax.rsqrt(var + EPS)
    shift = beta - mean * scale
    return (scale.reshape(1, -1).astype(jnp.float32),
            shift.reshape(1, -1).astype(jnp.float32))


def _conv3x3_from_pad(pad_ref, w2_ref, B, H, W, Cw):
    """3x3 SAME conv as 9 accumulating MXU dots (no materialized im2col)."""
    o2 = jnp.zeros((B * H * W, Cw), jnp.float32)
    for t in range(9):
        ky, kx = t // 3, t % 3
        tap = pad_ref[:, ky:ky + H, kx:kx + W, :].reshape(B * H * W, Cw)
        o2 = o2 + jnp.dot(tap.astype(jnp.bfloat16), w2_ref[t],
                          preferred_element_type=jnp.float32)
    return o2


def _fill_pad(pad_ref, interior, B, H, W, Cw):
    """Zero only the 1-pixel halo of the padded scratch, then write interior."""
    pad_ref[:, 0:1, :, :] = jnp.zeros((B, 1, W + 2, Cw), pad_ref.dtype)
    pad_ref[:, H + 1:H + 2, :, :] = jnp.zeros((B, 1, W + 2, Cw), pad_ref.dtype)
    pad_ref[:, 1:H + 1, 0:1, :] = jnp.zeros((B, H, 1, Cw), pad_ref.dtype)
    pad_ref[:, 1:H + 1, W + 1:W + 2, :] = jnp.zeros((B, H, 1, Cw), pad_ref.dtype)
    pad_ref[:, 1:H + 1, 1:W + 1, :] = interior.astype(pad_ref.dtype)


# --------------------------------------------------------------------------
# FUSED path: whole Bottleneck in one kernel (grid=(1,), everything in VMEM).
# --------------------------------------------------------------------------
def _fused_kernel(x_ref, w1_ref, w2_ref, w3_ref, gb1_ref, gb2_ref, gb3_ref,
                  y_ref, pad_ref):
    N, H, W, Cin = x_ref.shape
    width = w1_ref.shape[1]
    Cout = w3_ref.shape[1]
    cnt = float(N * H * W)

    # conv1 (1x1): one whole-batch MXU matmul.
    x2d = x_ref[...].reshape(N * H * W, Cin)                      # f32
    o1 = jnp.dot(x2d.astype(jnp.bfloat16), w1_ref[...],
                 preferred_element_type=jnp.float32)              # (NHW, width)

    # BN1 + ReLU (batch statistics computed in-VMEM, f32).
    sc1, sh1 = _fold_bn(o1, gb1_ref[0:1, :], gb1_ref[1:2, :], cnt)
    a1 = jnp.maximum(o1 * sc1 + sh1, 0.0)

    # conv2 (3x3, SAME): zero-haloed scratch + 9 accumulating dots.
    _fill_pad(pad_ref, a1.reshape(N, H, W, width), N, H, W, width)
    o2 = _conv3x3_from_pad(pad_ref, w2_ref, N, H, W, width)

    # BN2 + ReLU.
    sc2, sh2 = _fold_bn(o2, gb2_ref[0:1, :], gb2_ref[1:2, :], cnt)
    a2 = jnp.maximum(o2 * sc2 + sh2, 0.0).astype(jnp.bfloat16)

    # conv3 (1x1).
    o3 = jnp.dot(a2, w3_ref[...], preferred_element_type=jnp.float32)  # (NHW, Cout)

    # BN3 + residual + final ReLU (lane-dense 128-channel f32 store).
    sc3, sh3 = _fold_bn(o3, gb3_ref[0:1, :], gb3_ref[1:2, :], cnt)
    y = o3 * sc3 + sh3 + x2d
    y_ref[...] = jnp.maximum(y, 0.0).reshape(N, H, W, Cout).astype(y_ref.dtype)


# --------------------------------------------------------------------------
# PIPELINE path kernels (4 passes, batch-tiled grid, bf16 intermediates).
# --------------------------------------------------------------------------
def _conv1_kernel(x_ref, w1_ref, o1_ref, st_ref):
    B, H, W, Cin = x_ref.shape
    x2d = x_ref[...].reshape(B * H * W, Cin).astype(jnp.bfloat16)
    o1 = jnp.dot(x2d, w1_ref[...], preferred_element_type=jnp.float32)
    o1_ref[...] = o1.reshape(B, H, W, -1).astype(o1_ref.dtype)        # bf16 store
    st_ref[0] = _stats_rows(o1)                                        # f32 stats


def _conv2_kernel(o1_ref, sc_ref, sh_ref, w2_ref, o2_ref, st_ref, pad_ref):
    B, H, W, Cw = o1_ref.shape
    # BN1 (pre-folded scale/shift) + ReLU in f32 on the bf16-stored o1.
    a1 = jnp.maximum(o1_ref[...].astype(jnp.float32) * sc_ref[...] + sh_ref[...],
                     0.0)
    # Halo re-zeroed every step: a program_id==0 guard is unsafe with a
    # "parallel" axis on multi-TC parts (per-core scratch).
    _fill_pad(pad_ref, a1, B, H, W, Cw)
    o2 = _conv3x3_from_pad(pad_ref, w2_ref, B, H, W, Cw)
    o2_ref[...] = o2.reshape(B, H, W, Cw).astype(o2_ref.dtype)        # bf16 store
    st_ref[0] = _stats_rows(o2)


def _conv3_kernel(o2_ref, sc_ref, sh_ref, w3_ref, o3_ref, st_ref):
    B, H, W, Cw = o2_ref.shape
    a2 = jnp.maximum(o2_ref[...].astype(jnp.float32) * sc_ref[...] + sh_ref[...],
                     0.0)
    a2 = a2.reshape(B * H * W, Cw).astype(jnp.bfloat16)
    o3 = jnp.dot(a2, w3_ref[...], preferred_element_type=jnp.float32)
    o3_ref[...] = o3.reshape(B, H, W, -1).astype(o3_ref.dtype)        # f32 store
    st_ref[0] = _stats_rows(o3)


def _residual_kernel(o3_ref, x_ref, sc_ref, sh_ref, y_ref):
    y = o3_ref[...] * sc_ref[...] + sh_ref[...] + x_ref[...]
    y_ref[...] = jnp.maximum(y, 0.0).astype(y_ref.dtype)


# --------------------------------------------------------------------------
# Sizing heuristics.
# --------------------------------------------------------------------------
def _fused_working_set_bytes(N, H, W, Cin, width, Cout):
    hw = N * H * W
    acts = hw * (4 * Cin + 4 * Cout + 4 * 3 * width + 4 * 2 * Cout)
    pad = N * (H + 2) * (W + 2) * width * 4
    wts = 2 * (Cin * width + 9 * width * width + width * Cout)
    return acts + pad + wts


def _pipeline_step_bytes(b, H, W, width, Cin, Cout):
    hw = b * H * W
    heaviest = max(
        2 * width * hw + 2 * width * hw,                 # pass 2 in/out (bf16)
        2 * width * hw + 4 * Cout * hw,                  # pass 3
        4 * Cout * hw + 4 * Cin * hw + 4 * Cout * hw,    # pass 4
    )
    pad = b * (H + 2) * (W + 2) * width * 4
    return 2 * heaviest + pad                            # x2: double buffering


def _pick_b_tile(N, H, W, width, Cin, Cout, budget):
    best = 1
    for d in range(1, N + 1):
        if N % d:
            continue
        if (N // d) < min(N, 8):      # keep >=8 grid steps when possible (v7x)
            continue
        if _pipeline_step_bytes(d, H, W, width, Cin, Cout) <= budget // 2:
            best = d
    return best


# --------------------------------------------------------------------------
# Wrapper.
# --------------------------------------------------------------------------
def bottleneck_pallas_nhwc(x_nhwc, w1_pt, w2_pt, w3_pt, gammas, betas,
                           force_pipeline=False):
    """Bottleneck forward (stride=1, groups=1, dilation=1, downsample=None).

    x_nhwc : (N, H, W, Cin) float32 with Cin == planes * 4
    w*_pt  : PyTorch-layout conv weights (O, I, kH, kW), float32
    gammas, betas : per-BN (C,) affine params for (bn1, bn2, bn3)
    Returns (N, H, W, Cout) float32.
    """
    N, H, W, Cin = x_nhwc.shape
    width = w1_pt.shape[0]
    Cout = w3_pt.shape[0]
    assert Cin == Cout, "downsample=None requires inplanes == planes*expansion"

    # Matmul-friendly bf16 weight layouts (f32 MXU accumulation in-kernel).
    w1 = jnp.transpose(w1_pt[:, :, 0, 0], (1, 0)).astype(jnp.bfloat16)   # (Cin, width)
    w2 = jnp.transpose(w2_pt, (2, 3, 1, 0)).reshape(9, width, width)     # per-tap (I, O)
    w2 = w2.astype(jnp.bfloat16)
    w3 = jnp.transpose(w3_pt[:, :, 0, 0], (1, 0)).astype(jnp.bfloat16)   # (width, Cout)

    vmem_limit = _vmem_limit_bytes()
    count = float(N * H * W)

    fused_ok = (_fused_working_set_bytes(N, H, W, Cin, width, Cout) * 2
                <= vmem_limit)

    if fused_ok and not force_pipeline:
        gb = [jnp.stack([gammas[i].astype(jnp.float32),
                         betas[i].astype(jnp.float32)]) for i in range(3)]
        return pl.pallas_call(
            _fused_kernel,
            grid=(1,),
            in_specs=[_full_spec(x_nhwc), _full_spec(w1), _full_spec(w2),
                      _full_spec(w3), _full_spec(gb[0]), _full_spec(gb[1]),
                      _full_spec(gb[2])],
            out_specs=pl.BlockSpec((N, H, W, Cout), lambda n: (0, 0, 0, 0)),
            out_shape=jax.ShapeDtypeStruct((N, H, W, Cout), jnp.float32),
            scratch_shapes=[pltpu.VMEM((N, H + 2, W + 2, width), jnp.float32)],
            compiler_params=_compiler_params(vmem_limit, ("arbitrary",)),
        )(x_nhwc, w1, w2, w3, gb[0], gb[1], gb[2])

    # ------------------ 4-pass pipeline (large working sets) ----------------
    b_tile = _pick_b_tile(N, H, W, width, Cin, Cout, vmem_limit)
    steps = N // b_tile
    cparams = _compiler_params(vmem_limit, ("parallel",))

    tile4 = lambda C: pl.BlockSpec((b_tile, H, W, C), lambda n: (n, 0, 0, 0))
    stat_spec = lambda C: pl.BlockSpec((1, 2, C), lambda n: (n, 0, 0))

    # pass 1: conv1 (1x1) + BN1 partial stats; o1 stored bf16.
    o1, st1 = pl.pallas_call(
        _conv1_kernel,
        grid=(steps,),
        in_specs=[tile4(Cin), _full_spec(w1)],
        out_specs=(tile4(width), stat_spec(width)),
        out_shape=(jax.ShapeDtypeStruct((N, H, W, width), jnp.bfloat16),
                   jax.ShapeDtypeStruct((steps, 2, width), jnp.float32)),
        compiler_params=cparams,
    )(x_nhwc, w1)
    sc1, sh1 = _scale_shift(st1, gammas[0], betas[0], count)

    # pass 2: BN1+ReLU -> conv2 (3x3, 9 accumulating dots) + BN2 stats; o2 bf16.
    o2, st2 = pl.pallas_call(
        _conv2_kernel,
        grid=(steps,),
        in_specs=[tile4(width), _full_spec(sc1), _full_spec(sh1), _full_spec(w2)],
        out_specs=(tile4(width), stat_spec(width)),
        out_shape=(jax.ShapeDtypeStruct((N, H, W, width), jnp.bfloat16),
                   jax.ShapeDtypeStruct((steps, 2, width), jnp.float32)),
        scratch_shapes=[pltpu.VMEM((b_tile, H + 2, W + 2, width), jnp.float32)],
        compiler_params=cparams,
    )(o1, sc1, sh1, w2)
    sc2, sh2 = _scale_shift(st2, gammas[1], betas[1], count)

    # pass 3: BN2+ReLU -> conv3 (1x1) + BN3 stats; o3 kept f32 for the residual.
    o3, st3 = pl.pallas_call(
        _conv3_kernel,
        grid=(steps,),
        in_specs=[tile4(width), _full_spec(sc2), _full_spec(sh2), _full_spec(w3)],
        out_specs=(tile4(Cout), stat_spec(Cout)),
        out_shape=(jax.ShapeDtypeStruct((N, H, W, Cout), jnp.float32),
                   jax.ShapeDtypeStruct((steps, 2, Cout), jnp.float32)),
        compiler_params=cparams,
    )(o2, sc2, sh2, w3)
    sc3, sh3 = _scale_shift(st3, gammas[2], betas[2], count)

    # pass 4: BN3 + residual add + final ReLU (lane-dense 128-channel store).
    y = pl.pallas_call(
        _residual_kernel,
        grid=(steps,),
        in_specs=[tile4(Cout), tile4(Cin), _full_spec(sc3), _full_spec(sh3)],
        out_specs=tile4(Cout),
        out_shape=jax.ShapeDtypeStruct((N, H, W, Cout), jnp.float32),
        compiler_params=cparams,
    )(o3, x_nhwc, sc3, sh3)
    return y


# --------------------------- pure-JAX reference -----------------------------
def bottleneck_ref_nhwc(x, w1_pt, w2_pt, w3_pt, gammas, betas):
    def bn(y, g, b):
        m = jnp.mean(y, axis=(0, 1, 2), keepdims=True)
        v = jnp.mean((y - m) ** 2, axis=(0, 1, 2), keepdims=True)   # biased var
        return (y - m) * lax.rsqrt(v + EPS) * g.reshape(1, 1, 1, -1) \
            + b.reshape(1, 1, 1, -1)

    o = jnp.einsum('nhwc,oc->nhwo', x, w1_pt[:, :, 0, 0])
    o = jax.nn.relu(bn(o, gammas[0], betas[0]))
    o = lax.conv_general_dilated(
        o, jnp.transpose(w2_pt, (2, 3, 1, 0)), (1, 1), 'SAME',
        dimension_numbers=('NHWC', 'HWIO', 'NHWC'))
    o = jax.nn.relu(bn(o, gammas[1], betas[1]))
    o = jnp.einsum('nhwc,oc->nhwo', o, w3_pt[:, :, 0, 0])
    o = bn(o, gammas[2], betas[2])
    return jax.nn.relu(o + x)


if __name__ == "__main__":
    # Small but lane-friendly Bottleneck: planes=32 -> width=32, Cin=Cout=128.
    N, H, W = 2, 16, 16
    planes = 32
    width = planes            # base_width=64, groups=1 -> width = planes
    Cin = planes * 4          # downsample=None => inplanes == planes*expansion
    Cout = planes * 4

    key = jax.random.PRNGKey(0)
    kx, k1, k2, k3, kg, kb = jax.random.split(key, 6)

    # PyTorch-convention NCHW input and (O, I, kH, kW) conv weights.
    x_nchw = jax.random.normal(kx, (N, Cin, H, W), dtype=jnp.float32)
    w1_pt = jax.random.normal(k1, (width, Cin, 1, 1), jnp.float32) / jnp.sqrt(Cin)
    w2_pt = jax.random.normal(k2, (width, width, 3, 3), jnp.float32) / jnp.sqrt(9.0 * width)
    w3_pt = jax.random.normal(k3, (Cout, width, 1, 1), jnp.float32) / jnp.sqrt(width)

    gkeys = jax.random.split(kg, 3)
    bkeys = jax.random.split(kb, 3)
    dims = (width, width, Cout)
    gammas = tuple(1.0 + 0.1 * jax.random.normal(gkeys[i], (dims[i],), jnp.float32)
                   for i in range(3))
    betas = tuple(0.1 * jax.random.normal(bkeys[i], (dims[i],), jnp.float32)
                  for i in range(3))

    # Kernels work channels-last; convert once at the test boundary.
    x_nhwc = jnp.transpose(x_nchw, (0, 2, 3, 1))

    ref = jax.block_until_ready(
        bottleneck_ref_nhwc(x_nhwc, w1_pt, w2_pt, w3_pt, gammas, betas))

    # Fused single-kernel path (auto-selected at this size).
    out_fused = jax.block_until_ready(
        bottleneck_pallas_nhwc(x_nhwc, w1_pt, w2_pt, w3_pt, gammas, betas))
    assert out_fused.shape == (N, H, W, Cout)
    err_f = float(jnp.max(jnp.abs(out_fused - ref)))
    assert jnp.allclose(out_fused, ref, rtol=3e-2, atol=3e-2), \
        f"fused path max abs err {err_f}"

    # 4-pass pipeline path (used for working sets that exceed VMEM).
    out_pipe = jax.block_until_ready(
        bottleneck_pallas_nhwc(x_nhwc, w1_pt, w2_pt, w3_pt, gammas, betas,
                               force_pipeline=True))
    assert out_pipe.shape == (N, H, W, Cout)
    err_p = float(jnp.max(jnp.abs(out_pipe - ref)))
    assert jnp.allclose(out_pipe, ref, rtol=3e-2, atol=3e-2), \
        f"pipeline path max abs err {err_p}"

    print("KERNEL_OK")
</pallas_src>

<mosaic_0001>
module attributes {stable_mosaic.version = 11 : i64} {
  func.func @_fused_kernel(%arg0: i32, %arg1: memref<2x16x16x128xf32, #tpu.memory_space<vmem>>, %arg2: memref<128x32xbf16, #tpu.memory_space<vmem>>, %arg3: memref<9x32x32xbf16, #tpu.memory_space<vmem>>, %arg4: memref<32x128xbf16, #tpu.memory_space<vmem>>, %arg5: memref<2x32xf32, #tpu.memory_space<vmem>>, %arg6: memref<2x32xf32, #tpu.memory_space<vmem>>, %arg7: memref<2x128xf32, #tpu.memory_space<vmem>>, %arg8: memref<2x16x16x128xf32, #tpu.memory_space<vmem>>, %arg9: memref<2x18x18x32xf32, #tpu.memory_space<vmem>>) attributes {dimension_semantics = [#tpu.dimension_semantics<arbitrary>], iteration_bounds = array<i64: 1>, scalar_prefetch = 0 : i64, scratch_operands = 1 : i64, tpu.core_type = #tpu.core_type<tc>, window_params = [{pipeline_mode = #tpu.pipeline_mode<synchronous>, transform_indices = @transform_0, window_bounds = array<i64: 2, 16, 16, 128>}, {pipeline_mode = #tpu.pipeline_mode<synchronous>, transform_indices = @transform_1, window_bounds = array<i64: 128, 32>}, {pipeline_mode = #tpu.pipeline_mode<synchronous>, transform_indices = @transform_2, window_bounds = array<i64: 9, 32, 32>}, {pipeline_mode = #tpu.pipeline_mode<synchronous>, transform_indices = @transform_3, window_bounds = array<i64: 32, 128>}, {pipeline_mode = #tpu.pipeline_mode<synchronous>, transform_indices = @transform_4, window_bounds = array<i64: 2, 32>}, {pipeline_mode = #tpu.pipeline_mode<synchronous>, transform_indices = @transform_5, window_bounds = array<i64: 2, 32>}, {pipeline_mode = #tpu.pipeline_mode<synchronous>, transform_indices = @transform_6, window_bounds = array<i64: 2, 128>}, {pipeline_mode = #tpu.pipeline_mode<synchronous>, transform_indices = @transform_7, window_bounds = array<i64: 2, 16, 16, 128>}]} {
    %c0 = arith.constant 0 : index
    %c0_0 = arith.constant 0 : index
    %c0_1 = arith.constant 0 : index
    %c0_2 = arith.constant 0 : index
    %0 = vector.load %arg1[%c0, %c0_0, %c0_1, %c0_2] : memref<2x16x16x128xf32, #tpu.memory_space<vmem>>, vector<2x16x16x128xf32>
    %1 = vector.shape_cast %0 : vector<2x16x16x128xf32> to vector<512x128xf32>
    %2 = arith.truncf %1 : vector<512x128xf32> to vector<512x128xbf16>
    %c0_3 = arith.constant 0 : index
    %c0_4 = arith.constant 0 : index
    %3 = vector.load %arg2[%c0_3, %c0_4] : memref<128x32xbf16, #tpu.memory_space<vmem>>, vector<128x32xbf16>
    %cst = arith.constant dense<0.000000e+00> : vector<512x32xf32>
    %4 = tpu.matmul %2, %3, %cst {dimension_numbers = #tpu.dot_dimension_numbers<[1], [0], [0], [1], [0, 0, 1, 1], [], []>} : vector<512x128xbf16>, vector<128x32xbf16>, vector<512x32xf32> -> vector<512x32xf32>
    %c0_5 = arith.constant 0 : index
    %c0_6 = arith.constant 0 : index
    %5 = vector.load %arg5[%c0_5, %c0_6] : memref<2x32xf32, #tpu.memory_space<vmem>>, vector<1x32xf32>
    %c1 = arith.constant 1 : index
    %c0_7 = arith.constant 0 : index
    %6 = vector.load %arg5[%c1, %c0_7] : memref<2x32xf32, #tpu.memory_space<vmem>>, vector<1x32xf32>
    %cst_8 = arith.constant dense<0.000000e+00> : vector<32xf32>
    %7 = vector.multi_reduction <add>, %4, %cst_8 [0] : vector<512x32xf32> to vector<32xf32>
    %8 = vector.shape_cast %7 : vector<32xf32> to vector<1x32xf32>
    %9 = arith.mulf %4, %4 : vector<512x32xf32>
    %cst_9 = arith.constant dense<0.000000e+00> : vector<32xf32>
    %10 = vector.multi_reduction <add>, %9, %cst_9 [0] : vector<512x32xf32> to vector<32xf32>
    %11 = vector.shape_cast %10 : vector<32xf32> to vector<1x32xf32>
    %cst_10 = arith.constant 5.120000e+02 : f32
    %12 = vector.broadcast %cst_10 : f32 to vector<1x32xf32>
    %13 = arith.divf %8, %12 : vector<1x32xf32>
    %cst_11 = arith.constant 5.120000e+02 : f32
    %14 = vector.broadcast %cst_11 : f32 to vector<1x32xf32>
    %15 = arith.divf %11, %14 : vector<1x32xf32>
    %16 = arith.mulf %13, %13 : vector<1x32xf32>
    %17 = arith.subf %15, %16 : vector<1x32xf32>
    %cst_12 = arith.constant 9.99999974E-6 : f32
    %18 = vector.broadcast %cst_12 : f32 to vector<1x32xf32>
    %19 = arith.addf %17, %18 : vector<1x32xf32>
    %20 = math.rsqrt %19 : vector<1x32xf32>
    %21 = arith.mulf %5, %20 : vector<1x32xf32>
    %22 = arith.mulf %13, %21 : vector<1x32xf32>
    %23 = arith.subf %6, %22 : vector<1x32xf32>
    %24 = vector.broadcast %21 : vector<1x32xf32> to vector<512x32xf32>
    %25 = arith.mulf %4, %24 : vector<512x32xf32>
    %26 = vector.broadcast %23 : vector<1x32xf32> to vector<512x32xf32>
    %27 = arith.addf %25, %26 : vector<512x32xf32>
    %cst_13 = arith.constant 0.000000e+00 : f32
    %28 = vector.broadcast %cst_13 : f32 to vector<512x32xf32>
    %29 = arith.maximumf %27, %28 : vector<512x32xf32>
    %30 = vector.shape_cast %29 : vector<512x32xf32> to vector<2x16x16x32xf32>
    %cst_14 = arith.constant 0.000000e+00 : f32
    %31 = vector.broadcast %cst_14 : f32 to vector<2x1x18x32xf32>
    %c0_15 = arith.constant 0 : index
    %c0_16 = arith.constant 0 : index
    %c0_17 = arith.constant 0 : index
    %c0_18 = arith.constant 0 : index
    %32 = vector.load %arg9[%c0_15, %c0_16, %c0_17, %c0_18] : memref<2x18x18x32xf32, #tpu.memory_space<vmem>>, vector<2x1x18x32xf32>
    tpu.vector_store %arg9[%c0_15, %c0_16, %c0_17, %c0_18], %31 {strides = array<i32>} : memref<2x18x18x32xf32, #tpu.memory_space<vmem>>, vector<2x1x18x32xf32>,
    %cst_19 = arith.constant 0.000000e+00 : f32
    %33 = vector.broadcast %cst_19 : f32 to vector<2x1x18x32xf32>
    %c0_20 = arith.constant 0 : index
    %c17 = arith.constant 17 : index
    %c0_21 = arith.constant 0 : index
    %c0_22 = arith.constant 0 : index
    %34 = vector.load %arg9[%c0_20, %c17, %c0_21, %c0_22] : memref<2x18x18x32xf32, #tpu.memory_space<vmem>>, vector<2x1x18x32xf32>
    tpu.vector_store %arg9[%c0_20, %c17, %c0_21, %c0_22], %33 {strides = array<i32>} : memref<2x18x18x32xf32, #tpu.memory_space<vmem>>, vector<2x1x18x32xf32>,
    %cst_23 = arith.constant 0.000000e+00 : f32
    %35 = vector.broadcast %cst_23 : f32 to vector<2x16x1x32xf32>
    %c0_24 = arith.constant 0 : index
    %c1_25 = arith.constant 1 : index
    %c0_26 = arith.constant 0 : index
    %c0_27 = arith.constant 0 : index
    %36 = vector.load %arg9[%c0_24, %c1_25, %c0_26, %c0_27] : memref<2x18x18x32xf32, #tpu.memory_space<vmem>>, vector<2x16x1x32xf32>
    tpu.vector_store %arg9[%c0_24, %c1_25, %c0_26, %c0_27], %35 {strides = array<i32>} : memref<2x18x18x32xf32, #tpu.memory_space<vmem>>, vector<2x16x1x32xf32>,
    %cst_28 = arith.constant 0.000000e+00 : f32
    %37 = vector.broadcast %cst_28 : f32 to vector<2x16x1x32xf32>
    %c0_29 = arith.constant 0 : index
    %c1_30 = arith.constant 1 : index
    %c17_31 = arith.constant 17 : index
    %c0_32 = arith.constant 0 : index
    %38 = vector.load %arg9[%c0_29, %c1_30, %c17_31, %c0_32] : memref<2x18x18x32xf32, #tpu.memory_space<vmem>>, vector<2x16x1x32xf32>
    tpu.vector_store %arg9[%c0_29, %c1_30, %c17_31, %c0_32], %37 {strides = array<i32>} : memref<2x18x18x32xf32, #tpu.memory_space<vmem>>, vector<2x16x1x32xf32>,
    %c0_33 = arith.constant 0 : index
    %c1_34 = arith.constant 1 : index
    %c1_35 = arith.constant 1 : index
    %c0_36 = arith.constant 0 : index
    %39 = vector.load %arg9[%c0_33, %c1_34, %c1_35, %c0_36] : memref<2x18x18x32xf32, #tpu.memory_space<vmem>>, vector<2x16x16x32xf32>
    tpu.vector_store %arg9[%c0_33, %c1_34, %c1_35, %c0_36], %30 {strides = array<i32>} : memref<2x18x18x32xf32, #tpu.memory_space<vmem>>, vector<2x16x16x32xf32>,
    %cst_37 = arith.constant 0.000000e+00 : f32
    %40 = vector.broadcast %cst_37 : f32 to vector<512x32xf32>
    %c0_38 = arith.constant 0 : index
    %c0_39 = arith.constant 0 : index
    %c0_40 = arith.constant 0 : index
    %c0_41 = arith.constant 0 : index
    %41 = vector.load %arg9[%c0_38, %c0_39, %c0_40, %c0_41] : memref<2x18x18x32xf32, #tpu.memory_space<vmem>>, vector<2x16x16x32xf32>
    %42 = vector.shape_cast %41 : vector<2x16x16x32xf32> to vector<512x32xf32>
    %43 = arith.truncf %42 : vector<512x32xf32> to vector<512x32xbf16>
    %c0_42 = arith.constant 0 : index
    %c0_43 = arith.constant 0 : index
    %c0_44 = arith.constant 0 : index
    %44 = vector.load %arg3[%c0_42, %c0_43, %c0_44] : memref<9x32x32xbf16, #tpu.memory_space<vmem>>, vector<1x32x32xbf16>
    %45 = vector.shape_cast %44 : vector<1x32x32xbf16> to vector<32x32xbf16>
    %cst_45 = arith.constant dense<0.000000e+00> : vector<512x32xf32>
    %46 = tpu.matmul %43, %45, %cst_45 {dimension_numbers = #tpu.dot_dimension_numbers<[1], [0], [0], [1], [0, 0, 1, 1], [], []>} : vector<512x32xbf16>, vector<32x32xbf16>, vector<512x32xf32> -> vector<512x32xf32>
    %47 = arith.addf %40, %46 : vector<512x32xf32>
    %c0_46 = arith.constant 0 : index
    %c0_47 = arith.constant 0 : index
    %c1_48 = arith.constant 1 : index
    %c0_49 = arith.constant 0 : index
    %48 = vector.load %arg9[%c0_46, %c0_47, %c1_48, %c0_49] : memref<2x18x18x32xf32, #tpu.memory_space<vmem>>, vector<2x16x16x32xf32>
    %49 = vector.shape_cast %48 : vector<2x16x16x32xf32> to vector<512x32xf32>
    %50 = arith.truncf %49 : vector<512x32xf32> to vector<512x32xbf16>
    %c1_50 = arith.constant 1 : index
    %c0_51 = arith.constant 0 : index
    %c0_52 = arith.constant 0 : index
    %51 = vector.load %arg3[%c1_50, %c0_51, %c0_52] : memref<9x32x32xbf16, #tpu.memory_space<vmem>>, vector<1x32x32xbf16>
    %52 = vector.shape_cast %51 : vector<1x32x32xbf16> to vector<32x32xbf16>
    %cst_53 = arith.constant dense<0.000000e+00> : vector<512x32xf32>
    %53 = tpu.matmul %50, %52, %cst_53 {dimension_numbers = #tpu.dot_dimension_numbers<[1], [0], [0], [1], [0, 0, 1, 1], [], []>} : vector<512x32xbf16>, vector<32x32xbf16>, vector<512x32xf32> -> vector<512x32xf32>
    %54 = arith.addf %47, %53 : vector<512x32xf32>
    %c0_54 = arith.constant 0 : index
    %c0_55 = arith.constant 0 : index
    %c2 = arith.constant 2 : index
    %c0_56 = arith.constant 0 : index
    %55 = vector.load %arg9[%c0_54, %c0_55, %c2, %c0_56] : memref<2x18x18x32xf32, #tpu.memory_space<vmem>>, vector<2x16x16x32xf32>
    %56 = vector.shape_cast %55 : vector<2x16x16x32xf32> to vector<512x32xf32>
    %57 = arith.truncf %56 : vector<512x32xf32> to vector<512x32xbf16>
    %c2_57 = arith.constant 2 : index
    %c0_58 = arith.constant 0 : index
    %c0_59 = arith.constant 0 : index
    %58 = vector.load %arg3[%c2_57, %c0_58, %c0_59] : memref<9x32x32xbf16, #tpu.memory_space<vmem>>, vector<1x32x32xbf16>
    %59 = vector.shape_cast %58 : vector<1x32x32xbf16> to vector<32x32xbf16>
    %cst_60 = arith.constant dense<0.000000e+00> : vector<512x32xf32>
    %60 = tpu.matmul %57, %59, %cst_60 {dimension_numbers = #tpu.dot_dimension_numbers<[1], [0], [0], [1], [0, 0, 1, 1], [], []>} : vector<512x32xbf16>, vector<32x32xbf16>, vector<512x32xf32> -> vector<512x32xf32>
    %61 = arith.addf %54, %60 : vector<512x32xf32>
    %c0_61 = arith.constant 0 : index
    %c1_62 = arith.constant 1 : index
    %c0_63 = arith.constant 0 : index
    %c0_64 = arith.constant 0 : index
    %62 = vector.load %arg9[%c0_61, %c1_62, %c0_63, %c0_64] : memref<2x18x18x32xf32, #tpu.memory_space<vmem>>, vector<2x16x16x32xf32>
    %63 = vector.shape_cast %62 : vector<2x16x16x32xf32> to vector<512x32xf32>
    %64 = arith.truncf %63 : vector<512x32xf32> to vector<512x32xbf16>
    %c3 = arith.constant 3 : index
    %c0_65 = arith.constant 0 : index
    %c0_66 = arith.constant 0 : index
    %65 = vector.load %arg3[%c3, %c0_65, %c0_66] : memref<9x32x32xbf16, #tpu.memory_space<vmem>>, vector<1x32x32xbf16>
    %66 = vector.shape_cast %65 : vector<1x32x32xbf16> to vector<32x32xbf16>
    %cst_67 = arith.constant dense<0.000000e+00> : vector<512x32xf32>
    %67 = tpu.matmul %64, %66, %cst_67 {dimension_numbers = #tpu.dot_dimension_numbers<[1], [0], [0], [1], [0, 0, 1, 1], [], []>} : vector<512x32xbf16>, vector<32x32xbf16>, vector<512x32xf32> -> vector<512x32xf32>
    %68 = arith.addf %61, %67 : vector<512x32xf32>
    %c0_68 = arith.constant 0 : index
    %c1_69 = arith.constant 1 : index
    %c1_70 = arith.constant 1 : index
    %c0_71 = arith.constant 0 : index
    %69 = vector.load %arg9[%c0_68, %c1_69, %c1_70, %c0_71] : memref<2x18x18x32xf32, #tpu.memory_space<vmem>>, vector<2x16x16x32xf32>
    %70 = vector.shape_cast %69 : vector<2x16x16x32xf32> to vector<512x32xf32>
    %71 = arith.truncf %70 : vector<512x32xf32> to vector<512x32xbf16>
    %c4 = arith.constant 4 : index
    %c0_72 = arith.constant 0 : index
    %c0_73 = arith.constant 0 : index
    %72 = vector.load %arg3[%c4, %c0_72, %c0_73] : memref<9x32x32xbf16, #tpu.memory_space<vmem>>, vector<1x32x32xbf16>
    %73 = vector.shape_cast %72 : vector<1x32x32xbf16> to vector<32x32xbf16>
    %cst_74 = arith.constant dense<0.000000e+00> : vector<512x32xf32>
    %74 = tpu.matmul %71, %73, %cst_74 {dimension_numbers = #tpu.dot_dimension_numbers<[1], [0], [0], [1], [0, 0, 1, 1], [], []>} : vector<512x32xbf16>, vector<32x32xbf16>, vector<512x32xf32> -> vector<512x32xf32>
    %75 = arith.addf %68, %74 : vector<512x32xf32>
    %c0_75 = arith.constant 0 : index
    %c1_76 = arith.constant 1 : index
    %c2_77 = arith.constant 2 : index
    %c0_78 = arith.constant 0 : index
    %76 = vector.load %arg9[%c0_75, %c1_76, %c2_77, %c0_78] : memref<2x18x18x32xf32, #tpu.memory_space<vmem>>, vector<2x16x16x32xf32>
    %77 = vector.shape_cast %76 : vector<2x16x16x32xf32> to vector<512x32xf32>
    %78 = arith.truncf %77 : vector<512x32xf32> to vector<512x32xbf16>
    %c5 = arith.constant 5 : index
    %c0_79 = arith.constant 0 : index
    %c0_80 = arith.constant 0 : index
    %79 = vector.load %arg3[%c5, %c0_79, %c0_80] : memref<9x32x32xbf16, #tpu.memory_space<vmem>>, vector<1x32x32xbf16>
    %80 = vector.shape_cast %79 : vector<1x32x32xbf16> to vector<32x32xbf16>
    %cst_81 = arith.constant dense<0.000000e+00> : vector<512x32xf32>
    %81 = tpu.matmul %78, %80, %cst_81 {dimension_numbers = #tpu.dot_dimension_numbers<[1], [0], [0], [1], [0, 0, 1, 1], [], []>} : vector<512x32xbf16>, vector<32x32xbf16>, vector<512x32xf32> -> vector<512x32xf32>
    %82 = arith.addf %75, %81 : vector<512x32xf32>
    %c0_82 = arith.constant 0 : index
    %c2_83 = arith.constant 2 : index
    %c0_84 = arith.constant 0 : index
    %c0_85 = arith.constant 0 : index
    %83 = vector.load %arg9[%c0_82, %c2_83, %c0_84, %c0_85] : memref<2x18x18x32xf32, #tpu.memory_space<vmem>>, vector<2x16x16x32xf32>
    %84 = vector.shape_cast %83 : vector<2x16x16x32xf32> to vector<512x32xf32>
    %85 = arith.truncf %84 : vector<512x32xf32> to vector<512x32xbf16>
    %c6 = arith.constant 6 : index
    %c0_86 = arith.constant 0 : index
    %c0_87 = arith.constant 0 : index
    %86 = vector.load %arg3[%c6, %c0_86, %c0_87] : memref<9x32x32xbf16, #tpu.memory_space<vmem>>, vector<1x32x32xbf16>
    %87 = vector.shape_cast %86 : vector<1x32x32xbf16> to vector<32x32xbf16>
    %cst_88 = arith.constant dense<0.000000e+00> : vector<512x32xf32>
    %88 = tpu.matmul %85, %87, %cst_88 {dimension_numbers = #tpu.dot_dimension_numbers<[1], [0], [0], [1], [0, 0, 1, 1], [], []>} : vector<512x32xbf16>, vector<32x32xbf16>, vector<512x32xf32> -> vector<512x32xf32>
    %89 = arith.addf %82, %88 : vector<512x32xf32>
    %c0_89 = arith.constant 0 : index
    %c2_90 = arith.constant 2 : index
    %c1_91 = arith.constant 1 : index
    %c0_92 = arith.constant 0 : index
    %90 = vector.load %arg9[%c0_89, %c2_90, %c1_91, %c0_92] : memref<2x18x18x32xf32, #tpu.memory_space<vmem>>, vector<2x16x16x32xf32>
    %91 = vector.shape_cast %90 : vector<2x16x16x32xf32> to vector<512x32xf32>
    %92 = arith.truncf %91 : vector<512x32xf32> to vector<512x32xbf16>
    %c7 = arith.constant 7 : index
    %c0_93 = arith.constant 0 : index
    %c0_94 = arith.constant 0 : index
    %93 = vector.load %arg3[%c7, %c0_93, %c0_94] : memref<9x32x32xbf16, #tpu.memory_space<vmem>>, vector<1x32x32xbf16>
    %94 = vector.shape_cast %93 : vector<1x32x32xbf16> to vector<32x32xbf16>
    %cst_95 = arith.constant dense<0.000000e+00> : vector<512x32xf32>
    %95 = tpu.matmul %92, %94, %cst_95 {dimension_numbers = #tpu.dot_dimension_numbers<[1], [0], [0], [1], [0, 0, 1, 1], [], []>} : vector<512x32xbf16>, vector<32x32xbf16>, vector<512x32xf32> -> vector<512x32xf32>
    %96 = arith.addf %89, %95 : vector<512x32xf32>
    %c0_96 = arith.constant 0 : index
    %c2_97 = arith.constant 2 : index
    %c2_98 = arith.constant 2 : index
    %c0_99 = arith.constant 0 : index
    %97 = vector.load %arg9[%c0_96, %c2_97, %c2_98, %c0_99] : memref<2x18x18x32xf32, #tpu.memory_space<vmem>>, vector<2x16x16x32xf32>
    %98 = vector.shape_cast %97 : vector<2x16x16x32xf32> to vector<512x32xf32>
    %99 = arith.truncf %98 : vector<512x32xf32> to vector<512x32xbf16>
    %c8 = arith.constant 8 : index
    %c0_100 = arith.constant 0 : index
    %c0_101 = arith.constant 0 : index
    %100 = vector.load %arg3[%c8, %c0_100, %c0_101] : memref<9x32x32xbf16, #tpu.memory_space<vmem>>, vector<1x32x32xbf16>
    %101 = vector.shape_cast %100 : vector<1x32x32xbf16> to vector<32x32xbf16>
    %cst_102 = arith.constant dense<0.000000e+00> : vector<512x32xf32>
    %102 = tpu.matmul %99, %101, %cst_102 {dimension_numbers = #tpu.dot_dimension_numbers<[1], [0], [0], [1], [0, 0, 1, 1], [], []>} : vector<512x32xbf16>, vector<32x32xbf16>, vector<512x32xf32> -> vector<512x32xf32>
    %103 = arith.addf %96, %102 : vector<512x32xf32>
    %c0_103 = arith.constant 0 : index
    %c0_104 = arith.constant 0 : index
    %104 = vector.load %arg6[%c0_103, %c0_104] : memref<2x32xf32, #tpu.memory_space<vmem>>, vector<1x32xf32>
    %c1_105 = arith.constant 1 : index
    %c0_106 = arith.constant 0 : index
    %105 = vector.load %arg6[%c1_105, %c0_106] : memref<2x32xf32, #tpu.memory_space<vmem>>, vector<1x32xf32>
    %cst_107 = arith.constant dense<0.000000e+00> : vector<32xf32>
    %106 = vector.multi_reduction <add>, %103, %cst_107 [0] : vector<512x32xf32> to vector<32xf32>
    %107 = vector.shape_cast %106 : vector<32xf32> to vector<1x32xf32>
    %108 = arith.mulf %103, %103 : vector<512x32xf32>
    %cst_108 = arith.constant dense<0.000000e+00> : vector<32xf32>
    %109 = vector.multi_reduction <add>, %108, %cst_108 [0] : vector<512x32xf32> to vector<32xf32>
    %110 = vector.shape_cast %109 : vector<32xf32> to vector<1x32xf32>
    %cst_109 = arith.constant 5.120000e+02 : f32
    %111 = vector.broadcast %cst_109 : f32 to vector<1x32xf32>
    %112 = arith.divf %107, %111 : vector<1x32xf32>
    %cst_110 = arith.constant 5.120000e+02 : f32
    %113 = vector.broadcast %cst_110 : f32 to vector<1x32xf32>
    %114 = arith.divf %110, %113 : vector<1x32xf32>
    %115 = arith.mulf %112, %112 : vector<1x32xf32>
    %116 = arith.subf %114, %115 : vector<1x32xf32>
    %cst_111 = arith.constant 9.99999974E-6 : f32
    %117 = vector.broadcast %cst_111 : f32 to vector<1x32xf32>
    %118 = arith.addf %116, %117 : vector<1x32xf32>
    %119 = math.rsqrt %118 : vector<1x32xf32>
    %120 = arith.mulf %104, %119 : vector<1x32xf32>
    %121 = arith.mulf %112, %120 : vector<1x32xf32>
    %122 = arith.subf %105, %121 : vector<1x32xf32>
    %123 = vector.broadcast %120 : vector<1x32xf32> to vector<512x32xf32>
    %124 = arith.mulf %103, %123 : vector<512x32xf32>
    %125 = vector.broadcast %122 : vector<1x32xf32> to vector<512x32xf32>
    %126 = arith.addf %124, %125 : vector<512x32xf32>
    %cst_112 = arith.constant 0.000000e+00 : f32
    %127 = vector.broadcast %cst_112 : f32 to vector<512x32xf32>
    %128 = arith.maximumf %126, %127 : vector<512x32xf32>
    %129 = arith.truncf %128 : vector<512x32xf32> to vector<512x32xbf16>
    %c0_113 = arith.constant 0 : index
    %c0_114 = arith.constant 0 : index
    %130 = vector.load %arg4[%c0_113, %c0_114] : memref<32x128xbf16, #tpu.memory_space<vmem>>, vector<32x128xbf16>
    %cst_115 = arith.constant dense<0.000000e+00> : vector<512x128xf32>
    %131 = tpu.matmul %129, %130, %cst_115 {dimension_numbers = #tpu.dot_dimension_numbers<[1], [0], [0], [1], [0, 0, 1, 1], [], []>} : vector<512x32xbf16>, vector<32x128xbf16>, vector<512x128xf32> -> vector<512x128xf32>
    %c0_116 = arith.constant 0 : index
    %c0_117 = arith.constant 0 : index
    %132 = vector.load %arg7[%c0_116, %c0_117] : memref<2x128xf32, #tpu.memory_space<vmem>>, vector<1x128xf32>
    %c1_118 = arith.constant 1 : index
    %c0_119 = arith.constant 0 : index
    %133 = vector.load %arg7[%c1_118, %c0_119] : memref<2x128xf32, #tpu.memory_space<vmem>>, vector<1x128xf32>
    %cst_120 = arith.constant dense<0.000000e+00> : vector<128xf32>
    %134 = vector.multi_reduction <add>, %131, %cst_120 [0] : vector<512x128xf32> to vector<128xf32>
    %135 = vector.shape_cast %134 : vector<128xf32> to vector<1x128xf32>
    %136 = arith.mulf %131, %131 : vector<512x128xf32>
    %cst_121 = arith.constant dense<0.000000e+00> : vector<128xf32>
    %137 = vector.multi_reduction <add>, %136, %cst_121 [0] : vector<512x128xf32> to vector<128xf32>
    %138 = vector.shape_cast %137 : vector<128xf32> to vector<1x128xf32>
    %cst_122 = arith.constant 5.120000e+02 : f32
    %139 = vector.broadcast %cst_122 : f32 to vector<1x128xf32>
    %140 = arith.divf %135, %139 : vector<1x128xf32>
    %cst_123 = arith.constant 5.120000e+02 : f32
    %141 = vector.broadcast %cst_123 : f32 to vector<1x128xf32>
    %142 = arith.divf %138, %141 : vector<1x128xf32>
    %143 = arith.mulf %140, %140 : vector<1x128xf32>
    %144 = arith.subf %142, %143 : vector<1x128xf32>
    %cst_124 = arith.constant 9.99999974E-6 : f32
    %145 = vector.broadcast %cst_124 : f32 to vector<1x128xf32>
    %146 = arith.addf %144, %145 : vector<1x128xf32>
    %147 = math.rsqrt %146 : vector<1x128xf32>
    %148 = arith.mulf %132, %147 : vector<1x128xf32>
    %149 = arith.mulf %140, %148 : vector<1x128xf32>
    %150 = arith.subf %133, %149 : vector<1x128xf32>
    %151 = vector.broadcast %148 : vector<1x128xf32> to vector<512x128xf32>
    %152 = arith.mulf %131, %151 : vector<512x128xf32>
    %153 = vector.broadcast %150 : vector<1x128xf32> to vector<512x128xf32>
    %154 = arith.addf %152, %153 : vector<512x128xf32>
    %155 = arith.addf %154, %1 : vector<512x128xf32>
    %cst_125 = arith.constant 0.000000e+00 : f32
    %156 = vector.broadcast %cst_125 : f32 to vector<512x128xf32>
    %157 = arith.maximumf %155, %156 : vector<512x128xf32>
    %158 = vector.shape_cast %157 : vector<512x128xf32> to vector<2x16x16x128xf32>
    %c0_126 = arith.constant 0 : index
    %c0_127 = arith.constant 0 : index
    %c0_128 = arith.constant 0 : index
    %c0_129 = arith.constant 0 : index
    %159 = vector.load %arg8[%c0_126, %c0_127, %c0_128, %c0_129] : memref<2x16x16x128xf32, #tpu.memory_space<vmem>>, vector<2x16x16x128xf32>
    tpu.vector_store %arg8[%c0_126, %c0_127, %c0_128, %c0_129], %158 {strides = array<i32>} : memref<2x16x16x128xf32, #tpu.memory_space<vmem>>, vector<2x16x16x128xf32>,
    return
  }
  func.func @transform_0(%arg0: i32) -> (i32, i32, i32, i32) {
    %c0_i32 = arith.constant 0 : i32
    %c0_i32_0 = arith.constant 0 : i32
    %c0_i32_1 = arith.constant 0 : i32
    %c0_i32_2 = arith.constant 0 : i32
    %c0_i32_3 = arith.constant 0 : i32
    return %c0_i32, %c0_i32_0, %c0_i32_1, %c0_i32_2 : i32, i32, i32, i32
  }
  func.func @transform_1(%arg0: i32) -> (i32, i32) {
    %c0_i32 = arith.constant 0 : i32
    %c0_i32_0 = arith.constant 0 : i32
    %c0_i32_1 = arith.constant 0 : i32
    return %c0_i32, %c0_i32_0 : i32, i32
  }
  func.func @transform_2(%arg0: i32) -> (i32, i32, i32) {
    %c0_i32 = arith.constant 0 : i32
    %c0_i32_0 = arith.constant 0 : i32
    %c0_i32_1 = arith.constant 0 : i32
    %c0_i32_2 = arith.constant 0 : i32
    return %c0_i32, %c0_i32_0, %c0_i32_1 : i32, i32, i32
  }
  func.func @transform_3(%arg0: i32) -> (i32, i32) {
    %c0_i32 = arith.constant 0 : i32
    %c0_i32_0 = arith.constant 0 : i32
    %c0_i32_1 = arith.constant 0 : i32
    return %c0_i32, %c0_i32_0 : i32, i32
  }
  func.func @transform_4(%arg0: i32) -> (i32, i32) {
    %c0_i32 = arith.constant 0 : i32
    %c0_i32_0 = arith.constant 0 : i32
    %c0_i32_1 = arith.constant 0 : i32
    return %c0_i32, %c0_i32_0 : i32, i32
  }
  func.func @transform_5(%arg0: i32) -> (i32, i32) {
    %c0_i32 = arith.constant 0 : i32
    %c0_i32_0 = arith.constant 0 : i32
    %c0_i32_1 = arith.constant 0 : i32
    return %c0_i32, %c0_i32_0 : i32, i32
  }
  func.func @transform_6(%arg0: i32) -> (i32, i32) {
    %c0_i32 = arith.constant 0 : i32
    %c0_i32_0 = arith.constant 0 : i32
    %c0_i32_1 = arith.constant 0 : i32
    return %c0_i32, %c0_i32_0 : i32, i32
  }
  func.func @transform_7(%arg0: i32) -> (i32, i32, i32, i32) {
    %c0_i32 = arith.constant 0 : i32
    %c0_i32_0 = arith.constant 0 : i32
    %c0_i32_1 = arith.constant 0 : i32
    %c0_i32_2 = arith.constant 0 : i32
    %c0_i32_3 = arith.constant 0 : i32
    return %c0_i32, %c0_i32_0, %c0_i32_1, %c0_i32_2 : i32, i32, i32, i32
  }
}

</mosaic_0001>

<llo_original>
// kernel: tpu_custom_call.1
$region0: #{tpu_custom_call.1}
  #allocation0 [shape = 'u32[]', space=smem, size = 0x4, offset = 0x4, fixed_abs, tag = 'smem constant byte address 0x4 - core index']
  #allocation1 [shape = 'u32[144,128]{1,0:T(1,128)}', space=vmem, size = 0x12000, scoped, tag = 'internal scratch']
  #allocation2 [shape = 'f32[2,18,18,32]{3,2,1,0:T(8,128)}', space=vmem, size = 0x6c000, scoped, tag = 'scratch operand']
  %s0 = inlined_call_operand.hbm [shape: f32[2,16,16,128], index: 0, kind: input, shape index: {}]
  %s1 = inlined_call_operand.vmem [shape: bf16[128,32], index: 1, kind: input, shape index: {}]
  %s2 = inlined_call_operand.hbm [shape: bf16[9,32,32], index: 2, kind: input, shape index: {}]
  %s3 = inlined_call_operand.vmem [shape: bf16[32,128], index: 3, kind: input, shape index: {}]
  %s4 = inlined_call_operand.vmem [shape: f32[2,32], index: 4, kind: input, shape index: {}]
  %s5 = inlined_call_operand.vmem [shape: f32[2,32], index: 5, kind: input, shape index: {}]
  %s6 = inlined_call_operand.vmem [shape: f32[2,128], index: 6, kind: input, shape index: {}]
  %s7 = inlined_call_operand.hbm [shape: f32[2,16,16,128], index: 7, kind: output, shape index: {}]
  %s8 = sld [smem:[#allocation0]]
  $region46: #{tpu_custom_call.1} parent=0
    _
  %s10 = ssub.s32 1, %s8
  %s11 = scalar_select 0, %s10, %s8
  $region1: #{tpu_custom_call.1} parent=0
    #allocation3 [shape = 'u8[262144]{0}', space=vmem, size = 0x40000, scoped, tag = 'input window, operand 0, single buffered']
    #allocation4 [shape = 's32[1]{0}', space=sflag, size = 0x4, scoped, tag = 'scoped memory for tpu_custom_call.1']
    #allocation5 [shape = 's32[1]{0}', space=sflag, size = 0x4, scoped, tag = 'scoped memory for tpu_custom_call.1']
    #allocation6 [shape = 'u8[73728]{0}', space=vmem, size = 0x12000, scoped, tag = 'input window, operand 2, single buffered']
    #allocation7 [shape = 's32[1]{0}', space=sflag, size = 0x4, scoped, tag = 'scoped memory for tpu_custom_call.1']
    #allocation8 [shape = 'u8[262144]{0}', space=vmem, size = 0x40000, scoped, tag = 'output window, operand 0, single buffered']
    %12 = vsyncpa [#allocation4], 0
    %13 = vsyncpa [#allocation7], 0
    %14 = vsyncpa [#allocation5], 0
    // Predicated region
    $region2: #{tpu_custom_call.1} parent=1 // pred_check
      _
    $region3: #{tpu_custom_call.1} parent=1 // pred_check_branch
      %16 = sbr.rel (0) target = $region5
    $region4: #{tpu_custom_call.1} parent=1 // pred_region
      %s18 = ssub.s32 8192, 8192
      %19 = vsyncadd [#allocation4], %s18
      %s20 = sshll.u32 [#allocation3], 4
      %s21 = int_to_ptr.vmem [resolvable:$true] %s20
      %26 = dma.hbm_to_vmem [thread:$0]  %s0, 8192, %s21, [#allocation4], 128, 128, 8
    $region5: #{tpu_custom_call.1} parent=1 // pred_fallthru
      _
    // Predicated region
    $region6: #{tpu_custom_call.1} parent=1 // pred_check
      _
    $region7: #{tpu_custom_call.1} parent=1 // pred_check_branch
      %28 = sbr.rel (0) target = $region9
    $region8: #{tpu_custom_call.1} parent=1 // pred_region
      _
    $region9: #{tpu_custom_call.1} parent=1 // pred_fallthru
      _
    // Predicated region
    $region10: #{tpu_custom_call.1} parent=1 // pred_check
      _
    $region11: #{tpu_custom_call.1} parent=1 // pred_check_branch
      %30 = sbr.rel (0) target = $region13
    $region12: #{tpu_custom_call.1} parent=1 // pred_region
      %s32 = ssub.s32 2304, 2304
      %33 = vsyncadd [#allocation7], %s32
      %s34 = sshll.u32 [#allocation6], 4
      %s35 = int_to_ptr.vmem [resolvable:$true] %s34
      %40 = dma.hbm_to_vmem [thread:$0]  %s2, 2304, %s35, [#allocation7], 64, 64, 4
    $region13: #{tpu_custom_call.1} parent=1 // pred_fallthru
      _
    // Predicated region
    $region14: #{tpu_custom_call.1} parent=1 // pred_check
      _
    $region15: #{tpu_custom_call.1} parent=1 // pred_check_branch
      %42 = sbr.rel (0) target = $region17
    $region16: #{tpu_custom_call.1} parent=1 // pred_region
      _
    $region17: #{tpu_custom_call.1} parent=1 // pred_fallthru
      _
    // Predicated region
    $region18: #{tpu_custom_call.1} parent=1 // pred_check
      _
    $region19: #{tpu_custom_call.1} parent=1 // pred_check_branch
      %44 = sbr.rel (0) target = $region21
    $region20: #{tpu_custom_call.1} parent=1 // pred_region
      _
    $region21: #{tpu_custom_call.1} parent=1 // pred_fallthru
      _
    // Predicated region
    $region22: #{tpu_custom_call.1} parent=1 // pred_check
      _
    $region23: #{tpu_custom_call.1} parent=1 // pred_check_branch
      %46 = sbr.rel (0) target = $region25
    $region24: #{tpu_custom_call.1} parent=1 // pred_region
      _
    $region25: #{tpu_custom_call.1} parent=1 // pred_fallthru
      _
    // Predicated region
    $region26: #{tpu_custom_call.1} parent=1 // pred_check
      _
    $region27: #{tpu_custom_call.1} parent=1 // pred_check_branch
      %48 = sbr.rel (0) target = $region29
    $region28: #{tpu_custom_call.1} parent=1 // pred_region
      _
    $region29: #{tpu_custom_call.1} parent=1 // pred_fallthru
      _
    // Predicated region
    $region30: #{tpu_custom_call.1} parent=1 // pred_check
      _
    $region31: #{tpu_custom_call.1} parent=1 // pred_check_branch
      %50 = sbr.rel (0) target = $region33
    $region32: #{tpu_custom_call.1} parent=1 // pred_region
      %51 = dma.done [#allocation4], 8192
    $region33: #{tpu_custom_call.1} parent=1 // pred_fallthru
      _
    // Predicated region
    $region34: #{tpu_custom_call.1} parent=1 // pred_check
      _
    $region35: #{tpu_custom_call.1} parent=1 // pred_check_branch
      %53 = sbr.rel (0) target = $region37
    $region36: #{tpu_custom_call.1} parent=1 // pred_region
      %54 = dma.done [#allocation7], 2304
    $region37: #{tpu_custom_call.1} parent=1 // pred_fallthru
      _
    %v56 = vld [vmem:[#allocation3] sm:$0xff]
    %v57 = vld [vmem:[#allocation3 + $0x8] sm:$0xff]
    %v58 = vld [vmem:[#allocation3 + $0x10] sm:$0xff]
    %v59 = vld [vmem:[#allocation3 + $0x18] sm:$0xff]
    %v60 = vld [vmem:[#allocation3 + $0x20] sm:$0xff]
    %v61 = vld [vmem:[#allocation3 + $0x28] sm:$0xff]
    %v62 = vld [vmem:[#allocation3 + $0x30] sm:$0xff]
    %v63 = vld [vmem:[#allocation3 + $0x38] sm:$0xff]
    %v64 = vld [vmem:[#allocation3 + $0x40] sm:$0xff]
    %v65 = vld [vmem:[#allocation3 + $0x48] sm:$0xff]
    %v66 = vld [vmem:[#allocation3 + $0x50] sm:$0xff]
    %v67 = vld [vmem:[#allocation3 + $0x58] sm:$0xff]
    %v68 = vld [vmem:[#allocation3 + $0x60] sm:$0xff]
    %v69 = vld [vmem:[#allocation3 + $0x68] sm:$0xff]
    %v70 = vld [vmem:[#allocation3 + $0x70] sm:$0xff]
    %v71 = vld [vmem:[#allocation3 + $0x78] sm:$0xff]
    %v72 = vld [vmem:[#allocation3 + $0x80] sm:$0xff]
    %v73 = vld [vmem:[#allocation3 + $0x88] sm:$0xff]
    %v74 = vld [vmem:[#allocation3 + $0x90] sm:$0xff]
    %v75 = vld [vmem:[#allocation3 + $0x98] sm:$0xff]
    %v76 = vld [vmem:[#allocation3 + $0xa0] sm:$0xff]
    %v77 = vld [vmem:[#allocation3 + $0xa8] sm:$0xff]
    %v78 = vld [vmem:[#allocation3 + $0xb0] sm:$0xff]
    %v79 = vld [vmem:[#allocation3 + $0xb8] sm:$0xff]
    %v80 = vld [vmem:[#allocation3 + $0xc0] sm:$0xff]
    %v81 = vld [vmem:[#allocation3 + $0xc8] sm:$0xff]
    %v82 = vld [vmem:[#allocation3 + $0xd0] sm:$0xff]
    %v83 = vld [vmem:[#allocation3 + $0xd8] sm:$0xff]
    %v84 = vld [vmem:[#allocation3 + $0xe0] sm:$0xff]
    %v85 = vld [vmem:[#allocation3 + $0xe8] sm:$0xff]
    %v86 = vld [vmem:[#allocation3 + $0xf0] sm:$0xff]
    %v87 = vld [vmem:[#allocation3 + $0xf8] sm:$0xff]
    %v88 = vld [vmem:[#allocation3 + $0x100] sm:$0xff]
    %v89 = vld [vmem:[#allocation3 + $0x108] sm:$0xff]
    %v90 = vld [vmem:[#allocation3 + $0x110] sm:$0xff]
    %v91 = vld [vmem:[#allocation3 + $0x118] sm:$0xff]
    %v92 = vld [vmem:[#allocation3 + $0x120] sm:$0xff]
    %v93 = vld [vmem:[#allocation3 + $0x128] sm:$0xff]
    %v94 = vld [vmem:[#allocation3 + $0x130] sm:$0xff]
    %v95 = vld [vmem:[#allocation3 + $0x138] sm:$0xff]
    %v96 = vld [vmem:[#allocation3 + $0x140] sm:$0xff]
    %v97 = vld [vmem:[#allocation3 + $0x148] sm:$0xff]
    %v98 = vld [vmem:[#allocation3 + $0x150] sm:$0xff]
    %v99 = vld [vmem:[#allocation3 + $0x158] sm:$0xff]
    %v100 = vld [vmem:[#allocation3 + $0x160] sm:$0xff]
    %v101 = vld [vmem:[#allocation3 + $0x168] sm:$0xff]
    %v102 = vld [vmem:[#allocation3 + $0x170] sm:$0xff]
    %v103 = vld [vmem:[#allocation3 + $0x178] sm:$0xff]
    %v104 = vld [vmem:[#allocation3 + $0x180] sm:$0xff]
    %v105 = vld [vmem:[#allocation3 + $0x188] sm:$0xff]
    %v106 = vld [vmem:[#allocation3 + $0x190] sm:$0xff]
    %v107 = vld [vmem:[#allocation3 + $0x198] sm:$0xff]
    %v108 = vld [vmem:[#allocation3 + $0x1a0] sm:$0xff]
    %v109 = vld [vmem:[#allocation3 + $0x1a8] sm:$0xff]
    %v110 = vld [vmem:[#allocation3 + $0x1b0] sm:$0xff]
    %v111 = vld [vmem:[#allocation3 + $0x1b8] sm:$0xff]
    %v112 = vld [vmem:[#allocation3 + $0x1c0] sm:$0xff]
    %v113 = vld [vmem:[#allocation3 + $0x1c8] sm:$0xff]
    %v114 = vld [vmem:[#allocation3 + $0x1d0] sm:$0xff]
    %v115 = vld [vmem:[#allocation3 + $0x1d8] sm:$0xff]
    %v116 = vld [vmem:[#allocation3 + $0x1e0] sm:$0xff]
    %v117 = vld [vmem:[#allocation3 + $0x1e8] sm:$0xff]
    %v118 = vld [vmem:[#allocation3 + $0x1f0] sm:$0xff]
    %v119 = vld [vmem:[#allocation3 + $0x1f8] sm:$0xff]
    %v120 = vpack.c.bf16 %v57, %v56
    %v121 = vpack.c.bf16 %v59, %v58
    %v122 = vpack.c.bf16 %v61, %v60
    %v123 = vpack.c.bf16 %v63, %v62
    %v124 = vpack.c.bf16 %v65, %v64
    %v125 = vpack.c.bf16 %v67, %v66
    %v126 = vpack.c.bf16 %v69, %v68
    %v127 = vpack.c.bf16 %v71, %v70
    %v128 = vpack.c.bf16 %v73, %v72
    %v129 = vpack.c.bf16 %v75, %v74
    %v130 = vpack.c.bf16 %v77, %v76
    %v131 = vpack.c.bf16 %v79, %v78
    %v132 = vpack.c.bf16 %v81, %v80
    %v133 = vpack.c.bf16 %v83, %v82
    %v134 = vpack.c.bf16 %v85, %v84
    %v135 = vpack.c.bf16 %v87, %v86
    %v136 = vpack.c.bf16 %v89, %v88
    %v137 = vpack.c.bf16 %v91, %v90
    %v138 = vpack.c.bf16 %v93, %v92
    %v139 = vpack.c.bf16 %v95, %v94
    %v140 = vpack.c.bf16 %v97, %v96
    %v141 = vpack.c.bf16 %v99, %v98
    %v142 = vpack.c.bf16 %v101, %v100
    %v143 = vpack.c.bf16 %v103, %v102
    %v144 = vpack.c.bf16 %v105, %v104
    %v145 = vpack.c.bf16 %v107, %v106
    %v146 = vpack.c.bf16 %v109, %v108
    %v147 = vpack.c.bf16 %v111, %v110
    %v148 = vpack.c.bf16 %v113, %v112
    %v149 = vpack.c.bf16 %v115, %v114
    %v150 = vpack.c.bf16 %v117, %v116
    %v151 = vpack.c.bf16 %v119, %v118
    %v152 = vld [vmem:[%s1] sm:$0xf]
    %v153 = vld [vmem:[%s1 + $0x4] sm:$0xf]
    %v154 = vld [vmem:[%s1 + $0x8] sm:$0xf]
    %v155 = vld [vmem:[%s1 + $0xc] sm:$0xf]
    %v156 = vld [vmem:[%s1 + $0x10] sm:$0xf]
    %v157 = vld [vmem:[%s1 + $0x14] sm:$0xf]
    %v158 = vld [vmem:[%s1 + $0x18] sm:$0xf]
    %v159 = vld [vmem:[%s1 + $0x1c] sm:$0xf]
    %v160 = vld [vmem:[%s1 + $0x20] sm:$0xf]
    %v161 = vld [vmem:[%s1 + $0x24] sm:$0xf]
    %v162 = vld [vmem:[%s1 + $0x28] sm:$0xf]
    %v163 = vld [vmem:[%s1 + $0x2c] sm:$0xf]
    %v164 = vld [vmem:[%s1 + $0x30] sm:$0xf]
    %v165 = vld [vmem:[%s1 + $0x34] sm:$0xf]
    %v166 = vld [vmem:[%s1 + $0x38] sm:$0xf]
    %v167 = vld [vmem:[%s1 + $0x3c] sm:$0xf]
    %v184 = vunpack.c.l.b16 %v152
    %v185 = vunpack.c.l.b16 %v153
    %v186 = vunpack.c.l.b16 %v154
    %v187 = vunpack.c.l.b16 %v155
    %v188 = vunpack.c.l.b16 %v156
    %v189 = vunpack.c.l.b16 %v157
    %v190 = vunpack.c.l.b16 %v158
    %v191 = vunpack.c.l.b16 %v159
    %v192 = vunpack.c.l.b16 %v160
    %v193 = vunpack.c.l.b16 %v161
    %v194 = vunpack.c.l.b16 %v162
    %v195 = vunpack.c.l.b16 %v163
    %v196 = vunpack.c.l.b16 %v164
    %v197 = vunpack.c.l.b16 %v165
    %v198 = vunpack.c.l.b16 %v166
    %v199 = vunpack.c.l.b16 %v167
    %v200 = vpack.c.b16 %v185, %v184
    %v201 = vpack.c.b16 %v187, %v186
    %v202 = vpack.c.b16 %v189, %v188
    %v203 = vpack.c.b16 %v191, %v190
    %v204 = vpack.c.b16 %v193, %v192
    %v205 = vpack.c.b16 %v195, %v194
    %v206 = vpack.c.b16 %v197, %v196
    %v207 = vpack.c.b16 %v199, %v198
    %216 = vmatprep.subr.bf16.mxu0 0
    %217 = vmatpush1.bf16.msra.mxu0 %v200
    %218 = vmatprep.subr.bf16.mxu0 0
    %219 = vmatpush1.bf16.msra.mxu0 %v201
    %220 = vmatprep.subr.bf16.mxu0 0
    %221 = vmatpush1.bf16.msra.mxu0 %v202
    %222 = vmatprep.subr.bf16.mxu0 0
    %223 = vmatpush1.bf16.msra.mxu0 %v203
    %224 = vmatprep.subr.bf16.mxu0 0
    %225 = vmatpush1.bf16.msra.mxu0 %v204
    %226 = vmatprep.subr.bf16.mxu0 0
    %227 = vmatpush1.bf16.msra.mxu0 %v205
    %228 = vmatprep.subr.bf16.mxu0 0
    %229 = vmatpush1.bf16.msra.mxu0 %v206
    %230 = vmatprep.subr.bf16.mxu0 0
    %231 = vmatpush1.bf16.msra.mxu0 %v207
    %232 = vmatprep.subr.bf16.mxu0 0
    %233 = vmatpush1.bf16.msra.mxu0 0
    %234 = vmatprep.subr.bf16.mxu0 0
    %235 = vmatpush1.bf16.msra.mxu0 0
    %236 = vmatprep.subr.bf16.mxu0 0
    %237 = vmatpush1.bf16.msra.mxu0 0
    %238 = vmatprep.subr.bf16.mxu0 0
    %239 = vmatpush1.bf16.msra.mxu0 0
    %240 = vmatprep.subr.bf16.mxu0 0
    %241 = vmatpush1.bf16.msra.mxu0 0
    %242 = vmatprep.subr.bf16.mxu0 0
    %243 = vmatpush1.bf16.msra.mxu0 0
    %244 = vmatprep.subr.bf16.mxu0 0
    %245 = vmatpush1.bf16.msra.mxu0 0
    %246 = vmatprep.subr.bf16.mxu0 0
    %247 = vmatpush1.bf16.msra.mxu0 0
    %248 = vmatprep.mubr.bf16.mxu0 0
    %249 = vmatmul.mubr.bf16.gmra.mrb[0].mxu0 %v120
    %v250 = vpop.f32.mrb[0].mxu0
    %v251 = vadd.f32 0.0, %v250
    %v252 = vpop.f32.mrb[0].mxu0
    %v253 = vpop.f32.mrb[0].mxu0
    %v254 = vadd.f32 0.0, %v253
    %v255 = vpop.f32.mrb[0].mxu0
    %256 = vmatprep.mubr.bf16.mxu0 0
    %257 = vmatmul.mubr.bf16.gmra.mrb[0].mxu0 %v121
    %v258 = vpop.f32.mrb[0].mxu0
    %v259 = vadd.f32 0.0, %v258
    %v260 = vpop.f32.mrb[0].mxu0
    %v261 = vpop.f32.mrb[0].mxu0
    %v262 = vadd.f32 0.0, %v261
    %v263 = vpop.f32.mrb[0].mxu0
    %264 = vmatprep.mubr.bf16.mxu0 0
    %265 = vmatmul.mubr.bf16.gmra.mrb[0].mxu0 %v122
    %v266 = vpop.f32.mrb[0].mxu0
    %v267 = vadd.f32 0.0, %v266
    %v268 = vpop.f32.mrb[0].mxu0
    %v269 = vpop.f32.mrb[0].mxu0
    %v270 = vadd.f32 0.0, %v269
    %v271 = vpop.f32.mrb[0].mxu0
    %272 = vmatprep.mubr.bf16.mxu0 0
    %273 = vmatmul.mubr.bf16.gmra.mrb[0].mxu0 %v123
    %v274 = vpop.f32.mrb[0].mxu0
    %v275 = vadd.f32 0.0, %v274
    %v276 = vpop.f32.mrb[0].mxu0
    %v277 = vpop.f32.mrb[0].mxu0
    %v278 = vadd.f32 0.0, %v277
    %v279 = vpop.f32.mrb[0].mxu0
    %280 = vmatprep.mubr.bf16.mxu0 0
    %281 = vmatmul.mubr.bf16.gmra.mrb[0].mxu0 %v124
    %v282 = vpop.f32.mrb[0].mxu0
    %v283 = vadd.f32 0.0, %v282
    %v284 = vpop.f32.mrb[0].mxu0
    %v285 = vpop.f32.mrb[0].mxu0
    %v286 = vadd.f32 0.0, %v285
    %v287 = vpop.f32.mrb[0].mxu0
    %288 = vmatprep.mubr.bf16.mxu0 0
    %289 = vmatmul.mubr.bf16.gmra.mrb[0].mxu0 %v125
    %v290 = vpop.f32.mrb[0].mxu0
    %v291 = vadd.f32 0.0, %v290
    %v292 = vpop.f32.mrb[0].mxu0
    %v293 = vpop.f32.mrb[0].mxu0
    %v294 = vadd.f32 0.0, %v293
    %v295 = vpop.f32.mrb[0].mxu0
    %296 = vmatprep.mubr.bf16.mxu0 0
    %297 = vmatmul.mubr.bf16.gmra.mrb[0].mxu0 %v126
    %v298 = vpop.f32.mrb[0].mxu0
    %v299 = vadd.f32 0.0, %v298
    %v300 = vpop.f32.mrb[0].mxu0
    %v301 = vpop.f32.mrb[0].mxu0
    %v302 = vadd.f32 0.0, %v301
    %v303 = vpop.f32.mrb[0].mxu0
    %304 = vmatprep.mubr.bf16.mxu0 0
    %305 = vmatmul.mubr.bf16.gmra.mrb[0].mxu0 %v127
    %v306 = vpop.f32.mrb[0].mxu0
    %v307 = vadd.f32 0.0, %v306
    %v308 = vpop.f32.mrb[0].mxu0
    %v309 = vpop.f32.mrb[0].mxu0
    %v310 = vadd.f32 0.0, %v309
    %v311 = vpop.f32.mrb[0].mxu0
    %312 = vmatprep.mubr.bf16.mxu0 0
    %313 = vmatmul.mubr.bf16.gmra.mrb[0].mxu0 %v128
    %v314 = vpop.f32.mrb[0].mxu0
    %v315 = vadd.f32 0.0, %v314
    %v316 = vpop.f32.mrb[0].mxu0
    %v317 = vpop.f32.mrb[0].mxu0
    %v318 = vadd.f32 0.0, %v317
    %v319 = vpop.f32.mrb[0].mxu0
    %320 = vmatprep.mubr.bf16.mxu0 0
    %321 = vmatmul.mubr.bf16.gmra.mrb[0].mxu0 %v129
    %v322 = vpop.f32.mrb[0].mxu0
    %v323 = vadd.f32 0.0, %v322
    %v324 = vpop.f32.mrb[0].mxu0
    %v325 = vpop.f32.mrb[0].mxu0
    %v326 = vadd.f32 0.0, %v325
    %v327 = vpop.f32.mrb[0].mxu0
    %328 = vmatprep.mubr.bf16.mxu0 0
    %329 = vmatmul.mubr.bf16.gmra.mrb[0].mxu0 %v130
    %v330 = vpop.f32.mrb[0].mxu0
    %v331 = vadd.f32 0.0, %v330
    %v332 = vpop.f32.mrb[0].mxu0
    %v333 = vpop.f32.mrb[0].mxu0
    %v334 = vadd.f32 0.0, %v333
    %v335 = vpop.f32.mrb[0].mxu0
    %336 = vmatprep.mubr.bf16.mxu0 0
    %337 = vmatmul.mubr.bf16.gmra.mrb[0].mxu0 %v131
    %v338 = vpop.f32.mrb[0].mxu0
    %v339 = vadd.f32 0.0, %v338
    %v340 = vpop.f32.mrb[0].mxu0
    %v341 = vpop.f32.mrb[0].mxu0
    %v342 = vadd.f32 0.0, %v341
    %v343 = vpop.f32.mrb[0].mxu0
    %344 = vmatprep.mubr.bf16.mxu0 0
    %345 = vmatmul.mubr.bf16.gmra.mrb[0].mxu0 %v132
    %v346 = vpop.f32.mrb[0].mxu0
    %v347 = vadd.f32 0.0, %v346
    %v348 = vpop.f32.mrb[0].mxu0
    %v349 = vpop.f32.mrb[0].mxu0
    %v350 = vadd.f32 0.0, %v349
    %v351 = vpop.f32.mrb[0].mxu0
    %352 = vmatprep.mubr.bf16.mxu0 0
    %353 = vmatmul.mubr.bf16.gmra.mrb[0].mxu0 %v133
    %v354 = vpop.f32.mrb[0].mxu0
    %v355 = vadd.f32 0.0, %v354
    %v356 = vpop.f32.mrb[0].mxu0
    %v357 = vpop.f32.mrb[0].mxu0
    %v358 = vadd.f32 0.0, %v357
    %v359 = vpop.f32.mrb[0].mxu0
    %360 = vmatprep.mubr.bf16.mxu0 0
    %361 = vmatmul.mubr.bf16.gmra.mrb[0].mxu0 %v134
    %v362 = vpop.f32.mrb[0].mxu0
    %v363 = vadd.f32 0.0, %v362
    %v364 = vpop.f32.mrb[0].mxu0
    %v365 = vpop.f32.mrb[0].mxu0
    %v366 = vadd.f32 0.0, %v365
    %v367 = vpop.f32.mrb[0].mxu0
    %368 = vmatprep.mubr.bf16.mxu0 0
    %369 = vmatmul.mubr.bf16.gmra.mrb[0].mxu0 %v135
    %v370 = vpop.f32.mrb[0].mxu0
    %v371 = vadd.f32 0.0, %v370
    %v372 = vpop.f32.mrb[0].mxu0
    %v373 = vpop.f32.mrb[0].mxu0
    %v374 = vadd.f32 0.0, %v373
    %v375 = vpop.f32.mrb[0].mxu0
    %376 = vmatprep.mubr.bf16.mxu0 0
    %377 = vmatmul.mubr.bf16.gmra.mrb[0].mxu0 %v136
    %v378 = vpop.f32.mrb[0].mxu0
    %v379 = vadd.f32 0.0, %v378
    %v380 = vpop.f32.mrb[0].mxu0
    %v381 = vpop.f32.mrb[0].mxu0
    %v382 = vadd.f32 0.0, %v381
    %v383 = vpop.f32.mrb[0].mxu0
    %384 = vmatprep.mubr.bf16.mxu0 0
    %385 = vmatmul.mubr.bf16.gmra.mrb[0].mxu0 %v137
    %v386 = vpop.f32.mrb[0].mxu0
    %v387 = vadd.f32 0.0, %v386
    %v388 = vpop.f32.mrb[0].mxu0
    %v389 = vpop.f32.mrb[0].mxu0
    %v390 = vadd.f32 0.0, %v389
    %v391 = vpop.f32.mrb[0].mxu0
    %392 = vmatprep.mubr.bf16.mxu0 0
    %393 = vmatmul.mubr.bf16.gmra.mrb[0].mxu0 %v138
    %v394 = vpop.f32.mrb[0].mxu0
    %v395 = vadd.f32 0.0, %v394
    %v396 = vpop.f32.mrb[0].mxu0
    %v397 = vpop.f32.mrb[0].mxu0
    %v398 = vadd.f32 0.0, %v397
    %v399 = vpop.f32.mrb[0].mxu0
    %400 = vmatprep.mubr.bf16.mxu0 0
    %401 = vmatmul.mubr.bf16.gmra.mrb[0].mxu0 %v139
    %v402 = vpop.f32.mrb[0].mxu0
    %v403 = vadd.f32 0.0, %v402
    %v404 = vpop.f32.mrb[0].mxu0
    %v405 = vpop.f32.mrb[0].mxu0
    %v406 = vadd.f32 0.0, %v405
    %v407 = vpop.f32.mrb[0].mxu0
    %408 = vmatprep.mubr.bf16.mxu0 0
    %409 = vmatmul.mubr.bf16.gmra.mrb[0].mxu0 %v140
    %v410 = vpop.f32.mrb[0].mxu0
    %v411 = vadd.f32 0.0, %v410
    %v412 = vpop.f32.mrb[0].mxu0
    %v413 = vpop.f32.mrb[0].mxu0
    %v414 = vadd.f32 0.0, %v413
    %v415 = vpop.f32.mrb[0].mxu0
    %416 = vmatprep.mubr.bf16.mxu0 0
    %417 = vmatmul.mubr.bf16.gmra.mrb[0].mxu0 %v141
    %v418 = vpop.f32.mrb[0].mxu0
    %v419 = vadd.f32 0.0, %v418
    %v420 = vpop.f32.mrb[0].mxu0
    %v421 = vpop.f32.mrb[0].mxu0
    %v422 = vadd.f32 0.0, %v421
    %v423 = vpop.f32.mrb[0].mxu0
    %424 = vmatprep.mubr.bf16.mxu0 0
    %425 = vmatmul.mubr.bf16.gmra.mrb[0].mxu0 %v142
    %v426 = vpop.f32.mrb[0].mxu0
    %v427 = vadd.f32 0.0, %v426
    %v428 = vpop.f32.mrb[0].mxu0
    %v429 = vpop.f32.mrb[0].mxu0
    %v430 = vadd.f32 0.0, %v429
    %v431 = vpop.f32.mrb[0].mxu0
    %432 = vmatprep.mubr.bf16.mxu0 0
    %433 = vmatmul.mubr.bf16.gmra.mrb[0].mxu0 %v143
    %v434 = vpop.f32.mrb[0].mxu0
    %v435 = vadd.f32 0.0, %v434
    %v436 = vpop.f32.mrb[0].mxu0
    %v437 = vpop.f32.mrb[0].mxu0
    %v438 = vadd.f32 0.0, %v437
    %v439 = vpop.f32.mrb[0].mxu0
    %440 = vmatprep.mubr.bf16.mxu0 0
    %441 = vmatmul.mubr.bf16.gmra.mrb[0].mxu0 %v144
    %v442 = vpop.f32.mrb[0].mxu0
    %v443 = vadd.f32 0.0, %v442
    %v444 = vpop.f32.mrb[0].mxu0
    %v445 = vpop.f32.mrb[0].mxu0
    %v446 = vadd.f32 0.0, %v445
    %v447 = vpop.f32.mrb[0].mxu0
    %448 = vmatprep.mubr.bf16.mxu0 0
    %449 = vmatmul.mubr.bf16.gmra.mrb[0].mxu0 %v145
    %v450 = vpop.f32.mrb[0].mxu0
    %v451 = vadd.f32 0.0, %v450
    %v452 = vpop.f32.mrb[0].mxu0
    %v453 = vpop.f32.mrb[0].mxu0
    %v454 = vadd.f32 0.0, %v453
    %v455 = vpop.f32.mrb[0].mxu0
    %456 = vmatprep.mubr.bf16.mxu0 0
    %457 = vmatmul.mubr.bf16.gmra.mrb[0].mxu0 %v146
    %v458 = vpop.f32.mrb[0].mxu0
    %v459 = vadd.f32 0.0, %v458
    %v460 = vpop.f32.mrb[0].mxu0
    %v461 = vpop.f32.mrb[0].mxu0
    %v462 = vadd.f32 0.0, %v461
    %v463 = vpop.f32.mrb[0].mxu0
    %464 = vmatprep.mubr.bf16.mxu0 0
    %465 = vmatmul.mubr.bf16.gmra.mrb[0].mxu0 %v147
    %v466 = vpop.f32.mrb[0].mxu0
    %v467 = vadd.f32 0.0, %v466
    %v468 = vpop.f32.mrb[0].mxu0
    %v469 = vpop.f32.mrb[0].mxu0
    %v470 = vadd.f32 0.0, %v469
    %v471 = vpop.f32.mrb[0].mxu0
    %472 = vmatprep.mubr.bf16.mxu0 0
    %473 = vmatmul.mubr.bf16.gmra.mrb[0].mxu0 %v148
    %v474 = vpop.f32.mrb[0].mxu0
    %v475 = vadd.f32 0.0, %v474
    %v476 = vpop.f32.mrb[0].mxu0
    %v477 = vpop.f32.mrb[0].mxu0
    %v478 = vadd.f32 0.0, %v477
    %v479 = vpop.f32.mrb[0].mxu0
    %480 = vmatprep.mubr.bf16.mxu0 0
    %481 = vmatmul.mubr.bf16.gmra.mrb[0].mxu0 %v149
    %v482 = vpop.f32.mrb[0].mxu0
    %v483 = vadd.f32 0.0, %v482
    %v484 = vpop.f32.mrb[0].mxu0
    %v485 = vpop.f32.mrb[0].mxu0
    %v486 = vadd.f32 0.0, %v485
    %v487 = vpop.f32.mrb[0].mxu0
    %488 = vmatprep.mubr.bf16.mxu0 0
    %489 = vmatmul.mubr.bf16.gmra.mrb[0].mxu0 %v150
    %v490 = vpop.f32.mrb[0].mxu0
    %v491 = vadd.f32 0.0, %v490
    %v492 = vpop.f32.mrb[0].mxu0
    %v493 = vpop.f32.mrb[0].mxu0
    %v494 = vadd.f32 0.0, %v493
    %v495 = vpop.f32.mrb[0].mxu0
    %496 = vmatprep.mubr.bf16.mxu0 0
    %497 = vmatmul.mubr.bf16.gmra.mrb[0].mxu0 %v151
    %v498 = vpop.f32.mrb[0].mxu0
    %v499 = vadd.f32 0.0, %v498
    %v500 = vpop.f32.mrb[0].mxu0
    %v501 = vpop.f32.mrb[0].mxu0
    %v502 = vadd.f32 0.0, %v501
    %v503 = vpop.f32.mrb[0].mxu0
    %504 = vdwg.mxu0
    %v505 = vld [vmem:[%s4] sm:$0x1]
    %v506 = vld [vmem:[%s4 + $0x1] sm:$0x1]
    %vm507 = vcmask 261120
    %v508 = vsel %vm507, %v251, 0.0
    %v509 = vsel %vm507, %v254, 0.0
    %v510 = vadd.f32 %v508, %v509
    %v511 = vsel %vm507, %v259, 0.0
    %v512 = vadd.f32 %v510, %v511
    %v513 = vsel %vm507, %v262, 0.0
    %v514 = vadd.f32 %v512, %v513
    %v515 = vsel %vm507, %v267, 0.0
    %v516 = vadd.f32 %v514, %v515
    %v517 = vsel %vm507, %v270, 0.0
    %v518 = vadd.f32 %v516, %v517
    %v519 = vsel %vm507, %v275, 0.0
    %v520 = vadd.f32 %v518, %v519
    %v521 = vsel %vm507, %v278, 0.0
    %v522 = vadd.f32 %v520, %v521
    %v523 = vsel %vm507, %v283, 0.0
    %v524 = vadd.f32 %v522, %v523
    %v525 = vsel %vm507, %v286, 0.0
    %v526 = vadd.f32 %v524, %v525
    %v527 = vsel %vm507, %v291, 0.0
    %v528 = vadd.f32 %v526, %v527
    %v529 = vsel %vm507, %v294, 0.0
    %v530 = vadd.f32 %v528, %v529
    %v531 = vsel %vm507, %v299, 0.0
    %v532 = vadd.f32 %v530, %v531
    %v533 = vsel %vm507, %v302, 0.0
    %v534 = vadd.f32 %v532, %v533
    %v535 = vsel %vm507, %v307, 0.0
    %v536 = vadd.f32 %v534, %v535
    %v537 = vsel %vm507, %v310, 0.0
    %v538 = vadd.f32 %v536, %v537
    %v539 = vsel %vm507, %v315, 0.0
    %v540 = vadd.f32 %v538, %v539
    %v541 = vsel %vm507, %v318, 0.0
    %v542 = vadd.f32 %v540, %v541
    %v543 = vsel %vm507, %v323, 0.0
    %v544 = vadd.f32 %v542, %v543
    %v545 = vsel %vm507, %v326, 0.0
    %v546 = vadd.f32 %v544, %v545
    %v547 = vsel %vm507, %v331, 0.0
    %v548 = vadd.f32 %v546, %v547
    %v549 = vsel %vm507, %v334, 0.0
    %v550 = vadd.f32 %v548, %v549
    %v551 = vsel %vm507, %v339, 0.0
    %v552 = vadd.f32 %v550, %v551
    %v553 = vsel %vm507, %v342, 0.0
    %v554 = vadd.f32 %v552, %v553
    %v555 = vsel %vm507, %v347, 0.0
    %v556 = vadd.f32 %v554, %v555
    %v557 = vsel %vm507, %v350, 0.0
    %v558 = vadd.f32 %v556, %v557
    %v559 = vsel %vm507, %v355, 0.0
    %v560 = vadd.f32 %v558, %v559
    %v561 = vsel %vm507, %v358, 0.0
    %v562 = vadd.f32 %v560, %v561
    %v563 = vsel %vm507, %v363, 0.0
    %v564 = vadd.f32 %v562, %v563
    %v565 = vsel %vm507, %v366, 0.0
    %v566 = vadd.f32 %v564, %v565
    %v567 = vsel %vm507, %v371, 0.0
    %v568 = vadd.f32 %v566, %v567
    %v569 = vsel %vm507, %v374, 0.0
    %v570 = vadd.f32 %v568, %v569
    %v571 = vsel %vm507, %v379, 0.0
    %v572 = vadd.f32 %v570, %v571
    %v573 = vsel %vm507, %v382, 0.0
    %v574 = vadd.f32 %v572, %v573
    %v575 = vsel %vm507, %v387, 0.0
    %v576 = vadd.f32 %v574, %v575
    %v577 = vsel %vm507, %v390, 0.0
    %v578 = vadd.f32 %v576, %v577
    %v579 = vsel %vm507, %v395, 0.0
    %v580 = vadd.f32 %v578, %v579
    %v581 = vsel %vm507, %v398, 0.0
    %v582 = vadd.f32 %v580, %v581
    %v583 = vsel %vm507, %v403, 0.0
    %v584 = vadd.f32 %v582, %v583
    %v585 = vsel %vm507, %v406, 0.0
    %v586 = vadd.f32 %v584, %v585
    %v587 = vsel %vm507, %v411, 0.0
    %v588 = vadd.f32 %v586, %v587
    %v589 = vsel %vm507, %v414, 0.0
    %v590 = vadd.f32 %v588, %v589
    %v591 = vsel %vm507, %v419, 0.0
    %v592 = vadd.f32 %v590, %v591
    %v593 = vsel %vm507, %v422, 0.0
    %v594 = vadd.f32 %v592, %v593
    %v595 = vsel %vm507, %v427, 0.0
    %v596 = vadd.f32 %v594, %v595
    %v597 = vsel %vm507, %v430, 0.0
    %v598 = vadd.f32 %v596, %v597
    %v599 = vsel %vm507, %v435, 0.0
    %v600 = vadd.f32 %v598, %v599
    %v601 = vsel %vm507, %v438, 0.0
    %v602 = vadd.f32 %v600, %v601
    %v603 = vsel %vm507, %v443, 0.0
    %v604 = vadd.f32 %v602, %v603
    %v605 = vsel %vm507, %v446, 0.0
    %v606 = vadd.f32 %v604, %v605
    %v607 = vsel %vm507, %v451, 0.0
    %v608 = vadd.f32 %v606, %v607
    %v609 = vsel %vm507, %v454, 0.0
    %v610 = vadd.f32 %v608, %v609
    %v611 = vsel %vm507, %v459, 0.0
    %v612 = vadd.f32 %v610, %v611
    %v613 = vsel %vm507, %v462, 0.0
    %v614 = vadd.f32 %v612, %v613
    %v615 = vsel %vm507, %v467, 0.0
    %v616 = vadd.f32 %v614, %v615
    %v617 = vsel %vm507, %v470, 0.0
    %v618 = vadd.f32 %v616, %v617
    %v619 = vsel %vm507, %v475, 0.0
    %v620 = vadd.f32 %v618, %v619
    %v621 = vsel %vm507, %v478, 0.0
    %v622 = vadd.f32 %v620, %v621
    %v623 = vsel %vm507, %v483, 0.0
    %v624 = vadd.f32 %v622, %v623
    %v625 = vsel %vm507, %v486, 0.0
    %v626 = vadd.f32 %v624, %v625
    %v627 = vsel %vm507, %v491, 0.0
    %v628 = vadd.f32 %v626, %v627
    %v629 = vsel %vm507, %v494, 0.0
    %v630 = vadd.f32 %v628, %v629
    %v631 = vsel %vm507, %v499, 0.0
    %v632 = vadd.f32 %v630, %v631
    %v633 = vsel %vm507, %v502, 0.0
    %v634 = vadd.f32 %v632, %v633
    %v635 = vrot.slane %v634, 4
    %v636 = vadd.f32 %v634, %v635
    %v637 = vrot.slane %v636, 2
    %v638 = vadd.f32 %v636, %v637
    %v639 = vrot.slane %v638, 1
    %v640 = vadd.f32 %v638, %v639
    %v641 = vmul.f32 %v251, %v251
    %v642 = vmul.f32 %v254, %v254
    %v643 = vmul.f32 %v259, %v259
    %v644 = vmul.f32 %v262, %v262
    %v645 = vmul.f32 %v267, %v267
    %v646 = vmul.f32 %v270, %v270
    %v647 = vmul.f32 %v275, %v275
    %v648 = vmul.f32 %v278, %v278
    %v649 = vmul.f32 %v283, %v283
    %v650 = vmul.f32 %v286, %v286
    %v651 = vmul.f32 %v291, %v291
    %v652 = vmul.f32 %v294, %v294
    %v653 = vmul.f32 %v299, %v299
    %v654 = vmul.f32 %v302, %v302
    %v655 = vmul.f32 %v307, %v307
    %v656 = vmul.f32 %v310, %v310
    %v657 = vmul.f32 %v315, %v315
    %v658 = vmul.f32 %v318, %v318
    %v659 = vmul.f32 %v323, %v323
    %v660 = vmul.f32 %v326, %v326
    %v661 = vmul.f32 %v331, %v331
    %v662 = vmul.f32 %v334, %v334
    %v663 = vmul.f32 %v339, %v339
    %v664 = vmul.f32 %v342, %v342
    %v665 = vmul.f32 %v347, %v347
    %v666 = vmul.f32 %v350, %v350
    %v667 = vmul.f32 %v355, %v355
    %v668 = vmul.f32 %v358, %v358
    %v669 = vmul.f32 %v363, %v363
    %v670 = vmul.f32 %v366, %v366
    %v671 = vmul.f32 %v371, %v371
    %v672 = vmul.f32 %v374, %v374
    %v673 = vmul.f32 %v379, %v379
    %v674 = vmul.f32 %v382, %v382
    %v675 = vmul.f32 %v387, %v387
    %v676 = vmul.f32 %v390, %v390
    %v677 = vmul.f32 %v395, %v395
    %v678 = vmul.f32 %v398, %v398
    %v679 = vmul.f32 %v403, %v403
    %v680 = vmul.f32 %v406, %v406
    %v681 = vmul.f32 %v411, %v411
    %v682 = vmul.f32 %v414, %v414
    %v683 = vmul.f32 %v419, %v419
    %v684 = vmul.f32 %v422, %v422
    %v685 = vmul.f32 %v427, %v427
    %v686 = vmul.f32 %v430, %v430
    %v687 = vmul.f32 %v435, %v435
    %v688 = vmul.f32 %v438, %v438
    %v689 = vmul.f32 %v443, %v443
    %v690 = vmul.f32 %v446, %v446
    %v691 = vmul.f32 %v451, %v451
    %v692 = vmul.f32 %v454, %v454
    %v693 = vmul.f32 %v459, %v459
    %v694 = vmul.f32 %v462, %v462
    %v695 = vmul.f32 %v467, %v467
    %v696 = vmul.f32 %v470, %v470
    %v697 = vmul.f32 %v475, %v475
    %v698 = vmul.f32 %v478, %v478
    %v699 = vmul.f32 %v483, %v483
    %v700 = vmul.f32 %v486, %v486
    %v701 = vmul.f32 %v491, %v491
    %v702 = vmul.f32 %v494, %v494
    %v703 = vmul.f32 %v499, %v499
    %v704 = vmul.f32 %v502, %v502
    %v705 = vsel %vm507, %v641, 0.0
    %v706 = vsel %vm507, %v642, 0.0
    %v707 = vadd.f32 %v705, %v706
    %v708 = vsel %vm507, %v643, 0.0
    %v709 = vadd.f32 %v707, %v708
    %v710 = vsel %vm507, %v644, 0.0
    %v711 = vadd.f32 %v709, %v710
    %v712 = vsel %vm507, %v645, 0.0
    %v713 = vadd.f32 %v711, %v712
    %v714 = vsel %vm507, %v646, 0.0
    %v715 = vadd.f32 %v713, %v714
    %v716 = vsel %vm507, %v647, 0.0
    %v717 = vadd.f32 %v715, %v716
    %v718 = vsel %vm507, %v648, 0.0
    %v719 = vadd.f32 %v717, %v718
    %v720 = vsel %vm507, %v649, 0.0
    %v721 = vadd.f32 %v719, %v720
    %v722 = vsel %vm507, %v650, 0.0
    %v723 = vadd.f32 %v721, %v722
    %v724 = vsel %vm507, %v651, 0.0
    %v725 = vadd.f32 %v723, %v724
    %v726 = vsel %vm507, %v652, 0.0
    %v727 = vadd.f32 %v725, %v726
    %v728 = vsel %vm507, %v653, 0.0
    %v729 = vadd.f32 %v727, %v728
    %v730 = vsel %vm507, %v654, 0.0
    %v731 = vadd.f32 %v729, %v730
    %v732 = vsel %vm507, %v655, 0.0
    %v733 = vadd.f32 %v731, %v732
    %v734 = vsel %vm507, %v656, 0.0
    %v735 = vadd.f32 %v733, %v734
    %v736 = vsel %vm507, %v657, 0.0
    %v737 = vadd.f32 %v735, %v736
    %v738 = vsel %vm507, %v658, 0.0
    %v739 = vadd.f32 %v737, %v738
    %v740 = vsel %vm507, %v659, 0.0
    %v741 = vadd.f32 %v739, %v740
    %v742 = vsel %vm507, %v660, 0.0
    %v743 = vadd.f32 %v741, %v742
    %v744 = vsel %vm507, %v661, 0.0
    %v745 = vadd.f32 %v743, %v744
    %v746 = vsel %vm507, %v662, 0.0
    %v747 = vadd.f32 %v745, %v746
    %v748 = vsel %vm507, %v663, 0.0
    %v749 = vadd.f32 %v747, %v748
    %v750 = vsel %vm507, %v664, 0.0
    %v751 = vadd.f32 %v749, %v750
    %v752 = vsel %vm507, %v665, 0.0
    %v753 = vadd.f32 %v751, %v752
    %v754 = vsel %vm507, %v666, 0.0
    %v755 = vadd.f32 %v753, %v754
    %v756 = vsel %vm507, %v667, 0.0
    %v757 = vadd.f32 %v755, %v756
    %v758 = vsel %vm507, %v668, 0.0
    %v759 = vadd.f32 %v757, %v758
    %v760 = vsel %vm507, %v669, 0.0
    %v761 = vadd.f32 %v759, %v760
    %v762 = vsel %vm507, %v670, 0.0
    %v763 = vadd.f32 %v761, %v762
    %v764 = vsel %vm507, %v671, 0.0
    %v765 = vadd.f32 %v763, %v764
    %v766 = vsel %vm507, %v672, 0.0
    %v767 = vadd.f32 %v765, %v766
    %v768 = vsel %vm507, %v673, 0.0
    %v769 = vadd.f32 %v767, %v768
    %v770 = vsel %vm507, %v674, 0.0
    %v771 = vadd.f32 %v769, %v770
    %v772 = vsel %vm507, %v675, 0.0
    %v773 = vadd.f32 %v771, %v772
    %v774 = vsel %vm507, %v676, 0.0
    %v775 = vadd.f32 %v773, %v774
    %v776 = vsel %vm507, %v677, 0.0
    %v777 = vadd.f32 %v775, %v776
    %v778 = vsel %vm507, %v678, 0.0
    %v779 = vadd.f32 %v777, %v778
    %v780 = vsel %vm507, %v679, 0.0
    %v781 = vadd.f32 %v779, %v780
    %v782 = vsel %vm507, %v680, 0.0
    %v783 = vadd.f32 %v781, %v782
    %v784 = vsel %vm507, %v681, 0.0
    %v785 = vadd.f32 %v783, %v784
    %v786 = vsel %vm507, %v682, 0.0
    %v787 = vadd.f32 %v785, %v786
    %v788 = vsel %vm507, %v683, 0.0
    %v789 = vadd.f32 %v787, %v788
    %v790 = vsel %vm507, %v684, 0.0
    %v791 = vadd.f32 %v789, %v790
    %v792 = vsel %vm507, %v685, 0.0
    %v793 = vadd.f32 %v791, %v792
    %v794 = vsel %vm507, %v686, 0.0
    %v795 = vadd.f32 %v793, %v794
    %v796 = vsel %vm507, %v687, 0.0
    %v797 = vadd.f32 %v795, %v796
    %v798 = vsel %vm507, %v688, 0.0
    %v799 = vadd.f32 %v797, %v798
    %v800 = vsel %vm507, %v689, 0.0
    %v801 = vadd.f32 %v799, %v800
    %v802 = vsel %vm507, %v690, 0.0
    %v803 = vadd.f32 %v801, %v802
    %v804 = vsel %vm507, %v691, 0.0
    %v805 = vadd.f32 %v803, %v804
    %v806 = vsel %vm507, %v692, 0.0
    %v807 = vadd.f32 %v805, %v806
    %v808 = vsel %vm507, %v693, 0.0
    %v809 = vadd.f32 %v807, %v808
    %v810 = vsel %vm507, %v694, 0.0
    %v811 = vadd.f32 %v809, %v810
    %v812 = vsel %vm507, %v695, 0.0
    %v813 = vadd.f32 %v811, %v812
    %v814 = vsel %vm507, %v696, 0.0
    %v815 = vadd.f32 %v813, %v814
    %v816 = vsel %vm507, %v697, 0.0
    %v817 = vadd.f32 %v815, %v816
    %v818 = vsel %vm507, %v698, 0.0
    %v819 = vadd.f32 %v817, %v818
    %v820 = vsel %vm507, %v699, 0.0
    %v821 = vadd.f32 %v819, %v820
    %v822 = vsel %vm507, %v700, 0.0
    %v823 = vadd.f32 %v821, %v822
    %v824 = vsel %vm507, %v701, 0.0
    %v825 = vadd.f32 %v823, %v824
    %v826 = vsel %vm507, %v702, 0.0
    %v827 = vadd.f32 %v825, %v826
    %v828 = vsel %vm507, %v703, 0.0
    %v829 = vadd.f32 %v827, %v828
    %v830 = vsel %vm507, %v704, 0.0
    %v831 = vadd.f32 %v829, %v830
    %v832 = vrot.slane %v831, 4
    %v833 = vadd.f32 %v831, %v832
    %v834 = vrot.slane %v833, 2
    %v835 = vadd.f32 %v833, %v834
    %v836 = vrot.slane %v835, 1
    %v837 = vadd.f32 %v835, %v836
    %v838 = vrcp.pop 512.0
    %v839 = vmul.f32 %v640, %v838
    %v840 = vmul.f32 %v837, %v838
    %v841 = vmul.f32 %v839, %v839
    %v842 = vsub.f32 %v840, %v841
    %v843 = vadd.f32 %v842, 1e-05
    %v844 = vrsqrt.pop %v843
    %v845 = vmul.f32 %v505, %v844
    %v846 = vmul.f32 %v839, %v845
    %v847 = vsub.f32 %v506, %v846
    %v848 = vlaneseq
    %v849 = vshrl.u32 %v848, 7
    %v850 = vsub.s32 0, %v849
    %v851 = vrot.slane %v845, %v850
    %v852 = vmul.f32 %v251, %v851
    %v853 = vmul.f32 %v254, %v851
    %v854 = vmul.f32 %v259, %v851
    %v855 = vmul.f32 %v262, %v851
    %v856 = vmul.f32 %v267, %v851
    %v857 = vmul.f32 %v270, %v851
    %v858 = vmul.f32 %v275, %v851
    %v859 = vmul.f32 %v278, %v851
    %v860 = vmul.f32 %v283, %v851
    %v861 = vmul.f32 %v286, %v851
    %v862 = vmul.f32 %v291, %v851
    %v863 = vmul.f32 %v294, %v851
    %v864 = vmul.f32 %v299, %v851
    %v865 = vmul.f32 %v302, %v851
    %v866 = vmul.f32 %v307, %v851
    %v867 = vmul.f32 %v310, %v851
    %v868 = vmul.f32 %v315, %v851
    %v869 = vmul.f32 %v318, %v851
    %v870 = vmul.f32 %v323, %v851
    %v871 = vmul.f32 %v326, %v851
    %v872 = vmul.f32 %v331, %v851
    %v873 = vmul.f32 %v334, %v851
    %v874 = vmul.f32 %v339, %v851
    %v875 = vmul.f32 %v342, %v851
    %v876 = vmul.f32 %v347, %v851
    %v877 = vmul.f32 %v350, %v851
    %v878 = vmul.f32 %v355, %v851
    %v879 = vmul.f32 %v358, %v851
    %v880 = vmul.f32 %v363, %v851
    %v881 = vmul.f32 %v366, %v851
    %v882 = vmul.f32 %v371, %v851
    %v883 = vmul.f32 %v374, %v851
    %v884 = vmul.f32 %v379, %v851
    %v885 = vmul.f32 %v382, %v851
    %v886 = vmul.f32 %v387, %v851
    %v887 = vmul.f32 %v390, %v851
    %v888 = vmul.f32 %v395, %v851
    %v889 = vmul.f32 %v398, %v851
    %v890 = vmul.f32 %v403, %v851
    %v891 = vmul.f32 %v406, %v851
    %v892 = vmul.f32 %v411, %v851
    %v893 = vmul.f32 %v414, %v851
    %v894 = vmul.f32 %v419, %v851
    %v895 = vmul.f32 %v422, %v851
    %v896 = vmul.f32 %v427, %v851
    %v897 = vmul.f32 %v430, %v851
    %v898 = vmul.f32 %v435, %v851
    %v899 = vmul.f32 %v438, %v851
    %v900 = vmul.f32 %v443, %v851
    %v901 = vmul.f32 %v446, %v851
    %v902 = vmul.f32 %v451, %v851
    %v903 = vmul.f32 %v454, %v851
    %v904 = vmul.f32 %v459, %v851
    %v905 = vmul.f32 %v462, %v851
    %v906 = vmul.f32 %v467, %v851
    %v907 = vmul.f32 %v470, %v851
    %v908 = vmul.f32 %v475, %v851
    %v909 = vmul.f32 %v478, %v851
    %v910 = vmul.f32 %v483, %v851
    %v911 = vmul.f32 %v486, %v851
    %v912 = vmul.f32 %v491, %v851
    %v913 = vmul.f32 %v494, %v851
    %v914 = vmul.f32 %v499, %v851
    %v915 = vmul.f32 %v502, %v851
    %v916 = vlaneseq
    %v917 = vshrl.u32 %v916, 7
    %v918 = vsub.s32 0, %v917
    %v919 = vrot.slane %v847, %v918
    %v920 = vadd.f32 %v852, %v919
    %v921 = vadd.f32 %v853, %v919
    %v922 = vadd.f32 %v854, %v919
    %v923 = vadd.f32 %v855, %v919
    %v924 = vadd.f32 %v856, %v919
    %v925 = vadd.f32 %v857, %v919
    %v926 = vadd.f32 %v858, %v919
    %v927 = vadd.f32 %v859, %v919
    %v928 = vadd.f32 %v860, %v919
    %v929 = vadd.f32 %v861, %v919
    %v930 = vadd.f32 %v862, %v919
    %v931 = vadd.f32 %v863, %v919
    %v932 = vadd.f32 %v864, %v919
    %v933 = vadd.f32 %v865, %v919
    %v934 = vadd.f32 %v866, %v919
    %v935 = vadd.f32 %v867, %v919
    %v936 = vadd.f32 %v868, %v919
    %v937 = vadd.f32 %v869, %v919
    %v938 = vadd.f32 %v870, %v919
    %v939 = vadd.f32 %v871, %v919
    %v940 = vadd.f32 %v872, %v919
    %v941 = vadd.f32 %v873, %v919
    %v942 = vadd.f32 %v874, %v919
    %v943 = vadd.f32 %v875, %v919
    %v944 = vadd.f32 %v876, %v919
    %v945 = vadd.f32 %v877, %v919
    %v946 = vadd.f32 %v878, %v919
    %v947 = vadd.f32 %v879, %v919
    %v948 = vadd.f32 %v880, %v919
    %v949 = vadd.f32 %v881, %v919
    %v950 = vadd.f32 %v882, %v919
    %v951 = vadd.f32 %v883, %v919
    %v952 = vadd.f32 %v884, %v919
    %v953 = vadd.f32 %v885, %v919
    %v954 = vadd.f32 %v886, %v919
    %v955 = vadd.f32 %v887, %v919
    %v956 = vadd.f32 %v888, %v919
    %v957 = vadd.f32 %v889, %v919
    %v958 = vadd.f32 %v890, %v919
    %v959 = vadd.f32 %v891, %v919
    %v960 = vadd.f32 %v892, %v919
    %v961 = vadd.f32 %v893, %v919
    %v962 = vadd.f32 %v894, %v919
    %v963 = vadd.f32 %v895, %v919
    %v964 = vadd.f32 %v896, %v919
    %v965 = vadd.f32 %v897, %v919
    %v966 = vadd.f32 %v898, %v919
    %v967 = vadd.f32 %v899, %v919
    %v968 = vadd.f32 %v900, %v919
    %v969 = vadd.f32 %v901, %v919
    %v970 = vadd.f32 %v902, %v919
    %v971 = vadd.f32 %v903, %v919
    %v972 = vadd.f32 %v904, %v919
    %v973 = vadd.f32 %v905, %v919
    %v974 = vadd.f32 %v906, %v919
    %v975 = vadd.f32 %v907, %v919
    %v976 = vadd.f32 %v908, %v919
    %v977 = vadd.f32 %v909, %v919
    %v978 = vadd.f32 %v910, %v919
    %v979 = vadd.f32 %v911, %v919
    %v980 = vadd.f32 %v912, %v919
    %v981 = vadd.f32 %v913, %v919
    %v982 = vadd.f32 %v914, %v919
    %v983 = vadd.f32 %v915, %v919
    %v984 = vmax.f32 %v920, 0.0
    %v985 = vmax.f32 %v921, 0.0
    %v986 = vmax.f32 %v922, 0.0
    %v987 = vmax.f32 %v923, 0.0
    %v988 = vmax.f32 %v924, 0.0
    %v989 = vmax.f32 %v925, 0.0
    %v990 = vmax.f32 %v926, 0.0
    %v991 = vmax.f32 %v927, 0.0
    %v992 = vmax.f32 %v928, 0.0
    %v993 = vmax.f32 %v929, 0.0
    %v994 = vmax.f32 %v930, 0.0
    %v995 = vmax.f32 %v931, 0.0
    %v996 = vmax.f32 %v932, 0.0
    %v997 = vmax.f32 %v933, 0.0
    %v998 = vmax.f32 %v934, 0.0
    %v999 = vmax.f32 %v935, 0.0
    %v1000 = vmax.f32 %v936, 0.0
    %v1001 = vmax.f32 %v937, 0.0
    %v1002 = vmax.f32 %v938, 0.0
    %v1003 = vmax.f32 %v939, 0.0
    %v1004 = vmax.f32 %v940, 0.0
    %v1005 = vmax.f32 %v941, 0.0
    %v1006 = vmax.f32 %v942, 0.0
    %v1007 = vmax.f32 %v943, 0.0
    %v1008 = vmax.f32 %v944, 0.0
    %v1009 = vmax.f32 %v945, 0.0
    %v1010 = vmax.f32 %v946, 0.0
    %v1011 = vmax.f32 %v947, 0.0
    %v1012 = vmax.f32 %v948, 0.0
    %v1013 = vmax.f32 %v949, 0.0
    %v1014 = vmax.f32 %v950, 0.0
    %v1015 = vmax.f32 %v951, 0.0
    %v1016 = vmax.f32 %v952, 0.0
    %v1017 = vmax.f32 %v953, 0.0
    %v1018 = vmax.f32 %v954, 0.0
    %v1019 = vmax.f32 %v955, 0.0
    %v1020 = vmax.f32 %v956, 0.0
    %v1021 = vmax.f32 %v957, 0.0
    %v1022 = vmax.f32 %v958, 0.0
    %v1023 = vmax.f32 %v959, 0.0
    %v1024 = vmax.f32 %v960, 0.0
    %v1025 = vmax.f32 %v961, 0.0
    %v1026 = vmax.f32 %v962, 0.0
    %v1027 = vmax.f32 %v963, 0.0
    %v1028 = vmax.f32 %v964, 0.0
    %v1029 = vmax.f32 %v965, 0.0
    %v1030 = vmax.f32 %v966, 0.0
    %v1031 = vmax.f32 %v967, 0.0
    %v1032 = vmax.f32 %v968, 0.0
    %v1033 = vmax.f32 %v969, 0.0
    %v1034 = vmax.f32 %v970, 0.0
    %v1035 = vmax.f32 %v971, 0.0
    %v1036 = vmax.f32 %v972, 0.0
    %v1037 = vmax.f32 %v973, 0.0
    %v1038 = vmax.f32 %v974, 0.0
    %v1039 = vmax.f32 %v975, 0.0
    %v1040 = vmax.f32 %v976, 0.0
    %v1041 = vmax.f32 %v977, 0.0
    %v1042 = vmax.f32 %v978, 0.0
    %v1043 = vmax.f32 %v979, 0.0
    %v1044 = vmax.f32 %v980, 0.0
    %v1045 = vmax.f32 %v981, 0.0
    %v1046 = vmax.f32 %v982, 0.0
    %v1047 = vmax.f32 %v983, 0.0
    %1048 = vst.msk [vmem:[#allocation2] sm:$0xff] %vm507, 0.0
    %1049 = vst.msk [vmem:[#allocation2 + $0x8] sm:$0xff] %vm507, 0.0
    %vm1050 = vcmask 254976
    %1051 = vst.msk [vmem:[#allocation2 + $0x10] sm:$0x3] %vm1050, 0.0
    %1052 = vst.msk [vmem:[#allocation2 + $0x1b0] sm:$0xff] %vm507, 0.0
    %1053 = vst.msk [vmem:[#allocation2 + $0x1b8] sm:$0xff] %vm507, 0.0
    %1054 = vst.msk [vmem:[#allocation2 + $0x1c0] sm:$0x3] %vm1050, 0.0
    %s1055 = scalar_lea.vmem [#allocation2], 408
    %1056 = vst.msk [vmem:[%s1055] sm:$0xff] %vm507, 0.0
    %1057 = vst.msk [vmem:[%s1055 + $0x8] sm:$0xff] %vm507, 0.0
    %1058 = vst.msk [vmem:[%s1055 + $0x10] sm:$0x3] %vm1050, 0.0
    %1059 = vst.msk [vmem:[%s1055 + $0x1b0] sm:$0xff] %vm507, 0.0
    %1060 = vst.msk [vmem:[%s1055 + $0x1b8] sm:$0xff] %vm507, 0.0
    %1061 = vst.msk [vmem:[%s1055 + $0x1c0] sm:$0x3] %vm1050, 0.0
    %s1062 = scalar_lea.vmem [#allocation2], 24
    %vm1063 = vcmask 253952
    %1064 = vst.msk [vmem:[%s1062] sm:$0x1] %vm1063, 0.0
    %1065 = vst.msk [vmem:[%s1062 + $0x18] sm:$0x1] %vm1063, 0.0
    %1066 = vst.msk [vmem:[%s1062 + $0x30] sm:$0x1] %vm1063, 0.0
    %1067 = vst.msk [vmem:[%s1062 + $0x48] sm:$0x1] %vm1063, 0.0
    %1068 = vst.msk [vmem:[%s1062 + $0x60] sm:$0x1] %vm1063, 0.0
    %1069 = vst.msk [vmem:[%s1062 + $0x78] sm:$0x1] %vm1063, 0.0
    %1070 = vst.msk [vmem:[%s1062 + $0x90] sm:$0x1] %vm1063, 0.0
    %1071 = vst.msk [vmem:[%s1062 + $0xa8] sm:$0x1] %vm1063, 0.0
    %1072 = vst.msk [vmem:[%s1062 + $0xc0] sm:$0x1] %vm1063, 0.0
    %1073 = vst.msk [vmem:[%s1062 + $0xd8] sm:$0x1] %vm1063, 0.0
    %1074 = vst.msk [vmem:[%s1062 + $0xf0] sm:$0x1] %vm1063, 0.0
    %1075 = vst.msk [vmem:[%s1062 + $0x108] sm:$0x1] %vm1063, 0.0
    %1076 = vst.msk [vmem:[%s1062 + $0x120] sm:$0x1] %vm1063, 0.0
    %1077 = vst.msk [vmem:[%s1062 + $0x138] sm:$0x1] %vm1063, 0.0
    %1078 = vst.msk [vmem:[%s1062 + $0x150] sm:$0x1] %vm1063, 0.0
    %1079 = vst.msk [vmem:[%s1062 + $0x168] sm:$0x1] %vm1063, 0.0
    %1080 = vst.msk [vmem:[%s1062 + $0x1b0] sm:$0x1] %vm1063, 0.0
    %1081 = vst.msk [vmem:[%s1062 + $0x1c8] sm:$0x1] %vm1063, 0.0
    %1082 = vst.msk [vmem:[%s1062 + $0x1e0] sm:$0x1] %vm1063, 0.0
    %1083 = vst.msk [vmem:[%s1062 + $0x1f8] sm:$0x1] %vm1063, 0.0
    %1084 = vst.msk [vmem:[%s1062 + $0x210] sm:$0x1] %vm1063, 0.0
    %1085 = vst.msk [vmem:[%s1062 + $0x228] sm:$0x1] %vm1063, 0.0
    %1086 = vst.msk [vmem:[%s1062 + $0x240] sm:$0x1] %vm1063, 0.0
    %1087 = vst.msk [vmem:[%s1062 + $0x258] sm:$0x1] %vm1063, 0.0
    %1088 = vst.msk [vmem:[%s1062 + $0x270] sm:$0x1] %vm1063, 0.0
    %1089 = vst.msk [vmem:[%s1062 + $0x288] sm:$0x1] %vm1063, 0.0
    %1090 = vst.msk [vmem:[%s1062 + $0x2a0] sm:$0x1] %vm1063, 0.0
    %1091 = vst.msk [vmem:[%s1062 + $0x2b8] sm:$0x1] %vm1063, 0.0
    %1092 = vst.msk [vmem:[%s1062 + $0x2d0] sm:$0x1] %vm1063, 0.0
    %1093 = vst.msk [vmem:[%s1062 + $0x2e8] sm:$0x1] %vm1063, 0.0
    %1094 = vst.msk [vmem:[%s1062 + $0x300] sm:$0x1] %vm1063, 0.0
    %1095 = vst.msk [vmem:[%s1062 + $0x318] sm:$0x1] %vm1063, 0.0
    %1096 = vst.msk [vmem:[%s1062 + $0x11] sm:$0x1] %vm1063, 0.0
    %1097 = vst.msk [vmem:[%s1062 + $0x29] sm:$0x1] %vm1063, 0.0
    %1098 = vst.msk [vmem:[%s1062 + $0x41] sm:$0x1] %vm1063, 0.0
    %1099 = vst.msk [vmem:[%s1062 + $0x59] sm:$0x1] %vm1063, 0.0
    %1100 = vst.msk [vmem:[%s1062 + $0x71] sm:$0x1] %vm1063, 0.0
    %1101 = vst.msk [vmem:[%s1062 + $0x89] sm:$0x1] %vm1063, 0.0
    %1102 = vst.msk [vmem:[%s1062 + $0xa1] sm:$0x1] %vm1063, 0.0
    %1103 = vst.msk [vmem:[%s1062 + $0xb9] sm:$0x1] %vm1063, 0.0
    %1104 = vst.msk [vmem:[%s1062 + $0xd1] sm:$0x1] %vm1063, 0.0
    %1105 = vst.msk [vmem:[%s1062 + $0xe9] sm:$0x1] %vm1063, 0.0
    %1106 = vst.msk [vmem:[%s1062 + $0x101] sm:$0x1] %vm1063, 0.0
    %1107 = vst.msk [vmem:[%s1062 + $0x119] sm:$0x1] %vm1063, 0.0
    %1108 = vst.msk [vmem:[%s1062 + $0x131] sm:$0x1] %vm1063, 0.0
    %1109 = vst.msk [vmem:[%s1062 + $0x149] sm:$0x1] %vm1063, 0.0
    %1110 = vst.msk [vmem:[%s1062 + $0x161] sm:$0x1] %vm1063, 0.0
    %1111 = vst.msk [vmem:[%s1062 + $0x179] sm:$0x1] %vm1063, 0.0
    %1112 = vst.msk [vmem:[%s1062 + $0x1c1] sm:$0x1] %vm1063, 0.0
    %1113 = vst.msk [vmem:[%s1062 + $0x1d9] sm:$0x1] %vm1063, 0.0
    %1114 = vst.msk [vmem:[%s1062 + $0x1f1] sm:$0x1] %vm1063, 0.0
    %1115 = vst.msk [vmem:[%s1062 + $0x209] sm:$0x1] %vm1063, 0.0
    %1116 = vst.msk [vmem:[%s1062 + $0x221] sm:$0x1] %vm1063, 0.0
    %1117 = vst.msk [vmem:[%s1062 + $0x239] sm:$0x1] %vm1063, 0.0
    %1118 = vst.msk [vmem:[%s1062 + $0x251] sm:$0x1] %vm1063, 0.0
    %1119 = vst.msk [vmem:[%s1062 + $0x269] sm:$0x1] %vm1063, 0.0
    %1120 = vst.msk [vmem:[%s1062 + $0x281] sm:$0x1] %vm1063, 0.0
    %1121 = vst.msk [vmem:[%s1062 + $0x299] sm:$0x1] %vm1063, 0.0
    %1122 = vst.msk [vmem:[%s1062 + $0x2b1] sm:$0x1] %vm1063, 0.0
    %1123 = vst.msk [vmem:[%s1062 + $0x2c9] sm:$0x1] %vm1063, 0.0
    %1124 = vst.msk [vmem:[%s1062 + $0x2e1] sm:$0x1] %vm1063, 0.0
    %1125 = vst.msk [vmem:[%s1062 + $0x2f9] sm:$0x1] %vm1063, 0.0
    %1126 = vst.msk [vmem:[%s1062 + $0x311] sm:$0x1] %vm1063, 0.0
    %1127 = vst.msk [vmem:[%s1062 + $0x329] sm:$0x1] %vm1063, 0.0
    %1128 = vst.msk [vmem:[%s1062 + $0x1] sm:$0xff] %vm507, %v984
    %1129 = vst.msk [vmem:[%s1062 + $0x9] sm:$0xff] %vm507, %v985
    %1130 = vst.msk [vmem:[%s1062 + $0x19] sm:$0xff] %vm507, %v986
    %1131 = vst.msk [vmem:[%s1062 + $0x21] sm:$0xff] %vm507, %v987
    %1132 = vst.msk [vmem:[%s1062 + $0x31] sm:$0xff] %vm507, %v988
    %1133 = vst.msk [vmem:[%s1062 + $0x39] sm:$0xff] %vm507, %v989
    %1134 = vst.msk [vmem:[%s1062 + $0x49] sm:$0xff] %vm507, %v990
    %1135 = vst.msk [vmem:[%s1062 + $0x51] sm:$0xff] %vm507, %v991
    %1136 = vst.msk [vmem:[%s1062 + $0x61] sm:$0xff] %vm507, %v992
    %1137 = vst.msk [vmem:[%s1062 + $0x69] sm:$0xff] %vm507, %v993
    %1138 = vst.msk [vmem:[%s1062 + $0x79] sm:$0xff] %vm507, %v994
    %1139 = vst.msk [vmem:[%s1062 + $0x81] sm:$0xff] %vm507, %v995
    %1140 = vst.msk [vmem:[%s1062 + $0x91] sm:$0xff] %vm507, %v996
    %1141 = vst.msk [vmem:[%s1062 + $0x99] sm:$0xff] %vm507, %v997
    %1142 = vst.msk [vmem:[%s1062 + $0xa9] sm:$0xff] %vm507, %v998
    %1143 = vst.msk [vmem:[%s1062 + $0xb1] sm:$0xff] %vm507, %v999
    %1144 = vst.msk [vmem:[%s1062 + $0xc1] sm:$0xff] %vm507, %v1000
    %1145 = vst.msk [vmem:[%s1062 + $0xc9] sm:$0xff] %vm507, %v1001
    %1146 = vst.msk [vmem:[%s1062 + $0xd9] sm:$0xff] %vm507, %v1002
    %1147 = vst.msk [vmem:[%s1062 + $0xe1] sm:$0xff] %vm507, %v1003
    %1148 = vst.msk [vmem:[%s1062 + $0xf1] sm:$0xff] %vm507, %v1004
    %1149 = vst.msk [vmem:[%s1062 + $0xf9] sm:$0xff] %vm507, %v1005
    %1150 = vst.msk [vmem:[%s1062 + $0x109] sm:$0xff] %vm507, %v1006
    %1151 = vst.msk [vmem:[%s1062 + $0x111] sm:$0xff] %vm507, %v1007
    %1152 = vst.msk [vmem:[%s1062 + $0x121] sm:$0xff] %vm507, %v1008
    %1153 = vst.msk [vmem:[%s1062 + $0x129] sm:$0xff] %vm507, %v1009
    %1154 = vst.msk [vmem:[%s1062 + $0x139] sm:$0xff] %vm507, %v1010
    %1155 = vst.msk [vmem:[%s1062 + $0x141] sm:$0xff] %vm507, %v1011
    %1156 = vst.msk [vmem:[%s1062 + $0x151] sm:$0xff] %vm507, %v1012
    %1157 = vst.msk [vmem:[%s1062 + $0x159] sm:$0xff] %vm507, %v1013
    %1158 = vst.msk [vmem:[%s1062 + $0x169] sm:$0xff] %vm507, %v1014
    %1159 = vst.msk [vmem:[%s1062 + $0x171] sm:$0xff] %vm507, %v1015
    %1160 = vst.msk [vmem:[%s1062 + $0x1b1] sm:$0xff] %vm507, %v1016
    %1161 = vst.msk [vmem:[%s1062 + $0x1b9] sm:$0xff] %vm507, %v1017
    %1162 = vst.msk [vmem:[%s1062 + $0x1c9] sm:$0xff] %vm507, %v1018
    %1163 = vst.msk [vmem:[%s1062 + $0x1d1] sm:$0xff] %vm507, %v1019
    %1164 = vst.msk [vmem:[%s1062 + $0x1e1] sm:$0xff] %vm507, %v1020
    %1165 = vst.msk [vmem:[%s1062 + $0x1e9] sm:$0xff] %vm507, %v1021
    %1166 = vst.msk [vmem:[%s1062 + $0x1f9] sm:$0xff] %vm507, %v1022
    %1167 = vst.msk [vmem:[%s1062 + $0x201] sm:$0xff] %vm507, %v1023
    %1168 = vst.msk [vmem:[%s1062 + $0x211] sm:$0xff] %vm507, %v1024
    %1169 = vst.msk [vmem:[%s1062 + $0x219] sm:$0xff] %vm507, %v1025
    %1170 = vst.msk [vmem:[%s1062 + $0x229] sm:$0xff] %vm507, %v1026
    %1171 = vst.msk [vmem:[%s1062 + $0x231] sm:$0xff] %vm507, %v1027
    %1172 = vst.msk [vmem:[%s1062 + $0x241] sm:$0xff] %vm507, %v1028
    %1173 = vst.msk [vmem:[%s1062 + $0x249] sm:$0xff] %vm507, %v1029
    %1174 = vst.msk [vmem:[%s1062 + $0x259] sm:$0xff] %vm507, %v1030
    %1175 = vst.msk [vmem:[%s1062 + $0x261] sm:$0xff] %vm507, %v1031
    %1176 = vst.msk [vmem:[%s1062 + $0x271] sm:$0xff] %vm507, %v1032
    %1177 = vst.msk [vmem:[%s1062 + $0x279] sm:$0xff] %vm507, %v1033
    %1178 = vst.msk [vmem:[%s1062 + $0x289] sm:$0xff] %vm507, %v1034
    %1179 = vst.msk [vmem:[%s1062 + $0x291] sm:$0xff] %vm507, %v1035
    %1180 = vst.msk [vmem:[%s1062 + $0x2a1] sm:$0xff] %vm507, %v1036
    %1181 = vst.msk [vmem:[%s1062 + $0x2a9] sm:$0xff] %vm507, %v1037
    %1182 = vst.msk [vmem:[%s1062 + $0x2b9] sm:$0xff] %vm507, %v1038
    %1183 = vst.msk [vmem:[%s1062 + $0x2c1] sm:$0xff] %vm507, %v1039
    %1184 = vst.msk [vmem:[%s1062 + $0x2d1] sm:$0xff] %vm507, %v1040
    %1185 = vst.msk [vmem:[%s1062 + $0x2d9] sm:$0xff] %vm507, %v1041
    %1186 = vst.msk [vmem:[%s1062 + $0x2e9] sm:$0xff] %vm507, %v1042
    %1187 = vst.msk [vmem:[%s1062 + $0x2f1] sm:$0xff] %vm507, %v1043
    %1188 = vst.msk [vmem:[%s1062 + $0x301] sm:$0xff] %vm507, %v1044
    %1189 = vst.msk [vmem:[%s1062 + $0x309] sm:$0xff] %vm507, %v1045
    %1190 = vst.msk [vmem:[%s1062 + $0x319] sm:$0xff] %vm507, %v1046
    %1191 = vst.msk [vmem:[%s1062 + $0x321] sm:$0xff] %vm507, %v1047
    %v1192 = vld [vmem:[#allocation2] sm:$0xff]
    %v1193 = vld [vmem:[#allocation2 + $0x8] sm:$0xff]
    %v1194 = vld [vmem:[#allocation2 + $0x18] sm:$0xff]
    %v1195 = vld [vmem:[#allocation2 + $0x20] sm:$0xff]
    %v1196 = vld [vmem:[#allocation2 + $0x30] sm:$0xff]
    %v1197 = vld [vmem:[#allocation2 + $0x38] sm:$0xff]
    %v1198 = vld [vmem:[#allocation2 + $0x48] sm:$0xff]
    %v1199 = vld [vmem:[#allocation2 + $0x50] sm:$0xff]
    %v1200 = vld [vmem:[#allocation2 + $0x60] sm:$0xff]
    %v1201 = vld [vmem:[#allocation2 + $0x68] sm:$0xff]
    %v1202 = vld [vmem:[#allocation2 + $0x78] sm:$0xff]
    %v1203 = vld [vmem:[#allocation2 + $0x80] sm:$0xff]
    %v1204 = vld [vmem:[#allocation2 + $0x90] sm:$0xff]
    %v1205 = vld [vmem:[#allocation2 + $0x98] sm:$0xff]
    %v1206 = vld [vmem:[#allocation2 + $0xa8] sm:$0xff]
    %v1207 = vld [vmem:[#allocation2 + $0xb0] sm:$0xff]
    %v1208 = vld [vmem:[#allocation2 + $0xc0] sm:$0xff]
    %v1209 = vld [vmem:[#allocation2 + $0xc8] sm:$0xff]
    %v1210 = vld [vmem:[#allocation2 + $0xd8] sm:$0xff]
    %v1211 = vld [vmem:[#allocation2 + $0xe0] sm:$0xff]
    %v1212 = vld [vmem:[#allocation2 + $0xf0] sm:$0xff]
    %v1213 = vld [vmem:[#allocation2 + $0xf8] sm:$0xff]
    %v1214 = vld [vmem:[#allocation2 + $0x108] sm:$0xff]
    %v1215 = vld [vmem:[#allocation2 + $0x110] sm:$0xff]
    %v1216 = vld [vmem:[#allocation2 + $0x120] sm:$0xff]
    %v1217 = vld [vmem:[#allocation2 + $0x128] sm:$0xff]
    %v1218 = vld [vmem:[#allocation2 + $0x138] sm:$0xff]
    %v1219 = vld [vmem:[#allocation2 + $0x140] sm:$0xff]
    %v1220 = vld [vmem:[#allocation2 + $0x150] sm:$0xff]
    %v1221 = vld [vmem:[#allocation2 + $0x158] sm:$0xff]
    %v1222 = vld [vmem:[#allocation2 + $0x168] sm:$0xff]
    %v1223 = vld [vmem:[#allocation2 + $0x170] sm:$0xff]
    %v1224 = vld [vmem:[#allocation2 + $0x1b0] sm:$0xff]
    %v1225 = vld [vmem:[#allocation2 + $0x1b8] sm:$0xff]
    %v1226 = vld [vmem:[#allocation2 + $0x1c8] sm:$0xff]
    %v1227 = vld [vmem:[#allocation2 + $0x1d0] sm:$0xff]
    %v1228 = vld [vmem:[#allocation2 + $0x1e0] sm:$0xff]
    %v1229 = vld [vmem:[#allocation2 + $0x1e8] sm:$0xff]
    %v1230 = vld [vmem:[#allocation2 + $0x1f8] sm:$0xff]
    %v1231 = vld [vmem:[#allocation2 + $0x200] sm:$0xff]
    %v1232 = vld [vmem:[#allocation2 + $0x210] sm:$0xff]
    %v1233 = vld [vmem:[#allocation2 + $0x218] sm:$0xff]
    %v1234 = vld [vmem:[#allocation2 + $0x228] sm:$0xff]
    %v1235 = vld [vmem:[#allocation2 + $0x230] sm:$0xff]
    %v1236 = vld [vmem:[#allocation2 + $0x240] sm:$0xff]
    %v1237 = vld [vmem:[#allocation2 + $0x248] sm:$0xff]
    %v1238 = vld [vmem:[#allocation2 + $0x258] sm:$0xff]
    %v1239 = vld [vmem:[#allocation2 + $0x260] sm:$0xff]
    %v1240 = vld [vmem:[#allocation2 + $0x270] sm:$0xff]
    %v1241 = vld [vmem:[#allocation2 + $0x278] sm:$0xff]
    %v1242 = vld [vmem:[#allocation2 + $0x288] sm:$0xff]
    %v1243 = vld [vmem:[#allocation2 + $0x290] sm:$0xff]
    %v1244 = vld [vmem:[#allocation2 + $0x2a0] sm:$0xff]
    %v1245 = vld [vmem:[#allocation2 + $0x2a8] sm:$0xff]
    %v1246 = vld [vmem:[#allocation2 + $0x2b8] sm:$0xff]
    %v1247 = vld [vmem:[#allocation2 + $0x2c0] sm:$0xff]
    %v1248 = vld [vmem:[#allocation2 + $0x2d0] sm:$0xff]
    %v1249 = vld [vmem:[#allocation2 + $0x2d8] sm:$0xff]
    %v1250 = vld [vmem:[#allocation2 + $0x2e8] sm:$0xff]
    %v1251 = vld [vmem:[#allocation2 + $0x2f0] sm:$0xff]
    %v1252 = vld [vmem:[#allocation2 + $0x300] sm:$0xff]
    %v1253 = vld [vmem:[#allocation2 + $0x308] sm:$0xff]
    %v1254 = vld [vmem:[#allocation2 + $0x318] sm:$0xff]
    %v1255 = vld [vmem:[#allocation2 + $0x320] sm:$0xff]
    %v1256 = vpack.c.bf16 %v1193, %v1192
    %v1257 = vpack.c.bf16 %v1195, %v1194
    %v1258 = vpack.c.bf16 %v1197, %v1196
    %v1259 = vpack.c.bf16 %v1199, %v1198
    %v1260 = vpack.c.bf16 %v1201, %v1200
    %v1261 = vpack.c.bf16 %v1203, %v1202
    %v1262 = vpack.c.bf16 %v1205, %v1204
    %v1263 = vpack.c.bf16 %v1207, %v1206
    %v1264 = vpack.c.bf16 %v1209, %v1208
    %v1265 = vpack.c.bf16 %v1211, %v1210
    %v1266 = vpack.c.bf16 %v1213, %v1212
    %v1267 = vpack.c.bf16 %v1215, %v1214
    %v1268 = vpack.c.bf16 %v1217, %v1216
    %v1269 = vpack.c.bf16 %v1219, %v1218
    %v1270 = vpack.c.bf16 %v1221, %v1220
    %v1271 = vpack.c.bf16 %v1223, %v1222
    %v1272 = vpack.c.bf16 %v1225, %v1224
    %v1273 = vpack.c.bf16 %v1227, %v1226
    %v1274 = vpack.c.bf16 %v1229, %v1228
    %v1275 = vpack.c.bf16 %v1231, %v1230
    %v1276 = vpack.c.bf16 %v1233, %v1232
    %v1277 = vpack.c.bf16 %v1235, %v1234
    %v1278 = vpack.c.bf16 %v1237, %v1236
    %v1279 = vpack.c.bf16 %v1239, %v1238
    %v1280 = vpack.c.bf16 %v1241, %v1240
    %v1281 = vpack.c.bf16 %v1243, %v1242
    %v1282 = vpack.c.bf16 %v1245, %v1244
    %v1283 = vpack.c.bf16 %v1247, %v1246
    %v1284 = vpack.c.bf16 %v1249, %v1248
    %v1285 = vpack.c.bf16 %v1251, %v1250
    %v1286 = vpack.c.bf16 %v1253, %v1252
    %v1287 = vpack.c.bf16 %v1255, %v1254
    %v1288 = vld [vmem:[#allocation6] sm:$0xf]
    %v1289 = vld [vmem:[#allocation6 + $0x4] sm:$0xf]
    %v1290 = vld [vmem:[#allocation6 + $0x8] sm:$0xf]
    %v1291 = vld [vmem:[#allocation6 + $0xc] sm:$0xf]
    %v1292 = vld [vmem:[#allocation2 + $0x1] sm:$0xff]
    %v1293 = vld [vmem:[#allocation2 + $0x9] sm:$0xff]
    %v1294 = vld [vmem:[#allocation2 + $0x19] sm:$0xff]
    %v1295 = vld [vmem:[#allocation2 + $0x21] sm:$0xff]
    %v1296 = vld [vmem:[#allocation2 + $0x31] sm:$0xff]
    %v1297 = vld [vmem:[#allocation2 + $0x39] sm:$0xff]
    %v1298 = vld [vmem:[#allocation2 + $0x49] sm:$0xff]
    %v1299 = vld [vmem:[#allocation2 + $0x51] sm:$0xff]
    %v1300 = vld [vmem:[#allocation2 + $0x61] sm:$0xff]
    %v1301 = vld [vmem:[#allocation2 + $0x69] sm:$0xff]
    %v1302 = vld [vmem:[#allocation2 + $0x79] sm:$0xff]
    %v1303 = vld [vmem:[#allocation2 + $0x81] sm:$0xff]
    %v1304 = vld [vmem:[#allocation2 + $0x91] sm:$0xff]
    %v1305 = vld [vmem:[#allocation2 + $0x99] sm:$0xff]
    %v1306 = vld [vmem:[#allocation2 + $0xa9] sm:$0xff]
    %v1307 = vld [vmem:[#allocation2 + $0xb1] sm:$0xff]
    %v1308 = vld [vmem:[#allocation2 + $0xc1] sm:$0xff]
    %v1309 = vld [vmem:[#allocation2 + $0xc9] sm:$0xff]
    %v1310 = vld [vmem:[#allocation2 + $0xd9] sm:$0xff]
    %v1311 = vld [vmem:[#allocation2 + $0xe1] sm:$0xff]
    %v1312 = vld [vmem:[#allocation2 + $0xf1] sm:$0xff]
    %v1313 = vld [vmem:[#allocation2 + $0xf9] sm:$0xff]
    %v1314 = vld [vmem:[#allocation2 + $0x109] sm:$0xff]
    %v1315 = vld [vmem:[#allocation2 + $0x111] sm:$0xff]
    %v1316 = vld [vmem:[#allocation2 + $0x121] sm:$0xff]
    %v1317 = vld [vmem:[#allocation2 + $0x129] sm:$0xff]
    %v1318 = vld [vmem:[#allocation2 + $0x139] sm:$0xff]
    %v1319 = vld [vmem:[#allocation2 + $0x141] sm:$0xff]
    %v1320 = vld [vmem:[#allocation2 + $0x151] sm:$0xff]
    %v1321 = vld [vmem:[#allocation2 + $0x159] sm:$0xff]
    %v1322 = vld [vmem:[#allocation2 + $0x169] sm:$0xff]
    %v1323 = vld [vmem:[#allocation2 + $0x171] sm:$0xff]
    %v1324 = vld [vmem:[#allocation2 + $0x1b1] sm:$0xff]
    %v1325 = vld [vmem:[#allocation2 + $0x1b9] sm:$0xff]
    %v1326 = vld [vmem:[#allocation2 + $0x1c9] sm:$0xff]
    %v1327 = vld [vmem:[#allocation2 + $0x1d1] sm:$0xff]
    %v1328 = vld [vmem:[#allocation2 + $0x1e1] sm:$0xff]
    %v1329 = vld [vmem:[#allocation2 + $0x1e9] sm:$0xff]
    %v1330 = vld [vmem:[#allocation2 + $0x1f9] sm:$0xff]
    %v1331 = vld [vmem:[#allocation2 + $0x201] sm:$0xff]
    %v1332 = vld [vmem:[#allocation2 + $0x211] sm:$0xff]
    %v1333 = vld [vmem:[#allocation2 + $0x219] sm:$0xff]
    %v1334 = vld [vmem:[#allocation2 + $0x229] sm:$0xff]
    %v1335 = vld [vmem:[#allocation2 + $0x231] sm:$0xff]
    %v1336 = vld [vmem:[#allocation2 + $0x241] sm:$0xff]
    %v1337 = vld [vmem:[#allocation2 + $0x249] sm:$0xff]
    %v1338 = vld [vmem:[#allocation2 + $0x259] sm:$0xff]
    %v1339 = vld [vmem:[#allocation2 + $0x261] sm:$0xff]
    %v1340 = vld [vmem:[#allocation2 + $0x271] sm:$0xff]
    %v1341 = vld [vmem:[#allocation2 + $0x279] sm:$0xff]
    %v1342 = vld [vmem:[#allocation2 + $0x289] sm:$0xff]
    %v1343 = vld [vmem:[#allocation2 + $0x291] sm:$0xff]
    %v1344 = vld [vmem:[#allocation2 + $0x2a1] sm:$0xff]
    %v1345 = vld [vmem:[#allocation2 + $0x2a9] sm:$0xff]
    %v1346 = vld [vmem:[#allocation2 + $0x2b9] sm:$0xff]
    %v1347 = vld [vmem:[#allocation2 + $0x2c1] sm:$0xff]
    %v1348 = vld [vmem:[#allocation2 + $0x2d1] sm:$0xff]
    %v1349 = vld [vmem:[#allocation2 + $0x2d9] sm:$0xff]
    %v1350 = vld [vmem:[#allocation2 + $0x2e9] sm:$0xff]
    %v1351 = vld [vmem:[#allocation2 + $0x2f1] sm:$0xff]
    %v1352 = vld [vmem:[#allocation2 + $0x301] sm:$0xff]
    %v1353 = vld [vmem:[#allocation2 + $0x309] sm:$0xff]
    %v1354 = vld [vmem:[#allocation2 + $0x319] sm:$0xff]
    %v1355 = vld [vmem:[#allocation2 + $0x321] sm:$0xff]
    %v1356 = vpack.c.bf16 %v1293, %v1292
    %v1357 = vpack.c.bf16 %v1295, %v1294
    %v1358 = vpack.c.bf16 %v1297, %v1296
    %v1359 = vpack.c.bf16 %v1299, %v1298
    %v1360 = vpack.c.bf16 %v1301, %v1300
    %v1361 = vpack.c.bf16 %v1303, %v1302
    %v1362 = vpack.c.bf16 %v1305, %v1304
    %v1363 = vpack.c.bf16 %v1307, %v1306
    %v1364 = vpack.c.bf16 %v1309, %v1308
    %v1365 = vpack.c.bf16 %v1311, %v1310
    %v1366 = vpack.c.bf16 %v1313, %v1312
    %v1367 = vpack.c.bf16 %v1315, %v1314
    %v1368 = vpack.c.bf16 %v1317, %v1316
    %v1369 = vpack.c.bf16 %v1319, %v1318
    %v1370 = vpack.c.bf16 %v1321, %v1320
    %v1371 = vpack.c.bf16 %v1323, %v1322
    %v1372 = vpack.c.bf16 %v1325, %v1324
    %v1373 = vpack.c.bf16 %v1327, %v1326
    %v1374 = vpack.c.bf16 %v1329, %v1328
    %v1375 = vpack.c.bf16 %v1331, %v1330
    %v1376 = vpack.c.bf16 %v1333, %v1332
    %v1377 = vpack.c.bf16 %v1335, %v1334
    %v1378 = vpack.c.bf16 %v1337, %v1336
    %v1379 = vpack.c.bf16 %v1339, %v1338
    %v1380 = vpack.c.bf16 %v1341, %v1340
    %v1381 = vpack.c.bf16 %v1343, %v1342
    %v1382 = vpack.c.bf16 %v1345, %v1344
    %v1383 = vpack.c.bf16 %v1347, %v1346
    %v1384 = vpack.c.bf16 %v1349, %v1348
    %v1385 = vpack.c.bf16 %v1351, %v1350
    %v1386 = vpack.c.bf16 %v1353, %v1352
    %v1387 = vpack.c.bf16 %v1355, %v1354
    %s1388 = scalar_lea.vmem [#allocation6], 16
    %v1389 = vld [vmem:[%s1388] sm:$0xf]
    %v1390 = vld [vmem:[%s1388 + $0x4] sm:$0xf]
    %v1391 = vld [vmem:[%s1388 + $0x8] sm:$0xf]
    %v1392 = vld [vmem:[%s1388 + $0xc] sm:$0xf]
    %v1397 = vunpack.c.l.b16 %v1389
    %v1398 = vunpack.c.l.b16 %v1390
    %v1399 = vunpack.c.l.b16 %v1391
    %v1400 = vunpack.c.l.b16 %v1392
    %v1401 = vpack.c.b16 %v1398, %v1397
    %v1402 = vpack.c.b16 %v1400, %v1399
    %v1406 = vsel %vm507, %v1356, 0
    %v1409 = vsel %vm507, %v1357, 0
    %v1412 = vsel %vm507, %v1358, 0
    %v1415 = vsel %vm507, %v1359, 0
    %v1418 = vsel %vm507, %v1360, 0
    %v1421 = vsel %vm507, %v1361, 0
    %v1424 = vsel %vm507, %v1362, 0
    %v1427 = vsel %vm507, %v1363, 0
    %v1430 = vsel %vm507, %v1364, 0
    %v1433 = vsel %vm507, %v1365, 0
    %v1436 = vsel %vm507, %v1366, 0
    %v1439 = vsel %vm507, %v1367, 0
    %v1442 = vsel %vm507, %v1368, 0
    %v1445 = vsel %vm507, %v1369, 0
    %v1448 = vsel %vm507, %v1370, 0
    %v1451 = vsel %vm507, %v1371, 0
    %v1454 = vsel %vm507, %v1372, 0
    %v1457 = vsel %vm507, %v1373, 0
    %v1460 = vsel %vm507, %v1374, 0
    %v1463 = vsel %vm507, %v1375, 0
    %v1466 = vsel %vm507, %v1376, 0
    %v1469 = vsel %vm507, %v1377, 0
    %v1472 = vsel %vm507, %v1378, 0
    %v1475 = vsel %vm507, %v1379, 0
    %v1478 = vsel %vm507, %v1380, 0
    %v1481 = vsel %vm507, %v1381, 0
    %v1484 = vsel %vm507, %v1382, 0
    %v1487 = vsel %vm507, %v1383, 0
    %v1490 = vsel %vm507, %v1384, 0
    %v1493 = vsel %vm507, %v1385, 0
    %v1496 = vsel %vm507, %v1386, 0
    %v1499 = vsel %vm507, %v1387, 0
    %1501 = vmatprep.subr.bf16.mxu0 0
    %1502 = vmatpush1.bf16.msra.mxu0 %v1401
    %1503 = vmatprep.subr.bf16.mxu0 0
    %1504 = vmatpush1.bf16.msra.mxu0 %v1402
    %1505 = vmatprep.subr.bf16.mxu0 0
    %1506 = vmatpush1.bf16.msra.mxu0 0
    %1507 = vmatprep.subr.bf16.mxu0 0
    %1508 = vmatpush1.bf16.msra.mxu0 0
    %1509 = vmatprep.subr.bf16.mxu0 0
    %1510 = vmatpush1.bf16.msra.mxu0 0
    %1511 = vmatprep.subr.bf16.mxu0 0
    %1512 = vmatpush1.bf16.msra.mxu0 0
    %1513 = vmatprep.subr.bf16.mxu0 0
    %1514 = vmatpush1.bf16.msra.mxu0 0
    %1515 = vmatprep.subr.bf16.mxu0 0
    %1516 = vmatpush1.bf16.msra.mxu0 0
    %1517 = vmatprep.subr.bf16.mxu0 0
    %1518 = vmatpush1.bf16.msra.mxu0 0
    %1519 = vmatprep.subr.bf16.mxu0 0
    %1520 = vmatpush1.bf16.msra.mxu0 0
    %1521 = vmatprep.subr.bf16.mxu0 0
    %1522 = vmatpush1.bf16.msra.mxu0 0
    %1523 = vmatprep.subr.bf16.mxu0 0
    %1524 = vmatpush1.bf16.msra.mxu0 0
    %1525 = vmatprep.subr.bf16.mxu0 0
    %1526 = vmatpush1.bf16.msra.mxu0 0
    %1527 = vmatprep.subr.bf16.mxu0 0
    %1528 = vmatpush1.bf16.msra.mxu0 0
    %1529 = vmatprep.subr.bf16.mxu0 0
    %1530 = vmatpush1.bf16.msra.mxu0 0
    %1531 = vmatprep.subr.bf16.mxu0 0
    %1532 = vmatpush1.bf16.msra.mxu0 0
    %1533 = vmatprep.mubr.bf16.mxu0 0
    %1534 = vmatmul.mubr.bf16.gmra.mrb[0].mxu0 %v1406
    %v1535 = vpop.f32.mrb[0].mxu0
    %v1536 = vadd.f32 0.0, %v1535
    %v1537 = vpop.f32.mrb[0].mxu0
    %v1538 = vpop.f32.mrb[0].mxu0
    %v1539 = vadd.f32 0.0, %v1538
    %v1540 = vpop.f32.mrb[0].mxu0
    %1541 = vmatprep.mubr.bf16.mxu0 0
    %1542 = vmatmul.mubr.bf16.gmra.mrb[0].mxu0 %v1409
    %v1543 = vpop.f32.mrb[0].mxu0
    %v1544 = vadd.f32 0.0, %v1543
    %v1545 = vpop.f32.mrb[0].mxu0
    %v1546 = vpop.f32.mrb[0].mxu0
    %v1547 = vadd.f32 0.0, %v1546
    %v1548 = vpop.f32.mrb[0].mxu0
    %1549 = vmatprep.mubr.bf16.mxu0 0
    %1550 = vmatmul.mubr.bf16.gmra.mrb[0].mxu0 %v1412
    %v1551 = vpop.f32.mrb[0].mxu0
    %v1552 = vadd.f32 0.0, %v1551
    %v1553 = vpop.f32.mrb[0].mxu0
    %v1554 = vpop.f32.mrb[0].mxu0
    %v1555 = vadd.f32 0.0, %v1554
    %v1556 = vpop.f32.mrb[0].mxu0
    %1557 = vmatprep.mubr.bf16.mxu0 0
    %1558 = vmatmul.mubr.bf16.gmra.mrb[0].mxu0 %v1415
    %v1559 = vpop.f32.mrb[0].mxu0
    %v1560 = vadd.f32 0.0, %v1559
    %v1561 = vpop.f32.mrb[0].mxu0
    %v1562 = vpop.f32.mrb[0].mxu0
    %v1563 = vadd.f32 0.0, %v1562
    %v1564 = vpop.f32.mrb[0].mxu0
    %1565 = vmatprep.mubr.bf16.mxu0 0
    %1566 = vmatmul.mubr.bf16.gmra.mrb[0].mxu0 %v1418
    %v1567 = vpop.f32.mrb[0].mxu0
    %v1568 = vadd.f32 0.0, %v1567
    %v1569 = vpop.f32.mrb[0].mxu0
    %v1570 = vpop.f32.mrb[0].mxu0
    %v1571 = vadd.f32 0.0, %v1570
    %v1572 = vpop.f32.mrb[0].mxu0
    %1573 = vmatprep.mubr.bf16.mxu0 0
    %1574 = vmatmul.mubr.bf16.gmra.mrb[0].mxu0 %v1421
    %v1575 = vpop.f32.mrb[0].mxu0
    %v1576 = vadd.f32 0.0, %v1575
    %v1577 = vpop.f32.mrb[0].mxu0
    %v1578 = vpop.f32.mrb[0].mxu0
    %v1579 = vadd.f32 0.0, %v1578
    %v1580 = vpop.f32.mrb[0].mxu0
    %1581 = vmatprep.mubr.bf16.mxu0 0
    %1582 = vmatmul.mubr.bf16.gmra.mrb[0].mxu0 %v1424
    %v1583 = vpop.f32.mrb[0].mxu0
    %v1584 = vadd.f32 0.0, %v1583
    %v1585 = vpop.f32.mrb[0].mxu0
    %v1586 = vpop.f32.mrb[0].mxu0
    %v1587 = vadd.f32 0.0, %v1586
    %v1588 = vpop.f32.mrb[0].mxu0
    %1589 = vmatprep.mubr.bf16.mxu0 0
    %1590 = vmatmul.mubr.bf16.gmra.mrb[0].mxu0 %v1427
    %v1591 = vpop.f32.mrb[0].mxu0
    %v1592 = vadd.f32 0.0, %v1591
    %v1593 = vpop.f32.mrb[0].mxu0
    %v1594 = vpop.f32.mrb[0].mxu0
    %v1595 = vadd.f32 0.0, %v1594
    %v1596 = vpop.f32.mrb[0].mxu0
    %1597 = vmatprep.mubr.bf16.mxu0 0
    %1598 = vmatmul.mubr.bf16.gmra.mrb[0].mxu0 %v1430
    %v1599 = vpop.f32.mrb[0].mxu0
    %v1600 = vadd.f32 0.0, %v1599
    %v1601 = vpop.f32.mrb[0].mxu0
    %v1602 = vpop.f32.mrb[0].mxu0
    %v1603 = vadd.f32 0.0, %v1602
    %v1604 = vpop.f32.mrb[0].mxu0
    %1605 = vmatprep.mubr.bf16.mxu0 0
    %1606 = vmatmul.mubr.bf16.gmra.mrb[0].mxu0 %v1433
    %v1607 = vpop.f32.mrb[0].mxu0
    %v1608 = vadd.f32 0.0, %v1607
    %v1609 = vpop.f32.mrb[0].mxu0
    %v1610 = vpop.f32.mrb[0].mxu0
    %v1611 = vadd.f32 0.0, %v1610
    %v1612 = vpop.f32.mrb[0].mxu0
    %1613 = vmatprep.mubr.bf16.mxu0 0
    %1614 = vmatmul.mubr.bf16.gmra.mrb[0].mxu0 %v1436
    %v1615 = vpop.f32.mrb[0].mxu0
    %v1616 = vadd.f32 0.0, %v1615
    %v1617 = vpop.f32.mrb[0].mxu0
    %v1618 = vpop.f32.mrb[0].mxu0
    %v1619 = vadd.f32 0.0, %v1618
    %v1620 = vpop.f32.mrb[0].mxu0
    %1621 = vmatprep.mubr.bf16.mxu0 0
    %1622 = vmatmul.mubr.bf16.gmra.mrb[0].mxu0 %v1439
    %v1623 = vpop.f32.mrb[0].mxu0
    %v1624 = vadd.f32 0.0, %v1623
    %v1625 = vpop.f32.mrb[0].mxu0
    %v1626 = vpop.f32.mrb[0].mxu0
    %v1627 = vadd.f32 0.0, %v1626
    %v1628 = vpop.f32.mrb[0].mxu0
    %1629 = vmatprep.mubr.bf16.mxu0 0
    %1630 = vmatmul.mubr.bf16.gmra.mrb[0].mxu0 %v1442
    %v1631 = vpop.f32.mrb[0].mxu0
    %v1632 = vadd.f32 0.0, %v1631
    %v1633 = vpop.f32.mrb[0].mxu0
    %v1634 = vpop.f32.mrb[0].mxu0
    %v1635 = vadd.f32 0.0, %v1634
    %v1636 = vpop.f32.mrb[0].mxu0
    %1637 = vmatprep.mubr.bf16.mxu0 0
    %1638 = vmatmul.mubr.bf16.gmra.mrb[0].mxu0 %v1445
    %v1639 = vpop.f32.mrb[0].mxu0
    %v1640 = vadd.f32 0.0, %v1639
    %v1641 = vpop.f32.mrb[0].mxu0
    %v1642 = vpop.f32.mrb[0].mxu0
    %v1643 = vadd.f32 0.0, %v1642
    %v1644 = vpop.f32.mrb[0].mxu0
    %1645 = vmatprep.mubr.bf16.mxu0 0
    %1646 = vmatmul.mubr.bf16.gmra.mrb[0].mxu0 %v1448
    %v1647 = vpop.f32.mrb[0].mxu0
    %v1648 = vadd.f32 0.0, %v1647
    %v1649 = vpop.f32.mrb[0].mxu0
    %v1650 = vpop.f32.mrb[0].mxu0
    %v1651 = vadd.f32 0.0, %v1650
    %v1652 = vpop.f32.mrb[0].mxu0
    %1653 = vmatprep.mubr.bf16.mxu0 0
    %1654 = vmatmul.mubr.bf16.gmra.mrb[0].mxu0 %v1451
    %v1655 = vpop.f32.mrb[0].mxu0
    %v1656 = vadd.f32 0.0, %v1655
    %v1657 = vpop.f32.mrb[0].mxu0
    %v1658 = vpop.f32.mrb[0].mxu0
    %v1659 = vadd.f32 0.0, %v1658
    %v1660 = vpop.f32.mrb[0].mxu0
    %1661 = vmatprep.mubr.bf16.mxu0 0
    %1662 = vmatmul.mubr.bf16.gmra.mrb[0].mxu0 %v1454
    %v1663 = vpop.f32.mrb[0].mxu0
    %v1664 = vadd.f32 0.0, %v1663
    %v1665 = vpop.f32.mrb[0].mxu0
    %v1666 = vpop.f32.mrb[0].mxu0
    %v1667 = vadd.f32 0.0, %v1666
    %v1668 = vpop.f32.mrb[0].mxu0
    %1669 = vmatprep.mubr.bf16.mxu0 0
    %1670 = vmatmul.mubr.bf16.gmra.mrb[0].mxu0 %v1457
    %v1671 = vpop.f32.mrb[0].mxu0
    %v1672 = vadd.f32 0.0, %v1671
    %v1673 = vpop.f32.mrb[0].mxu0
    %v1674 = vpop.f32.mrb[0].mxu0
    %v1675 = vadd.f32 0.0, %v1674
    %v1676 = vpop.f32.mrb[0].mxu0
    %1677 = vmatprep.mubr.bf16.mxu0 0
    %1678 = vmatmul.mubr.bf16.gmra.mrb[0].mxu0 %v1460
    %v1679 = vpop.f32.mrb[0].mxu0
    %v1680 = vadd.f32 0.0, %v1679
    %v1681 = vpop.f32.mrb[0].mxu0
    %v1682 = vpop.f32.mrb[0].mxu0
    %v1683 = vadd.f32 0.0, %v1682
    %v1684 = vpop.f32.mrb[0].mxu0
    %1685 = vmatprep.mubr.bf16.mxu0 0
    %1686 = vmatmul.mubr.bf16.gmra.mrb[0].mxu0 %v1463
    %v1687 = vpop.f32.mrb[0].mxu0
    %v1688 = vadd.f32 0.0, %v1687
    %v1689 = vpop.f32.mrb[0].mxu0
    %v1690 = vpop.f32.mrb[0].mxu0
    %v1691 = vadd.f32 0.0, %v1690
    %v1692 = vpop.f32.mrb[0].mxu0
    %1693 = vmatprep.mubr.bf16.mxu0 0
    %1694 = vmatmul.mubr.bf16.gmra.mrb[0].mxu0 %v1466
    %v1695 = vpop.f32.mrb[0].mxu0
    %v1696 = vadd.f32 0.0, %v1695
    %v1697 = vpop.f32.mrb[0].mxu0
    %v1698 = vpop.f32.mrb[0].mxu0
    %v1699 = vadd.f32 0.0, %v1698
    %v1700 = vpop.f32.mrb[0].mxu0
    %1701 = vmatprep.mubr.bf16.mxu0 0
    %1702 = vmatmul.mubr.bf16.gmra.mrb[0].mxu0 %v1469
    %v1703 = vpop.f32.mrb[0].mxu0
    %v1704 = vadd.f32 0.0, %v1703
    %v1705 = vpop.f32.mrb[0].mxu0
    %v1706 = vpop.f32.mrb[0].mxu0
    %v1707 = vadd.f32 0.0, %v1706
    %v1708 = vpop.f32.mrb[0].mxu0
    %1709 = vmatprep.mubr.bf16.mxu0 0
    %1710 = vmatmul.mubr.bf16.gmra.mrb[0].mxu0 %v1472
    %v1711 = vpop.f32.mrb[0].mxu0
    %v1712 = vadd.f32 0.0, %v1711
    %v1713 = vpop.f32.mrb[0].mxu0
    %v1714 = vpop.f32.mrb[0].mxu0
    %v1715 = vadd.f32 0.0, %v1714
    %v1716 = vpop.f32.mrb[0].mxu0
    %1717 = vmatprep.mubr.bf16.mxu0 0
    %1718 = vmatmul.mubr.bf16.gmra.mrb[0].mxu0 %v1475
    %v1719 = vpop.f32.mrb[0].mxu0
    %v1720 = vadd.f32 0.0, %v1719
    %v1721 = vpop.f32.mrb[0].mxu0
    %v1722 = vpop.f32.mrb[0].mxu0
    %v1723 = vadd.f32 0.0, %v1722
    %v1724 = vpop.f32.mrb[0].mxu0
    %1725 = vmatprep.mubr.bf16.mxu0 0
    %1726 = vmatmul.mubr.bf16.gmra.mrb[0].mxu0 %v1478
    %v1727 = vpop.f32.mrb[0].mxu0
    %v1728 = vadd.f32 0.0, %v1727
    %v1729 = vpop.f32.mrb[0].mxu0
    %v1730 = vpop.f32.mrb[0].mxu0
    %v1731 = vadd.f32 0.0, %v1730
    %v1732 = vpop.f32.mrb[0].mxu0
    %1733 = vmatprep.mubr.bf16.mxu0 0
    %1734 = vmatmul.mubr.bf16.gmra.mrb[0].mxu0 %v1481
    %v1735 = vpop.f32.mrb[0].mxu0
    %v1736 = vadd.f32 0.0, %v1735
    %v1737 = vpop.f32.mrb[0].mxu0
    %v1738 = vpop.f32.mrb[0].mxu0
    %v1739 = vadd.f32 0.0, %v1738
    %v1740 = vpop.f32.mrb[0].mxu0
    %1741 = vmatprep.mubr.bf16.mxu0 0
    %1742 = vmatmul.mubr.bf16.gmra.mrb[0].mxu0 %v1484
    %v1743 = vpop.f32.mrb[0].mxu0
    %v1744 = vadd.f32 0.0, %v1743
    %v1745 = vpop.f32.mrb[0].mxu0
    %v1746 = vpop.f32.mrb[0].mxu0
    %v1747 = vadd.f32 0.0, %v1746
    %v1748 = vpop.f32.mrb[0].mxu0
    %1749 = vmatprep.mubr.bf16.mxu0 0
    %1750 = vmatmul.mubr.bf16.gmra.mrb[0].mxu0 %v1487
    %v1751 = vpop.f32.mrb[0].mxu0
    %v1752 = vadd.f32 0.0, %v1751
    %v1753 = vpop.f32.mrb[0].mxu0
    %v1754 = vpop.f32.mrb[0].mxu0
    %v1755 = vadd.f32 0.0, %v1754
    %v1756 = vpop.f32.mrb[0].mxu0
    %1757 = vmatprep.mubr.bf16.mxu0 0
    %1758 = vmatmul.mubr.bf16.gmra.mrb[0].mxu0 %v1490
    %v1759 = vpop.f32.mrb[0].mxu0
    %v1760 = vadd.f32 0.0, %v1759
    %v1761 = vpop.f32.mrb[0].mxu0
    %v1762 = vpop.f32.mrb[0].mxu0
    %v1763 = vadd.f32 0.0, %v1762
    %v1764 = vpop.f32.mrb[0].mxu0
    %1765 = vmatprep.mubr.bf16.mxu0 0
    %1766 = vmatmul.mubr.bf16.gmra.mrb[0].mxu0 %v1493
    %v1767 = vpop.f32.mrb[0].mxu0
    %v1768 = vadd.f32 0.0, %v1767
    %v1769 = vpop.f32.mrb[0].mxu0
    %v1770 = vpop.f32.mrb[0].mxu0
    %v1771 = vadd.f32 0.0, %v1770
    %v1772 = vpop.f32.mrb[0].mxu0
    %1773 = vmatprep.mubr.bf16.mxu0 0
    %1774 = vmatmul.mubr.bf16.gmra.mrb[0].mxu0 %v1496
    %v1775 = vpop.f32.mrb[0].mxu0
    %v1776 = vadd.f32 0.0, %v1775
    %v1777 = vpop.f32.mrb[0].mxu0
    %v1778 = vpop.f32.mrb[0].mxu0
    %v1779 = vadd.f32 0.0, %v1778
    %v1780 = vpop.f32.mrb[0].mxu0
    %1781 = vmatprep.mubr.bf16.mxu0 0
    %1782 = vmatmul.mubr.bf16.gmra.mrb[0].mxu0 %v1499
    %v1783 = vpop.f32.mrb[0].mxu0
    %v1784 = vadd.f32 0.0, %v1783
    %v1785 = vpop.f32.mrb[0].mxu0
    %v1786 = vpop.f32.mrb[0].mxu0
    %v1787 = vadd.f32 0.0, %v1786
    %v1788 = vpop.f32.mrb[0].mxu0
    %1789 = vdwg.mxu0
    %v1794 = vunpack.c.l.b16 %v1288
    %v1795 = vunpack.c.l.b16 %v1289
    %v1796 = vunpack.c.l.b16 %v1290
    %v1797 = vunpack.c.l.b16 %v1291
    %v1798 = vpack.c.b16 %v1795, %v1794
    %v1799 = vpack.c.b16 %v1797, %v1796
    %v1803 = vsel %vm507, %v1256, 0
    %v1806 = vsel %vm507, %v1257, 0
    %v1809 = vsel %vm507, %v1258, 0
    %v1812 = vsel %vm507, %v1259, 0
    %v1815 = vsel %vm507, %v1260, 0
    %v1818 = vsel %vm507, %v1261, 0
    %v1821 = vsel %vm507, %v1262, 0
    %v1824 = vsel %vm507, %v1263, 0
    %v1827 = vsel %vm507, %v1264, 0
    %v1830 = vsel %vm507, %v1265, 0
    %v1833 = vsel %vm507, %v1266, 0
    %v1836 = vsel %vm507, %v1267, 0
    %v1839 = vsel %vm507, %v1268, 0
    %v1842 = vsel %vm507, %v1269, 0
    %v1845 = vsel %vm507, %v1270, 0
    %v1848 = vsel %vm507, %v1271, 0
    %v1851 = vsel %vm507, %v1272, 0
    %v1854 = vsel %vm507, %v1273, 0
    %v1857 = vsel %vm507, %v1274, 0
    %v1860 = vsel %vm507, %v1275, 0
    %v1863 = vsel %vm507, %v1276, 0
    %v1866 = vsel %vm507, %v1277, 0
    %v1869 = vsel %vm507, %v1278, 0
    %v1872 = vsel %vm507, %v1279, 0
    %v1875 = vsel %vm507, %v1280, 0
    %v1878 = vsel %vm507, %v1281, 0
    %v1881 = vsel %vm507, %v1282, 0
    %v1884 = vsel %vm507, %v1283, 0
    %v1887 = vsel %vm507, %v1284, 0
    %v1890 = vsel %vm507, %v1285, 0
    %v1893 = vsel %vm507, %v1286, 0
    %v1896 = vsel %vm507, %v1287, 0
    %1898 = vmatprep.subr.bf16.mxu0 0
    %1899 = vmatpush1.bf16.msra.mxu0 %v1798
    %1900 = vmatprep.subr.bf16.mxu0 0
    %1901 = vmatpush1.bf16.msra.mxu0 %v1799
    %1902 = vmatprep.subr.bf16.mxu0 0
    %1903 = vmatpush1.bf16.msra.mxu0 0
    %1904 = vmatprep.subr.bf16.mxu0 0
    %1905 = vmatpush1.bf16.msra.mxu0 0
    %1906 = vmatprep.subr.bf16.mxu0 0
    %1907 = vmatpush1.bf16.msra.mxu0 0
    %1908 = vmatprep.subr.bf16.mxu0 0
    %1909 = vmatpush1.bf16.msra.mxu0 0
    %1910 = vmatprep.subr.bf16.mxu0 0
    %1911 = vmatpush1.bf16.msra.mxu0 0
    %1912 = vmatprep.subr.bf16.mxu0 0
    %1913 = vmatpush1.bf16.msra.mxu0 0
    %1914 = vmatprep.subr.bf16.mxu0 0
    %1915 = vmatpush1.bf16.msra.mxu0 0
    %1916 = vmatprep.subr.bf16.mxu0 0
    %1917 = vmatpush1.bf16.msra.mxu0 0
    %1918 = vmatprep.subr.bf16.mxu0 0
    %1919 = vmatpush1.bf16.msra.mxu0 0
    %1920 = vmatprep.subr.bf16.mxu0 0
    %1921 = vmatpush1.bf16.msra.mxu0 0
    %1922 = vmatprep.subr.bf16.mxu0 0
    %1923 = vmatpush1.bf16.msra.mxu0 0
    %1924 = vmatprep.subr.bf16.mxu0 0
    %1925 = vmatpush1.bf16.msra.mxu0 0
    %1926 = vmatprep.subr.bf16.mxu0 0
    %1927 = vmatpush1.bf16.msra.mxu0 0
    %1928 = vmatprep.subr.bf16.mxu0 0
    %1929 = vmatpush1.bf16.msra.mxu0 0
    %1930 = vmatprep.mubr.bf16.mxu0 0
    %1931 = vmatmul.mubr.bf16.gmra.mrb[0].mxu0 %v1803
    %v1932 = vpop.f32.mrb[0].mxu0
    %v1933 = vadd.f32 %v1536, %v1932
    %v1934 = vpop.f32.mrb[0].mxu0
    %v1935 = vpop.f32.mrb[0].mxu0
    %v1936 = vadd.f32 %v1539, %v1935
    %v1937 = vpop.f32.mrb[0].mxu0
    %1938 = vmatprep.mubr.bf16.mxu0 0
    %1939 = vmatmul.mubr.bf16.gmra.mrb[0].mxu0 %v1806
    %v1940 = vpop.f32.mrb[0].mxu0
    %v1941 = vadd.f32 %v1544, %v1940
    %v1942 = vpop.f32.mrb[0].mxu0
    %v1943 = vpop.f32.mrb[0].mxu0
    %v1944 = vadd.f32 %v1547, %v1943
    %v1945 = vpop.f32.mrb[0].mxu0
    %1946 = vmatprep.mubr.bf16.mxu0 0
    %1947 = vmatmul.mubr.bf16.gmra.mrb[0].mxu0 %v1809
    %v1948 = vpop.f32.mrb[0].mxu0
    %v1949 = vadd.f32 %v1552, %v1948
    %v1950 = vpop.f32.mrb[0].mxu0
    %v1951 = vpop.f32.mrb[0].mxu0
    %v1952 = vadd.f32 %v1555, %v1951
    %v1953 = vpop.f32.mrb[0].mxu0
    %1954 = vmatprep.mubr.bf16.mxu0 0
    %1955 = vmatmul.mubr.bf16.gmra.mrb[0].mxu0 %v1812
    %v1956 = vpop.f32.mrb[0].mxu0
    %v1957 = vadd.f32 %v1560, %v1956
    %v1958 = vpop.f32.mrb[0].mxu0
    %v1959 = vpop.f32.mrb[0].mxu0
    %v1960 = vadd.f32 %v1563, %v1959
    %v1961 = vpop.f32.mrb[0].mxu0
    %1962 = vmatprep.mubr.bf16.mxu0 0
    %1963 = vmatmul.mubr.bf16.gmra.mrb[0].mxu0 %v1815
    %v1964 = vpop.f32.mrb[0].mxu0
    %v1965 = vadd.f32 %v1568, %v1964
    %v1966 = vpop.f32.mrb[0].mxu0
    %v1967 = vpop.f32.mrb[0].mxu0
    %v1968 = vadd.f32 %v1571, %v1967
    %v1969 = vpop.f32.mrb[0].mxu0
    %1970 = vmatprep.mubr.bf16.mxu0 0
    %1971 = vmatmul.mubr.bf16.gmra.mrb[0].mxu0 %v1818
    %v1972 = vpop.f32.mrb[0].mxu0
    %v1973 = vadd.f32 %v1576, %v1972
    %v1974 = vpop.f32.mrb[0].mxu0
    %v1975 = vpop.f32.mrb[0].mxu0
    %v1976 = vadd.f32 %v1579, %v1975
    %v1977 = vpop.f32.mrb[0].mxu0
    %1978 = vmatprep.mubr.bf16.mxu0 0
    %1979 = vmatmul.mubr.bf16.gmra.mrb[0].mxu0 %v1821
    %v1980 = vpop.f32.mrb[0].mxu0
    %v1981 = vadd.f32 %v1584, %v1980
    %v1982 = vpop.f32.mrb[0].mxu0
    %v1983 = vpop.f32.mrb[0].mxu0
    %v1984 = vadd.f32 %v1587, %v1983
    %v1985 = vpop.f32.mrb[0].mxu0
    %1986 = vmatprep.mubr.bf16.mxu0 0
    %1987 = vmatmul.mubr.bf16.gmra.mrb[0].mxu0 %v1824
    %v1988 = vpop.f32.mrb[0].mxu0
    %v1989 = vadd.f32 %v1592, %v1988
    %v1990 = vpop.f32.mrb[0].mxu0
    %v1991 = vpop.f32.mrb[0].mxu0
    %v1992 = vadd.f32 %v1595, %v1991
    %v1993 = vpop.f32.mrb[0].mxu0
    %1994 = vmatprep.mubr.bf16.mxu0 0
    %1995 = vmatmul.mubr.bf16.gmra.mrb[0].mxu0 %v1827
    %v1996 = vpop.f32.mrb[0].mxu0
    %v1997 = vadd.f32 %v1600, %v1996
    %v1998 = vpop.f32.mrb[0].mxu0
    %v1999 = vpop.f32.mrb[0].mxu0
    %v2000 = vadd.f32 %v1603, %v1999
    %v2001 = vpop.f32.mrb[0].mxu0
    %2002 = vmatprep.mubr.bf16.mxu0 0
    %2003 = vmatmul.mubr.bf16.gmra.mrb[0].mxu0 %v1830
    %v2004 = vpop.f32.mrb[0].mxu0
    %v2005 = vadd.f32 %v1608, %v2004
    %v2006 = vpop.f32.mrb[0].mxu0
    %v2007 = vpop.f32.mrb[0].mxu0
    %v2008 = vadd.f32 %v1611, %v2007
    %v2009 = vpop.f32.mrb[0].mxu0
    %2010 = vmatprep.mubr.bf16.mxu0 0
    %2011 = vmatmul.mubr.bf16.gmra.mrb[0].mxu0 %v1833
    %v2012 = vpop.f32.mrb[0].mxu0
    %v2013 = vadd.f32 %v1616, %v2012
    %v2014 = vpop.f32.mrb[0].mxu0
    %v2015 = vpop.f32.mrb[0].mxu0
    %v2016 = vadd.f32 %v1619, %v2015
    %v2017 = vpop.f32.mrb[0].mxu0
    %2018 = vmatprep.mubr.bf16.mxu0 0
    %2019 = vmatmul.mubr.bf16.gmra.mrb[0].mxu0 %v1836
    %v2020 = vpop.f32.mrb[0].mxu0
    %v2021 = vadd.f32 %v1624, %v2020
    %v2022 = vpop.f32.mrb[0].mxu0
    %v2023 = vpop.f32.mrb[0].mxu0
    %v2024 = vadd.f32 %v1627, %v2023
    %v2025 = vpop.f32.mrb[0].mxu0
    %2026 = vmatprep.mubr.bf16.mxu0 0
    %2027 = vmatmul.mubr.bf16.gmra.mrb[0].mxu0 %v1839
    %v2028 = vpop.f32.mrb[0].mxu0
    %v2029 = vadd.f32 %v1632, %v2028
    %v2030 = vpop.f32.mrb[0].mxu0
    %v2031 = vpop.f32.mrb[0].mxu0
    %v2032 = vadd.f32 %v1635, %v2031
    %v2033 = vpop.f32.mrb[0].mxu0
    %2034 = vmatprep.mubr.bf16.mxu0 0
    %2035 = vmatmul.mubr.bf16.gmra.mrb[0].mxu0 %v1842
    %v2036 = vpop.f32.mrb[0].mxu0
    %v2037 = vadd.f32 %v1640, %v2036
    %v2038 = vpop.f32.mrb[0].mxu0
    %v2039 = vpop.f32.mrb[0].mxu0
    %v2040 = vadd.f32 %v1643, %v2039
    %v2041 = vpop.f32.mrb[0].mxu0
    %2042 = vmatprep.mubr.bf16.mxu0 0
    %2043 = vmatmul.mubr.bf16.gmra.mrb[0].mxu0 %v1845
    %v2044 = vpop.f32.mrb[0].mxu0
    %v2045 = vadd.f32 %v1648, %v2044
    %v2046 = vpop.f32.mrb[0].mxu0
    %v2047 = vpop.f32.mrb[0].mxu0
    %v2048 = vadd.f32 %v1651, %v2047
    %v2049 = vpop.f32.mrb[0].mxu0
    %2050 = vmatprep.mubr.bf16.mxu0 0
    %2051 = vmatmul.mubr.bf16.gmra.mrb[0].mxu0 %v1848
    %v2052 = vpop.f32.mrb[0].mxu0
    %v2053 = vadd.f32 %v1656, %v2052
    %v2054 = vpop.f32.mrb[0].mxu0
    %v2055 = vpop.f32.mrb[0].mxu0
    %v2056 = vadd.f32 %v1659, %v2055
    %v2057 = vpop.f32.mrb[0].mxu0
    %2058 = vmatprep.mubr.bf16.mxu0 0
    %2059 = vmatmul.mubr.bf16.gmra.mrb[0].mxu0 %v1851
    %v2060 = vpop.f32.mrb[0].mxu0
    %v2061 = vadd.f32 %v1664, %v2060
    %v2062 = vpop.f32.mrb[0].mxu0
    %v2063 = vpop.f32.mrb[0].mxu0
    %v2064 = vadd.f32 %v1667, %v2063
    %v2065 = vpop.f32.mrb[0].mxu0
    %2066 = vmatprep.mubr.bf16.mxu0 0
    %2067 = vmatmul.mubr.bf16.gmra.mrb[0].mxu0 %v1854
    %v2068 = vpop.f32.mrb[0].mxu0
    %v2069 = vadd.f32 %v1672, %v2068
    %v2070 = vpop.f32.mrb[0].mxu0
    %v2071 = vpop.f32.mrb[0].mxu0
    %v2072 = vadd.f32 %v1675, %v2071
    %v2073 = vpop.f32.mrb[0].mxu0
    %2074 = vmatprep.mubr.bf16.mxu0 0
    %2075 = vmatmul.mubr.bf16.gmra.mrb[0].mxu0 %v1857
    %v2076 = vpop.f32.mrb[0].mxu0
    %v2077 = vadd.f32 %v1680, %v2076
    %v2078 = vpop.f32.mrb[0].mxu0
    %v2079 = vpop.f32.mrb[0].mxu0
    %v2080 = vadd.f32 %v1683, %v2079
    %v2081 = vpop.f32.mrb[0].mxu0
    %2082 = vmatprep.mubr.bf16.mxu0 0
    %2083 = vmatmul.mubr.bf16.gmra.mrb[0].mxu0 %v1860
    %v2084 = vpop.f32.mrb[0].mxu0
    %v2085 = vadd.f32 %v1688, %v2084
    %v2086 = vpop.f32.mrb[0].mxu0
    %v2087 = vpop.f32.mrb[0].mxu0
    %v2088 = vadd.f32 %v1691, %v2087
    %v2089 = vpop.f32.mrb[0].mxu0
    %2090 = vmatprep.mubr.bf16.mxu0 0
    %2091 = vmatmul.mubr.bf16.gmra.mrb[0].mxu0 %v1863
    %v2092 = vpop.f32.mrb[0].mxu0
    %v2093 = vadd.f32 %v1696, %v2092
    %v2094 = vpop.f32.mrb[0].mxu0
    %v2095 = vpop.f32.mrb[0].mxu0
    %v2096 = vadd.f32 %v1699, %v2095
    %v2097 = vpop.f32.mrb[0].mxu0
    %2098 = vmatprep.mubr.bf16.mxu0 0
    %2099 = vmatmul.mubr.bf16.gmra.mrb[0].mxu0 %v1866
    %v2100 = vpop.f32.mrb[0].mxu0
    %v2101 = vadd.f32 %v1704, %v2100
    %v2102 = vpop.f32.mrb[0].mxu0
    %v2103 = vpop.f32.mrb[0].mxu0
    %v2104 = vadd.f32 %v1707, %v2103
    %v2105 = vpop.f32.mrb[0].mxu0
    %2106 = vmatprep.mubr.bf16.mxu0 0
    %2107 = vmatmul.mubr.bf16.gmra.mrb[0].mxu0 %v1869
    %v2108 = vpop.f32.mrb[0].mxu0
    %v2109 = vadd.f32 %v1712, %v2108
    %v2110 = vpop.f32.mrb[0].mxu0
    %v2111 = vpop.f32.mrb[0].mxu0
    %v2112 = vadd.f32 %v1715, %v2111
    %v2113 = vpop.f32.mrb[0].mxu0
    %2114 = vmatprep.mubr.bf16.mxu0 0
    %2115 = vmatmul.mubr.bf16.gmra.mrb[0].mxu0 %v1872
    %v2116 = vpop.f32.mrb[0].mxu0
    %v2117 = vadd.f32 %v1720, %v2116
    %v2118 = vpop.f32.mrb[0].mxu0
    %v2119 = vpop.f32.mrb[0].mxu0
    %v2120 = vadd.f32 %v1723, %v2119
    %v2121 = vpop.f32.mrb[0].mxu0
    %2122 = vmatprep.mubr.bf16.mxu0 0
    %2123 = vmatmul.mubr.bf16.gmra.mrb[0].mxu0 %v1875
    %v2124 = vpop.f32.mrb[0].mxu0
    %v2125 = vadd.f32 %v1728, %v2124
    %v2126 = vpop.f32.mrb[0].mxu0
    %v2127 = vpop.f32.mrb[0].mxu0
    %v2128 = vadd.f32 %v1731, %v2127
    %v2129 = vpop.f32.mrb[0].mxu0
    %2130 = vmatprep.mubr.bf16.mxu0 0
    %2131 = vmatmul.mubr.bf16.gmra.mrb[0].mxu0 %v1878
    %v2132 = vpop.f32.mrb[0].mxu0
    %v2133 = vadd.f32 %v1736, %v2132
    %v2134 = vpop.f32.mrb[0].mxu0
    %v2135 = vpop.f32.mrb[0].mxu0
    %v2136 = vadd.f32 %v1739, %v2135
    %v2137 = vpop.f32.mrb[0].mxu0
    %2138 = vmatprep.mubr.bf16.mxu0 0
    %2139 = vmatmul.mubr.bf16.gmra.mrb[0].mxu0 %v1881
    %v2140 = vpop.f32.mrb[0].mxu0
    %v2141 = vadd.f32 %v1744, %v2140
    %v2142 = vpop.f32.mrb[0].mxu0
    %v2143 = vpop.f32.mrb[0].mxu0
    %v2144 = vadd.f32 %v1747, %v2143
    %v2145 = vpop.f32.mrb[0].mxu0
    %2146 = vmatprep.mubr.bf16.mxu0 0
    %2147 = vmatmul.mubr.bf16.gmra.mrb[0].mxu0 %v1884
    %v2148 = vpop.f32.mrb[0].mxu0
    %v2149 = vadd.f32 %v1752, %v2148
    %v2150 = vpop.f32.mrb[0].mxu0
    %v2151 = vpop.f32.mrb[0].mxu0
    %v2152 = vadd.f32 %v1755, %v2151
    %v2153 = vpop.f32.mrb[0].mxu0
    %2154 = vmatprep.mubr.bf16.mxu0 0
    %2155 = vmatmul.mubr.bf16.gmra.mrb[0].mxu0 %v1887
    %v2156 = vpop.f32.mrb[0].mxu0
    %v2157 = vadd.f32 %v1760, %v2156
    %v2158 = vpop.f32.mrb[0].mxu0
    %v2159 = vpop.f32.mrb[0].mxu0
    %v2160 = vadd.f32 %v1763, %v2159
    %v2161 = vpop.f32.mrb[0].mxu0
    %2162 = vmatprep.mubr.bf16.mxu0 0
    %2163 = vmatmul.mubr.bf16.gmra.mrb[0].mxu0 %v1890
    %v2164 = vpop.f32.mrb[0].mxu0
    %v2165 = vadd.f32 %v1768, %v2164
    %v2166 = vpop.f32.mrb[0].mxu0
    %v2167 = vpop.f32.mrb[0].mxu0
    %v2168 = vadd.f32 %v1771, %v2167
    %v2169 = vpop.f32.mrb[0].mxu0
    %2170 = vmatprep.mubr.bf16.mxu0 0
    %2171 = vmatmul.mubr.bf16.gmra.mrb[0].mxu0 %v1893
    %v2172 = vpop.f32.mrb[0].mxu0
    %v2173 = vadd.f32 %v1776, %v2172
    %v2174 = vpop.f32.mrb[0].mxu0
    %v2175 = vpop.f32.mrb[0].mxu0
    %v2176 = vadd.f32 %v1779, %v2175
    %v2177 = vpop.f32.mrb[0].mxu0
    %2178 = vmatprep.mubr.bf16.mxu0 0
    %2179 = vmatmul.mubr.bf16.gmra.mrb[0].mxu0 %v1896
    %v2180 = vpop.f32.mrb[0].mxu0
    %v2181 = vadd.f32 %v1784, %v2180
    %v2182 = vpop.f32.mrb[0].mxu0
    %v2183 = vpop.f32.mrb[0].mxu0
    %v2184 = vadd.f32 %v1787, %v2183
    %v2185 = vpop.f32.mrb[0].mxu0
    %2186 = vdwg.mxu0
    %v2187 = vld [vmem:[#allocation2 + $0x2] sm:$0xff]
    %v2188 = vld [vmem:[#allocation2 + $0xa] sm:$0xff]
    %v2189 = vld [vmem:[#allocation2 + $0x1a] sm:$0xff]
    %v2190 = vld [vmem:[#allocation2 + $0x22] sm:$0xff]
    %v2191 = vld [vmem:[#allocation2 + $0x32] sm:$0xff]
    %v2192 = vld [vmem:[#allocation2 + $0x3a] sm:$0xff]
    %v2193 = vld [vmem:[#allocation2 + $0x4a] sm:$0xff]
    %v2194 = vld [vmem:[#allocation2 + $0x52] sm:$0xff]
    %v2195 = vld [vmem:[#allocation2 + $0x62] sm:$0xff]
    %v2196 = vld [vmem:[#allocation2 + $0x6a] sm:$0xff]
    %v2197 = vld [vmem:[#allocation2 + $0x7a] sm:$0xff]
    %v2198 = vld [vmem:[#allocation2 + $0x82] sm:$0xff]
    %v2199 = vld [vmem:[#allocation2 + $0x92] sm:$0xff]
    %v2200 = vld [vmem:[#allocation2 + $0x9a] sm:$0xff]
    %v2201 = vld [vmem:[#allocation2 + $0xaa] sm:$0xff]
    %v2202 = vld [vmem:[#allocation2 + $0xb2] sm:$0xff]
    %v2203 = vld [vmem:[#allocation2 + $0xc2] sm:$0xff]
    %v2204 = vld [vmem:[#allocation2 + $0xca] sm:$0xff]
    %v2205 = vld [vmem:[#allocation2 + $0xda] sm:$0xff]
    %v2206 = vld [vmem:[#allocation2 + $0xe2] sm:$0xff]
    %v2207 = vld [vmem:[#allocation2 + $0xf2] sm:$0xff]
    %v2208 = vld [vmem:[#allocation2 + $0xfa] sm:$0xff]
    %v2209 = vld [vmem:[#allocation2 + $0x10a] sm:$0xff]
    %v2210 = vld [vmem:[#allocation2 + $0x112] sm:$0xff]
    %v2211 = vld [vmem:[#allocation2 + $0x122] sm:$0xff]
    %v2212 = vld [vmem:[#allocation2 + $0x12a] sm:$0xff]
    %v2213 = vld [vmem:[#allocation2 + $0x13a] sm:$0xff]
    %v2214 = vld [vmem:[#allocation2 + $0x142] sm:$0xff]
    %v2215 = vld [vmem:[#allocation2 + $0x152] sm:$0xff]
    %v2216 = vld [vmem:[#allocation2 + $0x15a] sm:$0xff]
    %v2217 = vld [vmem:[#allocation2 + $0x16a] sm:$0xff]
    %v2218 = vld [vmem:[#allocation2 + $0x172] sm:$0xff]
    %v2219 = vld [vmem:[#allocation2 + $0x1b2] sm:$0xff]
    %v2220 = vld [vmem:[#allocation2 + $0x1ba] sm:$0xff]
    %v2221 = vld [vmem:[#allocation2 + $0x1ca] sm:$0xff]
    %v2222 = vld [vmem:[#allocation2 + $0x1d2] sm:$0xff]
    %v2223 = vld [vmem:[#allocation2 + $0x1e2] sm:$0xff]
    %v2224 = vld [vmem:[#allocation2 + $0x1ea] sm:$0xff]
    %v2225 = vld [vmem:[#allocation2 + $0x1fa] sm:$0xff]
    %v2226 = vld [vmem:[#allocation2 + $0x202] sm:$0xff]
    %v2227 = vld [vmem:[#allocation2 + $0x212] sm:$0xff]
    %v2228 = vld [vmem:[#allocation2 + $0x21a] sm:$0xff]
    %v2229 = vld [vmem:[#allocation2 + $0x22a] sm:$0xff]
    %v2230 = vld [vmem:[#allocation2 + $0x232] sm:$0xff]
    %v2231 = vld [vmem:[#allocation2 + $0x242] sm:$0xff]
    %v2232 = vld [vmem:[#allocation2 + $0x24a] sm:$0xff]
    %v2233 = vld [vmem:[#allocation2 + $0x25a] sm:$0xff]
    %v2234 = vld [vmem:[#allocation2 + $0x262] sm:$0xff]
    %v2235 = vld [vmem:[#allocation2 + $0x272] sm:$0xff]
    %v2236 = vld [vmem:[#allocation2 + $0x27a] sm:$0xff]
    %v2237 = vld [vmem:[#allocation2 + $0x28a] sm:$0xff]
    %v2238 = vld [vmem:[#allocation2 + $0x292] sm:$0xff]
    %v2239 = vld [vmem:[#allocation2 + $0x2a2] sm:$0xff]
    %v2240 = vld [vmem:[#allocation2 + $0x2aa] sm:$0xff]
    %v2241 = vld [vmem:[#allocation2 + $0x2ba] sm:$0xff]
    %v2242 = vld [vmem:[#allocation2 + $0x2c2] sm:$0xff]
    %v2243 = vld [vmem:[#allocation2 + $0x2d2] sm:$0xff]
    %v2244 = vld [vmem:[#allocation2 + $0x2da] sm:$0xff]
    %v2245 = vld [vmem:[#allocation2 + $0x2ea] sm:$0xff]
    %v2246 = vld [vmem:[#allocation2 + $0x2f2] sm:$0xff]
    %v2247 = vld [vmem:[#allocation2 + $0x302] sm:$0xff]
    %v2248 = vld [vmem:[#allocation2 + $0x30a] sm:$0xff]
    %v2249 = vld [vmem:[#allocation2 + $0x31a] sm:$0xff]
    %v2250 = vld [vmem:[#allocation2 + $0x322] sm:$0xff]
    %v2251 = vpack.c.bf16 %v2188, %v2187
    %v2252 = vpack.c.bf16 %v2190, %v2189
    %v2253 = vpack.c.bf16 %v2192, %v2191
    %v2254 = vpack.c.bf16 %v2194, %v2193
    %v2255 = vpack.c.bf16 %v2196, %v2195
    %v2256 = vpack.c.bf16 %v2198, %v2197
    %v2257 = vpack.c.bf16 %v2200, %v2199
    %v2258 = vpack.c.bf16 %v2202, %v2201
    %v2259 = vpack.c.bf16 %v2204, %v2203
    %v2260 = vpack.c.bf16 %v2206, %v2205
    %v2261 = vpack.c.bf16 %v2208, %v2207
    %v2262 = vpack.c.bf16 %v2210, %v2209
    %v2263 = vpack.c.bf16 %v2212, %v2211
    %v2264 = vpack.c.bf16 %v2214, %v2213
    %v2265 = vpack.c.bf16 %v2216, %v2215
    %v2266 = vpack.c.bf16 %v2218, %v2217
    %v2267 = vpack.c.bf16 %v2220, %v2219
    %v2268 = vpack.c.bf16 %v2222, %v2221
    %v2269 = vpack.c.bf16 %v2224, %v2223
    %v2270 = vpack.c.bf16 %v2226, %v2225
    %v2271 = vpack.c.bf16 %v2228, %v2227
    %v2272 = vpack.c.bf16 %v2230, %v2229
    %v2273 = vpack.c.bf16 %v2232, %v2231
    %v2274 = vpack.c.bf16 %v2234, %v2233
    %v2275 = vpack.c.bf16 %v2236, %v2235
    %v2276 = vpack.c.bf16 %v2238, %v2237
    %v2277 = vpack.c.bf16 %v2240, %v2239
    %v2278 = vpack.c.bf16 %v2242, %v2241
    %v2279 = vpack.c.bf16 %v2244, %v2243
    %v2280 = vpack.c.bf16 %v2246, %v2245
    %v2281 = vpack.c.bf16 %v2248, %v2247
    %v2282 = vpack.c.bf16 %v2250, %v2249
    %s2283 = scalar_lea.vmem [#allocation6], 32
    %v2284 = vld [vmem:[%s2283] sm:$0xf]
    %v2285 = vld [vmem:[%s2283 + $0x4] sm:$0xf]
    %v2286 = vld [vmem:[%s2283 + $0x8] sm:$0xf]
    %v2287 = vld [vmem:[%s2283 + $0xc] sm:$0xf]
    %v2292 = vunpack.c.l.b16 %v2284
    %v2293 = vunpack.c.l.b16 %v2285
    %v2294 = vunpack.c.l.b16 %v2286
    %v2295 = vunpack.c.l.b16 %v2287
    %v2296 = vpack.c.b16 %v2293, %v2292
    %v2297 = vpack.c.b16 %v2295, %v2294
    %v2301 = vsel %vm507, %v2251, 0
    %v2304 = vsel %vm507, %v2252, 0
    %v2307 = vsel %vm507, %v2253, 0
    %v2310 = vsel %vm507, %v2254, 0
    %v2313 = vsel %vm507, %v2255, 0
    %v2316 = vsel %vm507, %v2256, 0
    %v2319 = vsel %vm507, %v2257, 0
    %v2322 = vsel %vm507, %v2258, 0
    %v2325 = vsel %vm507, %v2259, 0
    %v2328 = vsel %vm507, %v2260, 0
    %v2331 = vsel %vm507, %v2261, 0
    %v2334 = vsel %vm507, %v2262, 0
    %v2337 = vsel %vm507, %v2263, 0
    %v2340 = vsel %vm507, %v2264, 0
    %v2343 = vsel %vm507, %v2265, 0
    %v2346 = vsel %vm507, %v2266, 0
    %v2349 = vsel %vm507, %v2267, 0
    %v2352 = vsel %vm507, %v2268, 0
    %v2355 = vsel %vm507, %v2269, 0
    %v2358 = vsel %vm507, %v2270, 0
    %v2361 = vsel %vm507, %v2271, 0
    %v2364 = vsel %vm507, %v2272, 0
    %v2367 = vsel %vm507, %v2273, 0
    %v2370 = vsel %vm507, %v2274, 0
    %v2373 = vsel %vm507, %v2275, 0
    %v2376 = vsel %vm507, %v2276, 0
    %v2379 = vsel %vm507, %v2277, 0
    %v2382 = vsel %vm507, %v2278, 0
    %v2385 = vsel %vm507, %v2279, 0
    %v2388 = vsel %vm507, %v2280, 0
    %v2391 = vsel %vm507, %v2281, 0
    %v2394 = vsel %vm507, %v2282, 0
    %2396 = vmatprep.subr.bf16.mxu0 0
    %2397 = vmatpush1.bf16.msra.mxu0 %v2296
    %2398 = vmatprep.subr.bf16.mxu0 0
    %2399 = vmatpush1.bf16.msra.mxu0 %v2297
    %2400 = vmatprep.subr.bf16.mxu0 0
    %2401 = vmatpush1.bf16.msra.mxu0 0
    %2402 = vmatprep.subr.bf16.mxu0 0
    %2403 = vmatpush1.bf16.msra.mxu0 0
    %2404 = vmatprep.subr.bf16.mxu0 0
    %2405 = vmatpush1.bf16.msra.mxu0 0
    %2406 = vmatprep.subr.bf16.mxu0 0
    %2407 = vmatpush1.bf16.msra.mxu0 0
    %2408 = vmatprep.subr.bf16.mxu0 0
    %2409 = vmatpush1.bf16.msra.mxu0 0
    %2410 = vmatprep.subr.bf16.mxu0 0
    %2411 = vmatpush1.bf16.msra.mxu0 0
    %2412 = vmatprep.subr.bf16.mxu0 0
    %2413 = vmatpush1.bf16.msra.mxu0 0
    %2414 = vmatprep.subr.bf16.mxu0 0
    %2415 = vmatpush1.bf16.msra.mxu0 0
    %2416 = vmatprep.subr.bf16.mxu0 0
    %2417 = vmatpush1.bf16.msra.mxu0 0
    %2418 = vmatprep.subr.bf16.mxu0 0
    %2419 = vmatpush1.bf16.msra.mxu0 0
    %2420 = vmatprep.subr.bf16.mxu0 0
    %2421 = vmatpush1.bf16.msra.mxu0 0
    %2422 = vmatprep.subr.bf16.mxu0 0
    %2423 = vmatpush1.bf16.msra.mxu0 0
    %2424 = vmatprep.subr.bf16.mxu0 0
    %2425 = vmatpush1.bf16.msra.mxu0 0
    %2426 = vmatprep.subr.bf16.mxu0 0
    %2427 = vmatpush1.bf16.msra.mxu0 0
    %2428 = vmatprep.mubr.bf16.mxu0 0
    %2429 = vmatmul.mubr.bf16.gmra.mrb[0].mxu0 %v2301
    %v2430 = vpop.f32.mrb[0].mxu0
    %v2431 = vadd.f32 0.0, %v2430
    %v2432 = vpop.f32.mrb[0].mxu0
    %v2433 = vpop.f32.mrb[0].mxu0
    %v2434 = vadd.f32 0.0, %v2433
    %v2435 = vpop.f32.mrb[0].mxu0
    %2436 = vmatprep.mubr.bf16.mxu0 0
    %2437 = vmatmul.mubr.bf16.gmra.mrb[0].mxu0 %v2304
    %v2438 = vpop.f32.mrb[0].mxu0
    %v2439 = vadd.f32 0.0, %v2438
    %v2440 = vpop.f32.mrb[0].mxu0
    %v2441 = vpop.f32.mrb[0].mxu0
    %v2442 = vadd.f32 0.0, %v2441
    %v2443 = vpop.f32.mrb[0].mxu0
    %2444 = vmatprep.mubr.bf16.mxu0 0
    %2445 = vmatmul.mubr.bf16.gmra.mrb[0].mxu0 %v2307
    %v2446 = vpop.f32.mrb[0].mxu0
    %v2447 = vadd.f32 0.0, %v2446
    %v2448 = vpop.f32.mrb[0].mxu0
    %v2449 = vpop.f32.mrb[0].mxu0
    %v2450 = vadd.f32 0.0, %v2449
    %v2451 = vpop.f32.mrb[0].mxu0
    %2452 = vmatprep.mubr.bf16.mxu0 0
    %2453 = vmatmul.mubr.bf16.gmra.mrb[0].mxu0 %v2310
    %v2454 = vpop.f32.mrb[0].mxu0
    %v2455 = vadd.f32 0.0, %v2454
    %v2456 = vpop.f32.mrb[0].mxu0
    %v2457 = vpop.f32.mrb[0].mxu0
    %v2458 = vadd.f32 0.0, %v2457
    %v2459 = vpop.f32.mrb[0].mxu0
    %2460 = vmatprep.mubr.bf16.mxu0 0
    %2461 = vmatmul.mubr.bf16.gmra.mrb[0].mxu0 %v2313
    %v2462 = vpop.f32.mrb[0].mxu0
    %v2463 = vadd.f32 0.0, %v2462
    %v2464 = vpop.f32.mrb[0].mxu0
    %v2465 = vpop.f32.mrb[0].mxu0
    %v2466 = vadd.f32 0.0, %v2465
    %v2467 = vpop.f32.mrb[0].mxu0
    %2468 = vmatprep.mubr.bf16.mxu0 0
    %2469 = vmatmul.mubr.bf16.gmra.mrb[0].mxu0 %v2316
    %v2470 = vpop.f32.mrb[0].mxu0
    %v2471 = vadd.f32 0.0, %v2470
    %v2472 = vpop.f32.mrb[0].mxu0
    %v2473 = vpop.f32.mrb[0].mxu0
    %v2474 = vadd.f32 0.0, %v2473
    %v2475 = vpop.f32.mrb[0].mxu0
    %2476 = vmatprep.mubr.bf16.mxu0 0
    %2477 = vmatmul.mubr.bf16.gmra.mrb[0].mxu0 %v2319
    %v2478 = vpop.f32.mrb[0].mxu0
    %v2479 = vadd.f32 0.0, %v2478
    %v2480 = vpop.f32.mrb[0].mxu0
    %v2481 = vpop.f32.mrb[0].mxu0
    %v2482 = vadd.f32 0.0, %v2481
    %v2483 = vpop.f32.mrb[0].mxu0
    %2484 = vmatprep.mubr.bf16.mxu0 0
    %2485 = vmatmul.mubr.bf16.gmra.mrb[0].mxu0 %v2322
    %v2486 = vpop.f32.mrb[0].mxu0
    %v2487 = vadd.f32 0.0, %v2486
    %v2488 = vpop.f32.mrb[0].mxu0
    %v2489 = vpop.f32.mrb[0].mxu0
    %v2490 = vadd.f32 0.0, %v2489
    %v2491 = vpop.f32.mrb[0].mxu0
    %2492 = vmatprep.mubr.bf16.mxu0 0
    %2493 = vmatmul.mubr.bf16.gmra.mrb[0].mxu0 %v2325
    %v2494 = vpop.f32.mrb[0].mxu0
    %v2495 = vadd.f32 0.0, %v2494
    %v2496 = vpop.f32.mrb[0].mxu0
    %v2497 = vpop.f32.mrb[0].mxu0
    %v2498 = vadd.f32 0.0, %v2497
    %v2499 = vpop.f32.mrb[0].mxu0
    %2500 = vmatprep.mubr.bf16.mxu0 0
    %2501 = vmatmul.mubr.bf16.gmra.mrb[0].mxu0 %v2328
    %v2502 = vpop.f32.mrb[0].mxu0
    %v2503 = vadd.f32 0.0, %v2502
    %v2504 = vpop.f32.mrb[0].mxu0
    %v2505 = vpop.f32.mrb[0].mxu0
    %v2506 = vadd.f32 0.0, %v2505
    %v2507 = vpop.f32.mrb[0].mxu0
    %2508 = vmatprep.mubr.bf16.mxu0 0
    %2509 = vmatmul.mubr.bf16.gmra.mrb[0].mxu0 %v2331
    %v2510 = vpop.f32.mrb[0].mxu0
    %v2511 = vadd.f32 0.0, %v2510
    %v2512 = vpop.f32.mrb[0].mxu0
    %v2513 = vpop.f32.mrb[0].mxu0
    %v2514 = vadd.f32 0.0, %v2513
    %v2515 = vpop.f32.mrb[0].mxu0
    %2516 = vmatprep.mubr.bf16.mxu0 0
    %2517 = vmatmul.mubr.bf16.gmra.mrb[0].mxu0 %v2334
    %v2518 = vpop.f32.mrb[0].mxu0
    %v2519 = vadd.f32 0.0, %v2518
    %v2520 = vpop.f32.mrb[0].mxu0
    %v2521 = vpop.f32.mrb[0].mxu0
    %v2522 = vadd.f32 0.0, %v2521
    %v2523 = vpop.f32.mrb[0].mxu0
    %2524 = vmatprep.mubr.bf16.mxu0 0
    %2525 = vmatmul.mubr.bf16.gmra.mrb[0].mxu0 %v2337
    %v2526 = vpop.f32.mrb[0].mxu0
    %v2527 = vadd.f32 0.0, %v2526
    %v2528 = vpop.f32.mrb[0].mxu0
    %v2529 = vpop.f32.mrb[0].mxu0
    %v2530 = vadd.f32 0.0, %v2529
    %v2531 = vpop.f32.mrb[0].mxu0
    %2532 = vmatprep.mubr.bf16.mxu0 0
    %2533 = vmatmul.mubr.bf16.gmra.mrb[0].mxu0 %v2340
    %v2534 = vpop.f32.mrb[0].mxu0
    %v2535 = vadd.f32 0.0, %v2534
    %v2536 = vpop.f32.mrb[0].mxu0
    %v2537 = vpop.f32.mrb[0].mxu0
    %v2538 = vadd.f32 0.0, %v2537
    %v2539 = vpop.f32.mrb[0].mxu0
    %2540 = vmatprep.mubr.bf16.mxu0 0
    %2541 = vmatmul.mubr.bf16.gmra.mrb[0].mxu0 %v2343
    %v2542 = vpop.f32.mrb[0].mxu0
    %v2543 = vadd.f32 0.0, %v2542
    %v2544 = vpop.f32.mrb[0].mxu0
    %v2545 = vpop.f32.mrb[0].mxu0
    %v2546 = vadd.f32 0.0, %v2545
    %v2547 = vpop.f32.mrb[0].mxu0
    %2548 = vmatprep.mubr.bf16.mxu0 0
    %2549 = vmatmul.mubr.bf16.gmra.mrb[0].mxu0 %v2346
    %v2550 = vpop.f32.mrb[0].mxu0
    %v2551 = vadd.f32 0.0, %v2550
    %v2552 = vpop.f32.mrb[0].mxu0
    %v2553 = vpop.f32.mrb[0].mxu0
    %v2554 = vadd.f32 0.0, %v2553
    %v2555 = vpop.f32.mrb[0].mxu0
    %2556 = vmatprep.mubr.bf16.mxu0 0
    %2557 = vmatmul.mubr.bf16.gmra.mrb[0].mxu0 %v2349
    %v2558 = vpop.f32.mrb[0].mxu0
    %v2559 = vadd.f32 0.0, %v2558
    %v2560 = vpop.f32.mrb[0].mxu0
    %v2561 = vpop.f32.mrb[0].mxu0
    %v2562 = vadd.f32 0.0, %v2561
    %v2563 = vpop.f32.mrb[0].mxu0
    %2564 = vmatprep.mubr.bf16.mxu0 0
    %2565 = vmatmul.mubr.bf16.gmra.mrb[0].mxu0 %v2352
    %v2566 = vpop.f32.mrb[0].mxu0
    %v2567 = vadd.f32 0.0, %v2566
    %v2568 = vpop.f32.mrb[0].mxu0
    %v2569 = vpop.f32.mrb[0].mxu0
    %v2570 = vadd.f32 0.0, %v2569
    %v2571 = vpop.f32.mrb[0].mxu0
    %2572 = vmatprep.mubr.bf16.mxu0 0
    %2573 = vmatmul.mubr.bf16.gmra.mrb[0].mxu0 %v2355
    %v2574 = vpop.f32.mrb[0].mxu0
    %v2575 = vadd.f32 0.0, %v2574
    %v2576 = vpop.f32.mrb[0].mxu0
    %v2577 = vpop.f32.mrb[0].mxu0
    %v2578 = vadd.f32 0.0, %v2577
    %v2579 = vpop.f32.mrb[0].mxu0
    %2580 = vmatprep.mubr.bf16.mxu0 0
    %2581 = vmatmul.mubr.bf16.gmra.mrb[0].mxu0 %v2358
    %v2582 = vpop.f32.mrb[0].mxu0
    %v2583 = vadd.f32 0.0, %v2582
    %v2584 = vpop.f32.mrb[0].mxu0
    %v2585 = vpop.f32.mrb[0].mxu0
    %v2586 = vadd.f32 0.0, %v2585
    %v2587 = vpop.f32.mrb[0].mxu0
    %2588 = vmatprep.mubr.bf16.mxu0 0
    %2589 = vmatmul.mubr.bf16.gmra.mrb[0].mxu0 %v2361
    %v2590 = vpop.f32.mrb[0].mxu0
    %v2591 = vadd.f32 0.0, %v2590
    %v2592 = vpop.f32.mrb[0].mxu0
    %v2593 = vpop.f32.mrb[0].mxu0
    %v2594 = vadd.f32 0.0, %v2593
    %v2595 = vpop.f32.mrb[0].mxu0
    %2596 = vmatprep.mubr.bf16.mxu0 0
    %2597 = vmatmul.mubr.bf16.gmra.mrb[0].mxu0 %v2364
    %v2598 = vpop.f32.mrb[0].mxu0
    %v2599 = vadd.f32 0.0, %v2598
    %v2600 = vpop.f32.mrb[0].mxu0
    %v2601 = vpop.f32.mrb[0].mxu0
    %v2602 = vadd.f32 0.0, %v2601
    %v2603 = vpop.f32.mrb[0].mxu0
    %2604 = vmatprep.mubr.bf16.mxu0 0
    %2605 = vmatmul.mubr.bf16.gmra.mrb[0].mxu0 %v2367
    %v2606 = vpop.f32.mrb[0].mxu0
    %v2607 = vadd.f32 0.0, %v2606
    %v2608 = vpop.f32.mrb[0].mxu0
    %v2609 = vpop.f32.mrb[0].mxu0
    %v2610 = vadd.f32 0.0, %v2609
    %v2611 = vpop.f32.mrb[0].mxu0
    %2612 = vmatprep.mubr.bf16.mxu0 0
    %2613 = vmatmul.mubr.bf16.gmra.mrb[0].mxu0 %v2370
    %v2614 = vpop.f32.mrb[0].mxu0
    %v2615 = vadd.f32 0.0, %v2614
    %v2616 = vpop.f32.mrb[0].mxu0
    %v2617 = vpop.f32.mrb[0].mxu0
    %v2618 = vadd.f32 0.0, %v2617
    %v2619 = vpop.f32.mrb[0].mxu0
    %2620 = vmatprep.mubr.bf16.mxu0 0
    %2621 = vmatmul.mubr.bf16.gmra.mrb[0].mxu0 %v2373
    %v2622 = vpop.f32.mrb[0].mxu0
    %v2623 = vadd.f32 0.0, %v2622
    %v2624 = vpop.f32.mrb[0].mxu0
    %v2625 = vpop.f32.mrb[0].mxu0
    %v2626 = vadd.f32 0.0, %v2625
    %v2627 = vpop.f32.mrb[0].mxu0
    %2628 = vmatprep.mubr.bf16.mxu0 0
    %2629 = vmatmul.mubr.bf16.gmra.mrb[0].mxu0 %v2376
    %v2630 = vpop.f32.mrb[0].mxu0
    %v2631 = vadd.f32 0.0, %v2630
    %v2632 = vpop.f32.mrb[0].mxu0
    %v2633 = vpop.f32.mrb[0].mxu0
    %v2634 = vadd.f32 0.0, %v2633
    %v2635 = vpop.f32.mrb[0].mxu0
    %2636 = vmatprep.mubr.bf16.mxu0 0
    %2637 = vmatmul.mubr.bf16.gmra.mrb[0].mxu0 %v2379
    %v2638 = vpop.f32.mrb[0].mxu0
    %v2639 = vadd.f32 0.0, %v2638
    %v2640 = vpop.f32.mrb[0].mxu0
    %v2641 = vpop.f32.mrb[0].mxu0
    %v2642 = vadd.f32 0.0, %v2641
    %v2643 = vpop.f32.mrb[0].mxu0
    %2644 = vmatprep.mubr.bf16.mxu0 0
    %2645 = vmatmul.mubr.bf16.gmra.mrb[0].mxu0 %v2382
    %v2646 = vpop.f32.mrb[0].mxu0
    %v2647 = vadd.f32 0.0, %v2646
    %v2648 = vpop.f32.mrb[0].mxu0
    %v2649 = vpop.f32.mrb[0].mxu0
    %v2650 = vadd.f32 0.0, %v2649
    %v2651 = vpop.f32.mrb[0].mxu0
    %2652 = vmatprep.mubr.bf16.mxu0 0
    %2653 = vmatmul.mubr.bf16.gmra.mrb[0].mxu0 %v2385
    %v2654 = vpop.f32.mrb[0].mxu0
    %v2655 = vadd.f32 0.0, %v2654
    %v2656 = vpop.f32.mrb[0].mxu0
    %v2657 = vpop.f32.mrb[0].mxu0
    %v2658 = vadd.f32 0.0, %v2657
    %v2659 = vpop.f32.mrb[0].mxu0
    %2660 = vmatprep.mubr.bf16.mxu0 0
    %2661 = vmatmul.mubr.bf16.gmra.mrb[0].mxu0 %v2388
    %v2662 = vpop.f32.mrb[0].mxu0
    %v2663 = vadd.f32 0.0, %v2662
    %v2664 = vpop.f32.mrb[0].mxu0
    %v2665 = vpop.f32.mrb[0].mxu0
    %v2666 = vadd.f32 0.0, %v2665
    %v2667 = vpop.f32.mrb[0].mxu0
    %2668 = vmatprep.mubr.bf16.mxu0 0
    %2669 = vmatmul.mubr.bf16.gmra.mrb[0].mxu0 %v2391
    %v2670 = vpop.f32.mrb[0].mxu0
    %v2671 = vadd.f32 0.0, %v2670
    %v2672 = vpop.f32.mrb[0].mxu0
    %v2673 = vpop.f32.mrb[0].mxu0
    %v2674 = vadd.f32 0.0, %v2673
    %v2675 = vpop.f32.mrb[0].mxu0
    %2676 = vmatprep.mubr.bf16.mxu0 0
    %2677 = vmatmul.mubr.bf16.gmra.mrb[0].mxu0 %v2394
    %v2678 = vpop.f32.mrb[0].mxu0
    %v2679 = vadd.f32 0.0, %v2678
    %v2680 = vpop.f32.mrb[0].mxu0
    %v2681 = vpop.f32.mrb[0].mxu0
    %v2682 = vadd.f32 0.0, %v2681
    %v2683 = vpop.f32.mrb[0].mxu0
    %2684 = vdwg.mxu0
    %v2685 = vadd.f32 %v1933, %v2431
    %v2686 = vadd.f32 %v1936, %v2434
    %v2687 = vadd.f32 %v1941, %v2439
    %v2688 = vadd.f32 %v1944, %v2442
    %v2689 = vadd.f32 %v1949, %v2447
    %v2690 = vadd.f32 %v1952, %v2450
    %v2691 = vadd.f32 %v1957, %v2455
    %v2692 = vadd.f32 %v1960, %v2458
    %v2693 = vadd.f32 %v1965, %v2463
    %v2694 = vadd.f32 %v1968, %v2466
    %v2695 = vadd.f32 %v1973, %v2471
    %v2696 = vadd.f32 %v1976, %v2474
    %v2697 = vadd.f32 %v1981, %v2479
    %v2698 = vadd.f32 %v1984, %v2482
    %v2699 = vadd.f32 %v1989, %v2487
    %v2700 = vadd.f32 %v1992, %v2490
    %v2701 = vadd.f32 %v1997, %v2495
    %v2702 = vadd.f32 %v2000, %v2498
    %v2703 = vadd.f32 %v2005, %v2503
    %v2704 = vadd.f32 %v2008, %v2506
    %v2705 = vadd.f32 %v2013, %v2511
    %v2706 = vadd.f32 %v2016, %v2514
    %v2707 = vadd.f32 %v2021, %v2519
    %v2708 = vadd.f32 %v2024, %v2522
    %v2709 = vadd.f32 %v2029, %v2527
    %v2710 = vadd.f32 %v2032, %v2530
    %v2711 = vadd.f32 %v2037, %v2535
    %v2712 = vadd.f32 %v2040, %v2538
    %v2713 = vadd.f32 %v2045, %v2543
    %v2714 = vadd.f32 %v2048, %v2546
    %v2715 = vadd.f32 %v2053, %v2551
    %v2716 = vadd.f32 %v2056, %v2554
    %v2717 = vadd.f32 %v2061, %v2559
    %v2718 = vadd.f32 %v2064, %v2562
    %v2719 = vadd.f32 %v2069, %v2567
    %v2720 = vadd.f32 %v2072, %v2570
    %v2721 = vadd.f32 %v2077, %v2575
    %v2722 = vadd.f32 %v2080, %v2578
    %v2723 = vadd.f32 %v2085, %v2583
    %v2724 = vadd.f32 %v2088, %v2586
    %v2725 = vadd.f32 %v2093, %v2591
    %v2726 = vadd.f32 %v2096, %v2594
    %v2727 = vadd.f32 %v2101, %v2599
    %v2728 = vadd.f32 %v2104, %v2602
    %v2729 = vadd.f32 %v2109, %v2607
    %v2730 = vadd.f32 %v2112, %v2610
    %v2731 = vadd.f32 %v2117, %v2615
    %v2732 = vadd.f32 %v2120, %v2618
    %v2733 = vadd.f32 %v2125, %v2623
    %v2734 = vadd.f32 %v2128, %v2626
    %v2735 = vadd.f32 %v2133, %v2631
    %v2736 = vadd.f32 %v2136, %v2634
    %v2737 = vadd.f32 %v2141, %v2639
    %v2738 = vadd.f32 %v2144, %v2642
    %v2739 = vadd.f32 %v2149, %v2647
    %v2740 = vadd.f32 %v2152, %v2650
    %v2741 = vadd.f32 %v2157, %v2655
    %v2742 = vadd.f32 %v2160, %v2658
    %v2743 = vadd.f32 %v2165, %v2663
    %v2744 = vadd.f32 %v2168, %v2666
    %v2745 = vadd.f32 %v2173, %v2671
    %v2746 = vadd.f32 %v2176, %v2674
    %v2747 = vadd.f32 %v2181, %v2679
    %v2748 = vadd.f32 %v2184, %v2682
    %v2749 = vld [vmem:[%s1062] sm:$0xff]
    %v2750 = vld [vmem:[%s1062 + $0x8] sm:$0xff]
    %v2751 = vld [vmem:[%s1062 + $0x18] sm:$0xff]
    %v2752 = vld [vmem:[%s1062 + $0x20] sm:$0xff]
    %v2753 = vld [vmem:[%s1062 + $0x30] sm:$0xff]
    %v2754 = vld [vmem:[%s1062 + $0x38] sm:$0xff]
    %v2755 = vld [vmem:[%s1062 + $0x48] sm:$0xff]
    %v2756 = vld [vmem:[%s1062 + $0x50] sm:$0xff]
    %v2757 = vld [vmem:[%s1062 + $0x60] sm:$0xff]
    %v2758 = vld [vmem:[%s1062 + $0x68] sm:$0xff]
    %v2759 = vld [vmem:[%s1062 + $0x78] sm:$0xff]
    %v2760 = vld [vmem:[%s1062 + $0x80] sm:$0xff]
    %v2761 = vld [vmem:[%s1062 + $0x90] sm:$0xff]
    %v2762 = vld [vmem:[%s1062 + $0x98] sm:$0xff]
    %v2763 = vld [vmem:[%s1062 + $0xa8] sm:$0xff]
    %v2764 = vld [vmem:[%s1062 + $0xb0] sm:$0xff]
    %v2765 = vld [vmem:[%s1062 + $0xc0] sm:$0xff]
    %v2766 = vld [vmem:[%s1062 + $0xc8] sm:$0xff]
    %v2767 = vld [vmem:[%s1062 + $0xd8] sm:$0xff]
    %v2768 = vld [vmem:[%s1062 + $0xe0] sm:$0xff]
    %v2769 = vld [vmem:[%s1062 + $0xf0] sm:$0xff]
    %v2770 = vld [vmem:[%s1062 + $0xf8] sm:$0xff]
    %v2771 = vld [vmem:[%s1062 + $0x108] sm:$0xff]
    %v2772 = vld [vmem:[%s1062 + $0x110] sm:$0xff]
    %v2773 = vld [vmem:[%s1062 + $0x120] sm:$0xff]
    %v2774 = vld [vmem:[%s1062 + $0x128] sm:$0xff]
    %v2775 = vld [vmem:[%s1062 + $0x138] sm:$0xff]
    %v2776 = vld [vmem:[%s1062 + $0x140] sm:$0xff]
    %v2777 = vld [vmem:[%s1062 + $0x150] sm:$0xff]
    %v2778 = vld [vmem:[%s1062 + $0x158] sm:$0xff]
    %v2779 = vld [vmem:[%s1062 + $0x168] sm:$0xff]
    %v2780 = vld [vmem:[%s1062 + $0x170] sm:$0xff]
    %v2781 = vld [vmem:[%s1062 + $0x1b0] sm:$0xff]
    %v2782 = vld [vmem:[%s1062 + $0x1b8] sm:$0xff]
    %v2783 = vld [vmem:[%s1062 + $0x1c8] sm:$0xff]
    %v2784 = vld [vmem:[%s1062 + $0x1d0] sm:$0xff]
    %v2785 = vld [vmem:[%s1062 + $0x1e0] sm:$0xff]
    %v2786 = vld [vmem:[%s1062 + $0x1e8] sm:$0xff]
    %v2787 = vld [vmem:[%s1062 + $0x1f8] sm:$0xff]
    %v2788 = vld [vmem:[%s1062 + $0x200] sm:$0xff]
    %v2789 = vld [vmem:[%s1062 + $0x210] sm:$0xff]
    %v2790 = vld [vmem:[%s1062 + $0x218] sm:$0xff]
    %v2791 = vld [vmem:[%s1062 + $0x228] sm:$0xff]
    %v2792 = vld [vmem:[%s1062 + $0x230] sm:$0xff]
    %v2793 = vld [vmem:[%s1062 + $0x240] sm:$0xff]
    %v2794 = vld [vmem:[%s1062 + $0x248] sm:$0xff]
    %v2795 = vld [vmem:[%s1062 + $0x258] sm:$0xff]
    %v2796 = vld [vmem:[%s1062 + $0x260] sm:$0xff]
    %v2797 = vld [vmem:[%s1062 + $0x270] sm:$0xff]
    %v2798 = vld [vmem:[%s1062 + $0x278] sm:$0xff]
    %v2799 = vld [vmem:[%s1062 + $0x288] sm:$0xff]
    %v2800 = vld [vmem:[%s1062 + $0x290] sm:$0xff]
    %v2801 = vld [vmem:[%s1062 + $0x2a0] sm:$0xff]
    %v2802 = vld [vmem:[%s1062 + $0x2a8] sm:$0xff]
    %v2803 = vld [vmem:[%s1062 + $0x2b8] sm:$0xff]
    %v2804 = vld [vmem:[%s1062 + $0x2c0] sm:$0xff]
    %v2805 = vld [vmem:[%s1062 + $0x2d0] sm:$0xff]
    %v2806 = vld [vmem:[%s1062 + $0x2d8] sm:$0xff]
    %v2807 = vld [vmem:[%s1062 + $0x2e8] sm:$0xff]
    %v2808 = vld [vmem:[%s1062 + $0x2f0] sm:$0xff]
    %v2809 = vld [vmem:[%s1062 + $0x300] sm:$0xff]
    %v2810 = vld [vmem:[%s1062 + $0x308] sm:$0xff]
    %v2811 = vld [vmem:[%s1062 + $0x318] sm:$0xff]
    %v2812 = vld [vmem:[%s1062 + $0x320] sm:$0xff]
    %v2813 = vpack.c.bf16 %v2750, %v2749
    %v2814 = vpack.c.bf16 %v2752, %v2751
    %v2815 = vpack.c.bf16 %v2754, %v2753
    %v2816 = vpack.c.bf16 %v2756, %v2755
    %v2817 = vpack.c.bf16 %v2758, %v2757
    %v2818 = vpack.c.bf16 %v2760, %v2759
    %v2819 = vpack.c.bf16 %v2762, %v2761
    %v2820 = vpack.c.bf16 %v2764, %v2763
    %v2821 = vpack.c.bf16 %v2766, %v2765
    %v2822 = vpack.c.bf16 %v2768, %v2767
    %v2823 = vpack.c.bf16 %v2770, %v2769
    %v2824 = vpack.c.bf16 %v2772, %v2771
    %v2825 = vpack.c.bf16 %v2774, %v2773
    %v2826 = vpack.c.bf16 %v2776, %v2775
    %v2827 = vpack.c.bf16 %v2778, %v2777
    %v2828 = vpack.c.bf16 %v2780, %v2779
    %v2829 = vpack.c.bf16 %v2782, %v2781
    %v2830 = vpack.c.bf16 %v2784, %v2783
    %v2831 = vpack.c.bf16 %v2786, %v2785
    %v2832 = vpack.c.bf16 %v2788, %v2787
    %v2833 = vpack.c.bf16 %v2790, %v2789
    %v2834 = vpack.c.bf16 %v2792, %v2791
    %v2835 = vpack.c.bf16 %v2794, %v2793
    %v2836 = vpack.c.bf16 %v2796, %v2795
    %v2837 = vpack.c.bf16 %v2798, %v2797
    %v2838 = vpack.c.bf16 %v2800, %v2799
    %v2839 = vpack.c.bf16 %v2802, %v2801
    %v2840 = vpack.c.bf16 %v2804, %v2803
    %v2841 = vpack.c.bf16 %v2806, %v2805
    %v2842 = vpack.c.bf16 %v2808, %v2807
    %v2843 = vpack.c.bf16 %v2810, %v2809
    %v2844 = vpack.c.bf16 %v2812, %v2811
    %s2845 = scalar_lea.vmem [#allocation6], 48
    %v2846 = vld [vmem:[%s2845] sm:$0xf]
    %v2847 = vld [vmem:[%s2845 + $0x4] sm:$0xf]
    %v2848 = vld [vmem:[%s2845 + $0x8] sm:$0xf]
    %v2849 = vld [vmem:[%s2845 + $0xc] sm:$0xf]
    %v2854 = vunpack.c.l.b16 %v2846
    %v2855 = vunpack.c.l.b16 %v2847
    %v2856 = vunpack.c.l.b16 %v2848
    %v2857 = vunpack.c.l.b16 %v2849
    %v2858 = vpack.c.b16 %v2855, %v2854
    %v2859 = vpack.c.b16 %v2857, %v2856
    %v2863 = vsel %vm507, %v2813, 0
    %v2866 = vsel %vm507, %v2814, 0
    %v2869 = vsel %vm507, %v2815, 0
    %v2872 = vsel %vm507, %v2816, 0
    %v2875 = vsel %vm507, %v2817, 0
    %v2878 = vsel %vm507, %v2818, 0
    %v2881 = vsel %vm507, %v2819, 0
    %v2884 = vsel %vm507, %v2820, 0
    %v2887 = vsel %vm507, %v2821, 0
    %v2890 = vsel %vm507, %v2822, 0
    %v2893 = vsel %vm507, %v2823, 0
    %v2896 = vsel %vm507, %v2824, 0
    %v2899 = vsel %vm507, %v2825, 0
    %v2902 = vsel %vm507, %v2826, 0
    %v2905 = vsel %vm507, %v2827, 0
    %v2908 = vsel %vm507, %v2828, 0
    %v2911 = vsel %vm507, %v2829, 0
    %v2914 = vsel %vm507, %v2830, 0
    %v2917 = vsel %vm507, %v2831, 0
    %v2920 = vsel %vm507, %v2832, 0
    %v2923 = vsel %vm507, %v2833, 0
    %v2926 = vsel %vm507, %v2834, 0
    %v2929 = vsel %vm507, %v2835, 0
    %v2932 = vsel %vm507, %v2836, 0
    %v2935 = vsel %vm507, %v2837, 0
    %v2938 = vsel %vm507, %v2838, 0
    %v2941 = vsel %vm507, %v2839, 0
    %v2944 = vsel %vm507, %v2840, 0
    %v2947 = vsel %vm507, %v2841, 0
    %v2950 = vsel %vm507, %v2842, 0
    %v2953 = vsel %vm507, %v2843, 0
    %v2956 = vsel %vm507, %v2844, 0
    %2958 = vmatprep.subr.bf16.mxu0 0
    %2959 = vmatpush1.bf16.msra.mxu0 %v2858
    %2960 = vmatprep.subr.bf16.mxu0 0
    %2961 = vmatpush1.bf16.msra.mxu0 %v2859
    %2962 = vmatprep.subr.bf16.mxu0 0
    %2963 = vmatpush1.bf16.msra.mxu0 0
    %2964 = vmatprep.subr.bf16.mxu0 0
    %2965 = vmatpush1.bf16.msra.mxu0 0
    %2966 = vmatprep.subr.bf16.mxu0 0
    %2967 = vmatpush1.bf16.msra.mxu0 0
    %2968 = vmatprep.subr.bf16.mxu0 0
    %2969 = vmatpush1.bf16.msra.mxu0 0
    %2970 = vmatprep.subr.bf16.mxu0 0
    %2971 = vmatpush1.bf16.msra.mxu0 0
    %2972 = vmatprep.subr.bf16.mxu0 0
    %2973 = vmatpush1.bf16.msra.mxu0 0
    %2974 = vmatprep.subr.bf16.mxu0 0
    %2975 = vmatpush1.bf16.msra.mxu0 0
    %2976 = vmatprep.subr.bf16.mxu0 0
    %2977 = vmatpush1.bf16.msra.mxu0 0
    %2978 = vmatprep.subr.bf16.mxu0 0
    %2979 = vmatpush1.bf16.msra.mxu0 0
    %2980 = vmatprep.subr.bf16.mxu0 0
    %2981 = vmatpush1.bf16.msra.mxu0 0
    %2982 = vmatprep.subr.bf16.mxu0 0
    %2983 = vmatpush1.bf16.msra.mxu0 0
    %2984 = vmatprep.subr.bf16.mxu0 0
    %2985 = vmatpush1.bf16.msra.mxu0 0
    %2986 = vmatprep.subr.bf16.mxu0 0
    %2987 = vmatpush1.bf16.msra.mxu0 0
    %2988 = vmatprep.subr.bf16.mxu0 0
    %2989 = vmatpush1.bf16.msra.mxu0 0
    %2990 = vmatprep.mubr.bf16.mxu0 0
    %2991 = vmatmul.mubr.bf16.gmra.mrb[0].mxu0 %v2863
    %v2992 = vpop.f32.mrb[0].mxu0
    %v2993 = vadd.f32 0.0, %v2992
    %v2994 = vpop.f32.mrb[0].mxu0
    %v2995 = vpop.f32.mrb[0].mxu0
    %v2996 = vadd.f32 0.0, %v2995
    %v2997 = vpop.f32.mrb[0].mxu0
    %2998 = vmatprep.mubr.bf16.mxu0 0
    %2999 = vmatmul.mubr.bf16.gmra.mrb[0].mxu0 %v2866
    %v3000 = vpop.f32.mrb[0].mxu0
    %v3001 = vadd.f32 0.0, %v3000
    %v3002 = vpop.f32.mrb[0].mxu0
    %v3003 = vpop.f32.mrb[0].mxu0
    %v3004 = vadd.f32 0.0, %v3003
    %v3005 = vpop.f32.mrb[0].mxu0
    %3006 = vmatprep.mubr.bf16.mxu0 0
    %3007 = vmatmul.mubr.bf16.gmra.mrb[0].mxu0 %v2869
    %v3008 = vpop.f32.mrb[0].mxu0
    %v3009 = vadd.f32 0.0, %v3008
    %v3010 = vpop.f32.mrb[0].mxu0
    %v3011 = vpop.f32.mrb[0].mxu0
    %v3012 = vadd.f32 0.0, %v3011
    %v3013 = vpop.f32.mrb[0].mxu0
    %3014 = vmatprep.mubr.bf16.mxu0 0
    %3015 = vmatmul.mubr.bf16.gmra.mrb[0].mxu0 %v2872
    %v3016 = vpop.f32.mrb[0].mxu0
    %v3017 = vadd.f32 0.0, %v3016
    %v3018 = vpop.f32.mrb[0].mxu0
    %v3019 = vpop.f32.mrb[0].mxu0
    %v3020 = vadd.f32 0.0, %v3019
    %v3021 = vpop.f32.mrb[0].mxu0
    %3022 = vmatprep.mubr.bf16.mxu0 0
    %3023 = vmatmul.mubr.bf16.gmra.mrb[0].mxu0 %v2875
    %v3024 = vpop.f32.mrb[0].mxu0
    %v3025 = vadd.f32 0.0, %v3024
    %v3026 = vpop.f32.mrb[0].mxu0
    %v3027 = vpop.f32.mrb[0].mxu0
    %v3028 = vadd.f32 0.0, %v3027
    %v3029 = vpop.f32.mrb[0].mxu0
    %3030 = vmatprep.mubr.bf16.mxu0 0
    %3031 = vmatmul.mubr.bf16.gmra.mrb[0].mxu0 %v2878
    %v3032 = vpop.f32.mrb[0].mxu0
    %v3033 = vadd.f32 0.0, %v3032
    %v3034 = vpop.f32.mrb[0].mxu0
    %v3035 = vpop.f32.mrb[0].mxu0
    %v3036 = vadd.f32 0.0, %v3035
    %v3037 = vpop.f32.mrb[0].mxu0
    %3038 = vmatprep.mubr.bf16.mxu0 0
    %3039 = vmatmul.mubr.bf16.gmra.mrb[0].mxu0 %v2881
    %v3040 = vpop.f32.mrb[0].mxu0
    %v3041 = vadd.f32 0.0, %v3040
    %v3042 = vpop.f32.mrb[0].mxu0
    %v3043 = vpop.f32.mrb[0].mxu0
    %v3044 = vadd.f32 0.0, %v3043
    %v3045 = vpop.f32.mrb[0].mxu0
    %3046 = vmatprep.mubr.bf16.mxu0 0
    %3047 = vmatmul.mubr.bf16.gmra.mrb[0].mxu0 %v2884
    %v3048 = vpop.f32.mrb[0].mxu0
    %v3049 = vadd.f32 0.0, %v3048
    %v3050 = vpop.f32.mrb[0].mxu0
    %v3051 = vpop.f32.mrb[0].mxu0
    %v3052 = vadd.f32 0.0, %v3051
    %v3053 = vpop.f32.mrb[0].mxu0
    %3054 = vmatprep.mubr.bf16.mxu0 0
    %3055 = vmatmul.mubr.bf16.gmra.mrb[0].mxu0 %v2887
    %v3056 = vpop.f32.mrb[0].mxu0
    %v3057 = vadd.f32 0.0, %v3056
    %v3058 = vpop.f32.mrb[0].mxu0
    %v3059 = vpop.f32.mrb[0].mxu0
    %v3060 = vadd.f32 0.0, %v3059
    %v3061 = vpop.f32.mrb[0].mxu0
    %3062 = vmatprep.mubr.bf16.mxu0 0
    %3063 = vmatmul.mubr.bf16.gmra.mrb[0].mxu0 %v2890
    %v3064 = vpop.f32.mrb[0].mxu0
    %v3065 = vadd.f32 0.0, %v3064
    %v3066 = vpop.f32.mrb[0].mxu0
    %v3067 = vpop.f32.mrb[0].mxu0
    %v3068 = vadd.f32 0.0, %v3067
    %v3069 = vpop.f32.mrb[0].mxu0
    %3070 = vmatprep.mubr.bf16.mxu0 0
    %3071 = vmatmul.mubr.bf16.gmra.mrb[0].mxu0 %v2893
    %v3072 = vpop.f32.mrb[0].mxu0
    %v3073 = vadd.f32 0.0, %v3072
    %v3074 = vpop.f32.mrb[0].mxu0
    %v3075 = vpop.f32.mrb[0].mxu0
    %v3076 = vadd.f32 0.0, %v3075
    %v3077 = vpop.f32.mrb[0].mxu0
    %3078 = vmatprep.mubr.bf16.mxu0 0
    %3079 = vmatmul.mubr.bf16.gmra.mrb[0].mxu0 %v2896
    %v3080 = vpop.f32.mrb[0].mxu0
    %v3081 = vadd.f32 0.0, %v3080
    %v3082 = vpop.f32.mrb[0].mxu0
    %v3083 = vpop.f32.mrb[0].mxu0
    %v3084 = vadd.f32 0.0, %v3083
    %v3085 = vpop.f32.mrb[0].mxu0
    %3086 = vmatprep.mubr.bf16.mxu0 0
    %3087 = vmatmul.mubr.bf16.gmra.mrb[0].mxu0 %v2899
    %v3088 = vpop.f32.mrb[0].mxu0
    %v3089 = vadd.f32 0.0, %v3088
    %v3090 = vpop.f32.mrb[0].mxu0
    %v3091 = vpop.f32.mrb[0].mxu0
    %v3092 = vadd.f32 0.0, %v3091
    %v3093 = vpop.f32.mrb[0].mxu0
    %3094 = vmatprep.mubr.bf16.mxu0 0
    %3095 = vmatmul.mubr.bf16.gmra.mrb[0].mxu0 %v2902
    %v3096 = vpop.f32.mrb[0].mxu0
    %v3097 = vadd.f32 0.0, %v3096
    %v3098 = vpop.f32.mrb[0].mxu0
    %v3099 = vpop.f32.mrb[0].mxu0
    %v3100 = vadd.f32 0.0, %v3099
    %v3101 = vpop.f32.mrb[0].mxu0
    %3102 = vmatprep.mubr.bf16.mxu0 0
    %3103 = vmatmul.mubr.bf16.gmra.mrb[0].mxu0 %v2905
    %v3104 = vpop.f32.mrb[0].mxu0
    %v3105 = vadd.f32 0.0, %v3104
    %v3106 = vpop.f32.mrb[0].mxu0
    %v3107 = vpop.f32.mrb[0].mxu0
    %v3108 = vadd.f32 0.0, %v3107
    %v3109 = vpop.f32.mrb[0].mxu0
    %3110 = vmatprep.mubr.bf16.mxu0 0
    %3111 = vmatmul.mubr.bf16.gmra.mrb[0].mxu0 %v2908
    %v3112 = vpop.f32.mrb[0].mxu0
    %v3113 = vadd.f32 0.0, %v3112
    %v3114 = vpop.f32.mrb[0].mxu0
    %v3115 = vpop.f32.mrb[0].mxu0
    %v3116 = vadd.f32 0.0, %v3115
    %v3117 = vpop.f32.mrb[0].mxu0
    %3118 = vmatprep.mubr.bf16.mxu0 0
    %3119 = vmatmul.mubr.bf16.gmra.mrb[0].mxu0 %v2911
    %v3120 = vpop.f32.mrb[0].mxu0
    %v3121 = vadd.f32 0.0, %v3120
    %v3122 = vpop.f32.mrb[0].mxu0
    %v3123 = vpop.f32.mrb[0].mxu0
    %v3124 = vadd.f32 0.0, %v3123
    %v3125 = vpop.f32.mrb[0].mxu0
    %3126 = vmatprep.mubr.bf16.mxu0 0
    %3127 = vmatmul.mubr.bf16.gmra.mrb[0].mxu0 %v2914
    %v3128 = vpop.f32.mrb[0].mxu0
    %v3129 = vadd.f32 0.0, %v3128
    %v3130 = vpop.f32.mrb[0].mxu0
    %v3131 = vpop.f32.mrb[0].mxu0
    %v3132 = vadd.f32 0.0, %v3131
    %v3133 = vpop.f32.mrb[0].mxu0
    %3134 = vmatprep.mubr.bf16.mxu0 0
    %3135 = vmatmul.mubr.bf16.gmra.mrb[0].mxu0 %v2917
    %v3136 = vpop.f32.mrb[0].mxu0
    %v3137 = vadd.f32 0.0, %v3136
    %v3138 = vpop.f32.mrb[0].mxu0
    %v3139 = vpop.f32.mrb[0].mxu0
    %v3140 = vadd.f32 0.0, %v3139
    %v3141 = vpop.f32.mrb[0].mxu0
    %3142 = vmatprep.mubr.bf16.mxu0 0
    %3143 = vmatmul.mubr.bf16.gmra.mrb[0].mxu0 %v2920
    %v3144 = vpop.f32.mrb[0].mxu0
    %v3145 = vadd.f32 0.0, %v3144
    %v3146 = vpop.f32.mrb[0].mxu0
    %v3147 = vpop.f32.mrb[0].mxu0
    %v3148 = vadd.f32 0.0, %v3147
    %v3149 = vpop.f32.mrb[0].mxu0
    %3150 = vmatprep.mubr.bf16.mxu0 0
    %3151 = vmatmul.mubr.bf16.gmra.mrb[0].mxu0 %v2923
    %v3152 = vpop.f32.mrb[0].mxu0
    %v3153 = vadd.f32 0.0, %v3152
    %v3154 = vpop.f32.mrb[0].mxu0
    %v3155 = vpop.f32.mrb[0].mxu0
    %v3156 = vadd.f32 0.0, %v3155
    %v3157 = vpop.f32.mrb[0].mxu0
    %3158 = vmatprep.mubr.bf16.mxu0 0
    %3159 = vmatmul.mubr.bf16.gmra.mrb[0].mxu0 %v2926
    %v3160 = vpop.f32.mrb[0].mxu0
    %v3161 = vadd.f32 0.0, %v3160
    %v3162 = vpop.f32.mrb[0].mxu0
    %v3163 = vpop.f32.mrb[0].mxu0
    %v3164 = vadd.f32 0.0, %v3163
    %v3165 = vpop.f32.mrb[0].mxu0
    %3166 = vmatprep.mubr.bf16.mxu0 0
    %3167 = vmatmul.mubr.bf16.gmra.mrb[0].mxu0 %v2929
    %v3168 = vpop.f32.mrb[0].mxu0
    %v3169 = vadd.f32 0.0, %v3168
    %v3170 = vpop.f32.mrb[0].mxu0
    %v3171 = vpop.f32.mrb[0].mxu0
    %v3172 = vadd.f32 0.0, %v3171
    %v3173 = vpop.f32.mrb[0].mxu0
    %3174 = vmatprep.mubr.bf16.mxu0 0
    %3175 = vmatmul.mubr.bf16.gmra.mrb[0].mxu0 %v2932
    %v3176 = vpop.f32.mrb[0].mxu0
    %v3177 = vadd.f32 0.0, %v3176
    %v3178 = vpop.f32.mrb[0].mxu0
    %v3179 = vpop.f32.mrb[0].mxu0
    %v3180 = vadd.f32 0.0, %v3179
    %v3181 = vpop.f32.mrb[0].mxu0
    %3182 = vmatprep.mubr.bf16.mxu0 0
    %3183 = vmatmul.mubr.bf16.gmra.mrb[0].mxu0 %v2935
    %v3184 = vpop.f32.mrb[0].mxu0
    %v3185 = vadd.f32 0.0, %v3184
    %v3186 = vpop.f32.mrb[0].mxu0
    %v3187 = vpop.f32.mrb[0].mxu0
    %v3188 = vadd.f32 0.0, %v3187
    %v3189 = vpop.f32.mrb[0].mxu0
    %3190 = vmatprep.mubr.bf16.mxu0 0
    %3191 = vmatmul.mubr.bf16.gmra.mrb[0].mxu0 %v2938
    %v3192 = vpop.f32.mrb[0].mxu0
    %v3193 = vadd.f32 0.0, %v3192
    %v3194 = vpop.f32.mrb[0].mxu0
    %v3195 = vpop.f32.mrb[0].mxu0
    %v3196 = vadd.f32 0.0, %v3195
    %v3197 = vpop.f32.mrb[0].mxu0
    %3198 = vmatprep.mubr.bf16.mxu0 0
    %3199 = vmatmul.mubr.bf16.gmra.mrb[0].mxu0 %v2941
    %v3200 = vpop.f32.mrb[0].mxu0
    %v3201 = vadd.f32 0.0, %v3200
    %v3202 = vpop.f32.mrb[0].mxu0
    %v3203 = vpop.f32.mrb[0].mxu0
    %v3204 = vadd.f32 0.0, %v3203
    %v3205 = vpop.f32.mrb[0].mxu0
    %3206 = vmatprep.mubr.bf16.mxu0 0
    %3207 = vmatmul.mubr.bf16.gmra.mrb[0].mxu0 %v2944
    %v3208 = vpop.f32.mrb[0].mxu0
    %v3209 = vadd.f32 0.0, %v3208
    %v3210 = vpop.f32.mrb[0].mxu0
    %v3211 = vpop.f32.mrb[0].mxu0
    %v3212 = vadd.f32 0.0, %v3211
    %v3213 = vpop.f32.mrb[0].mxu0
    %3214 = vmatprep.mubr.bf16.mxu0 0
    %3215 = vmatmul.mubr.bf16.gmra.mrb[0].mxu0 %v2947
    %v3216 = vpop.f32.mrb[0].mxu0
    %v3217 = vadd.f32 0.0, %v3216
    %v3218 = vpop.f32.mrb[0].mxu0
    %v3219 = vpop.f32.mrb[0].mxu0
    %v3220 = vadd.f32 0.0, %v3219
    %v3221 = vpop.f32.mrb[0].mxu0
    %3222 = vmatprep.mubr.bf16.mxu0 0
    %3223 = vmatmul.mubr.bf16.gmra.mrb[0].mxu0 %v2950
    %v3224 = vpop.f32.mrb[0].mxu0
    %v3225 = vadd.f32 0.0, %v3224
    %v3226 = vpop.f32.mrb[0].mxu0
    %v3227 = vpop.f32.mrb[0].mxu0
    %v3228 = vadd.f32 0.0, %v3227
    %v3229 = vpop.f32.mrb[0].mxu0
    %3230 = vmatprep.mubr.bf16.mxu0 0
    %3231 = vmatmul.mubr.bf16.gmra.mrb[0].mxu0 %v2953
    %v3232 = vpop.f32.mrb[0].mxu0
    %v3233 = vadd.f32 0.0, %v3232
    %v3234 = vpop.f32.mrb[0].mxu0
    %v3235 = vpop.f32.mrb[0].mxu0
    %v3236 = vadd.f32 0.0, %v3235
    %v3237 = vpop.f32.mrb[0].mxu0
    %3238 = vmatprep.mubr.bf16.mxu0 0
    %3239 = vmatmul.mubr.bf16.gmra.mrb[0].mxu0 %v2956
    %v3240 = vpop.f32.mrb[0].mxu0
    %v3241 = vadd.f32 0.0, %v3240
    %v3242 = vpop.f32.mrb[0].mxu0
    %v3243 = vpop.f32.mrb[0].mxu0
    %v3244 = vadd.f32 0.0, %v3243
    %v3245 = vpop.f32.mrb[0].mxu0
    %3246 = vdwg.mxu0
    %v3247 = vadd.f32 %v2685, %v2993
    %v3248 = vadd.f32 %v2686, %v2996
    %v3249 = vadd.f32 %v2687, %v3001
    %v3250 = vadd.f32 %v2688, %v3004
    %v3251 = vadd.f32 %v2689, %v3009
    %v3252 = vadd.f32 %v2690, %v3012
    %v3253 = vadd.f32 %v2691, %v3017
    %v3254 = vadd.f32 %v2692, %v3020
    %v3255 = vadd.f32 %v2693, %v3025
    %v3256 = vadd.f32 %v2694, %v3028
    %v3257 = vadd.f32 %v2695, %v3033
    %v3258 = vadd.f32 %v2696, %v3036
    %v3259 = vadd.f32 %v2697, %v3041
    %v3260 = vadd.f32 %v2698, %v3044
    %v3261 = vadd.f32 %v2699, %v3049
    %v3262 = vadd.f32 %v2700, %v3052
    %v3263 = vadd.f32 %v2701, %v3057
    %v3264 = vadd.f32 %v2702, %v3060
    %v3265 = vadd.f32 %v2703, %v3065
    %v3266 = vadd.f32 %v2704, %v3068
    %v3267 = vadd.f32 %v2705, %v3073
    %v3268 = vadd.f32 %v2706, %v3076
    %v3269 = vadd.f32 %v2707, %v3081
    %v3270 = vadd.f32 %v2708, %v3084
    %v3271 = vadd.f32 %v2709, %v3089
    %v3272 = vadd.f32 %v2710, %v3092
    %v3273 = vadd.f32 %v2711, %v3097
    %v3274 = vadd.f32 %v2712, %v3100
    %v3275 = vadd.f32 %v2713, %v3105
    %v3276 = vadd.f32 %v2714, %v3108
    %v3277 = vadd.f32 %v2715, %v3113
    %v3278 = vadd.f32 %v2716, %v3116
    %v3279 = vadd.f32 %v2717, %v3121
    %v3280 = vadd.f32 %v2718, %v3124
    %v3281 = vadd.f32 %v2719, %v3129
    %v3282 = vadd.f32 %v2720, %v3132
    %v3283 = vadd.f32 %v2721, %v3137
    %v3284 = vadd.f32 %v2722, %v3140
    %v3285 = vadd.f32 %v2723, %v3145
    %v3286 = vadd.f32 %v2724, %v3148
    %v3287 = vadd.f32 %v2725, %v3153
    %v3288 = vadd.f32 %v2726, %v3156
    %v3289 = vadd.f32 %v2727, %v3161
    %v3290 = vadd.f32 %v2728, %v3164
    %v3291 = vadd.f32 %v2729, %v3169
    %v3292 = vadd.f32 %v2730, %v3172
    %v3293 = vadd.f32 %v2731, %v3177
    %v3294 = vadd.f32 %v2732, %v3180
    %v3295 = vadd.f32 %v2733, %v3185
    %v3296 = vadd.f32 %v2734, %v3188
    %v3297 = vadd.f32 %v2735, %v3193
    %v3298 = vadd.f32 %v2736, %v3196
    %v3299 = vadd.f32 %v2737, %v3201
    %v3300 = vadd.f32 %v2738, %v3204
    %v3301 = vadd.f32 %v2739, %v3209
    %v3302 = vadd.f32 %v2740, %v3212
    %v3303 = vadd.f32 %v2741, %v3217
    %v3304 = vadd.f32 %v2742, %v3220
    %v3305 = vadd.f32 %v2743, %v3225
    %v3306 = vadd.f32 %v2744, %v3228
    %v3307 = vadd.f32 %v2745, %v3233
    %v3308 = vadd.f32 %v2746, %v3236
    %v3309 = vadd.f32 %v2747, %v3241
    %v3310 = vadd.f32 %v2748, %v3244
    %v3311 = vld [vmem:[%s1062 + $0x1] sm:$0xff]
    %v3312 = vld [vmem:[%s1062 + $0x9] sm:$0xff]
    %v3313 = vld [vmem:[%s1062 + $0x19] sm:$0xff]
    %v3314 = vld [vmem:[%s1062 + $0x21] sm:$0xff]
    %v3315 = vld [vmem:[%s1062 + $0x31] sm:$0xff]
    %v3316 = vld [vmem:[%s1062 + $0x39] sm:$0xff]
    %v3317 = vld [vmem:[%s1062 + $0x49] sm:$0xff]
    %v3318 = vld [vmem:[%s1062 + $0x51] sm:$0xff]
    %v3319 = vld [vmem:[%s1062 + $0x61] sm:$0xff]
    %v3320 = vld [vmem:[%s1062 + $0x69] sm:$0xff]
    %v3321 = vld [vmem:[%s1062 + $0x79] sm:$0xff]
    %v3322 = vld [vmem:[%s1062 + $0x81] sm:$0xff]
    %v3323 = vld [vmem:[%s1062 + $0x91] sm:$0xff]
    %v3324 = vld [vmem:[%s1062 + $0x99] sm:$0xff]
    %v3325 = vld [vmem:[%s1062 + $0xa9] sm:$0xff]
    %v3326 = vld [vmem:[%s1062 + $0xb1] sm:$0xff]
    %v3327 = vld [vmem:[%s1062 + $0xc1] sm:$0xff]
    %v3328 = vld [vmem:[%s1062 + $0xc9] sm:$0xff]
    %v3329 = vld [vmem:[%s1062 + $0xd9] sm:$0xff]
    %v3330 = vld [vmem:[%s1062 + $0xe1] sm:$0xff]
    %v3331 = vld [vmem:[%s1062 + $0xf1] sm:$0xff]
    %v3332 = vld [vmem:[%s1062 + $0xf9] sm:$0xff]
    %v3333 = vld [vmem:[%s1062 + $0x109] sm:$0xff]
    %v3334 = vld [vmem:[%s1062 + $0x111] sm:$0xff]
    %v3335 = vld [vmem:[%s1062 + $0x121] sm:$0xff]
    %v3336 = vld [vmem:[%s1062 + $0x129] sm:$0xff]
    %v3337 = vld [vmem:[%s1062 + $0x139] sm:$0xff]
    %v3338 = vld [vmem:[%s1062 + $0x141] sm:$0xff]
    %v3339 = vld [vmem:[%s1062 + $0x151] sm:$0xff]
    %v3340 = vld [vmem:[%s1062 + $0x159] sm:$0xff]
    %v3341 = vld [vmem:[%s1062 + $0x169] sm:$0xff]
    %v3342 = vld [vmem:[%s1062 + $0x171] sm:$0xff]
    %v3343 = vld [vmem:[%s1062 + $0x1b1] sm:$0xff]
    %v3344 = vld [vmem:[%s1062 + $0x1b9] sm:$0xff]
    %v3345 = vld [vmem:[%s1062 + $0x1c9] sm:$0xff]
    %v3346 = vld [vmem:[%s1062 + $0x1d1] sm:$0xff]
    %v3347 = vld [vmem:[%s1062 + $0x1e1] sm:$0xff]
    %v3348 = vld [vmem:[%s1062 + $0x1e9] sm:$0xff]
    %v3349 = vld [vmem:[%s1062 + $0x1f9] sm:$0xff]
    %v3350 = vld [vmem:[%s1062 + $0x201] sm:$0xff]
    %v3351 = vld [vmem:[%s1062 + $0x211] sm:$0xff]
    %v3352 = vld [vmem:[%s1062 + $0x219] sm:$0xff]
    %v3353 = vld [vmem:[%s1062 + $0x229] sm:$0xff]
    %v3354 = vld [vmem:[%s1062 + $0x231] sm:$0xff]
    %v3355 = vld [vmem:[%s1062 + $0x241] sm:$0xff]
    %v3356 = vld [vmem:[%s1062 + $0x249] sm:$0xff]
    %v3357 = vld [vmem:[%s1062 + $0x259] sm:$0xff]
    %v3358 = vld [vmem:[%s1062 + $0x261] sm:$0xff]
    %v3359 = vld [vmem:[%s1062 + $0x271] sm:$0xff]
    %v3360 = vld [vmem:[%s1062 + $0x279] sm:$0xff]
    %v3361 = vld [vmem:[%s1062 + $0x289] sm:$0xff]
    %v3362 = vld [vmem:[%s1062 + $0x291] sm:$0xff]
    %v3363 = vld [vmem:[%s1062 + $0x2a1] sm:$0xff]
    %v3364 = vld [vmem:[%s1062 + $0x2a9] sm:$0xff]
    %v3365 = vld [vmem:[%s1062 + $0x2b9] sm:$0xff]
    %v3366 = vld [vmem:[%s1062 + $0x2c1] sm:$0xff]
    %v3367 = vld [vmem:[%s1062 + $0x2d1] sm:$0xff]
    %v3368 = vld [vmem:[%s1062 + $0x2d9] sm:$0xff]
    %v3369 = vld [vmem:[%s1062 + $0x2e9] sm:$0xff]
    %v3370 = vld [vmem:[%s1062 + $0x2f1] sm:$0xff]
    %v3371 = vld [vmem:[%s1062 + $0x301] sm:$0xff]
    %v3372 = vld [vmem:[%s1062 + $0x309] sm:$0xff]
    %v3373 = vld [vmem:[%s1062 + $0x319] sm:$0xff]
    %v3374 = vld [vmem:[%s1062 + $0x321] sm:$0xff]
    %v3375 = vpack.c.bf16 %v3312, %v3311
    %v3376 = vpack.c.bf16 %v3314, %v3313
    %v3377 = vpack.c.bf16 %v3316, %v3315
    %v3378 = vpack.c.bf16 %v3318, %v3317
    %v3379 = vpack.c.bf16 %v3320, %v3319
    %v3380 = vpack.c.bf16 %v3322, %v3321
    %v3381 = vpack.c.bf16 %v3324, %v3323
    %v3382 = vpack.c.bf16 %v3326, %v3325
    %v3383 = vpack.c.bf16 %v3328, %v3327
    %v3384 = vpack.c.bf16 %v3330, %v3329
    %v3385 = vpack.c.bf16 %v3332, %v3331
    %v3386 = vpack.c.bf16 %v3334, %v3333
    %v3387 = vpack.c.bf16 %v3336, %v3335
    %v3388 = vpack.c.bf16 %v3338, %v3337
    %v3389 = vpack.c.bf16 %v3340, %v3339
    %v3390 = vpack.c.bf16 %v3342, %v3341
    %v3391 = vpack.c.bf16 %v3344, %v3343
    %v3392 = vpack.c.bf16 %v3346, %v3345
    %v3393 = vpack.c.bf16 %v3348, %v3347
    %v3394 = vpack.c.bf16 %v3350, %v3349
    %v3395 = vpack.c.bf16 %v3352, %v3351
    %v3396 = vpack.c.bf16 %v3354, %v3353
    %v3397 = vpack.c.bf16 %v3356, %v3355
    %v3398 = vpack.c.bf16 %v3358, %v3357
    %v3399 = vpack.c.bf16 %v3360, %v3359
    %v3400 = vpack.c.bf16 %v3362, %v3361
    %v3401 = vpack.c.bf16 %v3364, %v3363
    %v3402 = vpack.c.bf16 %v3366, %v3365
    %v3403 = vpack.c.bf16 %v3368, %v3367
    %v3404 = vpack.c.bf16 %v3370, %v3369
    %v3405 = vpack.c.bf16 %v3372, %v3371
    %v3406 = vpack.c.bf16 %v3374, %v3373
    %s3407 = scalar_lea.vmem [#allocation6], 64
    %v3408 = vld [vmem:[%s3407] sm:$0xf]
    %v3409 = vld [vmem:[%s3407 + $0x4] sm:$0xf]
    %v3410 = vld [vmem:[%s3407 + $0x8] sm:$0xf]
    %v3411 = vld [vmem:[%s3407 + $0xc] sm:$0xf]
    %v3416 = vunpack.c.l.b16 %v3408
    %v3417 = vunpack.c.l.b16 %v3409
    %v3418 = vunpack.c.l.b16 %v3410
    %v3419 = vunpack.c.l.b16 %v3411
    %v3420 = vpack.c.b16 %v3417, %v3416
    %v3421 = vpack.c.b16 %v3419, %v3418
    %v3425 = vsel %vm507, %v3375, 0
    %v3428 = vsel %vm507, %v3376, 0
    %v3431 = vsel %vm507, %v3377, 0
    %v3434 = vsel %vm507, %v3378, 0
    %v3437 = vsel %vm507, %v3379, 0
    %v3440 = vsel %vm507, %v3380, 0
    %v3443 = vsel %vm507, %v3381, 0
    %v3446 = vsel %vm507, %v3382, 0
    %v3449 = vsel %vm507, %v3383, 0
    %v3452 = vsel %vm507, %v3384, 0
    %v3455 = vsel %vm507, %v3385, 0
    %v3458 = vsel %vm507, %v3386, 0
    %v3461 = vsel %vm507, %v3387, 0
    %v3464 = vsel %vm507, %v3388, 0
    %v3467 = vsel %vm507, %v3389, 0
    %v3470 = vsel %vm507, %v3390, 0
    %v3473 = vsel %vm507, %v3391, 0
    %v3476 = vsel %vm507, %v3392, 0
    %v3479 = vsel %vm507, %v3393, 0
    %v3482 = vsel %vm507, %v3394, 0
    %v3485 = vsel %vm507, %v3395, 0
    %v3488 = vsel %vm507, %v3396, 0
    %v3491 = vsel %vm507, %v3397, 0
    %v3494 = vsel %vm507, %v3398, 0
    %v3497 = vsel %vm507, %v3399, 0
    %v3500 = vsel %vm507, %v3400, 0
    %v3503 = vsel %vm507, %v3401, 0
    %v3506 = vsel %vm507, %v3402, 0
    %v3509 = vsel %vm507, %v3403, 0
    %v3512 = vsel %vm507, %v3404, 0
    %v3515 = vsel %vm507, %v3405, 0
    %v3518 = vsel %vm507, %v3406, 0
    %3520 = vmatprep.subr.bf16.mxu0 0
    %3521 = vmatpush1.bf16.msra.mxu0 %v3420
    %3522 = vmatprep.subr.bf16.mxu0 0
    %3523 = vmatpush1.bf16.msra.mxu0 %v3421
    %3524 = vmatprep.subr.bf16.mxu0 0
    %3525 = vmatpush1.bf16.msra.mxu0 0
    %3526 = vmatprep.subr.bf16.mxu0 0
    %3527 = vmatpush1.bf16.msra.mxu0 0
    %3528 = vmatprep.subr.bf16.mxu0 0
    %3529 = vmatpush1.bf16.msra.mxu0 0
    %3530 = vmatprep.subr.bf16.mxu0 0
    %3531 = vmatpush1.bf16.msra.mxu0 0
    %3532 = vmatprep.subr.bf16.mxu0 0
    %3533 = vmatpush1.bf16.msra.mxu0 0
    %3534 = vmatprep.subr.bf16.mxu0 0
    %3535 = vmatpush1.bf16.msra.mxu0 0
    %3536 = vmatprep.subr.bf16.mxu0 0
    %3537 = vmatpush1.bf16.msra.mxu0 0
    %3538 = vmatprep.subr.bf16.mxu0 0
    %3539 = vmatpush1.bf16.msra.mxu0 0
    %3540 = vmatprep.subr.bf16.mxu0 0
    %3541 = vmatpush1.bf16.msra.mxu0 0
    %3542 = vmatprep.subr.bf16.mxu0 0
    %3543 = vmatpush1.bf16.msra.mxu0 0
    %3544 = vmatprep.subr.bf16.mxu0 0
    %3545 = vmatpush1.bf16.msra.mxu0 0
    %3546 = vmatprep.subr.bf16.mxu0 0
    %3547 = vmatpush1.bf16.msra.mxu0 0
    %3548 = vmatprep.subr.bf16.mxu0 0
    %3549 = vmatpush1.bf16.msra.mxu0 0
    %3550 = vmatprep.subr.bf16.mxu0 0
    %3551 = vmatpush1.bf16.msra.mxu0 0
    %3552 = vmatprep.mubr.bf16.mxu0 0
    %3553 = vmatmul.mubr.bf16.gmra.mrb[0].mxu0 %v3425
    %v3554 = vpop.f32.mrb[0].mxu0
    %v3555 = vadd.f32 0.0, %v3554
    %v3556 = vpop.f32.mrb[0].mxu0
    %v3557 = vpop.f32.mrb[0].mxu0
    %v3558 = vadd.f32 0.0, %v3557
    %v3559 = vpop.f32.mrb[0].mxu0
    %3560 = vmatprep.mubr.bf16.mxu0 0
    %3561 = vmatmul.mubr.bf16.gmra.mrb[0].mxu0 %v3428
    %v3562 = vpop.f32.mrb[0].mxu0
    %v3563 = vadd.f32 0.0, %v3562
    %v3564 = vpop.f32.mrb[0].mxu0
    %v3565 = vpop.f32.mrb[0].mxu0
    %v3566 = vadd.f32 0.0, %v3565
    %v3567 = vpop.f32.mrb[0].mxu0
    %3568 = vmatprep.mubr.bf16.mxu0 0
    %3569 = vmatmul.mubr.bf16.gmra.mrb[0].mxu0 %v3431
    %v3570 = vpop.f32.mrb[0].mxu0
    %v3571 = vadd.f32 0.0, %v3570
    %v3572 = vpop.f32.mrb[0].mxu0
    %v3573 = vpop.f32.mrb[0].mxu0
    %v3574 = vadd.f32 0.0, %v3573
    %v3575 = vpop.f32.mrb[0].mxu0
    %3576 = vmatprep.mubr.bf16.mxu0 0
    %3577 = vmatmul.mubr.bf16.gmra.mrb[0].mxu0 %v3434
    %v3578 = vpop.f32.mrb[0].mxu0
    %v3579 = vadd.f32 0.0, %v3578
    %v3580 = vpop.f32.mrb[0].mxu0
    %v3581 = vpop.f32.mrb[0].mxu0
    %v3582 = vadd.f32 0.0, %v3581
    %v3583 = vpop.f32.mrb[0].mxu0
    %3584 = vmatprep.mubr.bf16.mxu0 0
    %3585 = vmatmul.mubr.bf16.gmra.mrb[0].mxu0 %v3437
    %v3586 = vpop.f32.mrb[0].mxu0
    %v3587 = vadd.f32 0.0, %v3586
    %v3588 = vpop.f32.mrb[0].mxu0
    %v3589 = vpop.f32.mrb[0].mxu0
    %v3590 = vadd.f32 0.0, %v3589
    %v3591 = vpop.f32.mrb[0].mxu0
    %3592 = vmatprep.mubr.bf16.mxu0 0
    %3593 = vmatmul.mubr.bf16.gmra.mrb[0].mxu0 %v3440
    %v3594 = vpop.f32.mrb[0].mxu0
    %v3595 = vadd.f32 0.0, %v3594
    %v3596 = vpop.f32.mrb[0].mxu0
    %v3597 = vpop.f32.mrb[0].mxu0
    %v3598 = vadd.f32 0.0, %v3597
    %v3599 = vpop.f32.mrb[0].mxu0
    %3600 = vmatprep.mubr.bf16.mxu0 0
    %3601 = vmatmul.mubr.bf16.gmra.mrb[0].mxu0 %v3443
    %v3602 = vpop.f32.mrb[0].mxu0
    %v3603 = vadd.f32 0.0, %v3602
    %v3604 = vpop.f32.mrb[0].mxu0
    %v3605 = vpop.f32.mrb[0].mxu0
    %v3606 = vadd.f32 0.0, %v3605
    %v3607 = vpop.f32.mrb[0].mxu0
    %3608 = vmatprep.mubr.bf16.mxu0 0
    %3609 = vmatmul.mubr.bf16.gmra.mrb[0].mxu0 %v3446
    %v3610 = vpop.f32.mrb[0].mxu0
    %v3611 = vadd.f32 0.0, %v3610
    %v3612 = vpop.f32.mrb[0].mxu0
    %v3613 = vpop.f32.mrb[0].mxu0
    %v3614 = vadd.f32 0.0, %v3613
    %v3615 = vpop.f32.mrb[0].mxu0
    %3616 = vmatprep.mubr.bf16.mxu0 0
    %3617 = vmatmul.mubr.bf16.gmra.mrb[0].mxu0 %v3449
    %v3618 = vpop.f32.mrb[0].mxu0
    %v3619 = vadd.f32 0.0, %v3618
    %v3620 = vpop.f32.mrb[0].mxu0
    %v3621 = vpop.f32.mrb[0].mxu0
    %v3622 = vadd.f32 0.0, %v3621
    %v3623 = vpop.f32.mrb[0].mxu0
    %3624 = vmatprep.mubr.bf16.mxu0 0
    %3625 = vmatmul.mubr.bf16.gmra.mrb[0].mxu0 %v3452
    %v3626 = vpop.f32.mrb[0].mxu0
    %v3627 = vadd.f32 0.0, %v3626
    %v3628 = vpop.f32.mrb[0].mxu0
    %v3629 = vpop.f32.mrb[0].mxu0
    %v3630 = vadd.f32 0.0, %v3629
    %v3631 = vpop.f32.mrb[0].mxu0
    %3632 = vmatprep.mubr.bf16.mxu0 0
    %3633 = vmatmul.mubr.bf16.gmra.mrb[0].mxu0 %v3455
    %v3634 = vpop.f32.mrb[0].mxu0
    %v3635 = vadd.f32 0.0, %v3634
    %v3636 = vpop.f32.mrb[0].mxu0
    %v3637 = vpop.f32.mrb[0].mxu0
    %v3638 = vadd.f32 0.0, %v3637
    %v3639 = vpop.f32.mrb[0].mxu0
    %3640 = vmatprep.mubr.bf16.mxu0 0
    %3641 = vmatmul.mubr.bf16.gmra.mrb[0].mxu0 %v3458
    %v3642 = vpop.f32.mrb[0].mxu0
    %v3643 = vadd.f32 0.0, %v3642
    %v3644 = vpop.f32.mrb[0].mxu0
    %v3645 = vpop.f32.mrb[0].mxu0
    %v3646 = vadd.f32 0.0, %v3645
    %v3647 = vpop.f32.mrb[0].mxu0
    %3648 = vmatprep.mubr.bf16.mxu0 0
    %3649 = vmatmul.mubr.bf16.gmra.mrb[0].mxu0 %v3461
    %v3650 = vpop.f32.mrb[0].mxu0
    %v3651 = vadd.f32 0.0, %v3650
    %v3652 = vpop.f32.mrb[0].mxu0
    %v3653 = vpop.f32.mrb[0].mxu0
    %v3654 = vadd.f32 0.0, %v3653
    %v3655 = vpop.f32.mrb[0].mxu0
    %3656 = vmatprep.mubr.bf16.mxu0 0
    %3657 = vmatmul.mubr.bf16.gmra.mrb[0].mxu0 %v3464
    %v3658 = vpop.f32.mrb[0].mxu0
    %v3659 = vadd.f32 0.0, %v3658
    %v3660 = vpop.f32.mrb[0].mxu0
    %v3661 = vpop.f32.mrb[0].mxu0
    %v3662 = vadd.f32 0.0, %v3661
    %v3663 = vpop.f32.mrb[0].mxu0
    %3664 = vmatprep.mubr.bf16.mxu0 0
    %3665 = vmatmul.mubr.bf16.gmra.mrb[0].mxu0 %v3467
    %v3666 = vpop.f32.mrb[0].mxu0
    %v3667 = vadd.f32 0.0, %v3666
    %v3668 = vpop.f32.mrb[0].mxu0
    %v3669 = vpop.f32.mrb[0].mxu0
    %v3670 = vadd.f32 0.0, %v3669
    %v3671 = vpop.f32.mrb[0].mxu0
    %3672 = vmatprep.mubr.bf16.mxu0 0
    %3673 = vmatmul.mubr.bf16.gmra.mrb[0].mxu0 %v3470
    %v3674 = vpop.f32.mrb[0].mxu0
    %v3675 = vadd.f32 0.0, %v3674
    %v3676 = vpop.f32.mrb[0].mxu0
    %v3677 = vpop.f32.mrb[0].mxu0
    %v3678 = vadd.f32 0.0, %v3677
    %v3679 = vpop.f32.mrb[0].mxu0
    %3680 = vmatprep.mubr.bf16.mxu0 0
    %3681 = vmatmul.mubr.bf16.gmra.mrb[0].mxu0 %v3473
    %v3682 = vpop.f32.mrb[0].mxu0
    %v3683 = vadd.f32 0.0, %v3682
    %v3684 = vpop.f32.mrb[0].mxu0
    %v3685 = vpop.f32.mrb[0].mxu0
    %v3686 = vadd.f32 0.0, %v3685
    %v3687 = vpop.f32.mrb[0].mxu0
    %3688 = vmatprep.mubr.bf16.mxu0 0
    %3689 = vmatmul.mubr.bf16.gmra.mrb[0].mxu0 %v3476
    %v3690 = vpop.f32.mrb[0].mxu0
    %v3691 = vadd.f32 0.0, %v3690
    %v3692 = vpop.f32.mrb[0].mxu0
    %v3693 = vpop.f32.mrb[0].mxu0
    %v3694 = vadd.f32 0.0, %v3693
    %v3695 = vpop.f32.mrb[0].mxu0
    %3696 = vmatprep.mubr.bf16.mxu0 0
    %3697 = vmatmul.mubr.bf16.gmra.mrb[0].mxu0 %v3479
    %v3698 = vpop.f32.mrb[0].mxu0
    %v3699 = vadd.f32 0.0, %v3698
    %v3700 = vpop.f32.mrb[0].mxu0
    %v3701 = vpop.f32.mrb[0].mxu0
    %v3702 = vadd.f32 0.0, %v3701
    %v3703 = vpop.f32.mrb[0].mxu0
    %3704 = vmatprep.mubr.bf16.mxu0 0
    %3705 = vmatmul.mubr.bf16.gmra.mrb[0].mxu0 %v3482
    %v3706 = vpop.f32.mrb[0].mxu0
    %v3707 = vadd.f32 0.0, %v3706
    %v3708 = vpop.f32.mrb[0].mxu0
    %v3709 = vpop.f32.mrb[0].mxu0
    %v3710 = vadd.f32 0.0, %v3709
    %v3711 = vpop.f32.mrb[0].mxu0
    %3712 = vmatprep.mubr.bf16.mxu0 0
    %3713 = vmatmul.mubr.bf16.gmra.mrb[0].mxu0 %v3485
    %v3714 = vpop.f32.mrb[0].mxu0
    %v3715 = vadd.f32 0.0, %v3714
    %v3716 = vpop.f32.mrb[0].mxu0
    %v3717 = vpop.f32.mrb[0].mxu0
    %v3718 = vadd.f32 0.0, %v3717
    %v3719 = vpop.f32.mrb[0].mxu0
    %3720 = vmatprep.mubr.bf16.mxu0 0
    %3721 = vmatmul.mubr.bf16.gmra.mrb[0].mxu0 %v3488
    %v3722 = vpop.f32.mrb[0].mxu0
    %v3723 = vadd.f32 0.0, %v3722
    %v3724 = vpop.f32.mrb[0].mxu0
    %v3725 = vpop.f32.mrb[0].mxu0
    %v3726 = vadd.f32 0.0, %v3725
    %v3727 = vpop.f32.mrb[0].mxu0
    %3728 = vmatprep.mubr.bf16.mxu0 0
    %3729 = vmatmul.mubr.bf16.gmra.mrb[0].mxu0 %v3491
    %v3730 = vpop.f32.mrb[0].mxu0
    %v3731 = vadd.f32 0.0, %v3730
    %v3732 = vpop.f32.mrb[0].mxu0
    %v3733 = vpop.f32.mrb[0].mxu0
    %v3734 = vadd.f32 0.0, %v3733
    %v3735 = vpop.f32.mrb[0].mxu0
    %3736 = vmatprep.mubr.bf16.mxu0 0
    %3737 = vmatmul.mubr.bf16.gmra.mrb[0].mxu0 %v3494
    %v3738 = vpop.f32.mrb[0].mxu0
    %v3739 = vadd.f32 0.0, %v3738
    %v3740 = vpop.f32.mrb[0].mxu0
    %v3741 = vpop.f32.mrb[0].mxu0
    %v3742 = vadd.f32 0.0, %v3741
    %v3743 = vpop.f32.mrb[0].mxu0
    %3744 = vmatprep.mubr.bf16.mxu0 0
    %3745 = vmatmul.mubr.bf16.gmra.mrb[0].mxu0 %v3497
    %v3746 = vpop.f32.mrb[0].mxu0
    %v3747 = vadd.f32 0.0, %v3746
    %v3748 = vpop.f32.mrb[0].mxu0
    %v3749 = vpop.f32.mrb[0].mxu0
    %v3750 = vadd.f32 0.0, %v3749
    %v3751 = vpop.f32.mrb[0].mxu0
    %3752 = vmatprep.mubr.bf16.mxu0 0
    %3753 = vmatmul.mubr.bf16.gmra.mrb[0].mxu0 %v3500
    %v3754 = vpop.f32.mrb[0].mxu0
    %v3755 = vadd.f32 0.0, %v3754
    %v3756 = vpop.f32.mrb[0].mxu0
    %v3757 = vpop.f32.mrb[0].mxu0
    %v3758 = vadd.f32 0.0, %v3757
    %v3759 = vpop.f32.mrb[0].mxu0
    %3760 = vmatprep.mubr.bf16.mxu0 0
    %3761 = vmatmul.mubr.bf16.gmra.mrb[0].mxu0 %v3503
    %v3762 = vpop.f32.mrb[0].mxu0
    %v3763 = vadd.f32 0.0, %v3762
    %v3764 = vpop.f32.mrb[0].mxu0
    %v3765 = vpop.f32.mrb[0].mxu0
    %v3766 = vadd.f32 0.0, %v3765
    %v3767 = vpop.f32.mrb[0].mxu0
    %3768 = vmatprep.mubr.bf16.mxu0 0
    %3769 = vmatmul.mubr.bf16.gmra.mrb[0].mxu0 %v3506
    %v3770 = vpop.f32.mrb[0].mxu0
    %v3771 = vadd.f32 0.0, %v3770
    %v3772 = vpop.f32.mrb[0].mxu0
    %v3773 = vpop.f32.mrb[0].mxu0
    %v3774 = vadd.f32 0.0, %v3773
    %v3775 = vpop.f32.mrb[0].mxu0
    %3776 = vmatprep.mubr.bf16.mxu0 0
    %3777 = vmatmul.mubr.bf16.gmra.mrb[0].mxu0 %v3509
    %v3778 = vpop.f32.mrb[0].mxu0
    %v3779 = vadd.f32 0.0, %v3778
    %v3780 = vpop.f32.mrb[0].mxu0
    %v3781 = vpop.f32.mrb[0].mxu0
    %v3782 = vadd.f32 0.0, %v3781
    %v3783 = vpop.f32.mrb[0].mxu0
    %3784 = vmatprep.mubr.bf16.mxu0 0
    %3785 = vmatmul.mubr.bf16.gmra.mrb[0].mxu0 %v3512
    %v3786 = vpop.f32.mrb[0].mxu0
    %v3787 = vadd.f32 0.0, %v3786
    %v3788 = vpop.f32.mrb[0].mxu0
    %v3789 = vpop.f32.mrb[0].mxu0
    %v3790 = vadd.f32 0.0, %v3789
    %v3791 = vpop.f32.mrb[0].mxu0
    %3792 = vmatprep.mubr.bf16.mxu0 0
    %3793 = vmatmul.mubr.bf16.gmra.mrb[0].mxu0 %v3515
    %v3794 = vpop.f32.mrb[0].mxu0
    %v3795 = vadd.f32 0.0, %v3794
    %v3796 = vpop.f32.mrb[0].mxu0
    %v3797 = vpop.f32.mrb[0].mxu0
    %v3798 = vadd.f32 0.0, %v3797
    %v3799 = vpop.f32.mrb[0].mxu0
    %3800 = vmatprep.mubr.bf16.mxu0 0
    %3801 = vmatmul.mubr.bf16.gmra.mrb[0].mxu0 %v3518
    %v3802 = vpop.f32.mrb[0].mxu0
    %v3803 = vadd.f32 0.0, %v3802
    %v3804 = vpop.f32.mrb[0].mxu0
    %v3805 = vpop.f32.mrb[0].mxu0
    %v3806 = vadd.f32 0.0, %v3805
    %v3807 = vpop.f32.mrb[0].mxu0
    %3808 = vdwg.mxu0
    %v3809 = vadd.f32 %v3247, %v3555
    %v3810 = vadd.f32 %v3248, %v3558
    %v3811 = vadd.f32 %v3249, %v3563
    %v3812 = vadd.f32 %v3250, %v3566
    %v3813 = vadd.f32 %v3251, %v3571
    %v3814 = vadd.f32 %v3252, %v3574
    %v3815 = vadd.f32 %v3253, %v3579
    %v3816 = vadd.f32 %v3254, %v3582
    %v3817 = vadd.f32 %v3255, %v3587
    %v3818 = vadd.f32 %v3256, %v3590
    %v3819 = vadd.f32 %v3257, %v3595
    %v3820 = vadd.f32 %v3258, %v3598
    %v3821 = vadd.f32 %v3259, %v3603
    %v3822 = vadd.f32 %v3260, %v3606
    %v3823 = vadd.f32 %v3261, %v3611
    %v3824 = vadd.f32 %v3262, %v3614
    %v3825 = vadd.f32 %v3263, %v3619
    %v3826 = vadd.f32 %v3264, %v3622
    %v3827 = vadd.f32 %v3265, %v3627
    %v3828 = vadd.f32 %v3266, %v3630
    %v3829 = vadd.f32 %v3267, %v3635
    %v3830 = vadd.f32 %v3268, %v3638
    %v3831 = vadd.f32 %v3269, %v3643
    %v3832 = vadd.f32 %v3270, %v3646
    %v3833 = vadd.f32 %v3271, %v3651
    %v3834 = vadd.f32 %v3272, %v3654
    %v3835 = vadd.f32 %v3273, %v3659
    %v3836 = vadd.f32 %v3274, %v3662
    %v3837 = vadd.f32 %v3275, %v3667
    %v3838 = vadd.f32 %v3276, %v3670
    %v3839 = vadd.f32 %v3277, %v3675
    %v3840 = vadd.f32 %v3278, %v3678
    %v3841 = vadd.f32 %v3279, %v3683
    %v3842 = vadd.f32 %v3280, %v3686
    %v3843 = vadd.f32 %v3281, %v3691
    %v3844 = vadd.f32 %v3282, %v3694
    %v3845 = vadd.f32 %v3283, %v3699
    %v3846 = vadd.f32 %v3284, %v3702
    %v3847 = vadd.f32 %v3285, %v3707
    %v3848 = vadd.f32 %v3286, %v3710
    %v3849 = vadd.f32 %v3287, %v3715
    %v3850 = vadd.f32 %v3288, %v3718
    %v3851 = vadd.f32 %v3289, %v3723
    %v3852 = vadd.f32 %v3290, %v3726
    %v3853 = vadd.f32 %v3291, %v3731
    %v3854 = vadd.f32 %v3292, %v3734
    %v3855 = vadd.f32 %v3293, %v3739
    %v3856 = vadd.f32 %v3294, %v3742
    %v3857 = vadd.f32 %v3295, %v3747
    %v3858 = vadd.f32 %v3296, %v3750
    %v3859 = vadd.f32 %v3297, %v3755
    %v3860 = vadd.f32 %v3298, %v3758
    %v3861 = vadd.f32 %v3299, %v3763
    %v3862 = vadd.f32 %v3300, %v3766
    %v3863 = vadd.f32 %v3301, %v3771
    %v3864 = vadd.f32 %v3302, %v3774
    %v3865 = vadd.f32 %v3303, %v3779
    %v3866 = vadd.f32 %v3304, %v3782
    %v3867 = vadd.f32 %v3305, %v3787
    %v3868 = vadd.f32 %v3306, %v3790
    %v3869 = vadd.f32 %v3307, %v3795
    %v3870 = vadd.f32 %v3308, %v3798
    %v3871 = vadd.f32 %v3309, %v3803
    %v3872 = vadd.f32 %v3310, %v3806
    %v3873 = vld [vmem:[%s1062 + $0x2] sm:$0xff]
    %v3874 = vld [vmem:[%s1062 + $0xa] sm:$0xff]
    %v3875 = vld [vmem:[%s1062 + $0x1a] sm:$0xff]
    %v3876 = vld [vmem:[%s1062 + $0x22] sm:$0xff]
    %v3877 = vld [vmem:[%s1062 + $0x32] sm:$0xff]
    %v3878 = vld [vmem:[%s1062 + $0x3a] sm:$0xff]
    %v3879 = vld [vmem:[%s1062 + $0x4a] sm:$0xff]
    %v3880 = vld [vmem:[%s1062 + $0x52] sm:$0xff]
    %v3881 = vld [vmem:[%s1062 + $0x62] sm:$0xff]
    %v3882 = vld [vmem:[%s1062 + $0x6a] sm:$0xff]
    %v3883 = vld [vmem:[%s1062 + $0x7a] sm:$0xff]
    %v3884 = vld [vmem:[%s1062 + $0x82] sm:$0xff]
    %v3885 = vld [vmem:[%s1062 + $0x92] sm:$0xff]
    %v3886 = vld [vmem:[%s1062 + $0x9a] sm:$0xff]
    %v3887 = vld [vmem:[%s1062 + $0xaa] sm:$0xff]
    %v3888 = vld [vmem:[%s1062 + $0xb2] sm:$0xff]
    %v3889 = vld [vmem:[%s1062 + $0xc2] sm:$0xff]
    %v3890 = vld [vmem:[%s1062 + $0xca] sm:$0xff]
    %v3891 = vld [vmem:[%s1062 + $0xda] sm:$0xff]
    %v3892 = vld [vmem:[%s1062 + $0xe2] sm:$0xff]
    %v3893 = vld [vmem:[%s1062 + $0xf2] sm:$0xff]
    %v3894 = vld [vmem:[%s1062 + $0xfa] sm:$0xff]
    %v3895 = vld [vmem:[%s1062 + $0x10a] sm:$0xff]
    %v3896 = vld [vmem:[%s1062 + $0x112] sm:$0xff]
    %v3897 = vld [vmem:[%s1062 + $0x122] sm:$0xff]
    %v3898 = vld [vmem:[%s1062 + $0x12a] sm:$0xff]
    %v3899 = vld [vmem:[%s1062 + $0x13a] sm:$0xff]
    %v3900 = vld [vmem:[%s1062 + $0x142] sm:$0xff]
    %v3901 = vld [vmem:[%s1062 + $0x152] sm:$0xff]
    %v3902 = vld [vmem:[%s1062 + $0x15a] sm:$0xff]
    %v3903 = vld [vmem:[%s1062 + $0x16a] sm:$0xff]
    %v3904 = vld [vmem:[%s1062 + $0x172] sm:$0xff]
    %v3905 = vld [vmem:[%s1062 + $0x1b2] sm:$0xff]
    %v3906 = vld [vmem:[%s1062 + $0x1ba] sm:$0xff]
    %v3907 = vld [vmem:[%s1062 + $0x1ca] sm:$0xff]
    %v3908 = vld [vmem:[%s1062 + $0x1d2] sm:$0xff]
    %v3909 = vld [vmem:[%s1062 + $0x1e2] sm:$0xff]
    %v3910 = vld [vmem:[%s1062 + $0x1ea] sm:$0xff]
    %v3911 = vld [vmem:[%s1062 + $0x1fa] sm:$0xff]
    %v3912 = vld [vmem:[%s1062 + $0x202] sm:$0xff]
    %v3913 = vld [vmem:[%s1062 + $0x212] sm:$0xff]
    %v3914 = vld [vmem:[%s1062 + $0x21a] sm:$0xff]
    %v3915 = vld [vmem:[%s1062 + $0x22a] sm:$0xff]
    %v3916 = vld [vmem:[%s1062 + $0x232] sm:$0xff]
    %v3917 = vld [vmem:[%s1062 + $0x242] sm:$0xff]
    %v3918 = vld [vmem:[%s1062 + $0x24a] sm:$0xff]
    %v3919 = vld [vmem:[%s1062 + $0x25a] sm:$0xff]
    %v3920 = vld [vmem:[%s1062 + $0x262] sm:$0xff]
    %v3921 = vld [vmem:[%s1062 + $0x272] sm:$0xff]
    %v3922 = vld [vmem:[%s1062 + $0x27a] sm:$0xff]
    %v3923 = vld [vmem:[%s1062 + $0x28a] sm:$0xff]
    %v3924 = vld [vmem:[%s1062 + $0x292] sm:$0xff]
    %v3925 = vld [vmem:[%s1062 + $0x2a2] sm:$0xff]
    %v3926 = vld [vmem:[%s1062 + $0x2aa] sm:$0xff]
    %v3927 = vld [vmem:[%s1062 + $0x2ba] sm:$0xff]
    %v3928 = vld [vmem:[%s1062 + $0x2c2] sm:$0xff]
    %v3929 = vld [vmem:[%s1062 + $0x2d2] sm:$0xff]
    %v3930 = vld [vmem:[%s1062 + $0x2da] sm:$0xff]
    %v3931 = vld [vmem:[%s1062 + $0x2ea] sm:$0xff]
    %v3932 = vld [vmem:[%s1062 + $0x2f2] sm:$0xff]
    %v3933 = vld [vmem:[%s1062 + $0x302] sm:$0xff]
    %v3934 = vld [vmem:[%s1062 + $0x30a] sm:$0xff]
    %v3935 = vld [vmem:[%s1062 + $0x31a] sm:$0xff]
    %v3936 = vld [vmem:[%s1062 + $0x322] sm:$0xff]
    %v3937 = vpack.c.bf16 %v3874, %v3873
    %v3938 = vpack.c.bf16 %v3876, %v3875
    %v3939 = vpack.c.bf16 %v3878, %v3877
    %v3940 = vpack.c.bf16 %v3880, %v3879
    %v3941 = vpack.c.bf16 %v3882, %v3881
    %v3942 = vpack.c.bf16 %v3884, %v3883
    %v3943 = vpack.c.bf16 %v3886, %v3885
    %v3944 = vpack.c.bf16 %v3888, %v3887
    %v3945 = vpack.c.bf16 %v3890, %v3889
    %v3946 = vpack.c.bf16 %v3892, %v3891
    %v3947 = vpack.c.bf16 %v3894, %v3893
    %v3948 = vpack.c.bf16 %v3896, %v3895
    %v3949 = vpack.c.bf16 %v3898, %v3897
    %v3950 = vpack.c.bf16 %v3900, %v3899
    %v3951 = vpack.c.bf16 %v3902, %v3901
    %v3952 = vpack.c.bf16 %v3904, %v3903
    %v3953 = vpack.c.bf16 %v3906, %v3905
    %v3954 = vpack.c.bf16 %v3908, %v3907
    %v3955 = vpack.c.bf16 %v3910, %v3909
    %v3956 = vpack.c.bf16 %v3912, %v3911
    %v3957 = vpack.c.bf16 %v3914, %v3913
    %v3958 = vpack.c.bf16 %v3916, %v3915
    %v3959 = vpack.c.bf16 %v3918, %v3917
    %v3960 = vpack.c.bf16 %v3920, %v3919
    %v3961 = vpack.c.bf16 %v3922, %v3921
    %v3962 = vpack.c.bf16 %v3924, %v3923
    %v3963 = vpack.c.bf16 %v3926, %v3925
    %v3964 = vpack.c.bf16 %v3928, %v3927
    %v3965 = vpack.c.bf16 %v3930, %v3929
    %v3966 = vpack.c.bf16 %v3932, %v3931
    %v3967 = vpack.c.bf16 %v3934, %v3933
    %v3968 = vpack.c.bf16 %v3936, %v3935
    %s3969 = scalar_lea.vmem [#allocation6], 80
    %v3970 = vld [vmem:[%s3969] sm:$0xf]
    %v3971 = vld [vmem:[%s3969 + $0x4] sm:$0xf]
    %v3972 = vld [vmem:[%s3969 + $0x8] sm:$0xf]
    %v3973 = vld [vmem:[%s3969 + $0xc] sm:$0xf]
    %v3978 = vunpack.c.l.b16 %v3970
    %v3979 = vunpack.c.l.b16 %v3971
    %v3980 = vunpack.c.l.b16 %v3972
    %v3981 = vunpack.c.l.b16 %v3973
    %v3982 = vpack.c.b16 %v3979, %v3978
    %v3983 = vpack.c.b16 %v3981, %v3980
    %v3987 = vsel %vm507, %v3937, 0
    %v3990 = vsel %vm507, %v3938, 0
    %v3993 = vsel %vm507, %v3939, 0
    %v3996 = vsel %vm507, %v3940, 0
    %v3999 = vsel %vm507, %v3941, 0
    %v4002 = vsel %vm507, %v3942, 0
    %v4005 = vsel %vm507, %v3943, 0
    %v4008 = vsel %vm507, %v3944, 0
    %v4011 = vsel %vm507, %v3945, 0
    %v4014 = vsel %vm507, %v3946, 0
    %v4017 = vsel %vm507, %v3947, 0
    %v4020 = vsel %vm507, %v3948, 0
    %v4023 = vsel %vm507, %v3949, 0
    %v4026 = vsel %vm507, %v3950, 0
    %v4029 = vsel %vm507, %v3951, 0
    %v4032 = vsel %vm507, %v3952, 0
    %v4035 = vsel %vm507, %v3953, 0
    %v4038 = vsel %vm507, %v3954, 0
    %v4041 = vsel %vm507, %v3955, 0
    %v4044 = vsel %vm507, %v3956, 0
    %v4047 = vsel %vm507, %v3957, 0
    %v4050 = vsel %vm507, %v3958, 0
    %v4053 = vsel %vm507, %v3959, 0
    %v4056 = vsel %vm507, %v3960, 0
    %v4059 = vsel %vm507, %v3961, 0
    %v4062 = vsel %vm507, %v3962, 0
    %v4065 = vsel %vm507, %v3963, 0
    %v4068 = vsel %vm507, %v3964, 0
    %v4071 = vsel %vm507, %v3965, 0
    %v4074 = vsel %vm507, %v3966, 0
    %v4077 = vsel %vm507, %v3967, 0
    %v4080 = vsel %vm507, %v3968, 0
    %4082 = vmatprep.subr.bf16.mxu0 0
    %4083 = vmatpush1.bf16.msra.mxu0 %v3982
    %4084 = vmatprep.subr.bf16.mxu0 0
    %4085 = vmatpush1.bf16.msra.mxu0 %v3983
    %4086 = vmatprep.subr.bf16.mxu0 0
    %4087 = vmatpush1.bf16.msra.mxu0 0
    %4088 = vmatprep.subr.bf16.mxu0 0
    %4089 = vmatpush1.bf16.msra.mxu0 0
    %4090 = vmatprep.subr.bf16.mxu0 0
    %4091 = vmatpush1.bf16.msra.mxu0 0
    %4092 = vmatprep.subr.bf16.mxu0 0
    %4093 = vmatpush1.bf16.msra.mxu0 0
    %4094 = vmatprep.subr.bf16.mxu0 0
    %4095 = vmatpush1.bf16.msra.mxu0 0
    %4096 = vmatprep.subr.bf16.mxu0 0
    %4097 = vmatpush1.bf16.msra.mxu0 0
    %4098 = vmatprep.subr.bf16.mxu0 0
    %4099 = vmatpush1.bf16.msra.mxu0 0
    %4100 = vmatprep.subr.bf16.mxu0 0
    %4101 = vmatpush1.bf16.msra.mxu0 0
    %4102 = vmatprep.subr.bf16.mxu0 0
    %4103 = vmatpush1.bf16.msra.mxu0 0
    %4104 = vmatprep.subr.bf16.mxu0 0
    %4105 = vmatpush1.bf16.msra.mxu0 0
    %4106 = vmatprep.subr.bf16.mxu0 0
    %4107 = vmatpush1.bf16.msra.mxu0 0
    %4108 = vmatprep.subr.bf16.mxu0 0
    %4109 = vmatpush1.bf16.msra.mxu0 0
    %4110 = vmatprep.subr.bf16.mxu0 0
    %4111 = vmatpush1.bf16.msra.mxu0 0
    %4112 = vmatprep.subr.bf16.mxu0 0
    %4113 = vmatpush1.bf16.msra.mxu0 0
    %4114 = vmatprep.mubr.bf16.mxu0 0
    %4115 = vmatmul.mubr.bf16.gmra.mrb[0].mxu0 %v3987
    %v4116 = vpop.f32.mrb[0].mxu0
    %v4117 = vadd.f32 0.0, %v4116
    %v4118 = vpop.f32.mrb[0].mxu0
    %v4119 = vpop.f32.mrb[0].mxu0
    %v4120 = vadd.f32 0.0, %v4119
    %v4121 = vpop.f32.mrb[0].mxu0
    %4122 = vmatprep.mubr.bf16.mxu0 0
    %4123 = vmatmul.mubr.bf16.gmra.mrb[0].mxu0 %v3990
    %v4124 = vpop.f32.mrb[0].mxu0
    %v4125 = vadd.f32 0.0, %v4124
    %v4126 = vpop.f32.mrb[0].mxu0
    %v4127 = vpop.f32.mrb[0].mxu0
    %v4128 = vadd.f32 0.0, %v4127
    %v4129 = vpop.f32.mrb[0].mxu0
    %4130 = vmatprep.mubr.bf16.mxu0 0
    %4131 = vmatmul.mubr.bf16.gmra.mrb[0].mxu0 %v3993
    %v4132 = vpop.f32.mrb[0].mxu0
    %v4133 = vadd.f32 0.0, %v4132
    %v4134 = vpop.f32.mrb[0].mxu0
    %v4135 = vpop.f32.mrb[0].mxu0
    %v4136 = vadd.f32 0.0, %v4135
    %v4137 = vpop.f32.mrb[0].mxu0
    %4138 = vmatprep.mubr.bf16.mxu0 0
    %4139 = vmatmul.mubr.bf16.gmra.mrb[0].mxu0 %v3996
    %v4140 = vpop.f32.mrb[0].mxu0
    %v4141 = vadd.f32 0.0, %v4140
    %v4142 = vpop.f32.mrb[0].mxu0
    %v4143 = vpop.f32.mrb[0].mxu0
    %v4144 = vadd.f32 0.0, %v4143
    %v4145 = vpop.f32.mrb[0].mxu0
    %4146 = vmatprep.mubr.bf16.mxu0 0
    %4147 = vmatmul.mubr.bf16.gmra.mrb[0].mxu0 %v3999
    %v4148 = vpop.f32.mrb[0].mxu0
    %v4149 = vadd.f32 0.0, %v4148
    %v4150 = vpop.f32.mrb[0].mxu0
    %v4151 = vpop.f32.mrb[0].mxu0
    %v4152 = vadd.f32 0.0, %v4151
    %v4153 = vpop.f32.mrb[0].mxu0
    %4154 = vmatprep.mubr.bf16.mxu0 0
    %4155 = vmatmul.mubr.bf16.gmra.mrb[0].mxu0 %v4002
    %v4156 = vpop.f32.mrb[0].mxu0
    %v4157 = vadd.f32 0.0, %v4156
    %v4158 = vpop.f32.mrb[0].mxu0
    %v4159 = vpop.f32.mrb[0].mxu0
    %v4160 = vadd.f32 0.0, %v4159
    %v4161 = vpop.f32.mrb[0].mxu0
    %4162 = vmatprep.mubr.bf16.mxu0 0
    %4163 = vmatmul.mubr.bf16.gmra.mrb[0].mxu0 %v4005
    %v4164 = vpop.f32.mrb[0].mxu0
    %v4165 = vadd.f32 0.0, %v4164
    %v4166 = vpop.f32.mrb[0].mxu0
    %v4167 = vpop.f32.mrb[0].mxu0
    %v4168 = vadd.f32 0.0, %v4167
    %v4169 = vpop.f32.mrb[0].mxu0
    %4170 = vmatprep.mubr.bf16.mxu0 0
    %4171 = vmatmul.mubr.bf16.gmra.mrb[0].mxu0 %v4008
    %v4172 = vpop.f32.mrb[0].mxu0
    %v4173 = vadd.f32 0.0, %v4172
    %v4174 = vpop.f32.mrb[0].mxu0
    %v4175 = vpop.f32.mrb[0].mxu0
    %v4176 = vadd.f32 0.0, %v4175
    %v4177 = vpop.f32.mrb[0].mxu0
    %4178 = vmatprep.mubr.bf16.mxu0 0
    %4179 = vmatmul.mubr.bf16.gmra.mrb[0].mxu0 %v4011
    %v4180 = vpop.f32.mrb[0].mxu0
    %v4181 = vadd.f32 0.0, %v4180
    %v4182 = vpop.f32.mrb[0].mxu0
    %v4183 = vpop.f32.mrb[0].mxu0
    %v4184 = vadd.f32 0.0, %v4183
    %v4185 = vpop.f32.mrb[0].mxu0
    %4186 = vmatprep.mubr.bf16.mxu0 0
    %4187 = vmatmul.mubr.bf16.gmra.mrb[0].mxu0 %v4014
    %v4188 = vpop.f32.mrb[0].mxu0
    %v4189 = vadd.f32 0.0, %v4188
    %v4190 = vpop.f32.mrb[0].mxu0
    %v4191 = vpop.f32.mrb[0].mxu0
    %v4192 = vadd.f32 0.0, %v4191
    %v4193 = vpop.f32.mrb[0].mxu0
    %4194 = vmatprep.mubr.bf16.mxu0 0
    %4195 = vmatmul.mubr.bf16.gmra.mrb[0].mxu0 %v4017
    %v4196 = vpop.f32.mrb[0].mxu0
    %v4197 = vadd.f32 0.0, %v4196
    %v4198 = vpop.f32.mrb[0].mxu0
    %v4199 = vpop.f32.mrb[0].mxu0
    %v4200 = vadd.f32 0.0, %v4199
    %v4201 = vpop.f32.mrb[0].mxu0
    %4202 = vmatprep.mubr.bf16.mxu0 0
    %4203 = vmatmul.mubr.bf16.gmra.mrb[0].mxu0 %v4020
    %v4204 = vpop.f32.mrb[0].mxu0
    %v4205 = vadd.f32 0.0, %v4204
    %v4206 = vpop.f32.mrb[0].mxu0
    %v4207 = vpop.f32.mrb[0].mxu0
    %v4208 = vadd.f32 0.0, %v4207
    %v4209 = vpop.f32.mrb[0].mxu0
    %4210 = vmatprep.mubr.bf16.mxu0 0
    %4211 = vmatmul.mubr.bf16.gmra.mrb[0].mxu0 %v4023
    %v4212 = vpop.f32.mrb[0].mxu0
    %v4213 = vadd.f32 0.0, %v4212
    %v4214 = vpop.f32.mrb[0].mxu0
    %v4215 = vpop.f32.mrb[0].mxu0
    %v4216 = vadd.f32 0.0, %v4215
    %v4217 = vpop.f32.mrb[0].mxu0
    %4218 = vmatprep.mubr.bf16.mxu0 0
    %4219 = vmatmul.mubr.bf16.gmra.mrb[0].mxu0 %v4026
    %v4220 = vpop.f32.mrb[0].mxu0
    %v4221 = vadd.f32 0.0, %v4220
    %v4222 = vpop.f32.mrb[0].mxu0
    %v4223 = vpop.f32.mrb[0].mxu0
    %v4224 = vadd.f32 0.0, %v4223
    %v4225 = vpop.f32.mrb[0].mxu0
    %4226 = vmatprep.mubr.bf16.mxu0 0
    %4227 = vmatmul.mubr.bf16.gmra.mrb[0].mxu0 %v4029
    %v4228 = vpop.f32.mrb[0].mxu0
    %v4229 = vadd.f32 0.0, %v4228
    %v4230 = vpop.f32.mrb[0].mxu0
    %v4231 = vpop.f32.mrb[0].mxu0
    %v4232 = vadd.f32 0.0, %v4231
    %v4233 = vpop.f32.mrb[0].mxu0
    %4234 = vmatprep.mubr.bf16.mxu0 0
    %4235 = vmatmul.mubr.bf16.gmra.mrb[0].mxu0 %v4032
    %v4236 = vpop.f32.mrb[0].mxu0
    %v4237 = vadd.f32 0.0, %v4236
    %v4238 = vpop.f32.mrb[0].mxu0
    %v4239 = vpop.f32.mrb[0].mxu0
    %v4240 = vadd.f32 0.0, %v4239
    %v4241 = vpop.f32.mrb[0].mxu0
    %4242 = vmatprep.mubr.bf16.mxu0 0
    %4243 = vmatmul.mubr.bf16.gmra.mrb[0].mxu0 %v4035
    %v4244 = vpop.f32.mrb[0].mxu0
    %v4245 = vadd.f32 0.0, %v4244
    %v4246 = vpop.f32.mrb[0].mxu0
    %v4247 = vpop.f32.mrb[0].mxu0
    %v4248 = vadd.f32 0.0, %v4247
    %v4249 = vpop.f32.mrb[0].mxu0
    %4250 = vmatprep.mubr.bf16.mxu0 0
    %4251 = vmatmul.mubr.bf16.gmra.mrb[0].mxu0 %v4038
    %v4252 = vpop.f32.mrb[0].mxu0
    %v4253 = vadd.f32 0.0, %v4252
    %v4254 = vpop.f32.mrb[0].mxu0
    %v4255 = vpop.f32.mrb[0].mxu0
    %v4256 = vadd.f32 0.0, %v4255
    %v4257 = vpop.f32.mrb[0].mxu0
    %4258 = vmatprep.mubr.bf16.mxu0 0
    %4259 = vmatmul.mubr.bf16.gmra.mrb[0].mxu0 %v4041
    %v4260 = vpop.f32.mrb[0].mxu0
    %v4261 = vadd.f32 0.0, %v4260
    %v4262 = vpop.f32.mrb[0].mxu0
    %v4263 = vpop.f32.mrb[0].mxu0
    %v4264 = vadd.f32 0.0, %v4263
    %v4265 = vpop.f32.mrb[0].mxu0
    %4266 = vmatprep.mubr.bf16.mxu0 0
    %4267 = vmatmul.mubr.bf16.gmra.mrb[0].mxu0 %v4044
    %v4268 = vpop.f32.mrb[0].mxu0
    %v4269 = vadd.f32 0.0, %v4268
    %v4270 = vpop.f32.mrb[0].mxu0
    %v4271 = vpop.f32.mrb[0].mxu0
    %v4272 = vadd.f32 0.0, %v4271
    %v4273 = vpop.f32.mrb[0].mxu0
    %4274 = vmatprep.mubr.bf16.mxu0 0
    %4275 = vmatmul.mubr.bf16.gmra.mrb[0].mxu0 %v4047
    %v4276 = vpop.f32.mrb[0].mxu0
    %v4277 = vadd.f32 0.0, %v4276
    %v4278 = vpop.f32.mrb[0].mxu0
    %v4279 = vpop.f32.mrb[0].mxu0
    %v4280 = vadd.f32 0.0, %v4279
    %v4281 = vpop.f32.mrb[0].mxu0
    %4282 = vmatprep.mubr.bf16.mxu0 0
    %4283 = vmatmul.mubr.bf16.gmra.mrb[0].mxu0 %v4050
    %v4284 = vpop.f32.mrb[0].mxu0
    %v4285 = vadd.f32 0.0, %v4284
    %v4286 = vpop.f32.mrb[0].mxu0
    %v4287 = vpop.f32.mrb[0].mxu0
    %v4288 = vadd.f32 0.0, %v4287
    %v4289 = vpop.f32.mrb[0].mxu0
    %4290 = vmatprep.mubr.bf16.mxu0 0
    %4291 = vmatmul.mubr.bf16.gmra.mrb[0].mxu0 %v4053
    %v4292 = vpop.f32.mrb[0].mxu0
    %v4293 = vadd.f32 0.0, %v4292
    %v4294 = vpop.f32.mrb[0].mxu0
    %v4295 = vpop.f32.mrb[0].mxu0
    %v4296 = vadd.f32 0.0, %v4295
    %v4297 = vpop.f32.mrb[0].mxu0
    %4298 = vmatprep.mubr.bf16.mxu0 0
    %4299 = vmatmul.mubr.bf16.gmra.mrb[0].mxu0 %v4056
    %v4300 = vpop.f32.mrb[0].mxu0
    %v4301 = vadd.f32 0.0, %v4300
    %v4302 = vpop.f32.mrb[0].mxu0
    %v4303 = vpop.f32.mrb[0].mxu0
    %v4304 = vadd.f32 0.0, %v4303
    %v4305 = vpop.f32.mrb[0].mxu0
    %4306 = vmatprep.mubr.bf16.mxu0 0
    %4307 = vmatmul.mubr.bf16.gmra.mrb[0].mxu0 %v4059
    %v4308 = vpop.f32.mrb[0].mxu0
    %v4309 = vadd.f32 0.0, %v4308
    %v4310 = vpop.f32.mrb[0].mxu0
    %v4311 = vpop.f32.mrb[0].mxu0
    %v4312 = vadd.f32 0.0, %v4311
    %v4313 = vpop.f32.mrb[0].mxu0
    %4314 = vmatprep.mubr.bf16.mxu0 0
    %4315 = vmatmul.mubr.bf16.gmra.mrb[0].mxu0 %v4062
    %v4316 = vpop.f32.mrb[0].mxu0
    %v4317 = vadd.f32 0.0, %v4316
    %v4318 = vpop.f32.mrb[0].mxu0
    %v4319 = vpop.f32.mrb[0].mxu0
    %v4320 = vadd.f32 0.0, %v4319
    %v4321 = vpop.f32.mrb[0].mxu0
    %4322 = vmatprep.mubr.bf16.mxu0 0
    %4323 = vmatmul.mubr.bf16.gmra.mrb[0].mxu0 %v4065
    %v4324 = vpop.f32.mrb[0].mxu0
    %v4325 = vadd.f32 0.0, %v4324
    %v4326 = vpop.f32.mrb[0].mxu0
    %v4327 = vpop.f32.mrb[0].mxu0
    %v4328 = vadd.f32 0.0, %v4327
    %v4329 = vpop.f32.mrb[0].mxu0
    %4330 = vmatprep.mubr.bf16.mxu0 0
    %4331 = vmatmul.mubr.bf16.gmra.mrb[0].mxu0 %v4068
    %v4332 = vpop.f32.mrb[0].mxu0
    %v4333 = vadd.f32 0.0, %v4332
    %v4334 = vpop.f32.mrb[0].mxu0
    %v4335 = vpop.f32.mrb[0].mxu0
    %v4336 = vadd.f32 0.0, %v4335
    %v4337 = vpop.f32.mrb[0].mxu0
    %4338 = vmatprep.mubr.bf16.mxu0 0
    %4339 = vmatmul.mubr.bf16.gmra.mrb[0].mxu0 %v4071
    %v4340 = vpop.f32.mrb[0].mxu0
    %v4341 = vadd.f32 0.0, %v4340
    %v4342 = vpop.f32.mrb[0].mxu0
    %v4343 = vpop.f32.mrb[0].mxu0
    %v4344 = vadd.f32 0.0, %v4343
    %v4345 = vpop.f32.mrb[0].mxu0
    %4346 = vmatprep.mubr.bf16.mxu0 0
    %4347 = vmatmul.mubr.bf16.gmra.mrb[0].mxu0 %v4074
    %v4348 = vpop.f32.mrb[0].mxu0
    %v4349 = vadd.f32 0.0, %v4348
    %v4350 = vpop.f32.mrb[0].mxu0
    %v4351 = vpop.f32.mrb[0].mxu0
    %v4352 = vadd.f32 0.0, %v4351
    %v4353 = vpop.f32.mrb[0].mxu0
    %4354 = vmatprep.mubr.bf16.mxu0 0
    %4355 = vmatmul.mubr.bf16.gmra.mrb[0].mxu0 %v4077
    %v4356 = vpop.f32.mrb[0].mxu0
    %v4357 = vadd.f32 0.0, %v4356
    %v4358 = vpop.f32.mrb[0].mxu0
    %v4359 = vpop.f32.mrb[0].mxu0
    %v4360 = vadd.f32 0.0, %v4359
    %v4361 = vpop.f32.mrb[0].mxu0
    %4362 = vmatprep.mubr.bf16.mxu0 0
    %4363 = vmatmul.mubr.bf16.gmra.mrb[0].mxu0 %v4080
    %v4364 = vpop.f32.mrb[0].mxu0
    %v4365 = vadd.f32 0.0, %v4364
    %v4366 = vpop.f32.mrb[0].mxu0
    %v4367 = vpop.f32.mrb[0].mxu0
    %v4368 = vadd.f32 0.0, %v4367
    %v4369 = vpop.f32.mrb[0].mxu0
    %4370 = vdwg.mxu0
    %v4371 = vadd.f32 %v3809, %v4117
    %v4372 = vadd.f32 %v3810, %v4120
    %v4373 = vadd.f32 %v3811, %v4125
    %v4374 = vadd.f32 %v3812, %v4128
    %v4375 = vadd.f32 %v3813, %v4133
    %v4376 = vadd.f32 %v3814, %v4136
    %v4377 = vadd.f32 %v3815, %v4141
    %v4378 = vadd.f32 %v3816, %v4144
    %v4379 = vadd.f32 %v3817, %v4149
    %v4380 = vadd.f32 %v3818, %v4152
    %v4381 = vadd.f32 %v3819, %v4157
    %v4382 = vadd.f32 %v3820, %v4160
    %v4383 = vadd.f32 %v3821, %v4165
    %v4384 = vadd.f32 %v3822, %v4168
    %v4385 = vadd.f32 %v3823, %v4173
    %v4386 = vadd.f32 %v3824, %v4176
    %v4387 = vadd.f32 %v3825, %v4181
    %v4388 = vadd.f32 %v3826, %v4184
    %v4389 = vadd.f32 %v3827, %v4189
    %v4390 = vadd.f32 %v3828, %v4192
    %v4391 = vadd.f32 %v3829, %v4197
    %v4392 = vadd.f32 %v3830, %v4200
    %v4393 = vadd.f32 %v3831, %v4205
    %v4394 = vadd.f32 %v3832, %v4208
    %v4395 = vadd.f32 %v3833, %v4213
    %v4396 = vadd.f32 %v3834, %v4216
    %v4397 = vadd.f32 %v3835, %v4221
    %v4398 = vadd.f32 %v3836, %v4224
    %v4399 = vadd.f32 %v3837, %v4229
    %v4400 = vadd.f32 %v3838, %v4232
    %v4401 = vadd.f32 %v3839, %v4237
    %v4402 = vadd.f32 %v3840, %v4240
    %v4403 = vadd.f32 %v3841, %v4245
    %v4404 = vadd.f32 %v3842, %v4248
    %v4405 = vadd.f32 %v3843, %v4253
    %v4406 = vadd.f32 %v3844, %v4256
    %v4407 = vadd.f32 %v3845, %v4261
    %v4408 = vadd.f32 %v3846, %v4264
    %v4409 = vadd.f32 %v3847, %v4269
    %v4410 = vadd.f32 %v3848, %v4272
    %v4411 = vadd.f32 %v3849, %v4277
    %v4412 = vadd.f32 %v3850, %v4280
    %v4413 = vadd.f32 %v3851, %v4285
    %v4414 = vadd.f32 %v3852, %v4288
    %v4415 = vadd.f32 %v3853, %v4293
    %v4416 = vadd.f32 %v3854, %v4296
    %v4417 = vadd.f32 %v3855, %v4301
    %v4418 = vadd.f32 %v3856, %v4304
    %v4419 = vadd.f32 %v3857, %v4309
    %v4420 = vadd.f32 %v3858, %v4312
    %v4421 = vadd.f32 %v3859, %v4317
    %v4422 = vadd.f32 %v3860, %v4320
    %v4423 = vadd.f32 %v3861, %v4325
    %v4424 = vadd.f32 %v3862, %v4328
    %v4425 = vadd.f32 %v3863, %v4333
    %v4426 = vadd.f32 %v3864, %v4336
    %v4427 = vadd.f32 %v3865, %v4341
    %v4428 = vadd.f32 %v3866, %v4344
    %v4429 = vadd.f32 %v3867, %v4349
    %v4430 = vadd.f32 %v3868, %v4352
    %v4431 = vadd.f32 %v3869, %v4357
    %v4432 = vadd.f32 %v3870, %v4360
    %v4433 = vadd.f32 %v3871, %v4365
    %v4434 = vadd.f32 %v3872, %v4368
    %s4435 = scalar_lea.vmem [#allocation2], 48
    %v4436 = vld [vmem:[%s4435] sm:$0xff]
    %v4437 = vld [vmem:[%s4435 + $0x8] sm:$0xff]
    %v4438 = vld [vmem:[%s4435 + $0x18] sm:$0xff]
    %v4439 = vld [vmem:[%s4435 + $0x20] sm:$0xff]
    %v4440 = vld [vmem:[%s4435 + $0x30] sm:$0xff]
    %v4441 = vld [vmem:[%s4435 + $0x38] sm:$0xff]
    %v4442 = vld [vmem:[%s4435 + $0x48] sm:$0xff]
    %v4443 = vld [vmem:[%s4435 + $0x50] sm:$0xff]
    %v4444 = vld [vmem:[%s4435 + $0x60] sm:$0xff]
    %v4445 = vld [vmem:[%s4435 + $0x68] sm:$0xff]
    %v4446 = vld [vmem:[%s4435 + $0x78] sm:$0xff]
    %v4447 = vld [vmem:[%s4435 + $0x80] sm:$0xff]
    %v4448 = vld [vmem:[%s4435 + $0x90] sm:$0xff]
    %v4449 = vld [vmem:[%s4435 + $0x98] sm:$0xff]
    %v4450 = vld [vmem:[%s4435 + $0xa8] sm:$0xff]
    %v4451 = vld [vmem:[%s4435 + $0xb0] sm:$0xff]
    %v4452 = vld [vmem:[%s4435 + $0xc0] sm:$0xff]
    %v4453 = vld [vmem:[%s4435 + $0xc8] sm:$0xff]
    %v4454 = vld [vmem:[%s4435 + $0xd8] sm:$0xff]
    %v4455 = vld [vmem:[%s4435 + $0xe0] sm:$0xff]
    %v4456 = vld [vmem:[%s4435 + $0xf0] sm:$0xff]
    %v4457 = vld [vmem:[%s4435 + $0xf8] sm:$0xff]
    %v4458 = vld [vmem:[%s4435 + $0x108] sm:$0xff]
    %v4459 = vld [vmem:[%s4435 + $0x110] sm:$0xff]
    %v4460 = vld [vmem:[%s4435 + $0x120] sm:$0xff]
    %v4461 = vld [vmem:[%s4435 + $0x128] sm:$0xff]
    %v4462 = vld [vmem:[%s4435 + $0x138] sm:$0xff]
    %v4463 = vld [vmem:[%s4435 + $0x140] sm:$0xff]
    %v4464 = vld [vmem:[%s4435 + $0x150] sm:$0xff]
    %v4465 = vld [vmem:[%s4435 + $0x158] sm:$0xff]
    %v4466 = vld [vmem:[%s4435 + $0x168] sm:$0xff]
    %v4467 = vld [vmem:[%s4435 + $0x170] sm:$0xff]
    %v4468 = vld [vmem:[%s4435 + $0x1b0] sm:$0xff]
    %v4469 = vld [vmem:[%s4435 + $0x1b8] sm:$0xff]
    %v4470 = vld [vmem:[%s4435 + $0x1c8] sm:$0xff]
    %v4471 = vld [vmem:[%s4435 + $0x1d0] sm:$0xff]
    %v4472 = vld [vmem:[%s4435 + $0x1e0] sm:$0xff]
    %v4473 = vld [vmem:[%s4435 + $0x1e8] sm:$0xff]
    %v4474 = vld [vmem:[%s4435 + $0x1f8] sm:$0xff]
    %v4475 = vld [vmem:[%s4435 + $0x200] sm:$0xff]
    %v4476 = vld [vmem:[%s4435 + $0x210] sm:$0xff]
    %v4477 = vld [vmem:[%s4435 + $0x218] sm:$0xff]
    %v4478 = vld [vmem:[%s4435 + $0x228] sm:$0xff]
    %v4479 = vld [vmem:[%s4435 + $0x230] sm:$0xff]
    %v4480 = vld [vmem:[%s4435 + $0x240] sm:$0xff]
    %v4481 = vld [vmem:[%s4435 + $0x248] sm:$0xff]
    %v4482 = vld [vmem:[%s4435 + $0x258] sm:$0xff]
    %v4483 = vld [vmem:[%s4435 + $0x260] sm:$0xff]
    %v4484 = vld [vmem:[%s4435 + $0x270] sm:$0xff]
    %v4485 = vld [vmem:[%s4435 + $0x278] sm:$0xff]
    %v4486 = vld [vmem:[%s4435 + $0x288] sm:$0xff]
    %v4487 = vld [vmem:[%s4435 + $0x290] sm:$0xff]
    %v4488 = vld [vmem:[%s4435 + $0x2a0] sm:$0xff]
    %v4489 = vld [vmem:[%s4435 + $0x2a8] sm:$0xff]
    %v4490 = vld [vmem:[%s4435 + $0x2b8] sm:$0xff]
    %v4491 = vld [vmem:[%s4435 + $0x2c0] sm:$0xff]
    %v4492 = vld [vmem:[%s4435 + $0x2d0] sm:$0xff]
    %v4493 = vld [vmem:[%s4435 + $0x2d8] sm:$0xff]
    %v4494 = vld [vmem:[%s4435 + $0x2e8] sm:$0xff]
    %v4495 = vld [vmem:[%s4435 + $0x2f0] sm:$0xff]
    %v4496 = vld [vmem:[%s4435 + $0x300] sm:$0xff]
    %v4497 = vld [vmem:[%s4435 + $0x308] sm:$0xff]
    %v4498 = vld [vmem:[%s4435 + $0x318] sm:$0xff]
    %v4499 = vld [vmem:[%s4435 + $0x320] sm:$0xff]
    %v4500 = vpack.c.bf16 %v4437, %v4436
    %v4501 = vpack.c.bf16 %v4439, %v4438
    %v4502 = vpack.c.bf16 %v4441, %v4440
    %v4503 = vpack.c.bf16 %v4443, %v4442
    %v4504 = vpack.c.bf16 %v4445, %v4444
    %v4505 = vpack.c.bf16 %v4447, %v4446
    %v4506 = vpack.c.bf16 %v4449, %v4448
    %v4507 = vpack.c.bf16 %v4451, %v4450
    %v4508 = vpack.c.bf16 %v4453, %v4452
    %v4509 = vpack.c.bf16 %v4455, %v4454
    %v4510 = vpack.c.bf16 %v4457, %v4456
    %v4511 = vpack.c.bf16 %v4459, %v4458
    %v4512 = vpack.c.bf16 %v4461, %v4460
    %v4513 = vpack.c.bf16 %v4463, %v4462
    %v4514 = vpack.c.bf16 %v4465, %v4464
    %v4515 = vpack.c.bf16 %v4467, %v4466
    %v4516 = vpack.c.bf16 %v4469, %v4468
    %v4517 = vpack.c.bf16 %v4471, %v4470
    %v4518 = vpack.c.bf16 %v4473, %v4472
    %v4519 = vpack.c.bf16 %v4475, %v4474
    %v4520 = vpack.c.bf16 %v4477, %v4476
    %v4521 = vpack.c.bf16 %v4479, %v4478
    %v4522 = vpack.c.bf16 %v4481, %v4480
    %v4523 = vpack.c.bf16 %v4483, %v4482
    %v4524 = vpack.c.bf16 %v4485, %v4484
    %v4525 = vpack.c.bf16 %v4487, %v4486
    %v4526 = vpack.c.bf16 %v4489, %v4488
    %v4527 = vpack.c.bf16 %v4491, %v4490
    %v4528 = vpack.c.bf16 %v4493, %v4492
    %v4529 = vpack.c.bf16 %v4495, %v4494
    %v4530 = vpack.c.bf16 %v4497, %v4496
    %v4531 = vpack.c.bf16 %v4499, %v4498
    %s4532 = scalar_lea.vmem [#allocation6], 96
    %v4533 = vld [vmem:[%s4532] sm:$0xf]
    %v4534 = vld [vmem:[%s4532 + $0x4] sm:$0xf]
    %v4535 = vld [vmem:[%s4532 + $0x8] sm:$0xf]
    %v4536 = vld [vmem:[%s4532 + $0xc] sm:$0xf]
    %v4541 = vunpack.c.l.b16 %v4533
    %v4542 = vunpack.c.l.b16 %v4534
    %v4543 = vunpack.c.l.b16 %v4535
    %v4544 = vunpack.c.l.b16 %v4536
    %v4545 = vpack.c.b16 %v4542, %v4541
    %v4546 = vpack.c.b16 %v4544, %v4543
    %v4550 = vsel %vm507, %v4500, 0
    %v4553 = vsel %vm507, %v4501, 0
    %v4556 = vsel %vm507, %v4502, 0
    %v4559 = vsel %vm507, %v4503, 0
    %v4562 = vsel %vm507, %v4504, 0
    %v4565 = vsel %vm507, %v4505, 0
    %v4568 = vsel %vm507, %v4506, 0
    %v4571 = vsel %vm507, %v4507, 0
    %v4574 = vsel %vm507, %v4508, 0
    %v4577 = vsel %vm507, %v4509, 0
    %v4580 = vsel %vm507, %v4510, 0
    %v4583 = vsel %vm507, %v4511, 0
    %v4586 = vsel %vm507, %v4512, 0
    %v4589 = vsel %vm507, %v4513, 0
    %v4592 = vsel %vm507, %v4514, 0
    %v4595 = vsel %vm507, %v4515, 0
    %v4598 = vsel %vm507, %v4516, 0
    %v4601 = vsel %vm507, %v4517, 0
    %v4604 = vsel %vm507, %v4518, 0
    %v4607 = vsel %vm507, %v4519, 0
    %v4610 = vsel %vm507, %v4520, 0
    %v4613 = vsel %vm507, %v4521, 0
    %v4616 = vsel %vm507, %v4522, 0
    %v4619 = vsel %vm507, %v4523, 0
    %v4622 = vsel %vm507, %v4524, 0
    %v4625 = vsel %vm507, %v4525, 0
    %v4628 = vsel %vm507, %v4526, 0
    %v4631 = vsel %vm507, %v4527, 0
    %v4634 = vsel %vm507, %v4528, 0
    %v4637 = vsel %vm507, %v4529, 0
    %v4640 = vsel %vm507, %v4530, 0
    %v4643 = vsel %vm507, %v4531, 0
    %4645 = vmatprep.subr.bf16.mxu0 0
    %4646 = vmatpush1.bf16.msra.mxu0 %v4545
    %4647 = vmatprep.subr.bf16.mxu0 0
    %4648 = vmatpush1.bf16.msra.mxu0 %v4546
    %4649 = vmatprep.subr.bf16.mxu0 0
    %4650 = vmatpush1.bf16.msra.mxu0 0
    %4651 = vmatprep.subr.bf16.mxu0 0
    %4652 = vmatpush1.bf16.msra.mxu0 0
    %4653 = vmatprep.subr.bf16.mxu0 0
    %4654 = vmatpush1.bf16.msra.mxu0 0
    %4655 = vmatprep.subr.bf16.mxu0 0
    %4656 = vmatpush1.bf16.msra.mxu0 0
    %4657 = vmatprep.subr.bf16.mxu0 0
    %4658 = vmatpush1.bf16.msra.mxu0 0
    %4659 = vmatprep.subr.bf16.mxu0 0
    %4660 = vmatpush1.bf16.msra.mxu0 0
    %4661 = vmatprep.subr.bf16.mxu0 0
    %4662 = vmatpush1.bf16.msra.mxu0 0
    %4663 = vmatprep.subr.bf16.mxu0 0
    %4664 = vmatpush1.bf16.msra.mxu0 0
    %4665 = vmatprep.subr.bf16.mxu0 0
    %4666 = vmatpush1.bf16.msra.mxu0 0
    %4667 = vmatprep.subr.bf16.mxu0 0
    %4668 = vmatpush1.bf16.msra.mxu0 0
    %4669 = vmatprep.subr.bf16.mxu0 0
    %4670 = vmatpush1.bf16.msra.mxu0 0
    %4671 = vmatprep.subr.bf16.mxu0 0
    %4672 = vmatpush1.bf16.msra.mxu0 0
    %4673 = vmatprep.subr.bf16.mxu0 0
    %4674 = vmatpush1.bf16.msra.mxu0 0
    %4675 = vmatprep.subr.bf16.mxu0 0
    %4676 = vmatpush1.bf16.msra.mxu0 0
    %4677 = vmatprep.mubr.bf16.mxu0 0
    %4678 = vmatmul.mubr.bf16.gmra.mrb[0].mxu0 %v4550
    %v4679 = vpop.f32.mrb[0].mxu0
    %v4680 = vadd.f32 0.0, %v4679
    %v4681 = vpop.f32.mrb[0].mxu0
    %v4682 = vpop.f32.mrb[0].mxu0
    %v4683 = vadd.f32 0.0, %v4682
    %v4684 = vpop.f32.mrb[0].mxu0
    %4685 = vmatprep.mubr.bf16.mxu0 0
    %4686 = vmatmul.mubr.bf16.gmra.mrb[0].mxu0 %v4553
    %v4687 = vpop.f32.mrb[0].mxu0
    %v4688 = vadd.f32 0.0, %v4687
    %v4689 = vpop.f32.mrb[0].mxu0
    %v4690 = vpop.f32.mrb[0].mxu0
    %v4691 = vadd.f32 0.0, %v4690
    %v4692 = vpop.f32.mrb[0].mxu0
    %4693 = vmatprep.mubr.bf16.mxu0 0
    %4694 = vmatmul.mubr.bf16.gmra.mrb[0].mxu0 %v4556
    %v4695 = vpop.f32.mrb[0].mxu0
    %v4696 = vadd.f32 0.0, %v4695
    %v4697 = vpop.f32.mrb[0].mxu0
    %v4698 = vpop.f32.mrb[0].mxu0
    %v4699 = vadd.f32 0.0, %v4698
    %v4700 = vpop.f32.mrb[0].mxu0
    %4701 = vmatprep.mubr.bf16.mxu0 0
    %4702 = vmatmul.mubr.bf16.gmra.mrb[0].mxu0 %v4559
    %v4703 = vpop.f32.mrb[0].mxu0
    %v4704 = vadd.f32 0.0, %v4703
    %v4705 = vpop.f32.mrb[0].mxu0
    %v4706 = vpop.f32.mrb[0].mxu0
    %v4707 = vadd.f32 0.0, %v4706
    %v4708 = vpop.f32.mrb[0].mxu0
    %4709 = vmatprep.mubr.bf16.mxu0 0
    %4710 = vmatmul.mubr.bf16.gmra.mrb[0].mxu0 %v4562
    %v4711 = vpop.f32.mrb[0].mxu0
    %v4712 = vadd.f32 0.0, %v4711
    %v4713 = vpop.f32.mrb[0].mxu0
    %v4714 = vpop.f32.mrb[0].mxu0
    %v4715 = vadd.f32 0.0, %v4714
    %v4716 = vpop.f32.mrb[0].mxu0
    %4717 = vmatprep.mubr.bf16.mxu0 0
    %4718 = vmatmul.mubr.bf16.gmra.mrb[0].mxu0 %v4565
    %v4719 = vpop.f32.mrb[0].mxu0
    %v4720 = vadd.f32 0.0, %v4719
    %v4721 = vpop.f32.mrb[0].mxu0
    %v4722 = vpop.f32.mrb[0].mxu0
    %v4723 = vadd.f32 0.0, %v4722
    %v4724 = vpop.f32.mrb[0].mxu0
    %4725 = vmatprep.mubr.bf16.mxu0 0
    %4726 = vmatmul.mubr.bf16.gmra.mrb[0].mxu0 %v4568
    %v4727 = vpop.f32.mrb[0].mxu0
    %v4728 = vadd.f32 0.0, %v4727
    %v4729 = vpop.f32.mrb[0].mxu0
    %v4730 = vpop.f32.mrb[0].mxu0
    %v4731 = vadd.f32 0.0, %v4730
    %v4732 = vpop.f32.mrb[0].mxu0
    %4733 = vmatprep.mubr.bf16.mxu0 0
    %4734 = vmatmul.mubr.bf16.gmra.mrb[0].mxu0 %v4571
    %v4735 = vpop.f32.mrb[0].mxu0
    %v4736 = vadd.f32 0.0, %v4735
    %v4737 = vpop.f32.mrb[0].mxu0
    %v4738 = vpop.f32.mrb[0].mxu0
    %v4739 = vadd.f32 0.0, %v4738
    %v4740 = vpop.f32.mrb[0].mxu0
    %4741 = vmatprep.mubr.bf16.mxu0 0
    %4742 = vmatmul.mubr.bf16.gmra.mrb[0].mxu0 %v4574
    %v4743 = vpop.f32.mrb[0].mxu0
    %v4744 = vadd.f32 0.0, %v4743
    %v4745 = vpop.f32.mrb[0].mxu0
    %v4746 = vpop.f32.mrb[0].mxu0
    %v4747 = vadd.f32 0.0, %v4746
    %v4748 = vpop.f32.mrb[0].mxu0
    %4749 = vmatprep.mubr.bf16.mxu0 0
    %4750 = vmatmul.mubr.bf16.gmra.mrb[0].mxu0 %v4577
    %v4751 = vpop.f32.mrb[0].mxu0
    %v4752 = vadd.f32 0.0, %v4751
    %v4753 = vpop.f32.mrb[0].mxu0
    %v4754 = vpop.f32.mrb[0].mxu0
    %v4755 = vadd.f32 0.0, %v4754
    %v4756 = vpop.f32.mrb[0].mxu0
    %4757 = vmatprep.mubr.bf16.mxu0 0
    %4758 = vmatmul.mubr.bf16.gmra.mrb[0].mxu0 %v4580
    %v4759 = vpop.f32.mrb[0].mxu0
    %v4760 = vadd.f32 0.0, %v4759
    %v4761 = vpop.f32.mrb[0].mxu0
    %v4762 = vpop.f32.mrb[0].mxu0
    %v4763 = vadd.f32 0.0, %v4762
    %v4764 = vpop.f32.mrb[0].mxu0
    %4765 = vmatprep.mubr.bf16.mxu0 0
    %4766 = vmatmul.mubr.bf16.gmra.mrb[0].mxu0 %v4583
    %v4767 = vpop.f32.mrb[0].mxu0
    %v4768 = vadd.f32 0.0, %v4767
    %v4769 = vpop.f32.mrb[0].mxu0
    %v4770 = vpop.f32.mrb[0].mxu0
    %v4771 = vadd.f32 0.0, %v4770
    %v4772 = vpop.f32.mrb[0].mxu0
    %4773 = vmatprep.mubr.bf16.mxu0 0
    %4774 = vmatmul.mubr.bf16.gmra.mrb[0].mxu0 %v4586
    %v4775 = vpop.f32.mrb[0].mxu0
    %v4776 = vadd.f32 0.0, %v4775
    %v4777 = vpop.f32.mrb[0].mxu0
    %v4778 = vpop.f32.mrb[0].mxu0
    %v4779 = vadd.f32 0.0, %v4778
    %v4780 = vpop.f32.mrb[0].mxu0
    %4781 = vmatprep.mubr.bf16.mxu0 0
    %4782 = vmatmul.mubr.bf16.gmra.mrb[0].mxu0 %v4589
    %v4783 = vpop.f32.mrb[0].mxu0
    %v4784 = vadd.f32 0.0, %v4783
    %v4785 = vpop.f32.mrb[0].mxu0
    %v4786 = vpop.f32.mrb[0].mxu0
    %v4787 = vadd.f32 0.0, %v4786
    %v4788 = vpop.f32.mrb[0].mxu0
    %4789 = vmatprep.mubr.bf16.mxu0 0
    %4790 = vmatmul.mubr.bf16.gmra.mrb[0].mxu0 %v4592
    %v4791 = vpop.f32.mrb[0].mxu0
    %v4792 = vadd.f32 0.0, %v4791
    %v4793 = vpop.f32.mrb[0].mxu0
    %v4794 = vpop.f32.mrb[0].mxu0
    %v4795 = vadd.f32 0.0, %v4794
    %v4796 = vpop.f32.mrb[0].mxu0
    %4797 = vmatprep.mubr.bf16.mxu0 0
    %4798 = vmatmul.mubr.bf16.gmra.mrb[0].mxu0 %v4595
    %v4799 = vpop.f32.mrb[0].mxu0
    %v4800 = vadd.f32 0.0, %v4799
    %v4801 = vpop.f32.mrb[0].mxu0
    %v4802 = vpop.f32.mrb[0].mxu0
    %v4803 = vadd.f32 0.0, %v4802
    %v4804 = vpop.f32.mrb[0].mxu0
    %4805 = vmatprep.mubr.bf16.mxu0 0
    %4806 = vmatmul.mubr.bf16.gmra.mrb[0].mxu0 %v4598
    %v4807 = vpop.f32.mrb[0].mxu0
    %v4808 = vadd.f32 0.0, %v4807
    %v4809 = vpop.f32.mrb[0].mxu0
    %v4810 = vpop.f32.mrb[0].mxu0
    %v4811 = vadd.f32 0.0, %v4810
    %v4812 = vpop.f32.mrb[0].mxu0
    %4813 = vmatprep.mubr.bf16.mxu0 0
    %4814 = vmatmul.mubr.bf16.gmra.mrb[0].mxu0 %v4601
    %v4815 = vpop.f32.mrb[0].mxu0
    %v4816 = vadd.f32 0.0, %v4815
    %v4817 = vpop.f32.mrb[0].mxu0
    %v4818 = vpop.f32.mrb[0].mxu0
    %v4819 = vadd.f32 0.0, %v4818
    %v4820 = vpop.f32.mrb[0].mxu0
    %4821 = vmatprep.mubr.bf16.mxu0 0
    %4822 = vmatmul.mubr.bf16.gmra.mrb[0].mxu0 %v4604
    %v4823 = vpop.f32.mrb[0].mxu0
    %v4824 = vadd.f32 0.0, %v4823
    %v4825 = vpop.f32.mrb[0].mxu0
    %v4826 = vpop.f32.mrb[0].mxu0
    %v4827 = vadd.f32 0.0, %v4826
    %v4828 = vpop.f32.mrb[0].mxu0
    %4829 = vmatprep.mubr.bf16.mxu0 0
    %4830 = vmatmul.mubr.bf16.gmra.mrb[0].mxu0 %v4607
    %v4831 = vpop.f32.mrb[0].mxu0
    %v4832 = vadd.f32 0.0, %v4831
    %v4833 = vpop.f32.mrb[0].mxu0
    %v4834 = vpop.f32.mrb[0].mxu0
    %v4835 = vadd.f32 0.0, %v4834
    %v4836 = vpop.f32.mrb[0].mxu0
    %4837 = vmatprep.mubr.bf16.mxu0 0
    %4838 = vmatmul.mubr.bf16.gmra.mrb[0].mxu0 %v4610
    %v4839 = vpop.f32.mrb[0].mxu0
    %v4840 = vadd.f32 0.0, %v4839
    %v4841 = vpop.f32.mrb[0].mxu0
    %v4842 = vpop.f32.mrb[0].mxu0
    %v4843 = vadd.f32 0.0, %v4842
    %v4844 = vpop.f32.mrb[0].mxu0
    %4845 = vmatprep.mubr.bf16.mxu0 0
    %4846 = vmatmul.mubr.bf16.gmra.mrb[0].mxu0 %v4613
    %v4847 = vpop.f32.mrb[0].mxu0
    %v4848 = vadd.f32 0.0, %v4847
    %v4849 = vpop.f32.mrb[0].mxu0
    %v4850 = vpop.f32.mrb[0].mxu0
    %v4851 = vadd.f32 0.0, %v4850
    %v4852 = vpop.f32.mrb[0].mxu0
    %4853 = vmatprep.mubr.bf16.mxu0 0
    %4854 = vmatmul.mubr.bf16.gmra.mrb[0].mxu0 %v4616
    %v4855 = vpop.f32.mrb[0].mxu0
    %v4856 = vadd.f32 0.0, %v4855
    %v4857 = vpop.f32.mrb[0].mxu0
    %v4858 = vpop.f32.mrb[0].mxu0
    %v4859 = vadd.f32 0.0, %v4858
    %v4860 = vpop.f32.mrb[0].mxu0
    %4861 = vmatprep.mubr.bf16.mxu0 0
    %4862 = vmatmul.mubr.bf16.gmra.mrb[0].mxu0 %v4619
    %v4863 = vpop.f32.mrb[0].mxu0
    %v4864 = vadd.f32 0.0, %v4863
    %v4865 = vpop.f32.mrb[0].mxu0
    %v4866 = vpop.f32.mrb[0].mxu0
    %v4867 = vadd.f32 0.0, %v4866
    %v4868 = vpop.f32.mrb[0].mxu0
    %4869 = vmatprep.mubr.bf16.mxu0 0
    %4870 = vmatmul.mubr.bf16.gmra.mrb[0].mxu0 %v4622
    %v4871 = vpop.f32.mrb[0].mxu0
    %v4872 = vadd.f32 0.0, %v4871
    %v4873 = vpop.f32.mrb[0].mxu0
    %v4874 = vpop.f32.mrb[0].mxu0
    %v4875 = vadd.f32 0.0, %v4874
    %v4876 = vpop.f32.mrb[0].mxu0
    %4877 = vmatprep.mubr.bf16.mxu0 0
    %4878 = vmatmul.mubr.bf16.gmra.mrb[0].mxu0 %v4625
    %v4879 = vpop.f32.mrb[0].mxu0
    %v4880 = vadd.f32 0.0, %v4879
    %v4881 = vpop.f32.mrb[0].mxu0
    %v4882 = vpop.f32.mrb[0].mxu0
    %v4883 = vadd.f32 0.0, %v4882
    %v4884 = vpop.f32.mrb[0].mxu0
    %4885 = vmatprep.mubr.bf16.mxu0 0
    %4886 = vmatmul.mubr.bf16.gmra.mrb[0].mxu0 %v4628
    %v4887 = vpop.f32.mrb[0].mxu0
    %v4888 = vadd.f32 0.0, %v4887
    %v4889 = vpop.f32.mrb[0].mxu0
    %v4890 = vpop.f32.mrb[0].mxu0
    %v4891 = vadd.f32 0.0, %v4890
    %v4892 = vpop.f32.mrb[0].mxu0
    %4893 = vmatprep.mubr.bf16.mxu0 0
    %4894 = vmatmul.mubr.bf16.gmra.mrb[0].mxu0 %v4631
    %v4895 = vpop.f32.mrb[0].mxu0
    %v4896 = vadd.f32 0.0, %v4895
    %v4897 = vpop.f32.mrb[0].mxu0
    %v4898 = vpop.f32.mrb[0].mxu0
    %v4899 = vadd.f32 0.0, %v4898
    %v4900 = vpop.f32.mrb[0].mxu0
    %4901 = vmatprep.mubr.bf16.mxu0 0
    %4902 = vmatmul.mubr.bf16.gmra.mrb[0].mxu0 %v4634
    %v4903 = vpop.f32.mrb[0].mxu0
    %v4904 = vadd.f32 0.0, %v4903
    %v4905 = vpop.f32.mrb[0].mxu0
    %v4906 = vpop.f32.mrb[0].mxu0
    %v4907 = vadd.f32 0.0, %v4906
    %v4908 = vpop.f32.mrb[0].mxu0
    %4909 = vmatprep.mubr.bf16.mxu0 0
    %4910 = vmatmul.mubr.bf16.gmra.mrb[0].mxu0 %v4637
    %v4911 = vpop.f32.mrb[0].mxu0
    %v4912 = vadd.f32 0.0, %v4911
    %v4913 = vpop.f32.mrb[0].mxu0
    %v4914 = vpop.f32.mrb[0].mxu0
    %v4915 = vadd.f32 0.0, %v4914
    %v4916 = vpop.f32.mrb[0].mxu0
    %4917 = vmatprep.mubr.bf16.mxu0 0
    %4918 = vmatmul.mubr.bf16.gmra.mrb[0].mxu0 %v4640
    %v4919 = vpop.f32.mrb[0].mxu0
    %v4920 = vadd.f32 0.0, %v4919
    %v4921 = vpop.f32.mrb[0].mxu0
    %v4922 = vpop.f32.mrb[0].mxu0
    %v4923 = vadd.f32 0.0, %v4922
    %v4924 = vpop.f32.mrb[0].mxu0
    %4925 = vmatprep.mubr.bf16.mxu0 0
    %4926 = vmatmul.mubr.bf16.gmra.mrb[0].mxu0 %v4643
    %v4927 = vpop.f32.mrb[0].mxu0
    %v4928 = vadd.f32 0.0, %v4927
    %v4929 = vpop.f32.mrb[0].mxu0
    %v4930 = vpop.f32.mrb[0].mxu0
    %v4931 = vadd.f32 0.0, %v4930
    %v4932 = vpop.f32.mrb[0].mxu0
    %4933 = vdwg.mxu0
    %v4934 = vadd.f32 %v4371, %v4680
    %v4935 = vadd.f32 %v4372, %v4683
    %v4936 = vadd.f32 %v4373, %v4688
    %v4937 = vadd.f32 %v4374, %v4691
    %v4938 = vadd.f32 %v4375, %v4696
    %v4939 = vadd.f32 %v4376, %v4699
    %v4940 = vadd.f32 %v4377, %v4704
    %v4941 = vadd.f32 %v4378, %v4707
    %v4942 = vadd.f32 %v4379, %v4712
    %v4943 = vadd.f32 %v4380, %v4715
    %v4944 = vadd.f32 %v4381, %v4720
    %v4945 = vadd.f32 %v4382, %v4723
    %v4946 = vadd.f32 %v4383, %v4728
    %v4947 = vadd.f32 %v4384, %v4731
    %v4948 = vadd.f32 %v4385, %v4736
    %v4949 = vadd.f32 %v4386, %v4739
    %v4950 = vadd.f32 %v4387, %v4744
    %v4951 = vadd.f32 %v4388, %v4747
    %v4952 = vadd.f32 %v4389, %v4752
    %v4953 = vadd.f32 %v4390, %v4755
    %v4954 = vadd.f32 %v4391, %v4760
    %v4955 = vadd.f32 %v4392, %v4763
    %v4956 = vadd.f32 %v4393, %v4768
    %v4957 = vadd.f32 %v4394, %v4771
    %v4958 = vadd.f32 %v4395, %v4776
    %v4959 = vadd.f32 %v4396, %v4779
    %v4960 = vadd.f32 %v4397, %v4784
    %v4961 = vadd.f32 %v4398, %v4787
    %v4962 = vadd.f32 %v4399, %v4792
    %v4963 = vadd.f32 %v4400, %v4795
    %v4964 = vadd.f32 %v4401, %v4800
    %v4965 = vadd.f32 %v4402, %v4803
    %v4966 = vadd.f32 %v4403, %v4808
    %v4967 = vadd.f32 %v4404, %v4811
    %v4968 = vadd.f32 %v4405, %v4816
    %v4969 = vadd.f32 %v4406, %v4819
    %v4970 = vadd.f32 %v4407, %v4824
    %v4971 = vadd.f32 %v4408, %v4827
    %v4972 = vadd.f32 %v4409, %v4832
    %v4973 = vadd.f32 %v4410, %v4835
    %v4974 = vadd.f32 %v4411, %v4840
    %v4975 = vadd.f32 %v4412, %v4843
    %v4976 = vadd.f32 %v4413, %v4848
    %v4977 = vadd.f32 %v4414, %v4851
    %v4978 = vadd.f32 %v4415, %v4856
    %v4979 = vadd.f32 %v4416, %v4859
    %v4980 = vadd.f32 %v4417, %v4864
    %v4981 = vadd.f32 %v4418, %v4867
    %v4982 = vadd.f32 %v4419, %v4872
    %v4983 = vadd.f32 %v4420, %v4875
    %v4984 = vadd.f32 %v4421, %v4880
    %v4985 = vadd.f32 %v4422, %v4883
    %v4986 = vadd.f32 %v4423, %v4888
    %v4987 = vadd.f32 %v4424, %v4891
    %v4988 = vadd.f32 %v4425, %v4896
    %v4989 = vadd.f32 %v4426, %v4899
    %v4990 = vadd.f32 %v4427, %v4904
    %v4991 = vadd.f32 %v4428, %v4907
    %v4992 = vadd.f32 %v4429, %v4912
    %v4993 = vadd.f32 %v4430, %v4915
    %v4994 = vadd.f32 %v4431, %v4920
    %v4995 = vadd.f32 %v4432, %v4923
    %v4996 = vadd.f32 %v4433, %v4928
    %v4997 = vadd.f32 %v4434, %v4931
    %v4998 = vld [vmem:[%s4435 + $0x1] sm:$0xff]
    %v4999 = vld [vmem:[%s4435 + $0x9] sm:$0xff]
    %v5000 = vld [vmem:[%s4435 + $0x19] sm:$0xff]
    %v5001 = vld [vmem:[%s4435 + $0x21] sm:$0xff]
    %v5002 = vld [vmem:[%s4435 + $0x31] sm:$0xff]
    %v5003 = vld [vmem:[%s4435 + $0x39] sm:$0xff]
    %v5004 = vld [vmem:[%s4435 + $0x49] sm:$0xff]
    %v5005 = vld [vmem:[%s4435 + $0x51] sm:$0xff]
    %v5006 = vld [vmem:[%s4435 + $0x61] sm:$0xff]
    %v5007 = vld [vmem:[%s4435 + $0x69] sm:$0xff]
    %v5008 = vld [vmem:[%s4435 + $0x79] sm:$0xff]
    %v5009 = vld [vmem:[%s4435 + $0x81] sm:$0xff]
    %v5010 = vld [vmem:[%s4435 + $0x91] sm:$0xff]
    %v5011 = vld [vmem:[%s4435 + $0x99] sm:$0xff]
    %v5012 = vld [vmem:[%s4435 + $0xa9] sm:$0xff]
    %v5013 = vld [vmem:[%s4435 + $0xb1] sm:$0xff]
    %v5014 = vld [vmem:[%s4435 + $0xc1] sm:$0xff]
    %v5015 = vld [vmem:[%s4435 + $0xc9] sm:$0xff]
    %v5016 = vld [vmem:[%s4435 + $0xd9] sm:$0xff]
    %v5017 = vld [vmem:[%s4435 + $0xe1] sm:$0xff]
    %v5018 = vld [vmem:[%s4435 + $0xf1] sm:$0xff]
    %v5019 = vld [vmem:[%s4435 + $0xf9] sm:$0xff]
    %v5020 = vld [vmem:[%s4435 + $0x109] sm:$0xff]
    %v5021 = vld [vmem:[%s4435 + $0x111] sm:$0xff]
    %v5022 = vld [vmem:[%s4435 + $0x121] sm:$0xff]
    %v5023 = vld [vmem:[%s4435 + $0x129] sm:$0xff]
    %v5024 = vld [vmem:[%s4435 + $0x139] sm:$0xff]
    %v5025 = vld [vmem:[%s4435 + $0x141] sm:$0xff]
    %v5026 = vld [vmem:[%s4435 + $0x151] sm:$0xff]
    %v5027 = vld [vmem:[%s4435 + $0x159] sm:$0xff]
    %v5028 = vld [vmem:[%s4435 + $0x169] sm:$0xff]
    %v5029 = vld [vmem:[%s4435 + $0x171] sm:$0xff]
    %v5030 = vld [vmem:[%s4435 + $0x1b1] sm:$0xff]
    %v5031 = vld [vmem:[%s4435 + $0x1b9] sm:$0xff]
    %v5032 = vld [vmem:[%s4435 + $0x1c9] sm:$0xff]
    %v5033 = vld [vmem:[%s4435 + $0x1d1] sm:$0xff]
    %v5034 = vld [vmem:[%s4435 + $0x1e1] sm:$0xff]
    %v5035 = vld [vmem:[%s4435 + $0x1e9] sm:$0xff]
    %v5036 = vld [vmem:[%s4435 + $0x1f9] sm:$0xff]
    %v5037 = vld [vmem:[%s4435 + $0x201] sm:$0xff]
    %v5038 = vld [vmem:[%s4435 + $0x211] sm:$0xff]
    %v5039 = vld [vmem:[%s4435 + $0x219] sm:$0xff]
    %v5040 = vld [vmem:[%s4435 + $0x229] sm:$0xff]
    %v5041 = vld [vmem:[%s4435 + $0x231] sm:$0xff]
    %v5042 = vld [vmem:[%s4435 + $0x241] sm:$0xff]
    %v5043 = vld [vmem:[%s4435 + $0x249] sm:$0xff]
    %v5044 = vld [vmem:[%s4435 + $0x259] sm:$0xff]
    %v5045 = vld [vmem:[%s4435 + $0x261] sm:$0xff]
    %v5046 = vld [vmem:[%s4435 + $0x271] sm:$0xff]
    %v5047 = vld [vmem:[%s4435 + $0x279] sm:$0xff]
    %v5048 = vld [vmem:[%s4435 + $0x289] sm:$0xff]
    %v5049 = vld [vmem:[%s4435 + $0x291] sm:$0xff]
    %v5050 = vld [vmem:[%s4435 + $0x2a1] sm:$0xff]
    %v5051 = vld [vmem:[%s4435 + $0x2a9] sm:$0xff]
    %v5052 = vld [vmem:[%s4435 + $0x2b9] sm:$0xff]
    %v5053 = vld [vmem:[%s4435 + $0x2c1] sm:$0xff]
    %v5054 = vld [vmem:[%s4435 + $0x2d1] sm:$0xff]
    %v5055 = vld [vmem:[%s4435 + $0x2d9] sm:$0xff]
    %v5056 = vld [vmem:[%s4435 + $0x2e9] sm:$0xff]
    %v5057 = vld [vmem:[%s4435 + $0x2f1] sm:$0xff]
    %v5058 = vld [vmem:[%s4435 + $0x301] sm:$0xff]
    %v5059 = vld [vmem:[%s4435 + $0x309] sm:$0xff]
    %v5060 = vld [vmem:[%s4435 + $0x319] sm:$0xff]
    %v5061 = vld [vmem:[%s4435 + $0x321] sm:$0xff]
    %v5062 = vpack.c.bf16 %v4999, %v4998
    %v5063 = vpack.c.bf16 %v5001, %v5000
    %v5064 = vpack.c.bf16 %v5003, %v5002
    %v5065 = vpack.c.bf16 %v5005, %v5004
    %v5066 = vpack.c.bf16 %v5007, %v5006
    %v5067 = vpack.c.bf16 %v5009, %v5008
    %v5068 = vpack.c.bf16 %v5011, %v5010
    %v5069 = vpack.c.bf16 %v5013, %v5012
    %v5070 = vpack.c.bf16 %v5015, %v5014
    %v5071 = vpack.c.bf16 %v5017, %v5016
    %v5072 = vpack.c.bf16 %v5019, %v5018
    %v5073 = vpack.c.bf16 %v5021, %v5020
    %v5074 = vpack.c.bf16 %v5023, %v5022
    %v5075 = vpack.c.bf16 %v5025, %v5024
    %v5076 = vpack.c.bf16 %v5027, %v5026
    %v5077 = vpack.c.bf16 %v5029, %v5028
    %v5078 = vpack.c.bf16 %v5031, %v5030
    %v5079 = vpack.c.bf16 %v5033, %v5032
    %v5080 = vpack.c.bf16 %v5035, %v5034
    %v5081 = vpack.c.bf16 %v5037, %v5036
    %v5082 = vpack.c.bf16 %v5039, %v5038
    %v5083 = vpack.c.bf16 %v5041, %v5040
    %v5084 = vpack.c.bf16 %v5043, %v5042
    %v5085 = vpack.c.bf16 %v5045, %v5044
    %v5086 = vpack.c.bf16 %v5047, %v5046
    %v5087 = vpack.c.bf16 %v5049, %v5048
    %v5088 = vpack.c.bf16 %v5051, %v5050
    %v5089 = vpack.c.bf16 %v5053, %v5052
    %v5090 = vpack.c.bf16 %v5055, %v5054
    %v5091 = vpack.c.bf16 %v5057, %v5056
    %v5092 = vpack.c.bf16 %v5059, %v5058
    %v5093 = vpack.c.bf16 %v5061, %v5060
    %s5094 = scalar_lea.vmem [#allocation6], 112
    %v5095 = vld [vmem:[%s5094] sm:$0xf]
    %v5096 = vld [vmem:[%s5094 + $0x4] sm:$0xf]
    %v5097 = vld [vmem:[%s5094 + $0x8] sm:$0xf]
    %v5098 = vld [vmem:[%s5094 + $0xc] sm:$0xf]
    %v5103 = vunpack.c.l.b16 %v5095
    %v5104 = vunpack.c.l.b16 %v5096
    %v5105 = vunpack.c.l.b16 %v5097
    %v5106 = vunpack.c.l.b16 %v5098
    %v5107 = vpack.c.b16 %v5104, %v5103
    %v5108 = vpack.c.b16 %v5106, %v5105
    %v5112 = vsel %vm507, %v5062, 0
    %v5115 = vsel %vm507, %v5063, 0
    %v5118 = vsel %vm507, %v5064, 0
    %v5121 = vsel %vm507, %v5065, 0
    %v5124 = vsel %vm507, %v5066, 0
    %v5127 = vsel %vm507, %v5067, 0
    %v5130 = vsel %vm507, %v5068, 0
    %v5133 = vsel %vm507, %v5069, 0
    %v5136 = vsel %vm507, %v5070, 0
    %v5139 = vsel %vm507, %v5071, 0
    %v5142 = vsel %vm507, %v5072, 0
    %v5145 = vsel %vm507, %v5073, 0
    %v5148 = vsel %vm507, %v5074, 0
    %v5151 = vsel %vm507, %v5075, 0
    %v5154 = vsel %vm507, %v5076, 0
    %v5157 = vsel %vm507, %v5077, 0
    %v5160 = vsel %vm507, %v5078, 0
    %v5163 = vsel %vm507, %v5079, 0
    %v5166 = vsel %vm507, %v5080, 0
    %v5169 = vsel %vm507, %v5081, 0
    %v5172 = vsel %vm507, %v5082, 0
    %v5175 = vsel %vm507, %v5083, 0
    %v5178 = vsel %vm507, %v5084, 0
    %v5181 = vsel %vm507, %v5085, 0
    %v5184 = vsel %vm507, %v5086, 0
    %v5187 = vsel %vm507, %v5087, 0
    %v5190 = vsel %vm507, %v5088, 0
    %v5193 = vsel %vm507, %v5089, 0
    %v5196 = vsel %vm507, %v5090, 0
    %v5199 = vsel %vm507, %v5091, 0
    %v5202 = vsel %vm507, %v5092, 0
    %v5205 = vsel %vm507, %v5093, 0
    %5207 = vmatprep.subr.bf16.mxu0 0
    %5208 = vmatpush1.bf16.msra.mxu0 %v5107
    %5209 = vmatprep.subr.bf16.mxu0 0
    %5210 = vmatpush1.bf16.msra.mxu0 %v5108
    %5211 = vmatprep.subr.bf16.mxu0 0
    %5212 = vmatpush1.bf16.msra.mxu0 0
    %5213 = vmatprep.subr.bf16.mxu0 0
    %5214 = vmatpush1.bf16.msra.mxu0 0
    %5215 = vmatprep.subr.bf16.mxu0 0
    %5216 = vmatpush1.bf16.msra.mxu0 0
    %5217 = vmatprep.subr.bf16.mxu0 0
    %5218 = vmatpush1.bf16.msra.mxu0 0
    %5219 = vmatprep.subr.bf16.mxu0 0
    %5220 = vmatpush1.bf16.msra.mxu0 0
    %5221 = vmatprep.subr.bf16.mxu0 0
    %5222 = vmatpush1.bf16.msra.mxu0 0
    %5223 = vmatprep.subr.bf16.mxu0 0
    %5224 = vmatpush1.bf16.msra.mxu0 0
    %5225 = vmatprep.subr.bf16.mxu0 0
    %5226 = vmatpush1.bf16.msra.mxu0 0
    %5227 = vmatprep.subr.bf16.mxu0 0
    %5228 = vmatpush1.bf16.msra.mxu0 0
    %5229 = vmatprep.subr.bf16.mxu0 0
    %5230 = vmatpush1.bf16.msra.mxu0 0
    %5231 = vmatprep.subr.bf16.mxu0 0
    %5232 = vmatpush1.bf16.msra.mxu0 0
    %5233 = vmatprep.subr.bf16.mxu0 0
    %5234 = vmatpush1.bf16.msra.mxu0 0
    %5235 = vmatprep.subr.bf16.mxu0 0
    %5236 = vmatpush1.bf16.msra.mxu0 0
    %5237 = vmatprep.subr.bf16.mxu0 0
    %5238 = vmatpush1.bf16.msra.mxu0 0
    %5239 = vmatprep.mubr.bf16.mxu0 0
    %5240 = vmatmul.mubr.bf16.gmra.mrb[0].mxu0 %v5112
    %v5241 = vpop.f32.mrb[0].mxu0
    %v5242 = vadd.f32 0.0, %v5241
    %v5243 = vpop.f32.mrb[0].mxu0
    %v5244 = vpop.f32.mrb[0].mxu0
    %v5245 = vadd.f32 0.0, %v5244
    %v5246 = vpop.f32.mrb[0].mxu0
    %5247 = vmatprep.mubr.bf16.mxu0 0
    %5248 = vmatmul.mubr.bf16.gmra.mrb[0].mxu0 %v5115
    %v5249 = vpop.f32.mrb[0].mxu0
    %v5250 = vadd.f32 0.0, %v5249
    %v5251 = vpop.f32.mrb[0].mxu0
    %v5252 = vpop.f32.mrb[0].mxu0
    %v5253 = vadd.f32 0.0, %v5252
    %v5254 = vpop.f32.mrb[0].mxu0
    %5255 = vmatprep.mubr.bf16.mxu0 0
    %5256 = vmatmul.mubr.bf16.gmra.mrb[0].mxu0 %v5118
    %v5257 = vpop.f32.mrb[0].mxu0
    %v5258 = vadd.f32 0.0, %v5257
    %v5259 = vpop.f32.mrb[0].mxu0
    %v5260 = vpop.f32.mrb[0].mxu0
    %v5261 = vadd.f32 0.0, %v5260
    %v5262 = vpop.f32.mrb[0].mxu0
    %5263 = vmatprep.mubr.bf16.mxu0 0
    %5264 = vmatmul.mubr.bf16.gmra.mrb[0].mxu0 %v5121
    %v5265 = vpop.f32.mrb[0].mxu0
    %v5266 = vadd.f32 0.0, %v5265
    %v5267 = vpop.f32.mrb[0].mxu0
    %v5268 = vpop.f32.mrb[0].mxu0
    %v5269 = vadd.f32 0.0, %v5268
    %v5270 = vpop.f32.mrb[0].mxu0
    %5271 = vmatprep.mubr.bf16.mxu0 0
    %5272 = vmatmul.mubr.bf16.gmra.mrb[0].mxu0 %v5124
    %v5273 = vpop.f32.mrb[0].mxu0
    %v5274 = vadd.f32 0.0, %v5273
    %v5275 = vpop.f32.mrb[0].mxu0
    %v5276 = vpop.f32.mrb[0].mxu0
    %v5277 = vadd.f32 0.0, %v5276
    %v5278 = vpop.f32.mrb[0].mxu0
    %5279 = vmatprep.mubr.bf16.mxu0 0
    %5280 = vmatmul.mubr.bf16.gmra.mrb[0].mxu0 %v5127
    %v5281 = vpop.f32.mrb[0].mxu0
    %v5282 = vadd.f32 0.0, %v5281
    %v5283 = vpop.f32.mrb[0].mxu0
    %v5284 = vpop.f32.mrb[0].mxu0
    %v5285 = vadd.f32 0.0, %v5284
    %v5286 = vpop.f32.mrb[0].mxu0
    %5287 = vmatprep.mubr.bf16.mxu0 0
    %5288 = vmatmul.mubr.bf16.gmra.mrb[0].mxu0 %v5130
    %v5289 = vpop.f32.mrb[0].mxu0
    %v5290 = vadd.f32 0.0, %v5289
    %v5291 = vpop.f32.mrb[0].mxu0
    %v5292 = vpop.f32.mrb[0].mxu0
    %v5293 = vadd.f32 0.0, %v5292
    %v5294 = vpop.f32.mrb[0].mxu0
    %5295 = vmatprep.mubr.bf16.mxu0 0
    %5296 = vmatmul.mubr.bf16.gmra.mrb[0].mxu0 %v5133
    %v5297 = vpop.f32.mrb[0].mxu0
    %v5298 = vadd.f32 0.0, %v5297
    %v5299 = vpop.f32.mrb[0].mxu0
    %v5300 = vpop.f32.mrb[0].mxu0
    %v5301 = vadd.f32 0.0, %v5300
    %v5302 = vpop.f32.mrb[0].mxu0
    %5303 = vmatprep.mubr.bf16.mxu0 0
    %5304 = vmatmul.mubr.bf16.gmra.mrb[0].mxu0 %v5136
    %v5305 = vpop.f32.mrb[0].mxu0
    %v5306 = vadd.f32 0.0, %v5305
    %v5307 = vpop.f32.mrb[0].mxu0
    %v5308 = vpop.f32.mrb[0].mxu0
    %v5309 = vadd.f32 0.0, %v5308
    %v5310 = vpop.f32.mrb[0].mxu0
    %5311 = vmatprep.mubr.bf16.mxu0 0
    %5312 = vmatmul.mubr.bf16.gmra.mrb[0].mxu0 %v5139
    %v5313 = vpop.f32.mrb[0].mxu0
    %v5314 = vadd.f32 0.0, %v5313
    %v5315 = vpop.f32.mrb[0].mxu0
    %v5316 = vpop.f32.mrb[0].mxu0
    %v5317 = vadd.f32 0.0, %v5316
    %v5318 = vpop.f32.mrb[0].mxu0
    %5319 = vmatprep.mubr.bf16.mxu0 0
    %5320 = vmatmul.mubr.bf16.gmra.mrb[0].mxu0 %v5142
    %v5321 = vpop.f32.mrb[0].mxu0
    %v5322 = vadd.f32 0.0, %v5321
    %v5323 = vpop.f32.mrb[0].mxu0
    %v5324 = vpop.f32.mrb[0].mxu0
    %v5325 = vadd.f32 0.0, %v5324
    %v5326 = vpop.f32.mrb[0].mxu0
    %5327 = vmatprep.mubr.bf16.mxu0 0
    %5328 = vmatmul.mubr.bf16.gmra.mrb[0].mxu0 %v5145
    %v5329 = vpop.f32.mrb[0].mxu0
    %v5330 = vadd.f32 0.0, %v5329
    %v5331 = vpop.f32.mrb[0].mxu0
    %v5332 = vpop.f32.mrb[0].mxu0
    %v5333 = vadd.f32 0.0, %v5332
    %v5334 = vpop.f32.mrb[0].mxu0
    %5335 = vmatprep.mubr.bf16.mxu0 0
    %5336 = vmatmul.mubr.bf16.gmra.mrb[0].mxu0 %v5148
    %v5337 = vpop.f32.mrb[0].mxu0
    %v5338 = vadd.f32 0.0, %v5337
    %v5339 = vpop.f32.mrb[0].mxu0
    %v5340 = vpop.f32.mrb[0].mxu0
    %v5341 = vadd.f32 0.0, %v5340
    %v5342 = vpop.f32.mrb[0].mxu0
    %5343 = vmatprep.mubr.bf16.mxu0 0
    %5344 = vmatmul.mubr.bf16.gmra.mrb[0].mxu0 %v5151
    %v5345 = vpop.f32.mrb[0].mxu0
    %v5346 = vadd.f32 0.0, %v5345
    %v5347 = vpop.f32.mrb[0].mxu0
    %v5348 = vpop.f32.mrb[0].mxu0
    %v5349 = vadd.f32 0.0, %v5348
    %v5350 = vpop.f32.mrb[0].mxu0
    %5351 = vmatprep.mubr.bf16.mxu0 0
    %5352 = vmatmul.mubr.bf16.gmra.mrb[0].mxu0 %v5154
    %v5353 = vpop.f32.mrb[0].mxu0
    %v5354 = vadd.f32 0.0, %v5353
    %v5355 = vpop.f32.mrb[0].mxu0
    %v5356 = vpop.f32.mrb[0].mxu0
    %v5357 = vadd.f32 0.0, %v5356
    %v5358 = vpop.f32.mrb[0].mxu0
    %5359 = vmatprep.mubr.bf16.mxu0 0
    %5360 = vmatmul.mubr.bf16.gmra.mrb[0].mxu0 %v5157
    %v5361 = vpop.f32.mrb[0].mxu0
    %v5362 = vadd.f32 0.0, %v5361
    %v5363 = vpop.f32.mrb[0].mxu0
    %v5364 = vpop.f32.mrb[0].mxu0
    %v5365 = vadd.f32 0.0, %v5364
    %v5366 = vpop.f32.mrb[0].mxu0
    %5367 = vmatprep.mubr.bf16.mxu0 0
    %5368 = vmatmul.mubr.bf16.gmra.mrb[0].mxu0 %v5160
    %v5369 = vpop.f32.mrb[0].mxu0
    %v5370 = vadd.f32 0.0, %v5369
    %v5371 = vpop.f32.mrb[0].mxu0
    %v5372 = vpop.f32.mrb[0].mxu0
    %v5373 = vadd.f32 0.0, %v5372
    %v5374 = vpop.f32.mrb[0].mxu0
    %5375 = vmatprep.mubr.bf16.mxu0 0
    %5376 = vmatmul.mubr.bf16.gmra.mrb[0].mxu0 %v5163
    %v5377 = vpop.f32.mrb[0].mxu0
    %v5378 = vadd.f32 0.0, %v5377
    %v5379 = vpop.f32.mrb[0].mxu0
    %v5380 = vpop.f32.mrb[0].mxu0
    %v5381 = vadd.f32 0.0, %v5380
    %v5382 = vpop.f32.mrb[0].mxu0
    %5383 = vmatprep.mubr.bf16.mxu0 0
    %5384 = vmatmul.mubr.bf16.gmra.mrb[0].mxu0 %v5166
    %v5385 = vpop.f32.mrb[0].mxu0
    %v5386 = vadd.f32 0.0, %v5385
    %v5387 = vpop.f32.mrb[0].mxu0
    %v5388 = vpop.f32.mrb[0].mxu0
    %v5389 = vadd.f32 0.0, %v5388
    %v5390 = vpop.f32.mrb[0].mxu0
    %5391 = vmatprep.mubr.bf16.mxu0 0
    %5392 = vmatmul.mubr.bf16.gmra.mrb[0].mxu0 %v5169
    %v5393 = vpop.f32.mrb[0].mxu0
    %v5394 = vadd.f32 0.0, %v5393
    %v5395 = vpop.f32.mrb[0].mxu0
    %v5396 = vpop.f32.mrb[0].mxu0
    %v5397 = vadd.f32 0.0, %v5396
    %v5398 = vpop.f32.mrb[0].mxu0
    %5399 = vmatprep.mubr.bf16.mxu0 0
    %5400 = vmatmul.mubr.bf16.gmra.mrb[0].mxu0 %v5172
    %v5401 = vpop.f32.mrb[0].mxu0
    %v5402 = vadd.f32 0.0, %v5401
    %v5403 = vpop.f32.mrb[0].mxu0
    %v5404 = vpop.f32.mrb[0].mxu0
    %v5405 = vadd.f32 0.0, %v5404
    %v5406 = vpop.f32.mrb[0].mxu0
    %5407 = vmatprep.mubr.bf16.mxu0 0
    %5408 = vmatmul.mubr.bf16.gmra.mrb[0].mxu0 %v5175
    %v5409 = vpop.f32.mrb[0].mxu0
    %v5410 = vadd.f32 0.0, %v5409
    %v5411 = vpop.f32.mrb[0].mxu0
    %v5412 = vpop.f32.mrb[0].mxu0
    %v5413 = vadd.f32 0.0, %v5412
    %v5414 = vpop.f32.mrb[0].mxu0
    %5415 = vmatprep.mubr.bf16.mxu0 0
    %5416 = vmatmul.mubr.bf16.gmra.mrb[0].mxu0 %v5178
    %v5417 = vpop.f32.mrb[0].mxu0
    %v5418 = vadd.f32 0.0, %v5417
    %v5419 = vpop.f32.mrb[0].mxu0
    %v5420 = vpop.f32.mrb[0].mxu0
    %v5421 = vadd.f32 0.0, %v5420
    %v5422 = vpop.f32.mrb[0].mxu0
    %5423 = vmatprep.mubr.bf16.mxu0 0
    %5424 = vmatmul.mubr.bf16.gmra.mrb[0].mxu0 %v5181
    %v5425 = vpop.f32.mrb[0].mxu0
    %v5426 = vadd.f32 0.0, %v5425
    %v5427 = vpop.f32.mrb[0].mxu0
    %v5428 = vpop.f32.mrb[0].mxu0
    %v5429 = vadd.f32 0.0, %v5428
    %v5430 = vpop.f32.mrb[0].mxu0
    %5431 = vmatprep.mubr.bf16.mxu0 0
    %5432 = vmatmul.mubr.bf16.gmra.mrb[0].mxu0 %v5184
    %v5433 = vpop.f32.mrb[0].mxu0
    %v5434 = vadd.f32 0.0, %v5433
    %v5435 = vpop.f32.mrb[0].mxu0
    %v5436 = vpop.f32.mrb[0].mxu0
    %v5437 = vadd.f32 0.0, %v5436
    %v5438 = vpop.f32.mrb[0].mxu0
    %5439 = vmatprep.mubr.bf16.mxu0 0
    %5440 = vmatmul.mubr.bf16.gmra.mrb[0].mxu0 %v5187
    %v5441 = vpop.f32.mrb[0].mxu0
    %v5442 = vadd.f32 0.0, %v5441
    %v5443 = vpop.f32.mrb[0].mxu0
    %v5444 = vpop.f32.mrb[0].mxu0
    %v5445 = vadd.f32 0.0, %v5444
    %v5446 = vpop.f32.mrb[0].mxu0
    %5447 = vmatprep.mubr.bf16.mxu0 0
    %5448 = vmatmul.mubr.bf16.gmra.mrb[0].mxu0 %v5190
    %v5449 = vpop.f32.mrb[0].mxu0
    %v5450 = vadd.f32 0.0, %v5449
    %v5451 = vpop.f32.mrb[0].mxu0
    %v5452 = vpop.f32.mrb[0].mxu0
    %v5453 = vadd.f32 0.0, %v5452
    %v5454 = vpop.f32.mrb[0].mxu0
    %5455 = vmatprep.mubr.bf16.mxu0 0
    %5456 = vmatmul.mubr.bf16.gmra.mrb[0].mxu0 %v5193
    %v5457 = vpop.f32.mrb[0].mxu0
    %v5458 = vadd.f32 0.0, %v5457
    %v5459 = vpop.f32.mrb[0].mxu0
    %v5460 = vpop.f32.mrb[0].mxu0
    %v5461 = vadd.f32 0.0, %v5460
    %v5462 = vpop.f32.mrb[0].mxu0
    %5463 = vmatprep.mubr.bf16.mxu0 0
    %5464 = vmatmul.mubr.bf16.gmra.mrb[0].mxu0 %v5196
    %v5465 = vpop.f32.mrb[0].mxu0
    %v5466 = vadd.f32 0.0, %v5465
    %v5467 = vpop.f32.mrb[0].mxu0
    %v5468 = vpop.f32.mrb[0].mxu0
    %v5469 = vadd.f32 0.0, %v5468
    %v5470 = vpop.f32.mrb[0].mxu0
    %5471 = vmatprep.mubr.bf16.mxu0 0
    %5472 = vmatmul.mubr.bf16.gmra.mrb[0].mxu0 %v5199
    %v5473 = vpop.f32.mrb[0].mxu0
    %v5474 = vadd.f32 0.0, %v5473
    %v5475 = vpop.f32.mrb[0].mxu0
    %v5476 = vpop.f32.mrb[0].mxu0
    %v5477 = vadd.f32 0.0, %v5476
    %v5478 = vpop.f32.mrb[0].mxu0
    %5479 = vmatprep.mubr.bf16.mxu0 0
    %5480 = vmatmul.mubr.bf16.gmra.mrb[0].mxu0 %v5202
    %v5481 = vpop.f32.mrb[0].mxu0
    %v5482 = vadd.f32 0.0, %v5481
    %v5483 = vpop.f32.mrb[0].mxu0
    %v5484 = vpop.f32.mrb[0].mxu0
    %v5485 = vadd.f32 0.0, %v5484
    %v5486 = vpop.f32.mrb[0].mxu0
    %5487 = vmatprep.mubr.bf16.mxu0 0
    %5488 = vmatmul.mubr.bf16.gmra.mrb[0].mxu0 %v5205
    %v5489 = vpop.f32.mrb[0].mxu0
    %v5490 = vadd.f32 0.0, %v5489
    %v5491 = vpop.f32.mrb[0].mxu0
    %v5492 = vpop.f32.mrb[0].mxu0
    %v5493 = vadd.f32 0.0, %v5492
    %v5494 = vpop.f32.mrb[0].mxu0
    %5495 = vdwg.mxu0
    %v5496 = vadd.f32 %v4934, %v5242
    %v5497 = vadd.f32 %v4935, %v5245
    %v5498 = vadd.f32 %v4936, %v5250
    %v5499 = vadd.f32 %v4937, %v5253
    %v5500 = vadd.f32 %v4938, %v5258
    %v5501 = vadd.f32 %v4939, %v5261
    %v5502 = vadd.f32 %v4940, %v5266
    %v5503 = vadd.f32 %v4941, %v5269
    %v5504 = vadd.f32 %v4942, %v5274
    %v5505 = vadd.f32 %v4943, %v5277
    %v5506 = vadd.f32 %v4944, %v5282
    %v5507 = vadd.f32 %v4945, %v5285
    %v5508 = vadd.f32 %v4946, %v5290
    %v5509 = vadd.f32 %v4947, %v5293
    %v5510 = vadd.f32 %v4948, %v5298
    %v5511 = vadd.f32 %v4949, %v5301
    %v5512 = vadd.f32 %v4950, %v5306
    %v5513 = vadd.f32 %v4951, %v5309
    %v5514 = vadd.f32 %v4952, %v5314
    %v5515 = vadd.f32 %v4953, %v5317
    %v5516 = vadd.f32 %v4954, %v5322
    %v5517 = vadd.f32 %v4955, %v5325
    %v5518 = vadd.f32 %v4956, %v5330
    %v5519 = vadd.f32 %v4957, %v5333
    %v5520 = vadd.f32 %v4958, %v5338
    %v5521 = vadd.f32 %v4959, %v5341
    %v5522 = vadd.f32 %v4960, %v5346
    %v5523 = vadd.f32 %v4961, %v5349
    %v5524 = vadd.f32 %v4962, %v5354
    %v5525 = vadd.f32 %v4963, %v5357
    %v5526 = vadd.f32 %v4964, %v5362
    %v5527 = vadd.f32 %v4965, %v5365
    %v5528 = vadd.f32 %v4966, %v5370
    %v5529 = vadd.f32 %v4967, %v5373
    %v5530 = vadd.f32 %v4968, %v5378
    %v5531 = vadd.f32 %v4969, %v5381
    %v5532 = vadd.f32 %v4970, %v5386
    %v5533 = vadd.f32 %v4971, %v5389
    %v5534 = vadd.f32 %v4972, %v5394
    %v5535 = vadd.f32 %v4973, %v5397
    %v5536 = vadd.f32 %v4974, %v5402
    %v5537 = vadd.f32 %v4975, %v5405
    %v5538 = vadd.f32 %v4976, %v5410
    %v5539 = vadd.f32 %v4977, %v5413
    %v5540 = vadd.f32 %v4978, %v5418
    %v5541 = vadd.f32 %v4979, %v5421
    %v5542 = vadd.f32 %v4980, %v5426
    %v5543 = vadd.f32 %v4981, %v5429
    %v5544 = vadd.f32 %v4982, %v5434
    %v5545 = vadd.f32 %v4983, %v5437
    %v5546 = vadd.f32 %v4984, %v5442
    %v5547 = vadd.f32 %v4985, %v5445
    %v5548 = vadd.f32 %v4986, %v5450
    %v5549 = vadd.f32 %v4987, %v5453
    %v5550 = vadd.f32 %v4988, %v5458
    %v5551 = vadd.f32 %v4989, %v5461
    %v5552 = vadd.f32 %v4990, %v5466
    %v5553 = vadd.f32 %v4991, %v5469
    %v5554 = vadd.f32 %v4992, %v5474
    %v5555 = vadd.f32 %v4993, %v5477
    %v5556 = vadd.f32 %v4994, %v5482
    %v5557 = vadd.f32 %v4995, %v5485
    %v5558 = vadd.f32 %v4996, %v5490
    %v5559 = vadd.f32 %v4997, %v5493
    %v5560 = vld [vmem:[%s4435 + $0x2] sm:$0xff]
    %v5561 = vld [vmem:[%s4435 + $0xa] sm:$0xff]
    %v5562 = vld [vmem:[%s4435 + $0x1a] sm:$0xff]
    %v5563 = vld [vmem:[%s4435 + $0x22] sm:$0xff]
    %v5564 = vld [vmem:[%s4435 + $0x32] sm:$0xff]
    %v5565 = vld [vmem:[%s4435 + $0x3a] sm:$0xff]
    %v5566 = vld [vmem:[%s4435 + $0x4a] sm:$0xff]
    %v5567 = vld [vmem:[%s4435 + $0x52] sm:$0xff]
    %v5568 = vld [vmem:[%s4435 + $0x62] sm:$0xff]
    %v5569 = vld [vmem:[%s4435 + $0x6a] sm:$0xff]
    %v5570 = vld [vmem:[%s4435 + $0x7a] sm:$0xff]
    %v5571 = vld [vmem:[%s4435 + $0x82] sm:$0xff]
    %v5572 = vld [vmem:[%s4435 + $0x92] sm:$0xff]
    %v5573 = vld [vmem:[%s4435 + $0x9a] sm:$0xff]
    %v5574 = vld [vmem:[%s4435 + $0xaa] sm:$0xff]
    %v5575 = vld [vmem:[%s4435 + $0xb2] sm:$0xff]
    %v5576 = vld [vmem:[%s4435 + $0xc2] sm:$0xff]
    %v5577 = vld [vmem:[%s4435 + $0xca] sm:$0xff]
    %v5578 = vld [vmem:[%s4435 + $0xda] sm:$0xff]
    %v5579 = vld [vmem:[%s4435 + $0xe2] sm:$0xff]
    %v5580 = vld [vmem:[%s4435 + $0xf2] sm:$0xff]
    %v5581 = vld [vmem:[%s4435 + $0xfa] sm:$0xff]
    %v5582 = vld [vmem:[%s4435 + $0x10a] sm:$0xff]
    %v5583 = vld [vmem:[%s4435 + $0x112] sm:$0xff]
    %v5584 = vld [vmem:[%s4435 + $0x122] sm:$0xff]
    %v5585 = vld [vmem:[%s4435 + $0x12a] sm:$0xff]
    %v5586 = vld [vmem:[%s4435 + $0x13a] sm:$0xff]
    %v5587 = vld [vmem:[%s4435 + $0x142] sm:$0xff]
    %v5588 = vld [vmem:[%s4435 + $0x152] sm:$0xff]
    %v5589 = vld [vmem:[%s4435 + $0x15a] sm:$0xff]
    %v5590 = vld [vmem:[%s4435 + $0x16a] sm:$0xff]
    %v5591 = vld [vmem:[%s4435 + $0x172] sm:$0xff]
    %v5592 = vld [vmem:[%s4435 + $0x1b2] sm:$0xff]
    %v5593 = vld [vmem:[%s4435 + $0x1ba] sm:$0xff]
    %v5594 = vld [vmem:[%s4435 + $0x1ca] sm:$0xff]
    %v5595 = vld [vmem:[%s4435 + $0x1d2] sm:$0xff]
    %v5596 = vld [vmem:[%s4435 + $0x1e2] sm:$0xff]
    %v5597 = vld [vmem:[%s4435 + $0x1ea] sm:$0xff]
    %v5598 = vld [vmem:[%s4435 + $0x1fa] sm:$0xff]
    %v5599 = vld [vmem:[%s4435 + $0x202] sm:$0xff]
    %v5600 = vld [vmem:[%s4435 + $0x212] sm:$0xff]
    %v5601 = vld [vmem:[%s4435 + $0x21a] sm:$0xff]
    %v5602 = vld [vmem:[%s4435 + $0x22a] sm:$0xff]
    %v5603 = vld [vmem:[%s4435 + $0x232] sm:$0xff]
    %v5604 = vld [vmem:[%s4435 + $0x242] sm:$0xff]
    %v5605 = vld [vmem:[%s4435 + $0x24a] sm:$0xff]
    %v5606 = vld [vmem:[%s4435 + $0x25a] sm:$0xff]
    %v5607 = vld [vmem:[%s4435 + $0x262] sm:$0xff]
    %v5608 = vld [vmem:[%s4435 + $0x272] sm:$0xff]
    %v5609 = vld [vmem:[%s4435 + $0x27a] sm:$0xff]
    %v5610 = vld [vmem:[%s4435 + $0x28a] sm:$0xff]
    %v5611 = vld [vmem:[%s4435 + $0x292] sm:$0xff]
    %v5612 = vld [vmem:[%s4435 + $0x2a2] sm:$0xff]
    %v5613 = vld [vmem:[%s4435 + $0x2aa] sm:$0xff]
    %v5614 = vld [vmem:[%s4435 + $0x2ba] sm:$0xff]
    %v5615 = vld [vmem:[%s4435 + $0x2c2] sm:$0xff]
    %v5616 = vld [vmem:[%s4435 + $0x2d2] sm:$0xff]
    %v5617 = vld [vmem:[%s4435 + $0x2da] sm:$0xff]
    %v5618 = vld [vmem:[%s4435 + $0x2ea] sm:$0xff]
    %v5619 = vld [vmem:[%s4435 + $0x2f2] sm:$0xff]
    %v5620 = vld [vmem:[%s4435 + $0x302] sm:$0xff]
    %v5621 = vld [vmem:[%s4435 + $0x30a] sm:$0xff]
    %v5622 = vld [vmem:[%s4435 + $0x31a] sm:$0xff]
    %v5623 = vld [vmem:[%s4435 + $0x322] sm:$0xff]
    %v5624 = vpack.c.bf16 %v5561, %v5560
    %v5625 = vpack.c.bf16 %v5563, %v5562
    %v5626 = vpack.c.bf16 %v5565, %v5564
    %v5627 = vpack.c.bf16 %v5567, %v5566
    %v5628 = vpack.c.bf16 %v5569, %v5568
    %v5629 = vpack.c.bf16 %v5571, %v5570
    %v5630 = vpack.c.bf16 %v5573, %v5572
    %v5631 = vpack.c.bf16 %v5575, %v5574
    %v5632 = vpack.c.bf16 %v5577, %v5576
    %v5633 = vpack.c.bf16 %v5579, %v5578
    %v5634 = vpack.c.bf16 %v5581, %v5580
    %v5635 = vpack.c.bf16 %v5583, %v5582
    %v5636 = vpack.c.bf16 %v5585, %v5584
    %v5637 = vpack.c.bf16 %v5587, %v5586
    %v5638 = vpack.c.bf16 %v5589, %v5588
    %v5639 = vpack.c.bf16 %v5591, %v5590
    %v5640 = vpack.c.bf16 %v5593, %v5592
    %v5641 = vpack.c.bf16 %v5595, %v5594
    %v5642 = vpack.c.bf16 %v5597, %v5596
    %v5643 = vpack.c.bf16 %v5599, %v5598
    %v5644 = vpack.c.bf16 %v5601, %v5600
    %v5645 = vpack.c.bf16 %v5603, %v5602
    %v5646 = vpack.c.bf16 %v5605, %v5604
    %v5647 = vpack.c.bf16 %v5607, %v5606
    %v5648 = vpack.c.bf16 %v5609, %v5608
    %v5649 = vpack.c.bf16 %v5611, %v5610
    %v5650 = vpack.c.bf16 %v5613, %v5612
    %v5651 = vpack.c.bf16 %v5615, %v5614
    %v5652 = vpack.c.bf16 %v5617, %v5616
    %v5653 = vpack.c.bf16 %v5619, %v5618
    %v5654 = vpack.c.bf16 %v5621, %v5620
    %v5655 = vpack.c.bf16 %v5623, %v5622
    %s5656 = scalar_lea.vmem [#allocation6], 128
    %v5657 = vld [vmem:[%s5656] sm:$0xf]
    %v5658 = vld [vmem:[%s5656 + $0x4] sm:$0xf]
    %v5659 = vld [vmem:[%s5656 + $0x8] sm:$0xf]
    %v5660 = vld [vmem:[%s5656 + $0xc] sm:$0xf]
    %v5665 = vunpack.c.l.b16 %v5657
    %v5666 = vunpack.c.l.b16 %v5658
    %v5667 = vunpack.c.l.b16 %v5659
    %v5668 = vunpack.c.l.b16 %v5660
    %v5669 = vpack.c.b16 %v5666, %v5665
    %v5670 = vpack.c.b16 %v5668, %v5667
    %v5674 = vsel %vm507, %v5624, 0
    %v5677 = vsel %vm507, %v5625, 0
    %v5680 = vsel %vm507, %v5626, 0
    %v5683 = vsel %vm507, %v5627, 0
    %v5686 = vsel %vm507, %v5628, 0
    %v5689 = vsel %vm507, %v5629, 0
    %v5692 = vsel %vm507, %v5630, 0
    %v5695 = vsel %vm507, %v5631, 0
    %v5698 = vsel %vm507, %v5632, 0
    %v5701 = vsel %vm507, %v5633, 0
    %v5704 = vsel %vm507, %v5634, 0
    %v5707 = vsel %vm507, %v5635, 0
    %v5710 = vsel %vm507, %v5636, 0
    %v5713 = vsel %vm507, %v5637, 0
    %v5716 = vsel %vm507, %v5638, 0
    %v5719 = vsel %vm507, %v5639, 0
    %v5722 = vsel %vm507, %v5640, 0
    %v5725 = vsel %vm507, %v5641, 0
    %v5728 = vsel %vm507, %v5642, 0
    %v5731 = vsel %vm507, %v5643, 0
    %v5734 = vsel %vm507, %v5644, 0
    %v5737 = vsel %vm507, %v5645, 0
    %v5740 = vsel %vm507, %v5646, 0
    %v5743 = vsel %vm507, %v5647, 0
    %v5746 = vsel %vm507, %v5648, 0
    %v5749 = vsel %vm507, %v5649, 0
    %v5752 = vsel %vm507, %v5650, 0
    %v5755 = vsel %vm507, %v5651, 0
    %v5758 = vsel %vm507, %v5652, 0
    %v5761 = vsel %vm507, %v5653, 0
    %v5764 = vsel %vm507, %v5654, 0
    %v5767 = vsel %vm507, %v5655, 0
    %5769 = vmatprep.subr.bf16.mxu0 0
    %5770 = vmatpush1.bf16.msra.mxu0 %v5669
    %5771 = vmatprep.subr.bf16.mxu0 0
    %5772 = vmatpush1.bf16.msra.mxu0 %v5670
    %5773 = vmatprep.subr.bf16.mxu0 0
    %5774 = vmatpush1.bf16.msra.mxu0 0
    %5775 = vmatprep.subr.bf16.mxu0 0
    %5776 = vmatpush1.bf16.msra.mxu0 0
    %5777 = vmatprep.subr.bf16.mxu0 0
    %5778 = vmatpush1.bf16.msra.mxu0 0
    %5779 = vmatprep.subr.bf16.mxu0 0
    %5780 = vmatpush1.bf16.msra.mxu0 0
    %5781 = vmatprep.subr.bf16.mxu0 0
    %5782 = vmatpush1.bf16.msra.mxu0 0
    %5783 = vmatprep.subr.bf16.mxu0 0
    %5784 = vmatpush1.bf16.msra.mxu0 0
    %5785 = vmatprep.subr.bf16.mxu0 0
    %5786 = vmatpush1.bf16.msra.mxu0 0
    %5787 = vmatprep.subr.bf16.mxu0 0
    %5788 = vmatpush1.bf16.msra.mxu0 0
    %5789 = vmatprep.subr.bf16.mxu0 0
    %5790 = vmatpush1.bf16.msra.mxu0 0
    %5791 = vmatprep.subr.bf16.mxu0 0
    %5792 = vmatpush1.bf16.msra.mxu0 0
    %5793 = vmatprep.subr.bf16.mxu0 0
    %5794 = vmatpush1.bf16.msra.mxu0 0
    %5795 = vmatprep.subr.bf16.mxu0 0
    %5796 = vmatpush1.bf16.msra.mxu0 0
    %5797 = vmatprep.subr.bf16.mxu0 0
    %5798 = vmatpush1.bf16.msra.mxu0 0
    %5799 = vmatprep.subr.bf16.mxu0 0
    %5800 = vmatpush1.bf16.msra.mxu0 0
    %5801 = vmatprep.mubr.bf16.mxu0 0
    %5802 = vmatmul.mubr.bf16.gmra.mrb[0].mxu0 %v5674
    %v5803 = vpop.f32.mrb[0].mxu0
    %v5804 = vadd.f32 0.0, %v5803
    %v5805 = vpop.f32.mrb[0].mxu0
    %v5806 = vpop.f32.mrb[0].mxu0
    %v5807 = vadd.f32 0.0, %v5806
    %v5808 = vpop.f32.mrb[0].mxu0
    %5809 = vmatprep.mubr.bf16.mxu0 0
    %5810 = vmatmul.mubr.bf16.gmra.mrb[0].mxu0 %v5677
    %v5811 = vpop.f32.mrb[0].mxu0
    %v5812 = vadd.f32 0.0, %v5811
    %v5813 = vpop.f32.mrb[0].mxu0
    %v5814 = vpop.f32.mrb[0].mxu0
    %v5815 = vadd.f32 0.0, %v5814
    %v5816 = vpop.f32.mrb[0].mxu0
    %5817 = vmatprep.mubr.bf16.mxu0 0
    %5818 = vmatmul.mubr.bf16.gmra.mrb[0].mxu0 %v5680
    %v5819 = vpop.f32.mrb[0].mxu0
    %v5820 = vadd.f32 0.0, %v5819
    %v5821 = vpop.f32.mrb[0].mxu0
    %v5822 = vpop.f32.mrb[0].mxu0
    %v5823 = vadd.f32 0.0, %v5822
    %v5824 = vpop.f32.mrb[0].mxu0
    %5825 = vmatprep.mubr.bf16.mxu0 0
    %5826 = vmatmul.mubr.bf16.gmra.mrb[0].mxu0 %v5683
    %v5827 = vpop.f32.mrb[0].mxu0
    %v5828 = vadd.f32 0.0, %v5827
    %v5829 = vpop.f32.mrb[0].mxu0
    %v5830 = vpop.f32.mrb[0].mxu0
    %v5831 = vadd.f32 0.0, %v5830
    %v5832 = vpop.f32.mrb[0].mxu0
    %5833 = vmatprep.mubr.bf16.mxu0 0
    %5834 = vmatmul.mubr.bf16.gmra.mrb[0].mxu0 %v5686
    %v5835 = vpop.f32.mrb[0].mxu0
    %v5836 = vadd.f32 0.0, %v5835
    %v5837 = vpop.f32.mrb[0].mxu0
    %v5838 = vpop.f32.mrb[0].mxu0
    %v5839 = vadd.f32 0.0, %v5838
    %v5840 = vpop.f32.mrb[0].mxu0
    %5841 = vmatprep.mubr.bf16.mxu0 0
    %5842 = vmatmul.mubr.bf16.gmra.mrb[0].mxu0 %v5689
    %v5843 = vpop.f32.mrb[0].mxu0
    %v5844 = vadd.f32 0.0, %v5843
    %v5845 = vpop.f32.mrb[0].mxu0
    %v5846 = vpop.f32.mrb[0].mxu0
    %v5847 = vadd.f32 0.0, %v5846
    %v5848 = vpop.f32.mrb[0].mxu0
    %5849 = vmatprep.mubr.bf16.mxu0 0
    %5850 = vmatmul.mubr.bf16.gmra.mrb[0].mxu0 %v5692
    %v5851 = vpop.f32.mrb[0].mxu0
    %v5852 = vadd.f32 0.0, %v5851
    %v5853 = vpop.f32.mrb[0].mxu0
    %v5854 = vpop.f32.mrb[0].mxu0
    %v5855 = vadd.f32 0.0, %v5854
    %v5856 = vpop.f32.mrb[0].mxu0
    %5857 = vmatprep.mubr.bf16.mxu0 0
    %5858 = vmatmul.mubr.bf16.gmra.mrb[0].mxu0 %v5695
    %v5859 = vpop.f32.mrb[0].mxu0
    %v5860 = vadd.f32 0.0, %v5859
    %v5861 = vpop.f32.mrb[0].mxu0
    %v5862 = vpop.f32.mrb[0].mxu0
    %v5863 = vadd.f32 0.0, %v5862
    %v5864 = vpop.f32.mrb[0].mxu0
    %5865 = vmatprep.mubr.bf16.mxu0 0
    %5866 = vmatmul.mubr.bf16.gmra.mrb[0].mxu0 %v5698
    %v5867 = vpop.f32.mrb[0].mxu0
    %v5868 = vadd.f32 0.0, %v5867
    %v5869 = vpop.f32.mrb[0].mxu0
    %v5870 = vpop.f32.mrb[0].mxu0
    %v5871 = vadd.f32 0.0, %v5870
    %v5872 = vpop.f32.mrb[0].mxu0
    %5873 = vmatprep.mubr.bf16.mxu0 0
    %5874 = vmatmul.mubr.bf16.gmra.mrb[0].mxu0 %v5701
    %v5875 = vpop.f32.mrb[0].mxu0
    %v5876 = vadd.f32 0.0, %v5875
    %v5877 = vpop.f32.mrb[0].mxu0
    %v5878 = vpop.f32.mrb[0].mxu0
    %v5879 = vadd.f32 0.0, %v5878
    %v5880 = vpop.f32.mrb[0].mxu0
    %5881 = vmatprep.mubr.bf16.mxu0 0
    %5882 = vmatmul.mubr.bf16.gmra.mrb[0].mxu0 %v5704
    %v5883 = vpop.f32.mrb[0].mxu0
    %v5884 = vadd.f32 0.0, %v5883
    %v5885 = vpop.f32.mrb[0].mxu0
    %v5886 = vpop.f32.mrb[0].mxu0
    %v5887 = vadd.f32 0.0, %v5886
    %v5888 = vpop.f32.mrb[0].mxu0
    %5889 = vmatprep.mubr.bf16.mxu0 0
    %5890 = vmatmul.mubr.bf16.gmra.mrb[0].mxu0 %v5707
    %v5891 = vpop.f32.mrb[0].mxu0
    %v5892 = vadd.f32 0.0, %v5891
    %v5893 = vpop.f32.mrb[0].mxu0
    %v5894 = vpop.f32.mrb[0].mxu0
    %v5895 = vadd.f32 0.0, %v5894
    %v5896 = vpop.f32.mrb[0].mxu0
    %5897 = vmatprep.mubr.bf16.mxu0 0
    %5898 = vmatmul.mubr.bf16.gmra.mrb[0].mxu0 %v5710
    %v5899 = vpop.f32.mrb[0].mxu0
    %v5900 = vadd.f32 0.0, %v5899
    %v5901 = vpop.f32.mrb[0].mxu0
    %v5902 = vpop.f32.mrb[0].mxu0
    %v5903 = vadd.f32 0.0, %v5902
    %v5904 = vpop.f32.mrb[0].mxu0
    %5905 = vmatprep.mubr.bf16.mxu0 0
    %5906 = vmatmul.mubr.bf16.gmra.mrb[0].mxu0 %v5713
    %v5907 = vpop.f32.mrb[0].mxu0
    %v5908 = vadd.f32 0.0, %v5907
    %v5909 = vpop.f32.mrb[0].mxu0
    %v5910 = vpop.f32.mrb[0].mxu0
    %v5911 = vadd.f32 0.0, %v5910
    %v5912 = vpop.f32.mrb[0].mxu0
    %5913 = vmatprep.mubr.bf16.mxu0 0
    %5914 = vmatmul.mubr.bf16.gmra.mrb[0].mxu0 %v5716
    %v5915 = vpop.f32.mrb[0].mxu0
    %v5916 = vadd.f32 0.0, %v5915
    %v5917 = vpop.f32.mrb[0].mxu0
    %v5918 = vpop.f32.mrb[0].mxu0
    %v5919 = vadd.f32 0.0, %v5918
    %v5920 = vpop.f32.mrb[0].mxu0
    %5921 = vmatprep.mubr.bf16.mxu0 0
    %5922 = vmatmul.mubr.bf16.gmra.mrb[0].mxu0 %v5719
    %v5923 = vpop.f32.mrb[0].mxu0
    %v5924 = vadd.f32 0.0, %v5923
    %v5925 = vpop.f32.mrb[0].mxu0
    %v5926 = vpop.f32.mrb[0].mxu0
    %v5927 = vadd.f32 0.0, %v5926
    %v5928 = vpop.f32.mrb[0].mxu0
    %5929 = vmatprep.mubr.bf16.mxu0 0
    %5930 = vmatmul.mubr.bf16.gmra.mrb[0].mxu0 %v5722
    %v5931 = vpop.f32.mrb[0].mxu0
    %v5932 = vadd.f32 0.0, %v5931
    %v5933 = vpop.f32.mrb[0].mxu0
    %v5934 = vpop.f32.mrb[0].mxu0
    %v5935 = vadd.f32 0.0, %v5934
    %v5936 = vpop.f32.mrb[0].mxu0
    %5937 = vmatprep.mubr.bf16.mxu0 0
    %5938 = vmatmul.mubr.bf16.gmra.mrb[0].mxu0 %v5725
    %v5939 = vpop.f32.mrb[0].mxu0
    %v5940 = vadd.f32 0.0, %v5939
    %v5941 = vpop.f32.mrb[0].mxu0
    %v5942 = vpop.f32.mrb[0].mxu0
    %v5943 = vadd.f32 0.0, %v5942
    %v5944 = vpop.f32.mrb[0].mxu0
    %5945 = vmatprep.mubr.bf16.mxu0 0
    %5946 = vmatmul.mubr.bf16.gmra.mrb[0].mxu0 %v5728
    %v5947 = vpop.f32.mrb[0].mxu0
    %v5948 = vadd.f32 0.0, %v5947
    %v5949 = vpop.f32.mrb[0].mxu0
    %v5950 = vpop.f32.mrb[0].mxu0
    %v5951 = vadd.f32 0.0, %v5950
    %v5952 = vpop.f32.mrb[0].mxu0
    %5953 = vmatprep.mubr.bf16.mxu0 0
    %5954 = vmatmul.mubr.bf16.gmra.mrb[0].mxu0 %v5731
    %v5955 = vpop.f32.mrb[0].mxu0
    %v5956 = vadd.f32 0.0, %v5955
    %v5957 = vpop.f32.mrb[0].mxu0
    %v5958 = vpop.f32.mrb[0].mxu0
    %v5959 = vadd.f32 0.0, %v5958
    %v5960 = vpop.f32.mrb[0].mxu0
    %5961 = vmatprep.mubr.bf16.mxu0 0
    %5962 = vmatmul.mubr.bf16.gmra.mrb[0].mxu0 %v5734
    %v5963 = vpop.f32.mrb[0].mxu0
    %v5964 = vadd.f32 0.0, %v5963
    %v5965 = vpop.f32.mrb[0].mxu0
    %v5966 = vpop.f32.mrb[0].mxu0
    %v5967 = vadd.f32 0.0, %v5966
    %v5968 = vpop.f32.mrb[0].mxu0
    %5969 = vmatprep.mubr.bf16.mxu0 0
    %5970 = vmatmul.mubr.bf16.gmra.mrb[0].mxu0 %v5737
    %v5971 = vpop.f32.mrb[0].mxu0
    %v5972 = vadd.f32 0.0, %v5971
    %v5973 = vpop.f32.mrb[0].mxu0
    %v5974 = vpop.f32.mrb[0].mxu0
    %v5975 = vadd.f32 0.0, %v5974
    %v5976 = vpop.f32.mrb[0].mxu0
    %5977 = vmatprep.mubr.bf16.mxu0 0
    %5978 = vmatmul.mubr.bf16.gmra.mrb[0].mxu0 %v5740
    %v5979 = vpop.f32.mrb[0].mxu0
    %v5980 = vadd.f32 0.0, %v5979
    %v5981 = vpop.f32.mrb[0].mxu0
    %v5982 = vpop.f32.mrb[0].mxu0
    %v5983 = vadd.f32 0.0, %v5982
    %v5984 = vpop.f32.mrb[0].mxu0
    %5985 = vmatprep.mubr.bf16.mxu0 0
    %5986 = vmatmul.mubr.bf16.gmra.mrb[0].mxu0 %v5743
    %v5987 = vpop.f32.mrb[0].mxu0
    %v5988 = vadd.f32 0.0, %v5987
    %v5989 = vpop.f32.mrb[0].mxu0
    %v5990 = vpop.f32.mrb[0].mxu0
    %v5991 = vadd.f32 0.0, %v5990
    %v5992 = vpop.f32.mrb[0].mxu0
    %5993 = vmatprep.mubr.bf16.mxu0 0
    %5994 = vmatmul.mubr.bf16.gmra.mrb[0].mxu0 %v5746
    %v5995 = vpop.f32.mrb[0].mxu0
    %v5996 = vadd.f32 0.0, %v5995
    %v5997 = vpop.f32.mrb[0].mxu0
    %v5998 = vpop.f32.mrb[0].mxu0
    %v5999 = vadd.f32 0.0, %v5998
    %v6000 = vpop.f32.mrb[0].mxu0
    %6001 = vmatprep.mubr.bf16.mxu0 0
    %6002 = vmatmul.mubr.bf16.gmra.mrb[0].mxu0 %v5749
    %v6003 = vpop.f32.mrb[0].mxu0
    %v6004 = vadd.f32 0.0, %v6003
    %v6005 = vpop.f32.mrb[0].mxu0
    %v6006 = vpop.f32.mrb[0].mxu0
    %v6007 = vadd.f32 0.0, %v6006
    %v6008 = vpop.f32.mrb[0].mxu0
    %6009 = vmatprep.mubr.bf16.mxu0 0
    %6010 = vmatmul.mubr.bf16.gmra.mrb[0].mxu0 %v5752
    %v6011 = vpop.f32.mrb[0].mxu0
    %v6012 = vadd.f32 0.0, %v6011
    %v6013 = vpop.f32.mrb[0].mxu0
    %v6014 = vpop.f32.mrb[0].mxu0
    %v6015 = vadd.f32 0.0, %v6014
    %v6016 = vpop.f32.mrb[0].mxu0
    %6017 = vmatprep.mubr.bf16.mxu0 0
    %6018 = vmatmul.mubr.bf16.gmra.mrb[0].mxu0 %v5755
    %v6019 = vpop.f32.mrb[0].mxu0
    %v6020 = vadd.f32 0.0, %v6019
    %v6021 = vpop.f32.mrb[0].mxu0
    %v6022 = vpop.f32.mrb[0].mxu0
    %v6023 = vadd.f32 0.0, %v6022
    %v6024 = vpop.f32.mrb[0].mxu0
    %6025 = vmatprep.mubr.bf16.mxu0 0
    %6026 = vmatmul.mubr.bf16.gmra.mrb[0].mxu0 %v5758
    %v6027 = vpop.f32.mrb[0].mxu0
    %v6028 = vadd.f32 0.0, %v6027
    %v6029 = vpop.f32.mrb[0].mxu0
    %v6030 = vpop.f32.mrb[0].mxu0
    %v6031 = vadd.f32 0.0, %v6030
    %v6032 = vpop.f32.mrb[0].mxu0
    %6033 = vmatprep.mubr.bf16.mxu0 0
    %6034 = vmatmul.mubr.bf16.gmra.mrb[0].mxu0 %v5761
    %v6035 = vpop.f32.mrb[0].mxu0
    %v6036 = vadd.f32 0.0, %v6035
    %v6037 = vpop.f32.mrb[0].mxu0
    %v6038 = vpop.f32.mrb[0].mxu0
    %v6039 = vadd.f32 0.0, %v6038
    %v6040 = vpop.f32.mrb[0].mxu0
    %6041 = vmatprep.mubr.bf16.mxu0 0
    %6042 = vmatmul.mubr.bf16.gmra.mrb[0].mxu0 %v5764
    %v6043 = vpop.f32.mrb[0].mxu0
    %v6044 = vadd.f32 0.0, %v6043
    %v6045 = vpop.f32.mrb[0].mxu0
    %v6046 = vpop.f32.mrb[0].mxu0
    %v6047 = vadd.f32 0.0, %v6046
    %v6048 = vpop.f32.mrb[0].mxu0
    %6049 = vmatprep.mubr.bf16.mxu0 0
    %6050 = vmatmul.mubr.bf16.gmra.mrb[0].mxu0 %v5767
    %v6051 = vpop.f32.mrb[0].mxu0
    %v6052 = vadd.f32 0.0, %v6051
    %v6053 = vpop.f32.mrb[0].mxu0
    %v6054 = vpop.f32.mrb[0].mxu0
    %v6055 = vadd.f32 0.0, %v6054
    %v6056 = vpop.f32.mrb[0].mxu0
    %6057 = vdwg.mxu0
    %v6058 = vadd.f32 %v5496, %v5804
    %v6059 = vadd.f32 %v5497, %v5807
    %v6060 = vadd.f32 %v5498, %v5812
    %v6061 = vadd.f32 %v5499, %v5815
    %v6062 = vadd.f32 %v5500, %v5820
    %v6063 = vadd.f32 %v5501, %v5823
    %v6064 = vadd.f32 %v5502, %v5828
    %v6065 = vadd.f32 %v5503, %v5831
    %v6066 = vadd.f32 %v5504, %v5836
    %v6067 = vadd.f32 %v5505, %v5839
    %v6068 = vadd.f32 %v5506, %v5844
    %v6069 = vadd.f32 %v5507, %v5847
    %v6070 = vadd.f32 %v5508, %v5852
    %v6071 = vadd.f32 %v5509, %v5855
    %v6072 = vadd.f32 %v5510, %v5860
    %v6073 = vadd.f32 %v5511, %v5863
    %v6074 = vadd.f32 %v5512, %v5868
    %v6075 = vadd.f32 %v5513, %v5871
    %v6076 = vadd.f32 %v5514, %v5876
    %v6077 = vadd.f32 %v5515, %v5879
    %v6078 = vadd.f32 %v5516, %v5884
    %v6079 = vadd.f32 %v5517, %v5887
    %v6080 = vadd.f32 %v5518, %v5892
    %v6081 = vadd.f32 %v5519, %v5895
    %v6082 = vadd.f32 %v5520, %v5900
    %v6083 = vadd.f32 %v5521, %v5903
    %v6084 = vadd.f32 %v5522, %v5908
    %v6085 = vadd.f32 %v5523, %v5911
    %v6086 = vadd.f32 %v5524, %v5916
    %v6087 = vadd.f32 %v5525, %v5919
    %v6088 = vadd.f32 %v5526, %v5924
    %v6089 = vadd.f32 %v5527, %v5927
    %v6090 = vadd.f32 %v5528, %v5932
    %v6091 = vadd.f32 %v5529, %v5935
    %v6092 = vadd.f32 %v5530, %v5940
    %v6093 = vadd.f32 %v5531, %v5943
    %v6094 = vadd.f32 %v5532, %v5948
    %v6095 = vadd.f32 %v5533, %v5951
    %v6096 = vadd.f32 %v5534, %v5956
    %v6097 = vadd.f32 %v5535, %v5959
    %v6098 = vadd.f32 %v5536, %v5964
    %v6099 = vadd.f32 %v5537, %v5967
    %v6100 = vadd.f32 %v5538, %v5972
    %v6101 = vadd.f32 %v5539, %v5975
    %v6102 = vadd.f32 %v5540, %v5980
    %v6103 = vadd.f32 %v5541, %v5983
    %v6104 = vadd.f32 %v5542, %v5988
    %v6105 = vadd.f32 %v5543, %v5991
    %v6106 = vadd.f32 %v5544, %v5996
    %v6107 = vadd.f32 %v5545, %v5999
    %v6108 = vadd.f32 %v5546, %v6004
    %v6109 = vadd.f32 %v5547, %v6007
    %v6110 = vadd.f32 %v5548, %v6012
    %v6111 = vadd.f32 %v5549, %v6015
    %v6112 = vadd.f32 %v5550, %v6020
    %v6113 = vadd.f32 %v5551, %v6023
    %v6114 = vadd.f32 %v5552, %v6028
    %v6115 = vadd.f32 %v5553, %v6031
    %v6116 = vadd.f32 %v5554, %v6036
    %v6117 = vadd.f32 %v5555, %v6039
    %v6118 = vadd.f32 %v5556, %v6044
    %v6119 = vadd.f32 %v5557, %v6047
    %v6120 = vadd.f32 %v5558, %v6052
    %v6121 = vadd.f32 %v5559, %v6055
    %v6122 = vld [vmem:[%s5] sm:$0x1]
    %v6123 = vld [vmem:[%s5 + $0x1] sm:$0x1]
    %v6124 = vsel %vm507, %v6058, 0.0
    %v6125 = vsel %vm507, %v6059, 0.0
    %v6126 = vadd.f32 %v6124, %v6125
    %v6127 = vsel %vm507, %v6060, 0.0
    %v6128 = vadd.f32 %v6126, %v6127
    %v6129 = vsel %vm507, %v6061, 0.0
    %v6130 = vadd.f32 %v6128, %v6129
    %v6131 = vsel %vm507, %v6062, 0.0
    %v6132 = vadd.f32 %v6130, %v6131
    %v6133 = vsel %vm507, %v6063, 0.0
    %v6134 = vadd.f32 %v6132, %v6133
    %v6135 = vsel %vm507, %v6064, 0.0
    %v6136 = vadd.f32 %v6134, %v6135
    %v6137 = vsel %vm507, %v6065, 0.0
    %v6138 = vadd.f32 %v6136, %v6137
    %v6139 = vsel %vm507, %v6066, 0.0
    %v6140 = vadd.f32 %v6138, %v6139
    %v6141 = vsel %vm507, %v6067, 0.0
    %v6142 = vadd.f32 %v6140, %v6141
    %v6143 = vsel %vm507, %v6068, 0.0
    %v6144 = vadd.f32 %v6142, %v6143
    %v6145 = vsel %vm507, %v6069, 0.0
    %v6146 = vadd.f32 %v6144, %v6145
    %v6147 = vsel %vm507, %v6070, 0.0
    %v6148 = vadd.f32 %v6146, %v6147
    %v6149 = vsel %vm507, %v6071, 0.0
    %v6150 = vadd.f32 %v6148, %v6149
    %v6151 = vsel %vm507, %v6072, 0.0
    %v6152 = vadd.f32 %v6150, %v6151
    %v6153 = vsel %vm507, %v6073, 0.0
    %v6154 = vadd.f32 %v6152, %v6153
    %v6155 = vsel %vm507, %v6074, 0.0
    %v6156 = vadd.f32 %v6154, %v6155
    %v6157 = vsel %vm507, %v6075, 0.0
    %v6158 = vadd.f32 %v6156, %v6157
    %v6159 = vsel %vm507, %v6076, 0.0
    %v6160 = vadd.f32 %v6158, %v6159
    %v6161 = vsel %vm507, %v6077, 0.0
    %v6162 = vadd.f32 %v6160, %v6161
    %v6163 = vsel %vm507, %v6078, 0.0
    %v6164 = vadd.f32 %v6162, %v6163
    %v6165 = vsel %vm507, %v6079, 0.0
    %v6166 = vadd.f32 %v6164, %v6165
    %v6167 = vsel %vm507, %v6080, 0.0
    %v6168 = vadd.f32 %v6166, %v6167
    %v6169 = vsel %vm507, %v6081, 0.0
    %v6170 = vadd.f32 %v6168, %v6169
    %v6171 = vsel %vm507, %v6082, 0.0
    %v6172 = vadd.f32 %v6170, %v6171
    %v6173 = vsel %vm507, %v6083, 0.0
    %v6174 = vadd.f32 %v6172, %v6173
    %v6175 = vsel %vm507, %v6084, 0.0
    %v6176 = vadd.f32 %v6174, %v6175
    %v6177 = vsel %vm507, %v6085, 0.0
    %v6178 = vadd.f32 %v6176, %v6177
    %v6179 = vsel %vm507, %v6086, 0.0
    %v6180 = vadd.f32 %v6178, %v6179
    %v6181 = vsel %vm507, %v6087, 0.0
    %v6182 = vadd.f32 %v6180, %v6181
    %v6183 = vsel %vm507, %v6088, 0.0
    %v6184 = vadd.f32 %v6182, %v6183
    %v6185 = vsel %vm507, %v6089, 0.0
    %v6186 = vadd.f32 %v6184, %v6185
    %v6187 = vsel %vm507, %v6090, 0.0
    %v6188 = vadd.f32 %v6186, %v6187
    %v6189 = vsel %vm507, %v6091, 0.0
    %v6190 = vadd.f32 %v6188, %v6189
    %v6191 = vsel %vm507, %v6092, 0.0
    %v6192 = vadd.f32 %v6190, %v6191
    %v6193 = vsel %vm507, %v6093, 0.0
    %v6194 = vadd.f32 %v6192, %v6193
    %v6195 = vsel %vm507, %v6094, 0.0
    %v6196 = vadd.f32 %v6194, %v6195
    %v6197 = vsel %vm507, %v6095, 0.0
    %v6198 = vadd.f32 %v6196, %v6197
    %v6199 = vsel %vm507, %v6096, 0.0
    %v6200 = vadd.f32 %v6198, %v6199
    %v6201 = vsel %vm507, %v6097, 0.0
    %v6202 = vadd.f32 %v6200, %v6201
    %v6203 = vsel %vm507, %v6098, 0.0
    %v6204 = vadd.f32 %v6202, %v6203
    %v6205 = vsel %vm507, %v6099, 0.0
    %v6206 = vadd.f32 %v6204, %v6205
    %v6207 = vsel %vm507, %v6100, 0.0
    %v6208 = vadd.f32 %v6206, %v6207
    %v6209 = vsel %vm507, %v6101, 0.0
    %v6210 = vadd.f32 %v6208, %v6209
    %v6211 = vsel %vm507, %v6102, 0.0
    %v6212 = vadd.f32 %v6210, %v6211
    %v6213 = vsel %vm507, %v6103, 0.0
    %v6214 = vadd.f32 %v6212, %v6213
    %v6215 = vsel %vm507, %v6104, 0.0
    %v6216 = vadd.f32 %v6214, %v6215
    %v6217 = vsel %vm507, %v6105, 0.0
    %v6218 = vadd.f32 %v6216, %v6217
    %v6219 = vsel %vm507, %v6106, 0.0
    %v6220 = vadd.f32 %v6218, %v6219
    %v6221 = vsel %vm507, %v6107, 0.0
    %v6222 = vadd.f32 %v6220, %v6221
    %v6223 = vsel %vm507, %v6108, 0.0
    %v6224 = vadd.f32 %v6222, %v6223
    %v6225 = vsel %vm507, %v6109, 0.0
    %v6226 = vadd.f32 %v6224, %v6225
    %v6227 = vsel %vm507, %v6110, 0.0
    %v6228 = vadd.f32 %v6226, %v6227
    %v6229 = vsel %vm507, %v6111, 0.0
    %v6230 = vadd.f32 %v6228, %v6229
    %v6231 = vsel %vm507, %v6112, 0.0
    %v6232 = vadd.f32 %v6230, %v6231
    %v6233 = vsel %vm507, %v6113, 0.0
    %v6234 = vadd.f32 %v6232, %v6233
    %v6235 = vsel %vm507, %v6114, 0.0
    %v6236 = vadd.f32 %v6234, %v6235
    %v6237 = vsel %vm507, %v6115, 0.0
    %v6238 = vadd.f32 %v6236, %v6237
    %v6239 = vsel %vm507, %v6116, 0.0
    %v6240 = vadd.f32 %v6238, %v6239
    %v6241 = vsel %vm507, %v6117, 0.0
    %v6242 = vadd.f32 %v6240, %v6241
    %v6243 = vsel %vm507, %v6118, 0.0
    %v6244 = vadd.f32 %v6242, %v6243
    %v6245 = vsel %vm507, %v6119, 0.0
    %v6246 = vadd.f32 %v6244, %v6245
    %v6247 = vsel %vm507, %v6120, 0.0
    %v6248 = vadd.f32 %v6246, %v6247
    %v6249 = vsel %vm507, %v6121, 0.0
    %v6250 = vadd.f32 %v6248, %v6249
    %v6251 = vrot.slane %v6250, 4
    %v6252 = vadd.f32 %v6250, %v6251
    %v6253 = vrot.slane %v6252, 2
    %v6254 = vadd.f32 %v6252, %v6253
    %v6255 = vrot.slane %v6254, 1
    %v6256 = vadd.f32 %v6254, %v6255
    %v6257 = vmul.f32 %v6058, %v6058
    %v6258 = vmul.f32 %v6059, %v6059
    %v6259 = vmul.f32 %v6060, %v6060
    %v6260 = vmul.f32 %v6061, %v6061
    %v6261 = vmul.f32 %v6062, %v6062
    %v6262 = vmul.f32 %v6063, %v6063
    %v6263 = vmul.f32 %v6064, %v6064
    %v6264 = vmul.f32 %v6065, %v6065
    %v6265 = vmul.f32 %v6066, %v6066
    %v6266 = vmul.f32 %v6067, %v6067
    %v6267 = vmul.f32 %v6068, %v6068
    %v6268 = vmul.f32 %v6069, %v6069
    %v6269 = vmul.f32 %v6070, %v6070
    %v6270 = vmul.f32 %v6071, %v6071
    %v6271 = vmul.f32 %v6072, %v6072
    %v6272 = vmul.f32 %v6073, %v6073
    %v6273 = vmul.f32 %v6074, %v6074
    %v6274 = vmul.f32 %v6075, %v6075
    %v6275 = vmul.f32 %v6076, %v6076
    %v6276 = vmul.f32 %v6077, %v6077
    %v6277 = vmul.f32 %v6078, %v6078
    %v6278 = vmul.f32 %v6079, %v6079
    %v6279 = vmul.f32 %v6080, %v6080
    %v6280 = vmul.f32 %v6081, %v6081
    %v6281 = vmul.f32 %v6082, %v6082
    %v6282 = vmul.f32 %v6083, %v6083
    %v6283 = vmul.f32 %v6084, %v6084
    %v6284 = vmul.f32 %v6085, %v6085
    %v6285 = vmul.f32 %v6086, %v6086
    %v6286 = vmul.f32 %v6087, %v6087
    %v6287 = vmul.f32 %v6088, %v6088
    %v6288 = vmul.f32 %v6089, %v6089
    %v6289 = vmul.f32 %v6090, %v6090
    %v6290 = vmul.f32 %v6091, %v6091
    %v6291 = vmul.f32 %v6092, %v6092
    %v6292 = vmul.f32 %v6093, %v6093
    %v6293 = vmul.f32 %v6094, %v6094
    %v6294 = vmul.f32 %v6095, %v6095
    %v6295 = vmul.f32 %v6096, %v6096
    %v6296 = vmul.f32 %v6097, %v6097
    %v6297 = vmul.f32 %v6098, %v6098
    %v6298 = vmul.f32 %v6099, %v6099
    %v6299 = vmul.f32 %v6100, %v6100
    %v6300 = vmul.f32 %v6101, %v6101
    %v6301 = vmul.f32 %v6102, %v6102
    %v6302 = vmul.f32 %v6103, %v6103
    %v6303 = vmul.f32 %v6104, %v6104
    %v6304 = vmul.f32 %v6105, %v6105
    %v6305 = vmul.f32 %v6106, %v6106
    %v6306 = vmul.f32 %v6107, %v6107
    %v6307 = vmul.f32 %v6108, %v6108
    %v6308 = vmul.f32 %v6109, %v6109
    %v6309 = vmul.f32 %v6110, %v6110
    %v6310 = vmul.f32 %v6111, %v6111
    %v6311 = vmul.f32 %v6112, %v6112
    %v6312 = vmul.f32 %v6113, %v6113
    %v6313 = vmul.f32 %v6114, %v6114
    %v6314 = vmul.f32 %v6115, %v6115
    %v6315 = vmul.f32 %v6116, %v6116
    %v6316 = vmul.f32 %v6117, %v6117
    %v6317 = vmul.f32 %v6118, %v6118
    %v6318 = vmul.f32 %v6119, %v6119
    %v6319 = vmul.f32 %v6120, %v6120
    %v6320 = vmul.f32 %v6121, %v6121
    %v6321 = vsel %vm507, %v6257, 0.0
    %v6322 = vsel %vm507, %v6258, 0.0
    %v6323 = vadd.f32 %v6321, %v6322
    %v6324 = vsel %vm507, %v6259, 0.0
    %v6325 = vadd.f32 %v6323, %v6324
    %v6326 = vsel %vm507, %v6260, 0.0
    %v6327 = vadd.f32 %v6325, %v6326
    %v6328 = vsel %vm507, %v6261, 0.0
    %v6329 = vadd.f32 %v6327, %v6328
    %v6330 = vsel %vm507, %v6262, 0.0
    %v6331 = vadd.f32 %v6329, %v6330
    %v6332 = vsel %vm507, %v6263, 0.0
    %v6333 = vadd.f32 %v6331, %v6332
    %v6334 = vsel %vm507, %v6264, 0.0
    %v6335 = vadd.f32 %v6333, %v6334
    %v6336 = vsel %vm507, %v6265, 0.0
    %v6337 = vadd.f32 %v6335, %v6336
    %v6338 = vsel %vm507, %v6266, 0.0
    %v6339 = vadd.f32 %v6337, %v6338
    %v6340 = vsel %vm507, %v6267, 0.0
    %v6341 = vadd.f32 %v6339, %v6340
    %v6342 = vsel %vm507, %v6268, 0.0
    %v6343 = vadd.f32 %v6341, %v6342
    %v6344 = vsel %vm507, %v6269, 0.0
    %v6345 = vadd.f32 %v6343, %v6344
    %v6346 = vsel %vm507, %v6270, 0.0
    %v6347 = vadd.f32 %v6345, %v6346
    %v6348 = vsel %vm507, %v6271, 0.0
    %v6349 = vadd.f32 %v6347, %v6348
    %v6350 = vsel %vm507, %v6272, 0.0
    %v6351 = vadd.f32 %v6349, %v6350
    %v6352 = vsel %vm507, %v6273, 0.0
    %v6353 = vadd.f32 %v6351, %v6352
    %v6354 = vsel %vm507, %v6274, 0.0
    %v6355 = vadd.f32 %v6353, %v6354
    %v6356 = vsel %vm507, %v6275, 0.0
    %v6357 = vadd.f32 %v6355, %v6356
    %v6358 = vsel %vm507, %v6276, 0.0
    %v6359 = vadd.f32 %v6357, %v6358
    %v6360 = vsel %vm507, %v6277, 0.0
    %v6361 = vadd.f32 %v6359, %v6360
    %v6362 = vsel %vm507, %v6278, 0.0
    %v6363 = vadd.f32 %v6361, %v6362
    %v6364 = vsel %vm507, %v6279, 0.0
    %v6365 = vadd.f32 %v6363, %v6364
    %v6366 = vsel %vm507, %v6280, 0.0
    %v6367 = vadd.f32 %v6365, %v6366
    %v6368 = vsel %vm507, %v6281, 0.0
    %v6369 = vadd.f32 %v6367, %v6368
    %v6370 = vsel %vm507, %v6282, 0.0
    %v6371 = vadd.f32 %v6369, %v6370
    %v6372 = vsel %vm507, %v6283, 0.0
    %v6373 = vadd.f32 %v6371, %v6372
    %v6374 = vsel %vm507, %v6284, 0.0
    %v6375 = vadd.f32 %v6373, %v6374
    %v6376 = vsel %vm507, %v6285, 0.0
    %v6377 = vadd.f32 %v6375, %v6376
    %v6378 = vsel %vm507, %v6286, 0.0
    %v6379 = vadd.f32 %v6377, %v6378
    %v6380 = vsel %vm507, %v6287, 0.0
    %v6381 = vadd.f32 %v6379, %v6380
    %v6382 = vsel %vm507, %v6288, 0.0
    %v6383 = vadd.f32 %v6381, %v6382
    %v6384 = vsel %vm507, %v6289, 0.0
    %v6385 = vadd.f32 %v6383, %v6384
    %v6386 = vsel %vm507, %v6290, 0.0
    %v6387 = vadd.f32 %v6385, %v6386
    %v6388 = vsel %vm507, %v6291, 0.0
    %v6389 = vadd.f32 %v6387, %v6388
    %v6390 = vsel %vm507, %v6292, 0.0
    %v6391 = vadd.f32 %v6389, %v6390
    %v6392 = vsel %vm507, %v6293, 0.0
    %v6393 = vadd.f32 %v6391, %v6392
    %v6394 = vsel %vm507, %v6294, 0.0
    %v6395 = vadd.f32 %v6393, %v6394
    %v6396 = vsel %vm507, %v6295, 0.0
    %v6397 = vadd.f32 %v6395, %v6396
    %v6398 = vsel %vm507, %v6296, 0.0
    %v6399 = vadd.f32 %v6397, %v6398
    %v6400 = vsel %vm507, %v6297, 0.0
    %v6401 = vadd.f32 %v6399, %v6400
    %v6402 = vsel %vm507, %v6298, 0.0
    %v6403 = vadd.f32 %v6401, %v6402
    %v6404 = vsel %vm507, %v6299, 0.0
    %v6405 = vadd.f32 %v6403, %v6404
    %v6406 = vsel %vm507, %v6300, 0.0
    %v6407 = vadd.f32 %v6405, %v6406
    %v6408 = vsel %vm507, %v6301, 0.0
    %v6409 = vadd.f32 %v6407, %v6408
    %v6410 = vsel %vm507, %v6302, 0.0
    %v6411 = vadd.f32 %v6409, %v6410
    %v6412 = vsel %vm507, %v6303, 0.0
    %v6413 = vadd.f32 %v6411, %v6412
    %v6414 = vsel %vm507, %v6304, 0.0
    %v6415 = vadd.f32 %v6413, %v6414
    %v6416 = vsel %vm507, %v6305, 0.0
    %v6417 = vadd.f32 %v6415, %v6416
    %v6418 = vsel %vm507, %v6306, 0.0
    %v6419 = vadd.f32 %v6417, %v6418
    %v6420 = vsel %vm507, %v6307, 0.0
    %v6421 = vadd.f32 %v6419, %v6420
    %v6422 = vsel %vm507, %v6308, 0.0
    %v6423 = vadd.f32 %v6421, %v6422
    %v6424 = vsel %vm507, %v6309, 0.0
    %v6425 = vadd.f32 %v6423, %v6424
    %v6426 = vsel %vm507, %v6310, 0.0
    %v6427 = vadd.f32 %v6425, %v6426
    %v6428 = vsel %vm507, %v6311, 0.0
    %v6429 = vadd.f32 %v6427, %v6428
    %v6430 = vsel %vm507, %v6312, 0.0
    %v6431 = vadd.f32 %v6429, %v6430
    %v6432 = vsel %vm507, %v6313, 0.0
    %v6433 = vadd.f32 %v6431, %v6432
    %v6434 = vsel %vm507, %v6314, 0.0
    %v6435 = vadd.f32 %v6433, %v6434
    %v6436 = vsel %vm507, %v6315, 0.0
    %v6437 = vadd.f32 %v6435, %v6436
    %v6438 = vsel %vm507, %v6316, 0.0
    %v6439 = vadd.f32 %v6437, %v6438
    %v6440 = vsel %vm507, %v6317, 0.0
    %v6441 = vadd.f32 %v6439, %v6440
    %v6442 = vsel %vm507, %v6318, 0.0
    %v6443 = vadd.f32 %v6441, %v6442
    %v6444 = vsel %vm507, %v6319, 0.0
    %v6445 = vadd.f32 %v6443, %v6444
    %v6446 = vsel %vm507, %v6320, 0.0
    %v6447 = vadd.f32 %v6445, %v6446
    %v6448 = vrot.slane %v6447, 4
    %v6449 = vadd.f32 %v6447, %v6448
    %v6450 = vrot.slane %v6449, 2
    %v6451 = vadd.f32 %v6449, %v6450
    %v6452 = vrot.slane %v6451, 1
    %v6453 = vadd.f32 %v6451, %v6452
    %v6454 = vmul.f32 %v6256, %v838
    %v6455 = vmul.f32 %v6453, %v838
    %v6456 = vmul.f32 %v6454, %v6454
    %v6457 = vsub.f32 %v6455, %v6456
    %v6458 = vadd.f32 %v6457, 1e-05
    %v6459 = vrsqrt.pop %v6458
    %v6460 = vmul.f32 %v6122, %v6459
    %v6461 = vmul.f32 %v6454, %v6460
    %v6462 = vsub.f32 %v6123, %v6461
    %v6463 = vlaneseq
    %v6464 = vshrl.u32 %v6463, 7
    %v6465 = vsub.s32 0, %v6464
    %v6466 = vrot.slane %v6460, %v6465
    %v6467 = vmul.f32 %v6058, %v6466
    %v6468 = vmul.f32 %v6059, %v6466
    %v6469 = vmul.f32 %v6060, %v6466
    %v6470 = vmul.f32 %v6061, %v6466
    %v6471 = vmul.f32 %v6062, %v6466
    %v6472 = vmul.f32 %v6063, %v6466
    %v6473 = vmul.f32 %v6064, %v6466
    %v6474 = vmul.f32 %v6065, %v6466
    %v6475 = vmul.f32 %v6066, %v6466
    %v6476 = vmul.f32 %v6067, %v6466
    %v6477 = vmul.f32 %v6068, %v6466
    %v6478 = vmul.f32 %v6069, %v6466
    %v6479 = vmul.f32 %v6070, %v6466
    %v6480 = vmul.f32 %v6071, %v6466
    %v6481 = vmul.f32 %v6072, %v6466
    %v6482 = vmul.f32 %v6073, %v6466
    %v6483 = vmul.f32 %v6074, %v6466
    %v6484 = vmul.f32 %v6075, %v6466
    %v6485 = vmul.f32 %v6076, %v6466
    %v6486 = vmul.f32 %v6077, %v6466
    %v6487 = vmul.f32 %v6078, %v6466
    %v6488 = vmul.f32 %v6079, %v6466
    %v6489 = vmul.f32 %v6080, %v6466
    %v6490 = vmul.f32 %v6081, %v6466
    %v6491 = vmul.f32 %v6082, %v6466
    %v6492 = vmul.f32 %v6083, %v6466
    %v6493 = vmul.f32 %v6084, %v6466
    %v6494 = vmul.f32 %v6085, %v6466
    %v6495 = vmul.f32 %v6086, %v6466
    %v6496 = vmul.f32 %v6087, %v6466
    %v6497 = vmul.f32 %v6088, %v6466
    %v6498 = vmul.f32 %v6089, %v6466
    %v6499 = vmul.f32 %v6090, %v6466
    %v6500 = vmul.f32 %v6091, %v6466
    %v6501 = vmul.f32 %v6092, %v6466
    %v6502 = vmul.f32 %v6093, %v6466
    %v6503 = vmul.f32 %v6094, %v6466
    %v6504 = vmul.f32 %v6095, %v6466
    %v6505 = vmul.f32 %v6096, %v6466
    %v6506 = vmul.f32 %v6097, %v6466
    %v6507 = vmul.f32 %v6098, %v6466
    %v6508 = vmul.f32 %v6099, %v6466
    %v6509 = vmul.f32 %v6100, %v6466
    %v6510 = vmul.f32 %v6101, %v6466
    %v6511 = vmul.f32 %v6102, %v6466
    %v6512 = vmul.f32 %v6103, %v6466
    %v6513 = vmul.f32 %v6104, %v6466
    %v6514 = vmul.f32 %v6105, %v6466
    %v6515 = vmul.f32 %v6106, %v6466
    %v6516 = vmul.f32 %v6107, %v6466
    %v6517 = vmul.f32 %v6108, %v6466
    %v6518 = vmul.f32 %v6109, %v6466
    %v6519 = vmul.f32 %v6110, %v6466
    %v6520 = vmul.f32 %v6111, %v6466
    %v6521 = vmul.f32 %v6112, %v6466
    %v6522 = vmul.f32 %v6113, %v6466
    %v6523 = vmul.f32 %v6114, %v6466
    %v6524 = vmul.f32 %v6115, %v6466
    %v6525 = vmul.f32 %v6116, %v6466
    %v6526 = vmul.f32 %v6117, %v6466
    %v6527 = vmul.f32 %v6118, %v6466
    %v6528 = vmul.f32 %v6119, %v6466
    %v6529 = vmul.f32 %v6120, %v6466
    %v6530 = vmul.f32 %v6121, %v6466
    %v6531 = vlaneseq
    %v6532 = vshrl.u32 %v6531, 7
    %v6533 = vsub.s32 0, %v6532
    %v6534 = vrot.slane %v6462, %v6533
    %v6535 = vadd.f32 %v6467, %v6534
    %v6536 = vadd.f32 %v6468, %v6534
    %v6537 = vadd.f32 %v6469, %v6534
    %v6538 = vadd.f32 %v6470, %v6534
    %v6539 = vadd.f32 %v6471, %v6534
    %v6540 = vadd.f32 %v6472, %v6534
    %v6541 = vadd.f32 %v6473, %v6534
    %v6542 = vadd.f32 %v6474, %v6534
    %v6543 = vadd.f32 %v6475, %v6534
    %v6544 = vadd.f32 %v6476, %v6534
    %v6545 = vadd.f32 %v6477, %v6534
    %v6546 = vadd.f32 %v6478, %v6534
    %v6547 = vadd.f32 %v6479, %v6534
    %v6548 = vadd.f32 %v6480, %v6534
    %v6549 = vadd.f32 %v6481, %v6534
    %v6550 = vadd.f32 %v6482, %v6534
    %v6551 = vadd.f32 %v6483, %v6534
    %v6552 = vadd.f32 %v6484, %v6534
    %v6553 = vadd.f32 %v6485, %v6534
    %v6554 = vadd.f32 %v6486, %v6534
    %v6555 = vadd.f32 %v6487, %v6534
    %v6556 = vadd.f32 %v6488, %v6534
    %v6557 = vadd.f32 %v6489, %v6534
    %v6558 = vadd.f32 %v6490, %v6534
    %v6559 = vadd.f32 %v6491, %v6534
    %v6560 = vadd.f32 %v6492, %v6534
    %v6561 = vadd.f32 %v6493, %v6534
    %v6562 = vadd.f32 %v6494, %v6534
    %v6563 = vadd.f32 %v6495, %v6534
    %v6564 = vadd.f32 %v6496, %v6534
    %v6565 = vadd.f32 %v6497, %v6534
    %v6566 = vadd.f32 %v6498, %v6534
    %v6567 = vadd.f32 %v6499, %v6534
    %v6568 = vadd.f32 %v6500, %v6534
    %v6569 = vadd.f32 %v6501, %v6534
    %v6570 = vadd.f32 %v6502, %v6534
    %v6571 = vadd.f32 %v6503, %v6534
    %v6572 = vadd.f32 %v6504, %v6534
    %v6573 = vadd.f32 %v6505, %v6534
    %v6574 = vadd.f32 %v6506, %v6534
    %v6575 = vadd.f32 %v6507, %v6534
    %v6576 = vadd.f32 %v6508, %v6534
    %v6577 = vadd.f32 %v6509, %v6534
    %v6578 = vadd.f32 %v6510, %v6534
    %v6579 = vadd.f32 %v6511, %v6534
    %v6580 = vadd.f32 %v6512, %v6534
    %v6581 = vadd.f32 %v6513, %v6534
    %v6582 = vadd.f32 %v6514, %v6534
    %v6583 = vadd.f32 %v6515, %v6534
    %v6584 = vadd.f32 %v6516, %v6534
    %v6585 = vadd.f32 %v6517, %v6534
    %v6586 = vadd.f32 %v6518, %v6534
    %v6587 = vadd.f32 %v6519, %v6534
    %v6588 = vadd.f32 %v6520, %v6534
    %v6589 = vadd.f32 %v6521, %v6534
    %v6590 = vadd.f32 %v6522, %v6534
    %v6591 = vadd.f32 %v6523, %v6534
    %v6592 = vadd.f32 %v6524, %v6534
    %v6593 = vadd.f32 %v6525, %v6534
    %v6594 = vadd.f32 %v6526, %v6534
    %v6595 = vadd.f32 %v6527, %v6534
    %v6596 = vadd.f32 %v6528, %v6534
    %v6597 = vadd.f32 %v6529, %v6534
    %v6598 = vadd.f32 %v6530, %v6534
    %v6599 = vmax.f32 %v6535, 0.0
    %v6600 = vmax.f32 %v6536, 0.0
    %v6601 = vmax.f32 %v6537, 0.0
    %v6602 = vmax.f32 %v6538, 0.0
    %v6603 = vmax.f32 %v6539, 0.0
    %v6604 = vmax.f32 %v6540, 0.0
    %v6605 = vmax.f32 %v6541, 0.0
    %v6606 = vmax.f32 %v6542, 0.0
    %v6607 = vmax.f32 %v6543, 0.0
    %v6608 = vmax.f32 %v6544, 0.0
    %v6609 = vmax.f32 %v6545, 0.0
    %v6610 = vmax.f32 %v6546, 0.0
    %v6611 = vmax.f32 %v6547, 0.0
    %v6612 = vmax.f32 %v6548, 0.0
    %v6613 = vmax.f32 %v6549, 0.0
    %v6614 = vmax.f32 %v6550, 0.0
    %v6615 = vmax.f32 %v6551, 0.0
    %v6616 = vmax.f32 %v6552, 0.0
    %v6617 = vmax.f32 %v6553, 0.0
    %v6618 = vmax.f32 %v6554, 0.0
    %v6619 = vmax.f32 %v6555, 0.0
    %v6620 = vmax.f32 %v6556, 0.0
    %v6621 = vmax.f32 %v6557, 0.0
    %v6622 = vmax.f32 %v6558, 0.0
    %v6623 = vmax.f32 %v6559, 0.0
    %v6624 = vmax.f32 %v6560, 0.0
    %v6625 = vmax.f32 %v6561, 0.0
    %v6626 = vmax.f32 %v6562, 0.0
    %v6627 = vmax.f32 %v6563, 0.0
    %v6628 = vmax.f32 %v6564, 0.0
    %v6629 = vmax.f32 %v6565, 0.0
    %v6630 = vmax.f32 %v6566, 0.0
    %v6631 = vmax.f32 %v6567, 0.0
    %v6632 = vmax.f32 %v6568, 0.0
    %v6633 = vmax.f32 %v6569, 0.0
    %v6634 = vmax.f32 %v6570, 0.0
    %v6635 = vmax.f32 %v6571, 0.0
    %v6636 = vmax.f32 %v6572, 0.0
    %v6637 = vmax.f32 %v6573, 0.0
    %v6638 = vmax.f32 %v6574, 0.0
    %v6639 = vmax.f32 %v6575, 0.0
    %v6640 = vmax.f32 %v6576, 0.0
    %v6641 = vmax.f32 %v6577, 0.0
    %v6642 = vmax.f32 %v6578, 0.0
    %v6643 = vmax.f32 %v6579, 0.0
    %v6644 = vmax.f32 %v6580, 0.0
    %v6645 = vmax.f32 %v6581, 0.0
    %v6646 = vmax.f32 %v6582, 0.0
    %v6647 = vmax.f32 %v6583, 0.0
    %v6648 = vmax.f32 %v6584, 0.0
    %v6649 = vmax.f32 %v6585, 0.0
    %v6650 = vmax.f32 %v6586, 0.0
    %v6651 = vmax.f32 %v6587, 0.0
    %v6652 = vmax.f32 %v6588, 0.0
    %v6653 = vmax.f32 %v6589, 0.0
    %v6654 = vmax.f32 %v6590, 0.0
    %v6655 = vmax.f32 %v6591, 0.0
    %v6656 = vmax.f32 %v6592, 0.0
    %v6657 = vmax.f32 %v6593, 0.0
    %v6658 = vmax.f32 %v6594, 0.0
    %v6659 = vmax.f32 %v6595, 0.0
    %v6660 = vmax.f32 %v6596, 0.0
    %v6661 = vmax.f32 %v6597, 0.0
    %v6662 = vmax.f32 %v6598, 0.0
    %v6663 = vpack.c.bf16 %v6600, %v6599
    %v6664 = vpack.c.bf16 %v6602, %v6601
    %v6665 = vpack.c.bf16 %v6604, %v6603
    %v6666 = vpack.c.bf16 %v6606, %v6605
    %v6667 = vpack.c.bf16 %v6608, %v6607
    %v6668 = vpack.c.bf16 %v6610, %v6609
    %v6669 = vpack.c.bf16 %v6612, %v6611
    %v6670 = vpack.c.bf16 %v6614, %v6613
    %v6671 = vpack.c.bf16 %v6616, %v6615
    %v6672 = vpack.c.bf16 %v6618, %v6617
    %v6673 = vpack.c.bf16 %v6620, %v6619
    %v6674 = vpack.c.bf16 %v6622, %v6621
    %v6675 = vpack.c.bf16 %v6624, %v6623
    %v6676 = vpack.c.bf16 %v6626, %v6625
    %v6677 = vpack.c.bf16 %v6628, %v6627
    %v6678 = vpack.c.bf16 %v6630, %v6629
    %v6679 = vpack.c.bf16 %v6632, %v6631
    %v6680 = vpack.c.bf16 %v6634, %v6633
    %v6681 = vpack.c.bf16 %v6636, %v6635
    %v6682 = vpack.c.bf16 %v6638, %v6637
    %v6683 = vpack.c.bf16 %v6640, %v6639
    %v6684 = vpack.c.bf16 %v6642, %v6641
    %v6685 = vpack.c.bf16 %v6644, %v6643
    %v6686 = vpack.c.bf16 %v6646, %v6645
    %v6687 = vpack.c.bf16 %v6648, %v6647
    %v6688 = vpack.c.bf16 %v6650, %v6649
    %v6689 = vpack.c.bf16 %v6652, %v6651
    %v6690 = vpack.c.bf16 %v6654, %v6653
    %v6691 = vpack.c.bf16 %v6656, %v6655
    %v6692 = vpack.c.bf16 %v6658, %v6657
    %v6693 = vpack.c.bf16 %v6660, %v6659
    %v6694 = vpack.c.bf16 %v6662, %v6661
    %v6695 = vld [vmem:[%s3] sm:$0xf]
    %v6696 = vld [vmem:[%s3 + $0x4] sm:$0xf]
    %v6697 = vld [vmem:[%s3 + $0x8] sm:$0xf]
    %v6698 = vld [vmem:[%s3 + $0xc] sm:$0xf]
    %v6703 = vunpack.c.l.b16 %v6695
    %v6704 = vunpack.c.l.b16 %v6696
    %v6705 = vunpack.c.l.b16 %v6697
    %v6706 = vunpack.c.l.b16 %v6698
    %v6707 = vpack.c.b16 %v6704, %v6703
    %v6708 = vpack.c.b16 %v6706, %v6705
    %v6712 = vsel %vm507, %v6663, 0
    %v6715 = vsel %vm507, %v6664, 0
    %v6718 = vsel %vm507, %v6665, 0
    %v6721 = vsel %vm507, %v6666, 0
    %v6724 = vsel %vm507, %v6667, 0
    %v6727 = vsel %vm507, %v6668, 0
    %v6730 = vsel %vm507, %v6669, 0
    %v6733 = vsel %vm507, %v6670, 0
    %v6736 = vsel %vm507, %v6671, 0
    %v6739 = vsel %vm507, %v6672, 0
    %v6742 = vsel %vm507, %v6673, 0
    %v6745 = vsel %vm507, %v6674, 0
    %v6748 = vsel %vm507, %v6675, 0
    %v6751 = vsel %vm507, %v6676, 0
    %v6754 = vsel %vm507, %v6677, 0
    %v6757 = vsel %vm507, %v6678, 0
    %v6760 = vsel %vm507, %v6679, 0
    %v6763 = vsel %vm507, %v6680, 0
    %v6766 = vsel %vm507, %v6681, 0
    %v6769 = vsel %vm507, %v6682, 0
    %v6772 = vsel %vm507, %v6683, 0
    %v6775 = vsel %vm507, %v6684, 0
    %v6778 = vsel %vm507, %v6685, 0
    %v6781 = vsel %vm507, %v6686, 0
    %v6784 = vsel %vm507, %v6687, 0
    %v6787 = vsel %vm507, %v6688, 0
    %v6790 = vsel %vm507, %v6689, 0
    %v6793 = vsel %vm507, %v6690, 0
    %v6796 = vsel %vm507, %v6691, 0
    %v6799 = vsel %vm507, %v6692, 0
    %v6802 = vsel %vm507, %v6693, 0
    %v6805 = vsel %vm507, %v6694, 0
    %6807 = vmatprep.subr.bf16.mxu0 0
    %6808 = vmatpush1.bf16.msra.mxu0 %v6707
    %6809 = vmatprep.subr.bf16.mxu0 0
    %6810 = vmatpush1.bf16.msra.mxu0 %v6708
    %6811 = vmatprep.subr.bf16.mxu0 0
    %6812 = vmatpush1.bf16.msra.mxu0 0
    %6813 = vmatprep.subr.bf16.mxu0 0
    %6814 = vmatpush1.bf16.msra.mxu0 0
    %6815 = vmatprep.subr.bf16.mxu0 0
    %6816 = vmatpush1.bf16.msra.mxu0 0
    %6817 = vmatprep.subr.bf16.mxu0 0
    %6818 = vmatpush1.bf16.msra.mxu0 0
    %6819 = vmatprep.subr.bf16.mxu0 0
    %6820 = vmatpush1.bf16.msra.mxu0 0
    %6821 = vmatprep.subr.bf16.mxu0 0
    %6822 = vmatpush1.bf16.msra.mxu0 0
    %6823 = vmatprep.subr.bf16.mxu0 0
    %6824 = vmatpush1.bf16.msra.mxu0 0
    %6825 = vmatprep.subr.bf16.mxu0 0
    %6826 = vmatpush1.bf16.msra.mxu0 0
    %6827 = vmatprep.subr.bf16.mxu0 0
    %6828 = vmatpush1.bf16.msra.mxu0 0
    %6829 = vmatprep.subr.bf16.mxu0 0
    %6830 = vmatpush1.bf16.msra.mxu0 0
    %6831 = vmatprep.subr.bf16.mxu0 0
    %6832 = vmatpush1.bf16.msra.mxu0 0
    %6833 = vmatprep.subr.bf16.mxu0 0
    %6834 = vmatpush1.bf16.msra.mxu0 0
    %6835 = vmatprep.subr.bf16.mxu0 0
    %6836 = vmatpush1.bf16.msra.mxu0 0
    %6837 = vmatprep.subr.bf16.mxu0 0
    %6838 = vmatpush1.bf16.msra.mxu0 0
    %6839 = vmatprep.mubr.bf16.mxu0 0
    %6840 = vmatmul.mubr.bf16.gmra.mrb[0].mxu0 %v6712
    %v6841 = vpop.f32.mrb[0].mxu0
    %v6842 = vadd.f32 0.0, %v6841
    %v6843 = vpop.f32.mrb[0].mxu0
    %v6844 = vpop.f32.mrb[0].mxu0
    %v6845 = vadd.f32 0.0, %v6844
    %v6846 = vpop.f32.mrb[0].mxu0
    %6847 = vmatprep.mubr.bf16.mxu0 0
    %6848 = vmatmul.mubr.bf16.gmra.mrb[0].mxu0 %v6715
    %v6849 = vpop.f32.mrb[0].mxu0
    %v6850 = vadd.f32 0.0, %v6849
    %v6851 = vpop.f32.mrb[0].mxu0
    %v6852 = vpop.f32.mrb[0].mxu0
    %v6853 = vadd.f32 0.0, %v6852
    %v6854 = vpop.f32.mrb[0].mxu0
    %6855 = vmatprep.mubr.bf16.mxu0 0
    %6856 = vmatmul.mubr.bf16.gmra.mrb[0].mxu0 %v6718
    %v6857 = vpop.f32.mrb[0].mxu0
    %v6858 = vadd.f32 0.0, %v6857
    %v6859 = vpop.f32.mrb[0].mxu0
    %v6860 = vpop.f32.mrb[0].mxu0
    %v6861 = vadd.f32 0.0, %v6860
    %v6862 = vpop.f32.mrb[0].mxu0
    %6863 = vmatprep.mubr.bf16.mxu0 0
    %6864 = vmatmul.mubr.bf16.gmra.mrb[0].mxu0 %v6721
    %v6865 = vpop.f32.mrb[0].mxu0
    %v6866 = vadd.f32 0.0, %v6865
    %v6867 = vpop.f32.mrb[0].mxu0
    %v6868 = vpop.f32.mrb[0].mxu0
    %v6869 = vadd.f32 0.0, %v6868
    %v6870 = vpop.f32.mrb[0].mxu0
    %6871 = vmatprep.mubr.bf16.mxu0 0
    %6872 = vmatmul.mubr.bf16.gmra.mrb[0].mxu0 %v6724
    %v6873 = vpop.f32.mrb[0].mxu0
    %v6874 = vadd.f32 0.0, %v6873
    %v6875 = vpop.f32.mrb[0].mxu0
    %v6876 = vpop.f32.mrb[0].mxu0
    %v6877 = vadd.f32 0.0, %v6876
    %v6878 = vpop.f32.mrb[0].mxu0
    %6879 = vmatprep.mubr.bf16.mxu0 0
    %6880 = vmatmul.mubr.bf16.gmra.mrb[0].mxu0 %v6727
    %v6881 = vpop.f32.mrb[0].mxu0
    %v6882 = vadd.f32 0.0, %v6881
    %v6883 = vpop.f32.mrb[0].mxu0
    %v6884 = vpop.f32.mrb[0].mxu0
    %v6885 = vadd.f32 0.0, %v6884
    %v6886 = vpop.f32.mrb[0].mxu0
    %6887 = vmatprep.mubr.bf16.mxu0 0
    %6888 = vmatmul.mubr.bf16.gmra.mrb[0].mxu0 %v6730
    %v6889 = vpop.f32.mrb[0].mxu0
    %v6890 = vadd.f32 0.0, %v6889
    %v6891 = vpop.f32.mrb[0].mxu0
    %v6892 = vpop.f32.mrb[0].mxu0
    %v6893 = vadd.f32 0.0, %v6892
    %v6894 = vpop.f32.mrb[0].mxu0
    %6895 = vmatprep.mubr.bf16.mxu0 0
    %6896 = vmatmul.mubr.bf16.gmra.mrb[0].mxu0 %v6733
    %v6897 = vpop.f32.mrb[0].mxu0
    %v6898 = vadd.f32 0.0, %v6897
    %v6899 = vpop.f32.mrb[0].mxu0
    %v6900 = vpop.f32.mrb[0].mxu0
    %v6901 = vadd.f32 0.0, %v6900
    %v6902 = vpop.f32.mrb[0].mxu0
    %6903 = vmatprep.mubr.bf16.mxu0 0
    %6904 = vmatmul.mubr.bf16.gmra.mrb[0].mxu0 %v6736
    %v6905 = vpop.f32.mrb[0].mxu0
    %v6906 = vadd.f32 0.0, %v6905
    %v6907 = vpop.f32.mrb[0].mxu0
    %v6908 = vpop.f32.mrb[0].mxu0
    %v6909 = vadd.f32 0.0, %v6908
    %v6910 = vpop.f32.mrb[0].mxu0
    %6911 = vmatprep.mubr.bf16.mxu0 0
    %6912 = vmatmul.mubr.bf16.gmra.mrb[0].mxu0 %v6739
    %v6913 = vpop.f32.mrb[0].mxu0
    %v6914 = vadd.f32 0.0, %v6913
    %v6915 = vpop.f32.mrb[0].mxu0
    %v6916 = vpop.f32.mrb[0].mxu0
    %v6917 = vadd.f32 0.0, %v6916
    %v6918 = vpop.f32.mrb[0].mxu0
    %6919 = vmatprep.mubr.bf16.mxu0 0
    %6920 = vmatmul.mubr.bf16.gmra.mrb[0].mxu0 %v6742
    %v6921 = vpop.f32.mrb[0].mxu0
    %v6922 = vadd.f32 0.0, %v6921
    %v6923 = vpop.f32.mrb[0].mxu0
    %v6924 = vpop.f32.mrb[0].mxu0
    %v6925 = vadd.f32 0.0, %v6924
    %v6926 = vpop.f32.mrb[0].mxu0
    %6927 = vmatprep.mubr.bf16.mxu0 0
    %6928 = vmatmul.mubr.bf16.gmra.mrb[0].mxu0 %v6745
    %v6929 = vpop.f32.mrb[0].mxu0
    %v6930 = vadd.f32 0.0, %v6929
    %v6931 = vpop.f32.mrb[0].mxu0
    %v6932 = vpop.f32.mrb[0].mxu0
    %v6933 = vadd.f32 0.0, %v6932
    %v6934 = vpop.f32.mrb[0].mxu0
    %6935 = vmatprep.mubr.bf16.mxu0 0
    %6936 = vmatmul.mubr.bf16.gmra.mrb[0].mxu0 %v6748
    %v6937 = vpop.f32.mrb[0].mxu0
    %v6938 = vadd.f32 0.0, %v6937
    %v6939 = vpop.f32.mrb[0].mxu0
    %v6940 = vpop.f32.mrb[0].mxu0
    %v6941 = vadd.f32 0.0, %v6940
    %v6942 = vpop.f32.mrb[0].mxu0
    %6943 = vmatprep.mubr.bf16.mxu0 0
    %6944 = vmatmul.mubr.bf16.gmra.mrb[0].mxu0 %v6751
    %v6945 = vpop.f32.mrb[0].mxu0
    %v6946 = vadd.f32 0.0, %v6945
    %v6947 = vpop.f32.mrb[0].mxu0
    %v6948 = vpop.f32.mrb[0].mxu0
    %v6949 = vadd.f32 0.0, %v6948
    %v6950 = vpop.f32.mrb[0].mxu0
    %6951 = vmatprep.mubr.bf16.mxu0 0
    %6952 = vmatmul.mubr.bf16.gmra.mrb[0].mxu0 %v6754
    %v6953 = vpop.f32.mrb[0].mxu0
    %v6954 = vadd.f32 0.0, %v6953
    %v6955 = vpop.f32.mrb[0].mxu0
    %v6956 = vpop.f32.mrb[0].mxu0
    %v6957 = vadd.f32 0.0, %v6956
    %v6958 = vpop.f32.mrb[0].mxu0
    %6959 = vmatprep.mubr.bf16.mxu0 0
    %6960 = vmatmul.mubr.bf16.gmra.mrb[0].mxu0 %v6757
    %v6961 = vpop.f32.mrb[0].mxu0
    %v6962 = vadd.f32 0.0, %v6961
    %v6963 = vpop.f32.mrb[0].mxu0
    %v6964 = vpop.f32.mrb[0].mxu0
    %v6965 = vadd.f32 0.0, %v6964
    %v6966 = vpop.f32.mrb[0].mxu0
    %6967 = vmatprep.mubr.bf16.mxu0 0
    %6968 = vmatmul.mubr.bf16.gmra.mrb[0].mxu0 %v6760
    %v6969 = vpop.f32.mrb[0].mxu0
    %v6970 = vadd.f32 0.0, %v6969
    %v6971 = vpop.f32.mrb[0].mxu0
    %v6972 = vpop.f32.mrb[0].mxu0
    %v6973 = vadd.f32 0.0, %v6972
    %v6974 = vpop.f32.mrb[0].mxu0
    %6975 = vmatprep.mubr.bf16.mxu0 0
    %6976 = vmatmul.mubr.bf16.gmra.mrb[0].mxu0 %v6763
    %v6977 = vpop.f32.mrb[0].mxu0
    %v6978 = vadd.f32 0.0, %v6977
    %v6979 = vpop.f32.mrb[0].mxu0
    %v6980 = vpop.f32.mrb[0].mxu0
    %v6981 = vadd.f32 0.0, %v6980
    %v6982 = vpop.f32.mrb[0].mxu0
    %6983 = vmatprep.mubr.bf16.mxu0 0
    %6984 = vmatmul.mubr.bf16.gmra.mrb[0].mxu0 %v6766
    %v6985 = vpop.f32.mrb[0].mxu0
    %v6986 = vadd.f32 0.0, %v6985
    %v6987 = vpop.f32.mrb[0].mxu0
    %v6988 = vpop.f32.mrb[0].mxu0
    %v6989 = vadd.f32 0.0, %v6988
    %v6990 = vpop.f32.mrb[0].mxu0
    %6991 = vmatprep.mubr.bf16.mxu0 0
    %6992 = vmatmul.mubr.bf16.gmra.mrb[0].mxu0 %v6769
    %v6993 = vpop.f32.mrb[0].mxu0
    %v6994 = vadd.f32 0.0, %v6993
    %v6995 = vpop.f32.mrb[0].mxu0
    %v6996 = vpop.f32.mrb[0].mxu0
    %v6997 = vadd.f32 0.0, %v6996
    %v6998 = vpop.f32.mrb[0].mxu0
    %6999 = vmatprep.mubr.bf16.mxu0 0
    %7000 = vmatmul.mubr.bf16.gmra.mrb[0].mxu0 %v6772
    %v7001 = vpop.f32.mrb[0].mxu0
    %v7002 = vadd.f32 0.0, %v7001
    %v7003 = vpop.f32.mrb[0].mxu0
    %v7004 = vpop.f32.mrb[0].mxu0
    %v7005 = vadd.f32 0.0, %v7004
    %v7006 = vpop.f32.mrb[0].mxu0
    %7007 = vmatprep.mubr.bf16.mxu0 0
    %7008 = vmatmul.mubr.bf16.gmra.mrb[0].mxu0 %v6775
    %v7009 = vpop.f32.mrb[0].mxu0
    %v7010 = vadd.f32 0.0, %v7009
    %v7011 = vpop.f32.mrb[0].mxu0
    %v7012 = vpop.f32.mrb[0].mxu0
    %v7013 = vadd.f32 0.0, %v7012
    %v7014 = vpop.f32.mrb[0].mxu0
    %7015 = vmatprep.mubr.bf16.mxu0 0
    %7016 = vmatmul.mubr.bf16.gmra.mrb[0].mxu0 %v6778
    %v7017 = vpop.f32.mrb[0].mxu0
    %v7018 = vadd.f32 0.0, %v7017
    %v7019 = vpop.f32.mrb[0].mxu0
    %v7020 = vpop.f32.mrb[0].mxu0
    %v7021 = vadd.f32 0.0, %v7020
    %v7022 = vpop.f32.mrb[0].mxu0
    %7023 = vmatprep.mubr.bf16.mxu0 0
    %7024 = vmatmul.mubr.bf16.gmra.mrb[0].mxu0 %v6781
    %v7025 = vpop.f32.mrb[0].mxu0
    %v7026 = vadd.f32 0.0, %v7025
    %v7027 = vpop.f32.mrb[0].mxu0
    %v7028 = vpop.f32.mrb[0].mxu0
    %v7029 = vadd.f32 0.0, %v7028
    %v7030 = vpop.f32.mrb[0].mxu0
    %7031 = vmatprep.mubr.bf16.mxu0 0
    %7032 = vmatmul.mubr.bf16.gmra.mrb[0].mxu0 %v6784
    %v7033 = vpop.f32.mrb[0].mxu0
    %v7034 = vadd.f32 0.0, %v7033
    %v7035 = vpop.f32.mrb[0].mxu0
    %v7036 = vpop.f32.mrb[0].mxu0
    %v7037 = vadd.f32 0.0, %v7036
    %v7038 = vpop.f32.mrb[0].mxu0
    %7039 = vmatprep.mubr.bf16.mxu0 0
    %7040 = vmatmul.mubr.bf16.gmra.mrb[0].mxu0 %v6787
    %v7041 = vpop.f32.mrb[0].mxu0
    %v7042 = vadd.f32 0.0, %v7041
    %v7043 = vpop.f32.mrb[0].mxu0
    %v7044 = vpop.f32.mrb[0].mxu0
    %v7045 = vadd.f32 0.0, %v7044
    %v7046 = vpop.f32.mrb[0].mxu0
    %7047 = vmatprep.mubr.bf16.mxu0 0
    %7048 = vmatmul.mubr.bf16.gmra.mrb[0].mxu0 %v6790
    %v7049 = vpop.f32.mrb[0].mxu0
    %v7050 = vadd.f32 0.0, %v7049
    %v7051 = vpop.f32.mrb[0].mxu0
    %v7052 = vpop.f32.mrb[0].mxu0
    %v7053 = vadd.f32 0.0, %v7052
    %v7054 = vpop.f32.mrb[0].mxu0
    %7055 = vmatprep.mubr.bf16.mxu0 0
    %7056 = vmatmul.mubr.bf16.gmra.mrb[0].mxu0 %v6793
    %v7057 = vpop.f32.mrb[0].mxu0
    %v7058 = vadd.f32 0.0, %v7057
    %v7059 = vpop.f32.mrb[0].mxu0
    %v7060 = vpop.f32.mrb[0].mxu0
    %v7061 = vadd.f32 0.0, %v7060
    %v7062 = vpop.f32.mrb[0].mxu0
    %7063 = vmatprep.mubr.bf16.mxu0 0
    %7064 = vmatmul.mubr.bf16.gmra.mrb[0].mxu0 %v6796
    %v7065 = vpop.f32.mrb[0].mxu0
    %v7066 = vadd.f32 0.0, %v7065
    %v7067 = vpop.f32.mrb[0].mxu0
    %v7068 = vpop.f32.mrb[0].mxu0
    %v7069 = vadd.f32 0.0, %v7068
    %v7070 = vpop.f32.mrb[0].mxu0
    %7071 = vmatprep.mubr.bf16.mxu0 0
    %7072 = vmatmul.mubr.bf16.gmra.mrb[0].mxu0 %v6799
    %v7073 = vpop.f32.mrb[0].mxu0
    %v7074 = vadd.f32 0.0, %v7073
    %v7075 = vpop.f32.mrb[0].mxu0
    %v7076 = vpop.f32.mrb[0].mxu0
    %v7077 = vadd.f32 0.0, %v7076
    %v7078 = vpop.f32.mrb[0].mxu0
    %7079 = vmatprep.mubr.bf16.mxu0 0
    %7080 = vmatmul.mubr.bf16.gmra.mrb[0].mxu0 %v6802
    %v7081 = vpop.f32.mrb[0].mxu0
    %v7082 = vadd.f32 0.0, %v7081
    %v7083 = vpop.f32.mrb[0].mxu0
    %v7084 = vpop.f32.mrb[0].mxu0
    %v7085 = vadd.f32 0.0, %v7084
    %v7086 = vpop.f32.mrb[0].mxu0
    %7087 = vmatprep.mubr.bf16.mxu0 0
    %7088 = vmatmul.mubr.bf16.gmra.mrb[0].mxu0 %v6805
    %v7089 = vpop.f32.mrb[0].mxu0
    %v7090 = vadd.f32 0.0, %v7089
    %v7091 = vpop.f32.mrb[0].mxu0
    %v7092 = vpop.f32.mrb[0].mxu0
    %v7093 = vadd.f32 0.0, %v7092
    %v7094 = vpop.f32.mrb[0].mxu0
    %7095 = vdwg.mxu0
    %v7096 = vld [vmem:[%s6] sm:$0x1]
    %v7097 = vld [vmem:[%s6 + $0x1] sm:$0x1]
    %v7098 = vadd.f32 %v6842, %v6845
    %v7099 = vadd.f32 %v7098, %v6850
    %v7100 = vadd.f32 %v7099, %v6853
    %v7101 = vadd.f32 %v7100, %v6858
    %v7102 = vadd.f32 %v7101, %v6861
    %v7103 = vadd.f32 %v7102, %v6866
    %v7104 = vadd.f32 %v7103, %v6869
    %v7105 = vadd.f32 %v7104, %v6874
    %v7106 = vadd.f32 %v7105, %v6877
    %v7107 = vadd.f32 %v7106, %v6882
    %v7108 = vadd.f32 %v7107, %v6885
    %v7109 = vadd.f32 %v7108, %v6890
    %v7110 = vadd.f32 %v7109, %v6893
    %v7111 = vadd.f32 %v7110, %v6898
    %v7112 = vadd.f32 %v7111, %v6901
    %v7113 = vadd.f32 %v7112, %v6906
    %v7114 = vadd.f32 %v7113, %v6909
    %v7115 = vadd.f32 %v7114, %v6914
    %v7116 = vadd.f32 %v7115, %v6917
    %v7117 = vadd.f32 %v7116, %v6922
    %v7118 = vadd.f32 %v7117, %v6925
    %v7119 = vadd.f32 %v7118, %v6930
    %v7120 = vadd.f32 %v7119, %v6933
    %v7121 = vadd.f32 %v7120, %v6938
    %v7122 = vadd.f32 %v7121, %v6941
    %v7123 = vadd.f32 %v7122, %v6946
    %v7124 = vadd.f32 %v7123, %v6949
    %v7125 = vadd.f32 %v7124, %v6954
    %v7126 = vadd.f32 %v7125, %v6957
    %v7127 = vadd.f32 %v7126, %v6962
    %v7128 = vadd.f32 %v7127, %v6965
    %v7129 = vadd.f32 %v7128, %v6970
    %v7130 = vadd.f32 %v7129, %v6973
    %v7131 = vadd.f32 %v7130, %v6978
    %v7132 = vadd.f32 %v7131, %v6981
    %v7133 = vadd.f32 %v7132, %v6986
    %v7134 = vadd.f32 %v7133, %v6989
    %v7135 = vadd.f32 %v7134, %v6994
    %v7136 = vadd.f32 %v7135, %v6997
    %v7137 = vadd.f32 %v7136, %v7002
    %v7138 = vadd.f32 %v7137, %v7005
    %v7139 = vadd.f32 %v7138, %v7010
    %v7140 = vadd.f32 %v7139, %v7013
    %v7141 = vadd.f32 %v7140, %v7018
    %v7142 = vadd.f32 %v7141, %v7021
    %v7143 = vadd.f32 %v7142, %v7026
    %v7144 = vadd.f32 %v7143, %v7029
    %v7145 = vadd.f32 %v7144, %v7034
    %v7146 = vadd.f32 %v7145, %v7037
    %v7147 = vadd.f32 %v7146, %v7042
    %v7148 = vadd.f32 %v7147, %v7045
    %v7149 = vadd.f32 %v7148, %v7050
    %v7150 = vadd.f32 %v7149, %v7053
    %v7151 = vadd.f32 %v7150, %v7058
    %v7152 = vadd.f32 %v7151, %v7061
    %v7153 = vadd.f32 %v7152, %v7066
    %v7154 = vadd.f32 %v7153, %v7069
    %v7155 = vadd.f32 %v7154, %v7074
    %v7156 = vadd.f32 %v7155, %v7077
    %v7157 = vadd.f32 %v7156, %v7082
    %v7158 = vadd.f32 %v7157, %v7085
    %v7159 = vadd.f32 %v7158, %v7090
    %v7160 = vadd.f32 %v7159, %v7093
    %v7161 = vrot.slane %v7160, 4
    %v7162 = vadd.f32 %v7160, %v7161
    %v7163 = vrot.slane %v7162, 2
    %v7164 = vadd.f32 %v7162, %v7163
    %v7165 = vrot.slane %v7164, 1
    %v7166 = vadd.f32 %v7164, %v7165
    %v7167 = vmul.f32 %v6842, %v6842
    %v7168 = vmul.f32 %v6845, %v6845
    %v7169 = vmul.f32 %v6850, %v6850
    %v7170 = vmul.f32 %v6853, %v6853
    %v7171 = vmul.f32 %v6858, %v6858
    %v7172 = vmul.f32 %v6861, %v6861
    %v7173 = vmul.f32 %v6866, %v6866
    %v7174 = vmul.f32 %v6869, %v6869
    %v7175 = vmul.f32 %v6874, %v6874
    %v7176 = vmul.f32 %v6877, %v6877
    %v7177 = vmul.f32 %v6882, %v6882
    %v7178 = vmul.f32 %v6885, %v6885
    %v7179 = vmul.f32 %v6890, %v6890
    %v7180 = vmul.f32 %v6893, %v6893
    %v7181 = vmul.f32 %v6898, %v6898
    %v7182 = vmul.f32 %v6901, %v6901
    %v7183 = vmul.f32 %v6906, %v6906
    %v7184 = vmul.f32 %v6909, %v6909
    %v7185 = vmul.f32 %v6914, %v6914
    %v7186 = vmul.f32 %v6917, %v6917
    %v7187 = vmul.f32 %v6922, %v6922
    %v7188 = vmul.f32 %v6925, %v6925
    %v7189 = vmul.f32 %v6930, %v6930
    %v7190 = vmul.f32 %v6933, %v6933
    %v7191 = vmul.f32 %v6938, %v6938
    %v7192 = vmul.f32 %v6941, %v6941
    %v7193 = vmul.f32 %v6946, %v6946
    %v7194 = vmul.f32 %v6949, %v6949
    %v7195 = vmul.f32 %v6954, %v6954
    %v7196 = vmul.f32 %v6957, %v6957
    %v7197 = vmul.f32 %v6962, %v6962
    %v7198 = vmul.f32 %v6965, %v6965
    %v7199 = vmul.f32 %v6970, %v6970
    %v7200 = vmul.f32 %v6973, %v6973
    %v7201 = vmul.f32 %v6978, %v6978
    %v7202 = vmul.f32 %v6981, %v6981
    %v7203 = vmul.f32 %v6986, %v6986
    %v7204 = vmul.f32 %v6989, %v6989
    %v7205 = vmul.f32 %v6994, %v6994
    %v7206 = vmul.f32 %v6997, %v6997
    %v7207 = vmul.f32 %v7002, %v7002
    %v7208 = vmul.f32 %v7005, %v7005
    %v7209 = vmul.f32 %v7010, %v7010
    %v7210 = vmul.f32 %v7013, %v7013
    %v7211 = vmul.f32 %v7018, %v7018
    %v7212 = vmul.f32 %v7021, %v7021
    %v7213 = vmul.f32 %v7026, %v7026
    %v7214 = vmul.f32 %v7029, %v7029
    %v7215 = vmul.f32 %v7034, %v7034
    %v7216 = vmul.f32 %v7037, %v7037
    %v7217 = vmul.f32 %v7042, %v7042
    %v7218 = vmul.f32 %v7045, %v7045
    %v7219 = vmul.f32 %v7050, %v7050
    %v7220 = vmul.f32 %v7053, %v7053
    %v7221 = vmul.f32 %v7058, %v7058
    %v7222 = vmul.f32 %v7061, %v7061
    %v7223 = vmul.f32 %v7066, %v7066
    %v7224 = vmul.f32 %v7069, %v7069
    %v7225 = vmul.f32 %v7074, %v7074
    %v7226 = vmul.f32 %v7077, %v7077
    %v7227 = vmul.f32 %v7082, %v7082
    %v7228 = vmul.f32 %v7085, %v7085
    %v7229 = vmul.f32 %v7090, %v7090
    %v7230 = vmul.f32 %v7093, %v7093
    %v7231 = vadd.f32 %v7167, %v7168
    %v7232 = vadd.f32 %v7231, %v7169
    %v7233 = vadd.f32 %v7232, %v7170
    %v7234 = vadd.f32 %v7233, %v7171
    %v7235 = vadd.f32 %v7234, %v7172
    %v7236 = vadd.f32 %v7235, %v7173
    %v7237 = vadd.f32 %v7236, %v7174
    %v7238 = vadd.f32 %v7237, %v7175
    %v7239 = vadd.f32 %v7238, %v7176
    %v7240 = vadd.f32 %v7239, %v7177
    %v7241 = vadd.f32 %v7240, %v7178
    %v7242 = vadd.f32 %v7241, %v7179
    %v7243 = vadd.f32 %v7242, %v7180
    %v7244 = vadd.f32 %v7243, %v7181
    %v7245 = vadd.f32 %v7244, %v7182
    %v7246 = vadd.f32 %v7245, %v7183
    %v7247 = vadd.f32 %v7246, %v7184
    %v7248 = vadd.f32 %v7247, %v7185
    %v7249 = vadd.f32 %v7248, %v7186
    %v7250 = vadd.f32 %v7249, %v7187
    %v7251 = vadd.f32 %v7250, %v7188
    %v7252 = vadd.f32 %v7251, %v7189
    %v7253 = vadd.f32 %v7252, %v7190
    %v7254 = vadd.f32 %v7253, %v7191
    %v7255 = vadd.f32 %v7254, %v7192
    %v7256 = vadd.f32 %v7255, %v7193
    %v7257 = vadd.f32 %v7256, %v7194
    %v7258 = vadd.f32 %v7257, %v7195
    %v7259 = vadd.f32 %v7258, %v7196
    %v7260 = vadd.f32 %v7259, %v7197
    %v7261 = vadd.f32 %v7260, %v7198
    %v7262 = vadd.f32 %v7261, %v7199
    %v7263 = vadd.f32 %v7262, %v7200
    %v7264 = vadd.f32 %v7263, %v7201
    %v7265 = vadd.f32 %v7264, %v7202
    %v7266 = vadd.f32 %v7265, %v7203
    %v7267 = vadd.f32 %v7266, %v7204
    %v7268 = vadd.f32 %v7267, %v7205
    %v7269 = vadd.f32 %v7268, %v7206
    %v7270 = vadd.f32 %v7269, %v7207
    %v7271 = vadd.f32 %v7270, %v7208
    %v7272 = vadd.f32 %v7271, %v7209
    %v7273 = vadd.f32 %v7272, %v7210
    %v7274 = vadd.f32 %v7273, %v7211
    %v7275 = vadd.f32 %v7274, %v7212
    %v7276 = vadd.f32 %v7275, %v7213
    %v7277 = vadd.f32 %v7276, %v7214
    %v7278 = vadd.f32 %v7277, %v7215
    %v7279 = vadd.f32 %v7278, %v7216
    %v7280 = vadd.f32 %v7279, %v7217
    %v7281 = vadd.f32 %v7280, %v7218
    %v7282 = vadd.f32 %v7281, %v7219
    %v7283 = vadd.f32 %v7282, %v7220
    %v7284 = vadd.f32 %v7283, %v7221
    %v7285 = vadd.f32 %v7284, %v7222
    %v7286 = vadd.f32 %v7285, %v7223
    %v7287 = vadd.f32 %v7286, %v7224
    %v7288 = vadd.f32 %v7287, %v7225
    %v7289 = vadd.f32 %v7288, %v7226
    %v7290 = vadd.f32 %v7289, %v7227
    %v7291 = vadd.f32 %v7290, %v7228
    %v7292 = vadd.f32 %v7291, %v7229
    %v7293 = vadd.f32 %v7292, %v7230
    %v7294 = vrot.slane %v7293, 4
    %v7295 = vadd.f32 %v7293, %v7294
    %v7296 = vrot.slane %v7295, 2
    %v7297 = vadd.f32 %v7295, %v7296
    %v7298 = vrot.slane %v7297, 1
    %v7299 = vadd.f32 %v7297, %v7298
    %v7300 = vmul.f32 %v7166, %v838
    %v7301 = vmul.f32 %v7299, %v838
    %v7302 = vmul.f32 %v7300, %v7300
    %v7303 = vsub.f32 %v7301, %v7302
    %v7304 = vadd.f32 %v7303, 1e-05
    %v7305 = vrsqrt.pop %v7304
    %v7306 = vmul.f32 %v7096, %v7305
    %v7307 = vmul.f32 %v7300, %v7306
    %v7308 = vsub.f32 %v7097, %v7307
    %v7309 = vlaneseq
    %v7310 = vshrl.u32 %v7309, 7
    %v7311 = vsub.s32 0, %v7310
    %v7312 = vrot.slane %v7306, %v7311
    %v7313 = vmul.f32 %v6842, %v7312
    %v7314 = vmul.f32 %v6845, %v7312
    %v7315 = vmul.f32 %v6850, %v7312
    %v7316 = vmul.f32 %v6853, %v7312
    %v7317 = vmul.f32 %v6858, %v7312
    %v7318 = vmul.f32 %v6861, %v7312
    %v7319 = vmul.f32 %v6866, %v7312
    %v7320 = vmul.f32 %v6869, %v7312
    %v7321 = vmul.f32 %v6874, %v7312
    %v7322 = vmul.f32 %v6877, %v7312
    %v7323 = vmul.f32 %v6882, %v7312
    %v7324 = vmul.f32 %v6885, %v7312
    %v7325 = vmul.f32 %v6890, %v7312
    %v7326 = vmul.f32 %v6893, %v7312
    %v7327 = vmul.f32 %v6898, %v7312
    %v7328 = vmul.f32 %v6901, %v7312
    %v7329 = vmul.f32 %v6906, %v7312
    %v7330 = vmul.f32 %v6909, %v7312
    %v7331 = vmul.f32 %v6914, %v7312
    %v7332 = vmul.f32 %v6917, %v7312
    %v7333 = vmul.f32 %v6922, %v7312
    %v7334 = vmul.f32 %v6925, %v7312
    %v7335 = vmul.f32 %v6930, %v7312
    %v7336 = vmul.f32 %v6933, %v7312
    %v7337 = vmul.f32 %v6938, %v7312
    %v7338 = vmul.f32 %v6941, %v7312
    %v7339 = vmul.f32 %v6946, %v7312
    %v7340 = vmul.f32 %v6949, %v7312
    %v7341 = vmul.f32 %v6954, %v7312
    %v7342 = vmul.f32 %v6957, %v7312
    %v7343 = vmul.f32 %v6962, %v7312
    %v7344 = vmul.f32 %v6965, %v7312
    %v7345 = vmul.f32 %v6970, %v7312
    %v7346 = vmul.f32 %v6973, %v7312
    %v7347 = vmul.f32 %v6978, %v7312
    %v7348 = vmul.f32 %v6981, %v7312
    %v7349 = vmul.f32 %v6986, %v7312
    %v7350 = vmul.f32 %v6989, %v7312
    %v7351 = vmul.f32 %v6994, %v7312
    %v7352 = vmul.f32 %v6997, %v7312
    %v7353 = vmul.f32 %v7002, %v7312
    %v7354 = vmul.f32 %v7005, %v7312
    %v7355 = vmul.f32 %v7010, %v7312
    %v7356 = vmul.f32 %v7013, %v7312
    %v7357 = vmul.f32 %v7018, %v7312
    %v7358 = vmul.f32 %v7021, %v7312
    %v7359 = vmul.f32 %v7026, %v7312
    %v7360 = vmul.f32 %v7029, %v7312
    %v7361 = vmul.f32 %v7034, %v7312
    %v7362 = vmul.f32 %v7037, %v7312
    %v7363 = vmul.f32 %v7042, %v7312
    %v7364 = vmul.f32 %v7045, %v7312
    %v7365 = vmul.f32 %v7050, %v7312
    %v7366 = vmul.f32 %v7053, %v7312
    %v7367 = vmul.f32 %v7058, %v7312
    %v7368 = vmul.f32 %v7061, %v7312
    %v7369 = vmul.f32 %v7066, %v7312
    %v7370 = vmul.f32 %v7069, %v7312
    %v7371 = vmul.f32 %v7074, %v7312
    %v7372 = vmul.f32 %v7077, %v7312
    %v7373 = vmul.f32 %v7082, %v7312
    %v7374 = vmul.f32 %v7085, %v7312
    %v7375 = vmul.f32 %v7090, %v7312
    %v7376 = vmul.f32 %v7093, %v7312
    %v7377 = vlaneseq
    %v7378 = vshrl.u32 %v7377, 7
    %v7379 = vsub.s32 0, %v7378
    %v7380 = vrot.slane %v7308, %v7379
    %v7381 = vadd.f32 %v7313, %v7380
    %v7382 = vadd.f32 %v7314, %v7380
    %v7383 = vadd.f32 %v7315, %v7380
    %v7384 = vadd.f32 %v7316, %v7380
    %v7385 = vadd.f32 %v7317, %v7380
    %v7386 = vadd.f32 %v7318, %v7380
    %v7387 = vadd.f32 %v7319, %v7380
    %v7388 = vadd.f32 %v7320, %v7380
    %v7389 = vadd.f32 %v7321, %v7380
    %v7390 = vadd.f32 %v7322, %v7380
    %v7391 = vadd.f32 %v7323, %v7380
    %v7392 = vadd.f32 %v7324, %v7380
    %v7393 = vadd.f32 %v7325, %v7380
    %v7394 = vadd.f32 %v7326, %v7380
    %v7395 = vadd.f32 %v7327, %v7380
    %v7396 = vadd.f32 %v7328, %v7380
    %v7397 = vadd.f32 %v7329, %v7380
    %v7398 = vadd.f32 %v7330, %v7380
    %v7399 = vadd.f32 %v7331, %v7380
    %v7400 = vadd.f32 %v7332, %v7380
    %v7401 = vadd.f32 %v7333, %v7380
    %v7402 = vadd.f32 %v7334, %v7380
    %v7403 = vadd.f32 %v7335, %v7380
    %v7404 = vadd.f32 %v7336, %v7380
    %v7405 = vadd.f32 %v7337, %v7380
    %v7406 = vadd.f32 %v7338, %v7380
    %v7407 = vadd.f32 %v7339, %v7380
    %v7408 = vadd.f32 %v7340, %v7380
    %v7409 = vadd.f32 %v7341, %v7380
    %v7410 = vadd.f32 %v7342, %v7380
    %v7411 = vadd.f32 %v7343, %v7380
    %v7412 = vadd.f32 %v7344, %v7380
    %v7413 = vadd.f32 %v7345, %v7380
    %v7414 = vadd.f32 %v7346, %v7380
    %v7415 = vadd.f32 %v7347, %v7380
    %v7416 = vadd.f32 %v7348, %v7380
    %v7417 = vadd.f32 %v7349, %v7380
    %v7418 = vadd.f32 %v7350, %v7380
    %v7419 = vadd.f32 %v7351, %v7380
    %v7420 = vadd.f32 %v7352, %v7380
    %v7421 = vadd.f32 %v7353, %v7380
    %v7422 = vadd.f32 %v7354, %v7380
    %v7423 = vadd.f32 %v7355, %v7380
    %v7424 = vadd.f32 %v7356, %v7380
    %v7425 = vadd.f32 %v7357, %v7380
    %v7426 = vadd.f32 %v7358, %v7380
    %v7427 = vadd.f32 %v7359, %v7380
    %v7428 = vadd.f32 %v7360, %v7380
    %v7429 = vadd.f32 %v7361, %v7380
    %v7430 = vadd.f32 %v7362, %v7380
    %v7431 = vadd.f32 %v7363, %v7380
    %v7432 = vadd.f32 %v7364, %v7380
    %v7433 = vadd.f32 %v7365, %v7380
    %v7434 = vadd.f32 %v7366, %v7380
    %v7435 = vadd.f32 %v7367, %v7380
    %v7436 = vadd.f32 %v7368, %v7380
    %v7437 = vadd.f32 %v7369, %v7380
    %v7438 = vadd.f32 %v7370, %v7380
    %v7439 = vadd.f32 %v7371, %v7380
    %v7440 = vadd.f32 %v7372, %v7380
    %v7441 = vadd.f32 %v7373, %v7380
    %v7442 = vadd.f32 %v7374, %v7380
    %v7443 = vadd.f32 %v7375, %v7380
    %v7444 = vadd.f32 %v7376, %v7380
    %v7445 = vadd.f32 %v7381, %v56
    %v7446 = vadd.f32 %v7382, %v57
    %v7447 = vadd.f32 %v7383, %v58
    %v7448 = vadd.f32 %v7384, %v59
    %v7449 = vadd.f32 %v7385, %v60
    %v7450 = vadd.f32 %v7386, %v61
    %v7451 = vadd.f32 %v7387, %v62
    %v7452 = vadd.f32 %v7388, %v63
    %v7453 = vadd.f32 %v7389, %v64
    %v7454 = vadd.f32 %v7390, %v65
    %v7455 = vadd.f32 %v7391, %v66
    %v7456 = vadd.f32 %v7392, %v67
    %v7457 = vadd.f32 %v7393, %v68
    %v7458 = vadd.f32 %v7394, %v69
    %v7459 = vadd.f32 %v7395, %v70
    %v7460 = vadd.f32 %v7396, %v71
    %v7461 = vadd.f32 %v7397, %v72
    %v7462 = vadd.f32 %v7398, %v73
    %v7463 = vadd.f32 %v7399, %v74
    %v7464 = vadd.f32 %v7400, %v75
    %v7465 = vadd.f32 %v7401, %v76
    %v7466 = vadd.f32 %v7402, %v77
    %v7467 = vadd.f32 %v7403, %v78
    %v7468 = vadd.f32 %v7404, %v79
    %v7469 = vadd.f32 %v7405, %v80
    %v7470 = vadd.f32 %v7406, %v81
    %v7471 = vadd.f32 %v7407, %v82
    %v7472 = vadd.f32 %v7408, %v83
    %v7473 = vadd.f32 %v7409, %v84
    %v7474 = vadd.f32 %v7410, %v85
    %v7475 = vadd.f32 %v7411, %v86
    %v7476 = vadd.f32 %v7412, %v87
    %v7477 = vadd.f32 %v7413, %v88
    %v7478 = vadd.f32 %v7414, %v89
    %v7479 = vadd.f32 %v7415, %v90
    %v7480 = vadd.f32 %v7416, %v91
    %v7481 = vadd.f32 %v7417, %v92
    %v7482 = vadd.f32 %v7418, %v93
    %v7483 = vadd.f32 %v7419, %v94
    %v7484 = vadd.f32 %v7420, %v95
    %v7485 = vadd.f32 %v7421, %v96
    %v7486 = vadd.f32 %v7422, %v97
    %v7487 = vadd.f32 %v7423, %v98
    %v7488 = vadd.f32 %v7424, %v99
    %v7489 = vadd.f32 %v7425, %v100
    %v7490 = vadd.f32 %v7426, %v101
    %v7491 = vadd.f32 %v7427, %v102
    %v7492 = vadd.f32 %v7428, %v103
    %v7493 = vadd.f32 %v7429, %v104
    %v7494 = vadd.f32 %v7430, %v105
    %v7495 = vadd.f32 %v7431, %v106
    %v7496 = vadd.f32 %v7432, %v107
    %v7497 = vadd.f32 %v7433, %v108
    %v7498 = vadd.f32 %v7434, %v109
    %v7499 = vadd.f32 %v7435, %v110
    %v7500 = vadd.f32 %v7436, %v111
    %v7501 = vadd.f32 %v7437, %v112
    %v7502 = vadd.f32 %v7438, %v113
    %v7503 = vadd.f32 %v7439, %v114
    %v7504 = vadd.f32 %v7440, %v115
    %v7505 = vadd.f32 %v7441, %v116
    %v7506 = vadd.f32 %v7442, %v117
    %v7507 = vadd.f32 %v7443, %v118
    %v7508 = vadd.f32 %v7444, %v119
    %v7509 = vmax.f32 %v7445, 0.0
    %v7510 = vmax.f32 %v7446, 0.0
    %v7511 = vmax.f32 %v7447, 0.0
    %v7512 = vmax.f32 %v7448, 0.0
    %v7513 = vmax.f32 %v7449, 0.0
    %v7514 = vmax.f32 %v7450, 0.0
    %v7515 = vmax.f32 %v7451, 0.0
    %v7516 = vmax.f32 %v7452, 0.0
    %v7517 = vmax.f32 %v7453, 0.0
    %v7518 = vmax.f32 %v7454, 0.0
    %v7519 = vmax.f32 %v7455, 0.0
    %v7520 = vmax.f32 %v7456, 0.0
    %v7521 = vmax.f32 %v7457, 0.0
    %v7522 = vmax.f32 %v7458, 0.0
    %v7523 = vmax.f32 %v7459, 0.0
    %v7524 = vmax.f32 %v7460, 0.0
    %v7525 = vmax.f32 %v7461, 0.0
    %v7526 = vmax.f32 %v7462, 0.0
    %v7527 = vmax.f32 %v7463, 0.0
    %v7528 = vmax.f32 %v7464, 0.0
    %v7529 = vmax.f32 %v7465, 0.0
    %v7530 = vmax.f32 %v7466, 0.0
    %v7531 = vmax.f32 %v7467, 0.0
    %v7532 = vmax.f32 %v7468, 0.0
    %v7533 = vmax.f32 %v7469, 0.0
    %v7534 = vmax.f32 %v7470, 0.0
    %v7535 = vmax.f32 %v7471, 0.0
    %v7536 = vmax.f32 %v7472, 0.0
    %v7537 = vmax.f32 %v7473, 0.0
    %v7538 = vmax.f32 %v7474, 0.0
    %v7539 = vmax.f32 %v7475, 0.0
    %v7540 = vmax.f32 %v7476, 0.0
    %v7541 = vmax.f32 %v7477, 0.0
    %v7542 = vmax.f32 %v7478, 0.0
    %v7543 = vmax.f32 %v7479, 0.0
    %v7544 = vmax.f32 %v7480, 0.0
    %v7545 = vmax.f32 %v7481, 0.0
    %v7546 = vmax.f32 %v7482, 0.0
    %v7547 = vmax.f32 %v7483, 0.0
    %v7548 = vmax.f32 %v7484, 0.0
    %v7549 = vmax.f32 %v7485, 0.0
    %v7550 = vmax.f32 %v7486, 0.0
    %v7551 = vmax.f32 %v7487, 0.0
    %v7552 = vmax.f32 %v7488, 0.0
    %v7553 = vmax.f32 %v7489, 0.0
    %v7554 = vmax.f32 %v7490, 0.0
    %v7555 = vmax.f32 %v7491, 0.0
    %v7556 = vmax.f32 %v7492, 0.0
    %v7557 = vmax.f32 %v7493, 0.0
    %v7558 = vmax.f32 %v7494, 0.0
    %v7559 = vmax.f32 %v7495, 0.0
    %v7560 = vmax.f32 %v7496, 0.0
    %v7561 = vmax.f32 %v7497, 0.0
    %v7562 = vmax.f32 %v7498, 0.0
    %v7563 = vmax.f32 %v7499, 0.0
    %v7564 = vmax.f32 %v7500, 0.0
    %v7565 = vmax.f32 %v7501, 0.0
    %v7566 = vmax.f32 %v7502, 0.0
    %v7567 = vmax.f32 %v7503, 0.0
    %v7568 = vmax.f32 %v7504, 0.0
    %v7569 = vmax.f32 %v7505, 0.0
    %v7570 = vmax.f32 %v7506, 0.0
    %v7571 = vmax.f32 %v7507, 0.0
    %v7572 = vmax.f32 %v7508, 0.0
    %7573 = vst [vmem:[#allocation8] sm:$0xff] %v7509
    %7574 = vst [vmem:[#allocation8 + $0x8] sm:$0xff] %v7510
    %7575 = vst [vmem:[#allocation8 + $0x10] sm:$0xff] %v7511
    %7576 = vst [vmem:[#allocation8 + $0x18] sm:$0xff] %v7512
    %7577 = vst [vmem:[#allocation8 + $0x20] sm:$0xff] %v7513
    %7578 = vst [vmem:[#allocation8 + $0x28] sm:$0xff] %v7514
    %7579 = vst [vmem:[#allocation8 + $0x30] sm:$0xff] %v7515
    %7580 = vst [vmem:[#allocation8 + $0x38] sm:$0xff] %v7516
    %7581 = vst [vmem:[#allocation8 + $0x40] sm:$0xff] %v7517
    %7582 = vst [vmem:[#allocation8 + $0x48] sm:$0xff] %v7518
    %7583 = vst [vmem:[#allocation8 + $0x50] sm:$0xff] %v7519
    %7584 = vst [vmem:[#allocation8 + $0x58] sm:$0xff] %v7520
    %7585 = vst [vmem:[#allocation8 + $0x60] sm:$0xff] %v7521
    %7586 = vst [vmem:[#allocation8 + $0x68] sm:$0xff] %v7522
    %7587 = vst [vmem:[#allocation8 + $0x70] sm:$0xff] %v7523
    %7588 = vst [vmem:[#allocation8 + $0x78] sm:$0xff] %v7524
    %7589 = vst [vmem:[#allocation8 + $0x80] sm:$0xff] %v7525
    %7590 = vst [vmem:[#allocation8 + $0x88] sm:$0xff] %v7526
    %7591 = vst [vmem:[#allocation8 + $0x90] sm:$0xff] %v7527
    %7592 = vst [vmem:[#allocation8 + $0x98] sm:$0xff] %v7528
    %7593 = vst [vmem:[#allocation8 + $0xa0] sm:$0xff] %v7529
    %7594 = vst [vmem:[#allocation8 + $0xa8] sm:$0xff] %v7530
    %7595 = vst [vmem:[#allocation8 + $0xb0] sm:$0xff] %v7531
    %7596 = vst [vmem:[#allocation8 + $0xb8] sm:$0xff] %v7532
    %7597 = vst [vmem:[#allocation8 + $0xc0] sm:$0xff] %v7533
    %7598 = vst [vmem:[#allocation8 + $0xc8] sm:$0xff] %v7534
    %7599 = vst [vmem:[#allocation8 + $0xd0] sm:$0xff] %v7535
    %7600 = vst [vmem:[#allocation8 + $0xd8] sm:$0xff] %v7536
    %7601 = vst [vmem:[#allocation8 + $0xe0] sm:$0xff] %v7537
    %7602 = vst [vmem:[#allocation8 + $0xe8] sm:$0xff] %v7538
    %7603 = vst [vmem:[#allocation8 + $0xf0] sm:$0xff] %v7539
    %7604 = vst [vmem:[#allocation8 + $0xf8] sm:$0xff] %v7540
    %7605 = vst [vmem:[#allocation8 + $0x100] sm:$0xff] %v7541
    %7606 = vst [vmem:[#allocation8 + $0x108] sm:$0xff] %v7542
    %7607 = vst [vmem:[#allocation8 + $0x110] sm:$0xff] %v7543
    %7608 = vst [vmem:[#allocation8 + $0x118] sm:$0xff] %v7544
    %7609 = vst [vmem:[#allocation8 + $0x120] sm:$0xff] %v7545
    %7610 = vst [vmem:[#allocation8 + $0x128] sm:$0xff] %v7546
    %7611 = vst [vmem:[#allocation8 + $0x130] sm:$0xff] %v7547
    %7612 = vst [vmem:[#allocation8 + $0x138] sm:$0xff] %v7548
    %7613 = vst [vmem:[#allocation8 + $0x140] sm:$0xff] %v7549
    %7614 = vst [vmem:[#allocation8 + $0x148] sm:$0xff] %v7550
    %7615 = vst [vmem:[#allocation8 + $0x150] sm:$0xff] %v7551
    %7616 = vst [vmem:[#allocation8 + $0x158] sm:$0xff] %v7552
    %7617 = vst [vmem:[#allocation8 + $0x160] sm:$0xff] %v7553
    %7618 = vst [vmem:[#allocation8 + $0x168] sm:$0xff] %v7554
    %7619 = vst [vmem:[#allocation8 + $0x170] sm:$0xff] %v7555
    %7620 = vst [vmem:[#allocation8 + $0x178] sm:$0xff] %v7556
    %7621 = vst [vmem:[#allocation8 + $0x180] sm:$0xff] %v7557
    %7622 = vst [vmem:[#allocation8 + $0x188] sm:$0xff] %v7558
    %7623 = vst [vmem:[#allocation8 + $0x190] sm:$0xff] %v7559
    %7624 = vst [vmem:[#allocation8 + $0x198] sm:$0xff] %v7560
    %7625 = vst [vmem:[#allocation8 + $0x1a0] sm:$0xff] %v7561
    %7626 = vst [vmem:[#allocation8 + $0x1a8] sm:$0xff] %v7562
    %7627 = vst [vmem:[#allocation8 + $0x1b0] sm:$0xff] %v7563
    %7628 = vst [vmem:[#allocation8 + $0x1b8] sm:$0xff] %v7564
    %7629 = vst [vmem:[#allocation8 + $0x1c0] sm:$0xff] %v7565
    %7630 = vst [vmem:[#allocation8 + $0x1c8] sm:$0xff] %v7566
    %7631 = vst [vmem:[#allocation8 + $0x1d0] sm:$0xff] %v7567
    %7632 = vst [vmem:[#allocation8 + $0x1d8] sm:$0xff] %v7568
    %7633 = vst [vmem:[#allocation8 + $0x1e0] sm:$0xff] %v7569
    %7634 = vst [vmem:[#allocation8 + $0x1e8] sm:$0xff] %v7570
    %7635 = vst [vmem:[#allocation8 + $0x1f0] sm:$0xff] %v7571
    %7636 = vst [vmem:[#allocation8 + $0x1f8] sm:$0xff] %v7572
    // Predicated region
    $region38: #{tpu_custom_call.1} parent=1 // pred_check
      _
    $region39: #{tpu_custom_call.1} parent=1 // pred_check_branch
      %7638 = sbr.rel (0) target = $region41
    $region40: #{tpu_custom_call.1} parent=1 // pred_region
      %s7640 = ssub.s32 8192, 8192
      %7641 = vsyncadd [#allocation5], %s7640
      %s7642 = sshll.u32 [#allocation8], 4
      %s7643 = int_to_ptr.vmem [resolvable:$true] %s7642
      %7648 = dma.vmem_to_hbm [thread:$0]  %s7643, 8192, %s7, [#allocation5], 128, 128, 8
    $region41: #{tpu_custom_call.1} parent=1 // pred_fallthru
      _
    // Predicated region
    $region42: #{tpu_custom_call.1} parent=1 // pred_check
      _
    $region43: #{tpu_custom_call.1} parent=1 // pred_check_branch
      %7650 = sbr.rel (0) target = $region45
    $region44: #{tpu_custom_call.1} parent=1 // pred_region
      %7651 = dma.done [#allocation5], 8192
    $region45: #{tpu_custom_call.1} parent=1 // pred_fallthru
      _
    %7652 = vsyncpa [#allocation4], 1
    %7653 = vsyncpa [#allocation7], 1
    %7654 = vsyncpa [#allocation5], 1

</llo_original>
